<compile_context>
chip_gen: v5e
topology: v5e:2x2
jax: 0.10.0
libtpu: 0.0.40
codegen_flags: <defaults>
</compile_context>

<pallas_src>
import functools

import jax
import jax.numpy as jnp
from jax import lax
from jax.experimental import pallas as pl
from jax.experimental.pallas import tpu as pltpu


# --------------------------- in-kernel helpers ------------------------------

_SQRT2_INV = 0.7071067811865476


def _erf(x):
    # Abramowitz & Stegun 7.1.26 rational approximation (|err| < 1.5e-7).
    # TODO(synk): PyTorch nn.GELU uses exact erf; Mosaic has no guaranteed erf
    # lowering, so we use this elementwise approximation in-kernel.
    p = 0.3275911
    a1, a2, a3, a4, a5 = (0.254829592, -0.284496736, 1.421413741,
                          -1.453152027, 1.061405429)
    sgn = jnp.where(x >= 0.0, 1.0, -1.0)
    ax = jnp.abs(x)
    t = 1.0 / (1.0 + p * ax)
    poly = ((((a5 * t + a4) * t + a3) * t + a2) * t + a1) * t
    return sgn * (1.0 - poly * jnp.exp(-ax * ax))


def _gelu(x):
    return 0.5 * x * (1.0 + _erf(x * _SQRT2_INV))


def stage_kernel_sizes(kernel_size):
    k = kernel_size
    return ((k, k), (2 * k - 1, k), (k, 2 * k - 1), (k, k), (k, k))


# ----------------------- kernel 1/3: 1x1 conv as matmul ----------------------
# Channels-major layout: x (C_in, M) with M = N*H*W pixels on lanes, so the
# output (C_out, M) is written with full-lane (unmasked) stores.

def _matmul_bias_kernel(x_ref, w_ref, b_ref, o_ref):
    o_ref[...] = (jnp.dot(w_ref[...], x_ref[...],
                          preferred_element_type=jnp.float32) + b_ref[...])


def _pick_col_tile(n_cols):
    for cand in (1024, 512, 256, 128):
        if n_cols % cand == 0:
            return cand
    return n_cols


def conv1x1_cm(x_cm, w, b):
    # x_cm: (C_in, M); w: (C_out, C_in); b: (C_out, 1) -> (C_out, M)
    c_in, m = x_cm.shape
    c_out = w.shape[0]
    tn = _pick_col_tile(m)
    return pl.pallas_call(
        _matmul_bias_kernel,
        out_shape=jax.ShapeDtypeStruct((c_out, m), jnp.float32),
        grid=(m // tn,),
        in_specs=[
            pl.BlockSpec((c_in, tn), lambda j: (0, j)),
            pl.BlockSpec((c_out, c_in), lambda j: (0, 0)),
            pl.BlockSpec((c_out, 1), lambda j: (0, 0)),
        ],
        out_specs=pl.BlockSpec((c_out, tn), lambda j: (0, j)),
        compiler_params=pltpu.CompilerParams(
            dimension_semantics=("parallel",),
            vmem_limit_bytes=32 * 1024 * 1024),
    )(x_cm, w, b)


# -------------- kernel 2/3: fused depthwise chain (+adds +GELU) --------------
# Activation layout per batch element: (H, W*Cg) with lane index l = w*Cg + c,
# so per-channel weights broadcast along lanes as a pre-tiled (kh*kw, W*Cg)
# matrix.  'same' zero padding is realised with a zero-bordered VMEM scratch;
# every stage overwrites the full interior so the border stays zero.

def _make_dwchain_kernel(h, w, cg, ks, pad):
    wl = w * cg

    def dwconv(scr_ref, u, w_ref, b_ref, kh, kw):
        ph, pw = (kh - 1) // 2, (kw - 1) // 2
        wv = w_ref[...]                     # (kh*kw, W*Cg), lane-tiled weights
        bv = b_ref[...]                     # (1, W*Cg)
        scr_ref[pl.ds(pad, h), pl.ds(pad * cg, wl)] = u
        acc = jnp.zeros((h, wl), jnp.float32)
        for di in range(kh):
            for dj in range(kw):
                r0 = (pad - ph) + di
                c0 = ((pad - pw) + dj) * cg
                acc = acc + scr_ref[pl.ds(r0, h), pl.ds(c0, wl)] * wv[di * kw + dj]
        return acc + bv

    def kernel(y0_ref, y1_ref, y2_ref, y3_ref,
               w1_ref, b1_ref, w2_ref, b2_ref, w3_ref, b3_ref,
               w4a_ref, b4a_ref, w4b_ref, b4b_ref,
               o1_ref, o2_ref, o3_ref, o4_ref, scr_ref):
        # zero the padded scratch once per program; only the interior is
        # rewritten afterwards, so the zero border provides the 'same' padding.
        scr_ref[...] = jnp.zeros_like(scr_ref)
        s1 = dwconv(scr_ref, y0_ref[0], w1_ref, b1_ref, *ks[0])
        s2 = dwconv(scr_ref, y1_ref[0] + s1, w2_ref, b2_ref, *ks[1])
        s3 = dwconv(scr_ref, y2_ref[0] + s2, w3_ref, b3_ref, *ks[2])
        s4a = dwconv(scr_ref, y3_ref[0] + s3, w4a_ref, b4a_ref, *ks[3])
        s4 = dwconv(scr_ref, s4a, w4b_ref, b4b_ref, *ks[4])
        # GELU fused here (it feeds conv1x1_2 directly).
        o1_ref[0] = _gelu(s1)
        o2_ref[0] = _gelu(s2)
        o3_ref[0] = _gelu(s3)
        o4_ref[0] = _gelu(s4)

    return kernel


def dwchain(y_chunks, dw_lane, ks, h, w, cg):
    n = y_chunks[0].shape[0]
    wl = w * cg
    pad = max(max((kh - 1) // 2, (kw - 1) // 2) for kh, kw in ks)
    kernel = _make_dwchain_kernel(h, w, cg, ks, pad)

    act_spec = pl.BlockSpec((1, h, wl), lambda b: (b, 0, 0))
    ins = list(y_chunks)
    in_specs = [act_spec] * 4
    for (w_lane, b_lane) in dw_lane:
        ins += [w_lane, b_lane]
        in_specs += [pl.BlockSpec(w_lane.shape, lambda b: (0, 0)),
                     pl.BlockSpec(b_lane.shape, lambda b: (0, 0))]

    out_sds = jax.ShapeDtypeStruct((n, h, wl), jnp.float32)
    return pl.pallas_call(
        kernel,
        out_shape=(out_sds,) * 4,
        grid=(n,),
        in_specs=in_specs,
        out_specs=[act_spec] * 4,
        scratch_shapes=[pltpu.VMEM((h + 2 * pad, (w + 2 * pad) * cg),
                                   jnp.float32)],
        compiler_params=pltpu.CompilerParams(
            dimension_semantics=("parallel",),
            vmem_limit_bytes=32 * 1024 * 1024),
    )(*ins)


# --------------------------------- forward ----------------------------------

@functools.partial(jax.jit, static_argnames=("kernel_size",))
def dconv_forward(x_nchw, params, kernel_size=3):
    n, c, h, w = x_nchw.shape
    assert c % 4 == 0, "in_dim must be divisible by 4"
    cg = c // 4
    wl = w * cg
    m = n * h * w
    ks = stage_kernel_sizes(kernel_size)
    x = x_nchw.astype(jnp.float32)

    # conv1 (1x1): channels-major matmul, pixels on lanes (lane-dense output).
    x_cm = jnp.transpose(x, (1, 0, 2, 3)).reshape(c, m)
    y_cm = conv1x1_cm(x_cm, params["conv1_w"], params["conv1_b"].reshape(c, 1))

    # chunk along channels and switch to the merged (W*Cg) lane layout.
    y_cl = jnp.transpose(y_cm.reshape(c, n, h, w), (1, 2, 3, 0))   # (N,H,W,C)
    y_chunks = [y_cl[..., a * cg:(a + 1) * cg].reshape(n, h, wl)
                for a in range(4)]

    # lane-tile the depthwise weights/biases: lane l holds (w=l//Cg, ch=l%Cg).
    dw_lane = []
    for (wt, bt), (kh, kw) in zip(params["dw"], ks):
        w_lane = jnp.tile(wt.reshape(cg, kh * kw).T, (1, w))       # (kh*kw, W*Cg)
        b_lane = jnp.tile(bt, (w,)).reshape(1, wl)                 # (1, W*Cg)
        dw_lane.append((w_lane, b_lane))

    # fused depthwise chain + residual adds + GELU (single pallas_call).
    outs = dwchain(y_chunks, dw_lane, ks, h, w, cg)

    # cat([s1..s4], dim=C) back to channels-major (C, M).
    g_cm = jnp.concatenate(
        [jnp.transpose(o.reshape(n, h, w, cg), (3, 0, 1, 2)).reshape(cg, m)
         for o in outs], axis=0)

    # conv1x1_2 (1x1): lane-dense matmul.
    out_cm = conv1x1_cm(g_cm, params["conv1x1_2_w"],
                        params["conv1x1_2_b"].reshape(c, 1))
    return jnp.transpose(out_cm.reshape(c, n, h, w), (1, 0, 2, 3))  # NCHW


# ----------------------------- params / reference ----------------------------

def init_params(key, c, kernel_size):
    cg = c // 4
    ks = stage_kernel_sizes(kernel_size)
    keys = iter(jax.random.split(key, 4 + 2 * len(ks)))
    p = {
        "conv1_w": jax.random.normal(next(keys), (c, c), jnp.float32) * 0.1,
        "conv1_b": jax.random.normal(next(keys), (c,), jnp.float32) * 0.01,
        "conv1x1_2_w": jax.random.normal(next(keys), (c, c), jnp.float32) * 0.1,
        "conv1x1_2_b": jax.random.normal(next(keys), (c,), jnp.float32) * 0.01,
        "dw": [],
    }
    for (kh, kw) in ks:
        wt = jax.random.normal(next(keys), (cg, kh, kw), jnp.float32) * 0.1
        bt = jax.random.normal(next(keys), (cg,), jnp.float32) * 0.01
        p["dw"].append((wt, bt))
    return p


def _reference_forward(x, p):
    # pure-JAX (XLA conv) reference with identical semantics, for a smoke check
    c = x.shape[1]
    cg = c // 4
    dn = ("NCHW", "OIHW", "NCHW")

    def conv1x1(u, w, b):
        return lax.conv_general_dilated(
            u, w.reshape(c, c, 1, 1), (1, 1), "VALID",
            dimension_numbers=dn) + b.reshape(1, c, 1, 1)

    def dwconv(u, w, b):
        kh, kw = w.shape[-2:]
        ph, pw = (kh - 1) // 2, (kw - 1) // 2
        return lax.conv_general_dilated(
            u, w.reshape(cg, 1, kh, kw), (1, 1), [(ph, ph), (pw, pw)],
            dimension_numbers=dn,
            feature_group_count=cg) + b.reshape(1, cg, 1, 1)

    y = conv1x1(x, p["conv1_w"], p["conv1_b"])
    y0, y1, y2, y3 = jnp.split(y, 4, axis=1)
    (w1, b1), (w2, b2), (w3, b3), (w4a, b4a), (w4b, b4b) = p["dw"]
    s1 = dwconv(y0, w1, b1)
    s2 = dwconv(y1 + s1, w2, b2)
    s3 = dwconv(y2 + s2, w3, b3)
    s4 = dwconv(dwconv(y3 + s3, w4a, b4a), w4b, b4b)
    g = jax.nn.gelu(jnp.concatenate([s1, s2, s3, s4], axis=1),
                    approximate=False)
    return conv1x1(g, p["conv1x1_2_w"], p["conv1x1_2_b"])


# ----------------------------------- main ------------------------------------

if __name__ == "__main__":
    # in_dim = out_dim = 16 -> Cg = 4; W = 32 makes the merged lane axis
    # W*Cg = 128 (full vreg lanes) and N*H*W = 2048 matmul lanes.
    N, C, H, W = 2, 16, 32, 32
    KSIZE = 3

    key = jax.random.PRNGKey(0)
    kx, kp = jax.random.split(key)
    x = jax.random.normal(kx, (N, C, H, W), jnp.float32)
    params = init_params(kp, C, KSIZE)

    y = dconv_forward(x, params, kernel_size=KSIZE)
    y = jax.block_until_ready(y)

    assert y.shape == (N, C, H, W)
    assert bool(jnp.isfinite(y).all())

    # numerical smoke-check against the pure-JAX reference (loose tolerance to
    # absorb MXU / GELU-approximation differences; structural bugs are O(1)).
    y_ref = _reference_forward(x, params)
    err = float(jnp.max(jnp.abs(y - y_ref)))
    assert err < 5e-2, f"max abs err vs reference: {err}"

    print("KERNEL_OK")
</pallas_src>

<mosaic_0001>
module attributes {stable_mosaic.version = 11 : i64} {
  func.func @_matmul_bias_kernel(%arg0: i32, %arg1: memref<16x1024xf32, #tpu.memory_space<vmem>>, %arg2: memref<16x16xf32, #tpu.memory_space<vmem>>, %arg3: memref<16x1xf32, #tpu.memory_space<vmem>>, %arg4: memref<16x1024xf32, #tpu.memory_space<vmem>>) attributes {dimension_semantics = [#tpu.dimension_semantics<parallel>], iteration_bounds = array<i64: 2>, scalar_prefetch = 0 : i64, scratch_operands = 0 : i64, tpu.core_type = #tpu.core_type<tc>, window_params = [{transform_indices = @transform_0, window_bounds = array<i64: 16, 1024>}, {pipeline_mode = #tpu.pipeline_mode<synchronous>, transform_indices = @transform_1, window_bounds = array<i64: 16, 16>}, {pipeline_mode = #tpu.pipeline_mode<synchronous>, transform_indices = @transform_2, window_bounds = array<i64: 16, 1>}, {transform_indices = @transform_3, window_bounds = array<i64: 16, 1024>}]} {
    %c0 = arith.constant 0 : index
    %c0_0 = arith.constant 0 : index
    %0 = vector.load %arg2[%c0, %c0_0] : memref<16x16xf32, #tpu.memory_space<vmem>>, vector<16x16xf32>
    %c0_1 = arith.constant 0 : index
    %c0_2 = arith.constant 0 : index
    %1 = vector.load %arg1[%c0_1, %c0_2] : memref<16x1024xf32, #tpu.memory_space<vmem>>, vector<16x1024xf32>
    %cst = arith.constant dense<0.000000e+00> : vector<16x1024xf32>
    %2 = tpu.matmul %0, %1, %cst {dimension_numbers = #tpu.dot_dimension_numbers<[1], [0], [0], [1], [0, 0, 1, 1], [], []>} : vector<16x16xf32>, vector<16x1024xf32>, vector<16x1024xf32> -> vector<16x1024xf32>
    %c0_3 = arith.constant 0 : index
    %c0_4 = arith.constant 0 : index
    %3 = vector.load %arg3[%c0_3, %c0_4] : memref<16x1xf32, #tpu.memory_space<vmem>>, vector<16x1xf32>
    %4 = vector.broadcast %3 : vector<16x1xf32> to vector<16x1024xf32>
    %5 = arith.addf %2, %4 : vector<16x1024xf32>
    %c0_5 = arith.constant 0 : index
    %c0_6 = arith.constant 0 : index
    %6 = vector.load %arg4[%c0_5, %c0_6] : memref<16x1024xf32, #tpu.memory_space<vmem>>, vector<16x1024xf32>
    tpu.vector_store %arg4[%c0_5, %c0_6], %5 {strides = array<i32>} : memref<16x1024xf32, #tpu.memory_space<vmem>>, vector<16x1024xf32>,
    return
  }
  func.func @transform_0(%arg0: i32) -> (i32, i32) {
    %c0_i32 = arith.constant 0 : i32
    %c0_i32_0 = arith.constant 0 : i32
    return %c0_i32, %arg0 : i32, i32
  }
  func.func @transform_1(%arg0: i32) -> (i32, i32) {
    %c0_i32 = arith.constant 0 : i32
    %c0_i32_0 = arith.constant 0 : i32
    %c0_i32_1 = arith.constant 0 : i32
    return %c0_i32, %c0_i32_0 : i32, i32
  }
  func.func @transform_2(%arg0: i32) -> (i32, i32) {
    %c0_i32 = arith.constant 0 : i32
    %c0_i32_0 = arith.constant 0 : i32
    %c0_i32_1 = arith.constant 0 : i32
    return %c0_i32, %c0_i32_0 : i32, i32
  }
  func.func @transform_3(%arg0: i32) -> (i32, i32) {
    %c0_i32 = arith.constant 0 : i32
    %c0_i32_0 = arith.constant 0 : i32
    return %c0_i32, %arg0 : i32, i32
  }
}

module attributes {stable_mosaic.version = 11 : i64} {
  func.func @kernel(%arg0: i32, %arg1: memref<1x32x128xf32, #tpu.memory_space<vmem>>, %arg2: memref<1x32x128xf32, #tpu.memory_space<vmem>>, %arg3: memref<1x32x128xf32, #tpu.memory_space<vmem>>, %arg4: memref<1x32x128xf32, #tpu.memory_space<vmem>>, %arg5: memref<9x128xf32, #tpu.memory_space<vmem>>, %arg6: memref<1x128xf32, #tpu.memory_space<vmem>>, %arg7: memref<15x128xf32, #tpu.memory_space<vmem>>, %arg8: memref<1x128xf32, #tpu.memory_space<vmem>>, %arg9: memref<15x128xf32, #tpu.memory_space<vmem>>, %arg10: memref<1x128xf32, #tpu.memory_space<vmem>>, %arg11: memref<9x128xf32, #tpu.memory_space<vmem>>, %arg12: memref<1x128xf32, #tpu.memory_space<vmem>>, %arg13: memref<9x128xf32, #tpu.memory_space<vmem>>, %arg14: memref<1x128xf32, #tpu.memory_space<vmem>>, %arg15: memref<1x32x128xf32, #tpu.memory_space<vmem>>, %arg16: memref<1x32x128xf32, #tpu.memory_space<vmem>>, %arg17: memref<1x32x128xf32, #tpu.memory_space<vmem>>, %arg18: memref<1x32x128xf32, #tpu.memory_space<vmem>>, %arg19: memref<36x144xf32, #tpu.memory_space<vmem>>) attributes {dimension_semantics = [#tpu.dimension_semantics<parallel>], iteration_bounds = array<i64: 2>, scalar_prefetch = 0 : i64, scratch_operands = 1 : i64, tpu.core_type = #tpu.core_type<tc>, window_params = [{transform_indices = @transform_0, window_bounds = array<i64: 1, 32, 128>}, {transform_indices = @transform_1, window_bounds = array<i64: 1, 32, 128>}, {transform_indices = @transform_2, window_bounds = array<i64: 1, 32, 128>}, {transform_indices = @transform_3, window_bounds = array<i64: 1, 32, 128>}, {pipeline_mode = #tpu.pipeline_mode<synchronous>, transform_indices = @transform_4, window_bounds = array<i64: 9, 128>}, {pipeline_mode = #tpu.pipeline_mode<synchronous>, transform_indices = @transform_5, window_bounds = array<i64: 1, 128>}, {pipeline_mode = #tpu.pipeline_mode<synchronous>, transform_indices = @transform_6, window_bounds = array<i64: 15, 128>}, {pipeline_mode = #tpu.pipeline_mode<synchronous>, transform_indices = @transform_7, window_bounds = array<i64: 1, 128>}, {pipeline_mode = #tpu.pipeline_mode<synchronous>, transform_indices = @transform_8, window_bounds = array<i64: 15, 128>}, {pipeline_mode = #tpu.pipeline_mode<synchronous>, transform_indices = @transform_9, window_bounds = array<i64: 1, 128>}, {pipeline_mode = #tpu.pipeline_mode<synchronous>, transform_indices = @transform_10, window_bounds = array<i64: 9, 128>}, {pipeline_mode = #tpu.pipeline_mode<synchronous>, transform_indices = @transform_11, window_bounds = array<i64: 1, 128>}, {pipeline_mode = #tpu.pipeline_mode<synchronous>, transform_indices = @transform_12, window_bounds = array<i64: 9, 128>}, {pipeline_mode = #tpu.pipeline_mode<synchronous>, transform_indices = @transform_13, window_bounds = array<i64: 1, 128>}, {transform_indices = @transform_14, window_bounds = array<i64: 1, 32, 128>}, {transform_indices = @transform_15, window_bounds = array<i64: 1, 32, 128>}, {transform_indices = @transform_16, window_bounds = array<i64: 1, 32, 128>}, {transform_indices = @transform_17, window_bounds = array<i64: 1, 32, 128>}]} {
    %cst = arith.constant 0.000000e+00 : f32
    %0 = vector.broadcast %cst : f32 to vector<36x144xf32>
    %c0 = arith.constant 0 : index
    %c0_0 = arith.constant 0 : index
    %1 = vector.load %arg19[%c0, %c0_0] : memref<36x144xf32, #tpu.memory_space<vmem>>, vector<36x144xf32>
    tpu.vector_store %arg19[%c0, %c0_0], %0 {strides = array<i32>} : memref<36x144xf32, #tpu.memory_space<vmem>>, vector<36x144xf32>,
    %c0_1 = arith.constant 0 : index
    %c0_2 = arith.constant 0 : index
    %c0_3 = arith.constant 0 : index
    %2 = vector.load %arg1[%c0_1, %c0_2, %c0_3] : memref<1x32x128xf32, #tpu.memory_space<vmem>>, vector<1x32x128xf32>
    %3 = vector.shape_cast %2 : vector<1x32x128xf32> to vector<32x128xf32>
    %c0_4 = arith.constant 0 : index
    %c0_5 = arith.constant 0 : index
    %4 = vector.load %arg5[%c0_4, %c0_5] : memref<9x128xf32, #tpu.memory_space<vmem>>, vector<9x128xf32>
    %c0_6 = arith.constant 0 : index
    %c0_7 = arith.constant 0 : index
    %5 = vector.load %arg6[%c0_6, %c0_7] : memref<1x128xf32, #tpu.memory_space<vmem>>, vector<1x128xf32>
    %c2 = arith.constant 2 : index
    %c8 = arith.constant 8 : index
    %6 = vector.load %arg19[%c2, %c8] : memref<36x144xf32, #tpu.memory_space<vmem>>, vector<32x128xf32>
    tpu.vector_store %arg19[%c2, %c8], %3 {strides = array<i32>} : memref<36x144xf32, #tpu.memory_space<vmem>>, vector<32x128xf32>,
    %cst_8 = arith.constant 0.000000e+00 : f32
    %7 = vector.broadcast %cst_8 : f32 to vector<32x128xf32>
    %c1 = arith.constant 1 : index
    %c4 = arith.constant 4 : index
    %8 = vector.load %arg19[%c1, %c4] : memref<36x144xf32, #tpu.memory_space<vmem>>, vector<32x128xf32>
    %9 = vector.extract_strided_slice %4 {offsets = [0, 0], sizes = [1, 128], strides = [1, 1]} : vector<9x128xf32> to vector<1x128xf32>
    %10 = vector.shape_cast %9 : vector<1x128xf32> to vector<128xf32>
    %11 = vector.shape_cast %10 : vector<128xf32> to vector<1x128xf32>
    %12 = vector.broadcast %11 : vector<1x128xf32> to vector<32x128xf32>
    %13 = arith.mulf %8, %12 : vector<32x128xf32>
    %14 = arith.addf %7, %13 : vector<32x128xf32>
    %c1_9 = arith.constant 1 : index
    %c8_10 = arith.constant 8 : index
    %15 = vector.load %arg19[%c1_9, %c8_10] : memref<36x144xf32, #tpu.memory_space<vmem>>, vector<32x128xf32>
    %16 = vector.extract_strided_slice %4 {offsets = [1, 0], sizes = [1, 128], strides = [1, 1]} : vector<9x128xf32> to vector<1x128xf32>
    %17 = vector.shape_cast %16 : vector<1x128xf32> to vector<128xf32>
    %18 = vector.shape_cast %17 : vector<128xf32> to vector<1x128xf32>
    %19 = vector.broadcast %18 : vector<1x128xf32> to vector<32x128xf32>
    %20 = arith.mulf %15, %19 : vector<32x128xf32>
    %21 = arith.addf %14, %20 : vector<32x128xf32>
    %c1_11 = arith.constant 1 : index
    %c12 = arith.constant 12 : index
    %22 = vector.load %arg19[%c1_11, %c12] : memref<36x144xf32, #tpu.memory_space<vmem>>, vector<32x128xf32>
    %23 = vector.extract_strided_slice %4 {offsets = [2, 0], sizes = [1, 128], strides = [1, 1]} : vector<9x128xf32> to vector<1x128xf32>
    %24 = vector.shape_cast %23 : vector<1x128xf32> to vector<128xf32>
    %25 = vector.shape_cast %24 : vector<128xf32> to vector<1x128xf32>
    %26 = vector.broadcast %25 : vector<1x128xf32> to vector<32x128xf32>
    %27 = arith.mulf %22, %26 : vector<32x128xf32>
    %28 = arith.addf %21, %27 : vector<32x128xf32>
    %c2_12 = arith.constant 2 : index
    %c4_13 = arith.constant 4 : index
    %29 = vector.load %arg19[%c2_12, %c4_13] : memref<36x144xf32, #tpu.memory_space<vmem>>, vector<32x128xf32>
    %30 = vector.extract_strided_slice %4 {offsets = [3, 0], sizes = [1, 128], strides = [1, 1]} : vector<9x128xf32> to vector<1x128xf32>
    %31 = vector.shape_cast %30 : vector<1x128xf32> to vector<128xf32>
    %32 = vector.shape_cast %31 : vector<128xf32> to vector<1x128xf32>
    %33 = vector.broadcast %32 : vector<1x128xf32> to vector<32x128xf32>
    %34 = arith.mulf %29, %33 : vector<32x128xf32>
    %35 = arith.addf %28, %34 : vector<32x128xf32>
    %c2_14 = arith.constant 2 : index
    %c8_15 = arith.constant 8 : index
    %36 = vector.load %arg19[%c2_14, %c8_15] : memref<36x144xf32, #tpu.memory_space<vmem>>, vector<32x128xf32>
    %37 = vector.extract_strided_slice %4 {offsets = [4, 0], sizes = [1, 128], strides = [1, 1]} : vector<9x128xf32> to vector<1x128xf32>
    %38 = vector.shape_cast %37 : vector<1x128xf32> to vector<128xf32>
    %39 = vector.shape_cast %38 : vector<128xf32> to vector<1x128xf32>
    %40 = vector.broadcast %39 : vector<1x128xf32> to vector<32x128xf32>
    %41 = arith.mulf %36, %40 : vector<32x128xf32>
    %42 = arith.addf %35, %41 : vector<32x128xf32>
    %c2_16 = arith.constant 2 : index
    %c12_17 = arith.constant 12 : index
    %43 = vector.load %arg19[%c2_16, %c12_17] : memref<36x144xf32, #tpu.memory_space<vmem>>, vector<32x128xf32>
    %44 = vector.extract_strided_slice %4 {offsets = [5, 0], sizes = [1, 128], strides = [1, 1]} : vector<9x128xf32> to vector<1x128xf32>
    %45 = vector.shape_cast %44 : vector<1x128xf32> to vector<128xf32>
    %46 = vector.shape_cast %45 : vector<128xf32> to vector<1x128xf32>
    %47 = vector.broadcast %46 : vector<1x128xf32> to vector<32x128xf32>
    %48 = arith.mulf %43, %47 : vector<32x128xf32>
    %49 = arith.addf %42, %48 : vector<32x128xf32>
    %c3 = arith.constant 3 : index
    %c4_18 = arith.constant 4 : index
    %50 = vector.load %arg19[%c3, %c4_18] : memref<36x144xf32, #tpu.memory_space<vmem>>, vector<32x128xf32>
    %51 = vector.extract_strided_slice %4 {offsets = [6, 0], sizes = [1, 128], strides = [1, 1]} : vector<9x128xf32> to vector<1x128xf32>
    %52 = vector.shape_cast %51 : vector<1x128xf32> to vector<128xf32>
    %53 = vector.shape_cast %52 : vector<128xf32> to vector<1x128xf32>
    %54 = vector.broadcast %53 : vector<1x128xf32> to vector<32x128xf32>
    %55 = arith.mulf %50, %54 : vector<32x128xf32>
    %56 = arith.addf %49, %55 : vector<32x128xf32>
    %c3_19 = arith.constant 3 : index
    %c8_20 = arith.constant 8 : index
    %57 = vector.load %arg19[%c3_19, %c8_20] : memref<36x144xf32, #tpu.memory_space<vmem>>, vector<32x128xf32>
    %58 = vector.extract_strided_slice %4 {offsets = [7, 0], sizes = [1, 128], strides = [1, 1]} : vector<9x128xf32> to vector<1x128xf32>
    %59 = vector.shape_cast %58 : vector<1x128xf32> to vector<128xf32>
    %60 = vector.shape_cast %59 : vector<128xf32> to vector<1x128xf32>
    %61 = vector.broadcast %60 : vector<1x128xf32> to vector<32x128xf32>
    %62 = arith.mulf %57, %61 : vector<32x128xf32>
    %63 = arith.addf %56, %62 : vector<32x128xf32>
    %c3_21 = arith.constant 3 : index
    %c12_22 = arith.constant 12 : index
    %64 = vector.load %arg19[%c3_21, %c12_22] : memref<36x144xf32, #tpu.memory_space<vmem>>, vector<32x128xf32>
    %65 = vector.extract_strided_slice %4 {offsets = [8, 0], sizes = [1, 128], strides = [1, 1]} : vector<9x128xf32> to vector<1x128xf32>
    %66 = vector.shape_cast %65 : vector<1x128xf32> to vector<128xf32>
    %67 = vector.shape_cast %66 : vector<128xf32> to vector<1x128xf32>
    %68 = vector.broadcast %67 : vector<1x128xf32> to vector<32x128xf32>
    %69 = arith.mulf %64, %68 : vector<32x128xf32>
    %70 = arith.addf %63, %69 : vector<32x128xf32>
    %71 = vector.broadcast %5 : vector<1x128xf32> to vector<32x128xf32>
    %72 = arith.addf %70, %71 : vector<32x128xf32>
    %c0_23 = arith.constant 0 : index
    %c0_24 = arith.constant 0 : index
    %c0_25 = arith.constant 0 : index
    %73 = vector.load %arg2[%c0_23, %c0_24, %c0_25] : memref<1x32x128xf32, #tpu.memory_space<vmem>>, vector<1x32x128xf32>
    %74 = vector.shape_cast %73 : vector<1x32x128xf32> to vector<32x128xf32>
    %75 = arith.addf %74, %72 : vector<32x128xf32>
    %c0_26 = arith.constant 0 : index
    %c0_27 = arith.constant 0 : index
    %76 = vector.load %arg7[%c0_26, %c0_27] : memref<15x128xf32, #tpu.memory_space<vmem>>, vector<15x128xf32>
    %c0_28 = arith.constant 0 : index
    %c0_29 = arith.constant 0 : index
    %77 = vector.load %arg8[%c0_28, %c0_29] : memref<1x128xf32, #tpu.memory_space<vmem>>, vector<1x128xf32>
    %c2_30 = arith.constant 2 : index
    %c8_31 = arith.constant 8 : index
    %78 = vector.load %arg19[%c2_30, %c8_31] : memref<36x144xf32, #tpu.memory_space<vmem>>, vector<32x128xf32>
    tpu.vector_store %arg19[%c2_30, %c8_31], %75 {strides = array<i32>} : memref<36x144xf32, #tpu.memory_space<vmem>>, vector<32x128xf32>,
    %cst_32 = arith.constant 0.000000e+00 : f32
    %79 = vector.broadcast %cst_32 : f32 to vector<32x128xf32>
    %c0_33 = arith.constant 0 : index
    %c4_34 = arith.constant 4 : index
    %80 = vector.load %arg19[%c0_33, %c4_34] : memref<36x144xf32, #tpu.memory_space<vmem>>, vector<32x128xf32>
    %81 = vector.extract_strided_slice %76 {offsets = [0, 0], sizes = [1, 128], strides = [1, 1]} : vector<15x128xf32> to vector<1x128xf32>
    %82 = vector.shape_cast %81 : vector<1x128xf32> to vector<128xf32>
    %83 = vector.shape_cast %82 : vector<128xf32> to vector<1x128xf32>
    %84 = vector.broadcast %83 : vector<1x128xf32> to vector<32x128xf32>
    %85 = arith.mulf %80, %84 : vector<32x128xf32>
    %86 = arith.addf %79, %85 : vector<32x128xf32>
    %c0_35 = arith.constant 0 : index
    %c8_36 = arith.constant 8 : index
    %87 = vector.load %arg19[%c0_35, %c8_36] : memref<36x144xf32, #tpu.memory_space<vmem>>, vector<32x128xf32>
    %88 = vector.extract_strided_slice %76 {offsets = [1, 0], sizes = [1, 128], strides = [1, 1]} : vector<15x128xf32> to vector<1x128xf32>
    %89 = vector.shape_cast %88 : vector<1x128xf32> to vector<128xf32>
    %90 = vector.shape_cast %89 : vector<128xf32> to vector<1x128xf32>
    %91 = vector.broadcast %90 : vector<1x128xf32> to vector<32x128xf32>
    %92 = arith.mulf %87, %91 : vector<32x128xf32>
    %93 = arith.addf %86, %92 : vector<32x128xf32>
    %c0_37 = arith.constant 0 : index
    %c12_38 = arith.constant 12 : index
    %94 = vector.load %arg19[%c0_37, %c12_38] : memref<36x144xf32, #tpu.memory_space<vmem>>, vector<32x128xf32>
    %95 = vector.extract_strided_slice %76 {offsets = [2, 0], sizes = [1, 128], strides = [1, 1]} : vector<15x128xf32> to vector<1x128xf32>
    %96 = vector.shape_cast %95 : vector<1x128xf32> to vector<128xf32>
    %97 = vector.shape_cast %96 : vector<128xf32> to vector<1x128xf32>
    %98 = vector.broadcast %97 : vector<1x128xf32> to vector<32x128xf32>
    %99 = arith.mulf %94, %98 : vector<32x128xf32>
    %100 = arith.addf %93, %99 : vector<32x128xf32>
    %c1_39 = arith.constant 1 : index
    %c4_40 = arith.constant 4 : index
    %101 = vector.load %arg19[%c1_39, %c4_40] : memref<36x144xf32, #tpu.memory_space<vmem>>, vector<32x128xf32>
    %102 = vector.extract_strided_slice %76 {offsets = [3, 0], sizes = [1, 128], strides = [1, 1]} : vector<15x128xf32> to vector<1x128xf32>
    %103 = vector.shape_cast %102 : vector<1x128xf32> to vector<128xf32>
    %104 = vector.shape_cast %103 : vector<128xf32> to vector<1x128xf32>
    %105 = vector.broadcast %104 : vector<1x128xf32> to vector<32x128xf32>
    %106 = arith.mulf %101, %105 : vector<32x128xf32>
    %107 = arith.addf %100, %106 : vector<32x128xf32>
    %c1_41 = arith.constant 1 : index
    %c8_42 = arith.constant 8 : index
    %108 = vector.load %arg19[%c1_41, %c8_42] : memref<36x144xf32, #tpu.memory_space<vmem>>, vector<32x128xf32>
    %109 = vector.extract_strided_slice %76 {offsets = [4, 0], sizes = [1, 128], strides = [1, 1]} : vector<15x128xf32> to vector<1x128xf32>
    %110 = vector.shape_cast %109 : vector<1x128xf32> to vector<128xf32>
    %111 = vector.shape_cast %110 : vector<128xf32> to vector<1x128xf32>
    %112 = vector.broadcast %111 : vector<1x128xf32> to vector<32x128xf32>
    %113 = arith.mulf %108, %112 : vector<32x128xf32>
    %114 = arith.addf %107, %113 : vector<32x128xf32>
    %c1_43 = arith.constant 1 : index
    %c12_44 = arith.constant 12 : index
    %115 = vector.load %arg19[%c1_43, %c12_44] : memref<36x144xf32, #tpu.memory_space<vmem>>, vector<32x128xf32>
    %116 = vector.extract_strided_slice %76 {offsets = [5, 0], sizes = [1, 128], strides = [1, 1]} : vector<15x128xf32> to vector<1x128xf32>
    %117 = vector.shape_cast %116 : vector<1x128xf32> to vector<128xf32>
    %118 = vector.shape_cast %117 : vector<128xf32> to vector<1x128xf32>
    %119 = vector.broadcast %118 : vector<1x128xf32> to vector<32x128xf32>
    %120 = arith.mulf %115, %119 : vector<32x128xf32>
    %121 = arith.addf %114, %120 : vector<32x128xf32>
    %c2_45 = arith.constant 2 : index
    %c4_46 = arith.constant 4 : index
    %122 = vector.load %arg19[%c2_45, %c4_46] : memref<36x144xf32, #tpu.memory_space<vmem>>, vector<32x128xf32>
    %123 = vector.extract_strided_slice %76 {offsets = [6, 0], sizes = [1, 128], strides = [1, 1]} : vector<15x128xf32> to vector<1x128xf32>
    %124 = vector.shape_cast %123 : vector<1x128xf32> to vector<128xf32>
    %125 = vector.shape_cast %124 : vector<128xf32> to vector<1x128xf32>
    %126 = vector.broadcast %125 : vector<1x128xf32> to vector<32x128xf32>
    %127 = arith.mulf %122, %126 : vector<32x128xf32>
    %128 = arith.addf %121, %127 : vector<32x128xf32>
    %c2_47 = arith.constant 2 : index
    %c8_48 = arith.constant 8 : index
    %129 = vector.load %arg19[%c2_47, %c8_48] : memref<36x144xf32, #tpu.memory_space<vmem>>, vector<32x128xf32>
    %130 = vector.extract_strided_slice %76 {offsets = [7, 0], sizes = [1, 128], strides = [1, 1]} : vector<15x128xf32> to vector<1x128xf32>
    %131 = vector.shape_cast %130 : vector<1x128xf32> to vector<128xf32>
    %132 = vector.shape_cast %131 : vector<128xf32> to vector<1x128xf32>
    %133 = vector.broadcast %132 : vector<1x128xf32> to vector<32x128xf32>
    %134 = arith.mulf %129, %133 : vector<32x128xf32>
    %135 = arith.addf %128, %134 : vector<32x128xf32>
    %c2_49 = arith.constant 2 : index
    %c12_50 = arith.constant 12 : index
    %136 = vector.load %arg19[%c2_49, %c12_50] : memref<36x144xf32, #tpu.memory_space<vmem>>, vector<32x128xf32>
    %137 = vector.extract_strided_slice %76 {offsets = [8, 0], sizes = [1, 128], strides = [1, 1]} : vector<15x128xf32> to vector<1x128xf32>
    %138 = vector.shape_cast %137 : vector<1x128xf32> to vector<128xf32>
    %139 = vector.shape_cast %138 : vector<128xf32> to vector<1x128xf32>
    %140 = vector.broadcast %139 : vector<1x128xf32> to vector<32x128xf32>
    %141 = arith.mulf %136, %140 : vector<32x128xf32>
    %142 = arith.addf %135, %141 : vector<32x128xf32>
    %c3_51 = arith.constant 3 : index
    %c4_52 = arith.constant 4 : index
    %143 = vector.load %arg19[%c3_51, %c4_52] : memref<36x144xf32, #tpu.memory_space<vmem>>, vector<32x128xf32>
    %144 = vector.extract_strided_slice %76 {offsets = [9, 0], sizes = [1, 128], strides = [1, 1]} : vector<15x128xf32> to vector<1x128xf32>
    %145 = vector.shape_cast %144 : vector<1x128xf32> to vector<128xf32>
    %146 = vector.shape_cast %145 : vector<128xf32> to vector<1x128xf32>
    %147 = vector.broadcast %146 : vector<1x128xf32> to vector<32x128xf32>
    %148 = arith.mulf %143, %147 : vector<32x128xf32>
    %149 = arith.addf %142, %148 : vector<32x128xf32>
    %c3_53 = arith.constant 3 : index
    %c8_54 = arith.constant 8 : index
    %150 = vector.load %arg19[%c3_53, %c8_54] : memref<36x144xf32, #tpu.memory_space<vmem>>, vector<32x128xf32>
    %151 = vector.extract_strided_slice %76 {offsets = [10, 0], sizes = [1, 128], strides = [1, 1]} : vector<15x128xf32> to vector<1x128xf32>
    %152 = vector.shape_cast %151 : vector<1x128xf32> to vector<128xf32>
    %153 = vector.shape_cast %152 : vector<128xf32> to vector<1x128xf32>
    %154 = vector.broadcast %153 : vector<1x128xf32> to vector<32x128xf32>
    %155 = arith.mulf %150, %154 : vector<32x128xf32>
    %156 = arith.addf %149, %155 : vector<32x128xf32>
    %c3_55 = arith.constant 3 : index
    %c12_56 = arith.constant 12 : index
    %157 = vector.load %arg19[%c3_55, %c12_56] : memref<36x144xf32, #tpu.memory_space<vmem>>, vector<32x128xf32>
    %158 = vector.extract_strided_slice %76 {offsets = [11, 0], sizes = [1, 128], strides = [1, 1]} : vector<15x128xf32> to vector<1x128xf32>
    %159 = vector.shape_cast %158 : vector<1x128xf32> to vector<128xf32>
    %160 = vector.shape_cast %159 : vector<128xf32> to vector<1x128xf32>
    %161 = vector.broadcast %160 : vector<1x128xf32> to vector<32x128xf32>
    %162 = arith.mulf %157, %161 : vector<32x128xf32>
    %163 = arith.addf %156, %162 : vector<32x128xf32>
    %c4_57 = arith.constant 4 : index
    %c4_58 = arith.constant 4 : index
    %164 = vector.load %arg19[%c4_57, %c4_58] : memref<36x144xf32, #tpu.memory_space<vmem>>, vector<32x128xf32>
    %165 = vector.extract_strided_slice %76 {offsets = [12, 0], sizes = [1, 128], strides = [1, 1]} : vector<15x128xf32> to vector<1x128xf32>
    %166 = vector.shape_cast %165 : vector<1x128xf32> to vector<128xf32>
    %167 = vector.shape_cast %166 : vector<128xf32> to vector<1x128xf32>
    %168 = vector.broadcast %167 : vector<1x128xf32> to vector<32x128xf32>
    %169 = arith.mulf %164, %168 : vector<32x128xf32>
    %170 = arith.addf %163, %169 : vector<32x128xf32>
    %c4_59 = arith.constant 4 : index
    %c8_60 = arith.constant 8 : index
    %171 = vector.load %arg19[%c4_59, %c8_60] : memref<36x144xf32, #tpu.memory_space<vmem>>, vector<32x128xf32>
    %172 = vector.extract_strided_slice %76 {offsets = [13, 0], sizes = [1, 128], strides = [1, 1]} : vector<15x128xf32> to vector<1x128xf32>
    %173 = vector.shape_cast %172 : vector<1x128xf32> to vector<128xf32>
    %174 = vector.shape_cast %173 : vector<128xf32> to vector<1x128xf32>
    %175 = vector.broadcast %174 : vector<1x128xf32> to vector<32x128xf32>
    %176 = arith.mulf %171, %175 : vector<32x128xf32>
    %177 = arith.addf %170, %176 : vector<32x128xf32>
    %c4_61 = arith.constant 4 : index
    %c12_62 = arith.constant 12 : index
    %178 = vector.load %arg19[%c4_61, %c12_62] : memref<36x144xf32, #tpu.memory_space<vmem>>, vector<32x128xf32>
    %179 = vector.extract_strided_slice %76 {offsets = [14, 0], sizes = [1, 128], strides = [1, 1]} : vector<15x128xf32> to vector<1x128xf32>
    %180 = vector.shape_cast %179 : vector<1x128xf32> to vector<128xf32>
    %181 = vector.shape_cast %180 : vector<128xf32> to vector<1x128xf32>
    %182 = vector.broadcast %181 : vector<1x128xf32> to vector<32x128xf32>
    %183 = arith.mulf %178, %182 : vector<32x128xf32>
    %184 = arith.addf %177, %183 : vector<32x128xf32>
    %185 = vector.broadcast %77 : vector<1x128xf32> to vector<32x128xf32>
    %186 = arith.addf %184, %185 : vector<32x128xf32>
    %c0_63 = arith.constant 0 : index
    %c0_64 = arith.constant 0 : index
    %c0_65 = arith.constant 0 : index
    %187 = vector.load %arg3[%c0_63, %c0_64, %c0_65] : memref<1x32x128xf32, #tpu.memory_space<vmem>>, vector<1x32x128xf32>
    %188 = vector.shape_cast %187 : vector<1x32x128xf32> to vector<32x128xf32>
    %189 = arith.addf %188, %186 : vector<32x128xf32>
    %c0_66 = arith.constant 0 : index
    %c0_67 = arith.constant 0 : index
    %190 = vector.load %arg9[%c0_66, %c0_67] : memref<15x128xf32, #tpu.memory_space<vmem>>, vector<15x128xf32>
    %c0_68 = arith.constant 0 : index
    %c0_69 = arith.constant 0 : index
    %191 = vector.load %arg10[%c0_68, %c0_69] : memref<1x128xf32, #tpu.memory_space<vmem>>, vector<1x128xf32>
    %c2_70 = arith.constant 2 : index
    %c8_71 = arith.constant 8 : index
    %192 = vector.load %arg19[%c2_70, %c8_71] : memref<36x144xf32, #tpu.memory_space<vmem>>, vector<32x128xf32>
    tpu.vector_store %arg19[%c2_70, %c8_71], %189 {strides = array<i32>} : memref<36x144xf32, #tpu.memory_space<vmem>>, vector<32x128xf32>,
    %cst_72 = arith.constant 0.000000e+00 : f32
    %193 = vector.broadcast %cst_72 : f32 to vector<32x128xf32>
    %c1_73 = arith.constant 1 : index
    %c0_74 = arith.constant 0 : index
    %194 = vector.load %arg19[%c1_73, %c0_74] : memref<36x144xf32, #tpu.memory_space<vmem>>, vector<32x128xf32>
    %195 = vector.extract_strided_slice %190 {offsets = [0, 0], sizes = [1, 128], strides = [1, 1]} : vector<15x128xf32> to vector<1x128xf32>
    %196 = vector.shape_cast %195 : vector<1x128xf32> to vector<128xf32>
    %197 = vector.shape_cast %196 : vector<128xf32> to vector<1x128xf32>
    %198 = vector.broadcast %197 : vector<1x128xf32> to vector<32x128xf32>
    %199 = arith.mulf %194, %198 : vector<32x128xf32>
    %200 = arith.addf %193, %199 : vector<32x128xf32>
    %c1_75 = arith.constant 1 : index
    %c4_76 = arith.constant 4 : index
    %201 = vector.load %arg19[%c1_75, %c4_76] : memref<36x144xf32, #tpu.memory_space<vmem>>, vector<32x128xf32>
    %202 = vector.extract_strided_slice %190 {offsets = [1, 0], sizes = [1, 128], strides = [1, 1]} : vector<15x128xf32> to vector<1x128xf32>
    %203 = vector.shape_cast %202 : vector<1x128xf32> to vector<128xf32>
    %204 = vector.shape_cast %203 : vector<128xf32> to vector<1x128xf32>
    %205 = vector.broadcast %204 : vector<1x128xf32> to vector<32x128xf32>
    %206 = arith.mulf %201, %205 : vector<32x128xf32>
    %207 = arith.addf %200, %206 : vector<32x128xf32>
    %c1_77 = arith.constant 1 : index
    %c8_78 = arith.constant 8 : index
    %208 = vector.load %arg19[%c1_77, %c8_78] : memref<36x144xf32, #tpu.memory_space<vmem>>, vector<32x128xf32>
    %209 = vector.extract_strided_slice %190 {offsets = [2, 0], sizes = [1, 128], strides = [1, 1]} : vector<15x128xf32> to vector<1x128xf32>
    %210 = vector.shape_cast %209 : vector<1x128xf32> to vector<128xf32>
    %211 = vector.shape_cast %210 : vector<128xf32> to vector<1x128xf32>
    %212 = vector.broadcast %211 : vector<1x128xf32> to vector<32x128xf32>
    %213 = arith.mulf %208, %212 : vector<32x128xf32>
    %214 = arith.addf %207, %213 : vector<32x128xf32>
    %c1_79 = arith.constant 1 : index
    %c12_80 = arith.constant 12 : index
    %215 = vector.load %arg19[%c1_79, %c12_80] : memref<36x144xf32, #tpu.memory_space<vmem>>, vector<32x128xf32>
    %216 = vector.extract_strided_slice %190 {offsets = [3, 0], sizes = [1, 128], strides = [1, 1]} : vector<15x128xf32> to vector<1x128xf32>
    %217 = vector.shape_cast %216 : vector<1x128xf32> to vector<128xf32>
    %218 = vector.shape_cast %217 : vector<128xf32> to vector<1x128xf32>
    %219 = vector.broadcast %218 : vector<1x128xf32> to vector<32x128xf32>
    %220 = arith.mulf %215, %219 : vector<32x128xf32>
    %221 = arith.addf %214, %220 : vector<32x128xf32>
    %c1_81 = arith.constant 1 : index
    %c16 = arith.constant 16 : index
    %222 = vector.load %arg19[%c1_81, %c16] : memref<36x144xf32, #tpu.memory_space<vmem>>, vector<32x128xf32>
    %223 = vector.extract_strided_slice %190 {offsets = [4, 0], sizes = [1, 128], strides = [1, 1]} : vector<15x128xf32> to vector<1x128xf32>
    %224 = vector.shape_cast %223 : vector<1x128xf32> to vector<128xf32>
    %225 = vector.shape_cast %224 : vector<128xf32> to vector<1x128xf32>
    %226 = vector.broadcast %225 : vector<1x128xf32> to vector<32x128xf32>
    %227 = arith.mulf %222, %226 : vector<32x128xf32>
    %228 = arith.addf %221, %227 : vector<32x128xf32>
    %c2_82 = arith.constant 2 : index
    %c0_83 = arith.constant 0 : index
    %229 = vector.load %arg19[%c2_82, %c0_83] : memref<36x144xf32, #tpu.memory_space<vmem>>, vector<32x128xf32>
    %230 = vector.extract_strided_slice %190 {offsets = [5, 0], sizes = [1, 128], strides = [1, 1]} : vector<15x128xf32> to vector<1x128xf32>
    %231 = vector.shape_cast %230 : vector<1x128xf32> to vector<128xf32>
    %232 = vector.shape_cast %231 : vector<128xf32> to vector<1x128xf32>
    %233 = vector.broadcast %232 : vector<1x128xf32> to vector<32x128xf32>
    %234 = arith.mulf %229, %233 : vector<32x128xf32>
    %235 = arith.addf %228, %234 : vector<32x128xf32>
    %c2_84 = arith.constant 2 : index
    %c4_85 = arith.constant 4 : index
    %236 = vector.load %arg19[%c2_84, %c4_85] : memref<36x144xf32, #tpu.memory_space<vmem>>, vector<32x128xf32>
    %237 = vector.extract_strided_slice %190 {offsets = [6, 0], sizes = [1, 128], strides = [1, 1]} : vector<15x128xf32> to vector<1x128xf32>
    %238 = vector.shape_cast %237 : vector<1x128xf32> to vector<128xf32>
    %239 = vector.shape_cast %238 : vector<128xf32> to vector<1x128xf32>
    %240 = vector.broadcast %239 : vector<1x128xf32> to vector<32x128xf32>
    %241 = arith.mulf %236, %240 : vector<32x128xf32>
    %242 = arith.addf %235, %241 : vector<32x128xf32>
    %c2_86 = arith.constant 2 : index
    %c8_87 = arith.constant 8 : index
    %243 = vector.load %arg19[%c2_86, %c8_87] : memref<36x144xf32, #tpu.memory_space<vmem>>, vector<32x128xf32>
    %244 = vector.extract_strided_slice %190 {offsets = [7, 0], sizes = [1, 128], strides = [1, 1]} : vector<15x128xf32> to vector<1x128xf32>
    %245 = vector.shape_cast %244 : vector<1x128xf32> to vector<128xf32>
    %246 = vector.shape_cast %245 : vector<128xf32> to vector<1x128xf32>
    %247 = vector.broadcast %246 : vector<1x128xf32> to vector<32x128xf32>
    %248 = arith.mulf %243, %247 : vector<32x128xf32>
    %249 = arith.addf %242, %248 : vector<32x128xf32>
    %c2_88 = arith.constant 2 : index
    %c12_89 = arith.constant 12 : index
    %250 = vector.load %arg19[%c2_88, %c12_89] : memref<36x144xf32, #tpu.memory_space<vmem>>, vector<32x128xf32>
    %251 = vector.extract_strided_slice %190 {offsets = [8, 0], sizes = [1, 128], strides = [1, 1]} : vector<15x128xf32> to vector<1x128xf32>
    %252 = vector.shape_cast %251 : vector<1x128xf32> to vector<128xf32>
    %253 = vector.shape_cast %252 : vector<128xf32> to vector<1x128xf32>
    %254 = vector.broadcast %253 : vector<1x128xf32> to vector<32x128xf32>
    %255 = arith.mulf %250, %254 : vector<32x128xf32>
    %256 = arith.addf %249, %255 : vector<32x128xf32>
    %c2_90 = arith.constant 2 : index
    %c16_91 = arith.constant 16 : index
    %257 = vector.load %arg19[%c2_90, %c16_91] : memref<36x144xf32, #tpu.memory_space<vmem>>, vector<32x128xf32>
    %258 = vector.extract_strided_slice %190 {offsets = [9, 0], sizes = [1, 128], strides = [1, 1]} : vector<15x128xf32> to vector<1x128xf32>
    %259 = vector.shape_cast %258 : vector<1x128xf32> to vector<128xf32>
    %260 = vector.shape_cast %259 : vector<128xf32> to vector<1x128xf32>
    %261 = vector.broadcast %260 : vector<1x128xf32> to vector<32x128xf32>
    %262 = arith.mulf %257, %261 : vector<32x128xf32>
    %263 = arith.addf %256, %262 : vector<32x128xf32>
    %c3_92 = arith.constant 3 : index
    %c0_93 = arith.constant 0 : index
    %264 = vector.load %arg19[%c3_92, %c0_93] : memref<36x144xf32, #tpu.memory_space<vmem>>, vector<32x128xf32>
    %265 = vector.extract_strided_slice %190 {offsets = [10, 0], sizes = [1, 128], strides = [1, 1]} : vector<15x128xf32> to vector<1x128xf32>
    %266 = vector.shape_cast %265 : vector<1x128xf32> to vector<128xf32>
    %267 = vector.shape_cast %266 : vector<128xf32> to vector<1x128xf32>
    %268 = vector.broadcast %267 : vector<1x128xf32> to vector<32x128xf32>
    %269 = arith.mulf %264, %268 : vector<32x128xf32>
    %270 = arith.addf %263, %269 : vector<32x128xf32>
    %c3_94 = arith.constant 3 : index
    %c4_95 = arith.constant 4 : index
    %271 = vector.load %arg19[%c3_94, %c4_95] : memref<36x144xf32, #tpu.memory_space<vmem>>, vector<32x128xf32>
    %272 = vector.extract_strided_slice %190 {offsets = [11, 0], sizes = [1, 128], strides = [1, 1]} : vector<15x128xf32> to vector<1x128xf32>
    %273 = vector.shape_cast %272 : vector<1x128xf32> to vector<128xf32>
    %274 = vector.shape_cast %273 : vector<128xf32> to vector<1x128xf32>
    %275 = vector.broadcast %274 : vector<1x128xf32> to vector<32x128xf32>
    %276 = arith.mulf %271, %275 : vector<32x128xf32>
    %277 = arith.addf %270, %276 : vector<32x128xf32>
    %c3_96 = arith.constant 3 : index
    %c8_97 = arith.constant 8 : index
    %278 = vector.load %arg19[%c3_96, %c8_97] : memref<36x144xf32, #tpu.memory_space<vmem>>, vector<32x128xf32>
    %279 = vector.extract_strided_slice %190 {offsets = [12, 0], sizes = [1, 128], strides = [1, 1]} : vector<15x128xf32> to vector<1x128xf32>
    %280 = vector.shape_cast %279 : vector<1x128xf32> to vector<128xf32>
    %281 = vector.shape_cast %280 : vector<128xf32> to vector<1x128xf32>
    %282 = vector.broadcast %281 : vector<1x128xf32> to vector<32x128xf32>
    %283 = arith.mulf %278, %282 : vector<32x128xf32>
    %284 = arith.addf %277, %283 : vector<32x128xf32>
    %c3_98 = arith.constant 3 : index
    %c12_99 = arith.constant 12 : index
    %285 = vector.load %arg19[%c3_98, %c12_99] : memref<36x144xf32, #tpu.memory_space<vmem>>, vector<32x128xf32>
    %286 = vector.extract_strided_slice %190 {offsets = [13, 0], sizes = [1, 128], strides = [1, 1]} : vector<15x128xf32> to vector<1x128xf32>
    %287 = vector.shape_cast %286 : vector<1x128xf32> to vector<128xf32>
    %288 = vector.shape_cast %287 : vector<128xf32> to vector<1x128xf32>
    %289 = vector.broadcast %288 : vector<1x128xf32> to vector<32x128xf32>
    %290 = arith.mulf %285, %289 : vector<32x128xf32>
    %291 = arith.addf %284, %290 : vector<32x128xf32>
    %c3_100 = arith.constant 3 : index
    %c16_101 = arith.constant 16 : index
    %292 = vector.load %arg19[%c3_100, %c16_101] : memref<36x144xf32, #tpu.memory_space<vmem>>, vector<32x128xf32>
    %293 = vector.extract_strided_slice %190 {offsets = [14, 0], sizes = [1, 128], strides = [1, 1]} : vector<15x128xf32> to vector<1x128xf32>
    %294 = vector.shape_cast %293 : vector<1x128xf32> to vector<128xf32>
    %295 = vector.shape_cast %294 : vector<128xf32> to vector<1x128xf32>
    %296 = vector.broadcast %295 : vector<1x128xf32> to vector<32x128xf32>
    %297 = arith.mulf %292, %296 : vector<32x128xf32>
    %298 = arith.addf %291, %297 : vector<32x128xf32>
    %299 = vector.broadcast %191 : vector<1x128xf32> to vector<32x128xf32>
    %300 = arith.addf %298, %299 : vector<32x128xf32>
    %c0_102 = arith.constant 0 : index
    %c0_103 = arith.constant 0 : index
    %c0_104 = arith.constant 0 : index
    %301 = vector.load %arg4[%c0_102, %c0_103, %c0_104] : memref<1x32x128xf32, #tpu.memory_space<vmem>>, vector<1x32x128xf32>
    %302 = vector.shape_cast %301 : vector<1x32x128xf32> to vector<32x128xf32>
    %303 = arith.addf %302, %300 : vector<32x128xf32>
    %c0_105 = arith.constant 0 : index
    %c0_106 = arith.constant 0 : index
    %304 = vector.load %arg11[%c0_105, %c0_106] : memref<9x128xf32, #tpu.memory_space<vmem>>, vector<9x128xf32>
    %c0_107 = arith.constant 0 : index
    %c0_108 = arith.constant 0 : index
    %305 = vector.load %arg12[%c0_107, %c0_108] : memref<1x128xf32, #tpu.memory_space<vmem>>, vector<1x128xf32>
    %c2_109 = arith.constant 2 : index
    %c8_110 = arith.constant 8 : index
    %306 = vector.load %arg19[%c2_109, %c8_110] : memref<36x144xf32, #tpu.memory_space<vmem>>, vector<32x128xf32>
    tpu.vector_store %arg19[%c2_109, %c8_110], %303 {strides = array<i32>} : memref<36x144xf32, #tpu.memory_space<vmem>>, vector<32x128xf32>,
    %cst_111 = arith.constant 0.000000e+00 : f32
    %307 = vector.broadcast %cst_111 : f32 to vector<32x128xf32>
    %c1_112 = arith.constant 1 : index
    %c4_113 = arith.constant 4 : index
    %308 = vector.load %arg19[%c1_112, %c4_113] : memref<36x144xf32, #tpu.memory_space<vmem>>, vector<32x128xf32>
    %309 = vector.extract_strided_slice %304 {offsets = [0, 0], sizes = [1, 128], strides = [1, 1]} : vector<9x128xf32> to vector<1x128xf32>
    %310 = vector.shape_cast %309 : vector<1x128xf32> to vector<128xf32>
    %311 = vector.shape_cast %310 : vector<128xf32> to vector<1x128xf32>
    %312 = vector.broadcast %311 : vector<1x128xf32> to vector<32x128xf32>
    %313 = arith.mulf %308, %312 : vector<32x128xf32>
    %314 = arith.addf %307, %313 : vector<32x128xf32>
    %c1_114 = arith.constant 1 : index
    %c8_115 = arith.constant 8 : index
    %315 = vector.load %arg19[%c1_114, %c8_115] : memref<36x144xf32, #tpu.memory_space<vmem>>, vector<32x128xf32>
    %316 = vector.extract_strided_slice %304 {offsets = [1, 0], sizes = [1, 128], strides = [1, 1]} : vector<9x128xf32> to vector<1x128xf32>
    %317 = vector.shape_cast %316 : vector<1x128xf32> to vector<128xf32>
    %318 = vector.shape_cast %317 : vector<128xf32> to vector<1x128xf32>
    %319 = vector.broadcast %318 : vector<1x128xf32> to vector<32x128xf32>
    %320 = arith.mulf %315, %319 : vector<32x128xf32>
    %321 = arith.addf %314, %320 : vector<32x128xf32>
    %c1_116 = arith.constant 1 : index
    %c12_117 = arith.constant 12 : index
    %322 = vector.load %arg19[%c1_116, %c12_117] : memref<36x144xf32, #tpu.memory_space<vmem>>, vector<32x128xf32>
    %323 = vector.extract_strided_slice %304 {offsets = [2, 0], sizes = [1, 128], strides = [1, 1]} : vector<9x128xf32> to vector<1x128xf32>
    %324 = vector.shape_cast %323 : vector<1x128xf32> to vector<128xf32>
    %325 = vector.shape_cast %324 : vector<128xf32> to vector<1x128xf32>
    %326 = vector.broadcast %325 : vector<1x128xf32> to vector<32x128xf32>
    %327 = arith.mulf %322, %326 : vector<32x128xf32>
    %328 = arith.addf %321, %327 : vector<32x128xf32>
    %c2_118 = arith.constant 2 : index
    %c4_119 = arith.constant 4 : index
    %329 = vector.load %arg19[%c2_118, %c4_119] : memref<36x144xf32, #tpu.memory_space<vmem>>, vector<32x128xf32>
    %330 = vector.extract_strided_slice %304 {offsets = [3, 0], sizes = [1, 128], strides = [1, 1]} : vector<9x128xf32> to vector<1x128xf32>
    %331 = vector.shape_cast %330 : vector<1x128xf32> to vector<128xf32>
    %332 = vector.shape_cast %331 : vector<128xf32> to vector<1x128xf32>
    %333 = vector.broadcast %332 : vector<1x128xf32> to vector<32x128xf32>
    %334 = arith.mulf %329, %333 : vector<32x128xf32>
    %335 = arith.addf %328, %334 : vector<32x128xf32>
    %c2_120 = arith.constant 2 : index
    %c8_121 = arith.constant 8 : index
    %336 = vector.load %arg19[%c2_120, %c8_121] : memref<36x144xf32, #tpu.memory_space<vmem>>, vector<32x128xf32>
    %337 = vector.extract_strided_slice %304 {offsets = [4, 0], sizes = [1, 128], strides = [1, 1]} : vector<9x128xf32> to vector<1x128xf32>
    %338 = vector.shape_cast %337 : vector<1x128xf32> to vector<128xf32>
    %339 = vector.shape_cast %338 : vector<128xf32> to vector<1x128xf32>
    %340 = vector.broadcast %339 : vector<1x128xf32> to vector<32x128xf32>
    %341 = arith.mulf %336, %340 : vector<32x128xf32>
    %342 = arith.addf %335, %341 : vector<32x128xf32>
    %c2_122 = arith.constant 2 : index
    %c12_123 = arith.constant 12 : index
    %343 = vector.load %arg19[%c2_122, %c12_123] : memref<36x144xf32, #tpu.memory_space<vmem>>, vector<32x128xf32>
    %344 = vector.extract_strided_slice %304 {offsets = [5, 0], sizes = [1, 128], strides = [1, 1]} : vector<9x128xf32> to vector<1x128xf32>
    %345 = vector.shape_cast %344 : vector<1x128xf32> to vector<128xf32>
    %346 = vector.shape_cast %345 : vector<128xf32> to vector<1x128xf32>
    %347 = vector.broadcast %346 : vector<1x128xf32> to vector<32x128xf32>
    %348 = arith.mulf %343, %347 : vector<32x128xf32>
    %349 = arith.addf %342, %348 : vector<32x128xf32>
    %c3_124 = arith.constant 3 : index
    %c4_125 = arith.constant 4 : index
    %350 = vector.load %arg19[%c3_124, %c4_125] : memref<36x144xf32, #tpu.memory_space<vmem>>, vector<32x128xf32>
    %351 = vector.extract_strided_slice %304 {offsets = [6, 0], sizes = [1, 128], strides = [1, 1]} : vector<9x128xf32> to vector<1x128xf32>
    %352 = vector.shape_cast %351 : vector<1x128xf32> to vector<128xf32>
    %353 = vector.shape_cast %352 : vector<128xf32> to vector<1x128xf32>
    %354 = vector.broadcast %353 : vector<1x128xf32> to vector<32x128xf32>
    %355 = arith.mulf %350, %354 : vector<32x128xf32>
    %356 = arith.addf %349, %355 : vector<32x128xf32>
    %c3_126 = arith.constant 3 : index
    %c8_127 = arith.constant 8 : index
    %357 = vector.load %arg19[%c3_126, %c8_127] : memref<36x144xf32, #tpu.memory_space<vmem>>, vector<32x128xf32>
    %358 = vector.extract_strided_slice %304 {offsets = [7, 0], sizes = [1, 128], strides = [1, 1]} : vector<9x128xf32> to vector<1x128xf32>
    %359 = vector.shape_cast %358 : vector<1x128xf32> to vector<128xf32>
    %360 = vector.shape_cast %359 : vector<128xf32> to vector<1x128xf32>
    %361 = vector.broadcast %360 : vector<1x128xf32> to vector<32x128xf32>
    %362 = arith.mulf %357, %361 : vector<32x128xf32>
    %363 = arith.addf %356, %362 : vector<32x128xf32>
    %c3_128 = arith.constant 3 : index
    %c12_129 = arith.constant 12 : index
    %364 = vector.load %arg19[%c3_128, %c12_129] : memref<36x144xf32, #tpu.memory_space<vmem>>, vector<32x128xf32>
    %365 = vector.extract_strided_slice %304 {offsets = [8, 0], sizes = [1, 128], strides = [1, 1]} : vector<9x128xf32> to vector<1x128xf32>
    %366 = vector.shape_cast %365 : vector<1x128xf32> to vector<128xf32>
    %367 = vector.shape_cast %366 : vector<128xf32> to vector<1x128xf32>
    %368 = vector.broadcast %367 : vector<1x128xf32> to vector<32x128xf32>
    %369 = arith.mulf %364, %368 : vector<32x128xf32>
    %370 = arith.addf %363, %369 : vector<32x128xf32>
    %371 = vector.broadcast %305 : vector<1x128xf32> to vector<32x128xf32>
    %372 = arith.addf %370, %371 : vector<32x128xf32>
    %c0_130 = arith.constant 0 : index
    %c0_131 = arith.constant 0 : index
    %373 = vector.load %arg13[%c0_130, %c0_131] : memref<9x128xf32, #tpu.memory_space<vmem>>, vector<9x128xf32>
    %c0_132 = arith.constant 0 : index
    %c0_133 = arith.constant 0 : index
    %374 = vector.load %arg14[%c0_132, %c0_133] : memref<1x128xf32, #tpu.memory_space<vmem>>, vector<1x128xf32>
    %c2_134 = arith.constant 2 : index
    %c8_135 = arith.constant 8 : index
    %375 = vector.load %arg19[%c2_134, %c8_135] : memref<36x144xf32, #tpu.memory_space<vmem>>, vector<32x128xf32>
    tpu.vector_store %arg19[%c2_134, %c8_135], %372 {strides = array<i32>} : memref<36x144xf32, #tpu.memory_space<vmem>>, vector<32x128xf32>,
    %cst_136 = arith.constant 0.000000e+00 : f32
    %376 = vector.broadcast %cst_136 : f32 to vector<32x128xf32>
    %c1_137 = arith.constant 1 : index
    %c4_138 = arith.constant 4 : index
    %377 = vector.load %arg19[%c1_137, %c4_138] : memref<36x144xf32, #tpu.memory_space<vmem>>, vector<32x128xf32>
    %378 = vector.extract_strided_slice %373 {offsets = [0, 0], sizes = [1, 128], strides = [1, 1]} : vector<9x128xf32> to vector<1x128xf32>
    %379 = vector.shape_cast %378 : vector<1x128xf32> to vector<128xf32>
    %380 = vector.shape_cast %379 : vector<128xf32> to vector<1x128xf32>
    %381 = vector.broadcast %380 : vector<1x128xf32> to vector<32x128xf32>
    %382 = arith.mulf %377, %381 : vector<32x128xf32>
    %383 = arith.addf %376, %382 : vector<32x128xf32>
    %c1_139 = arith.constant 1 : index
    %c8_140 = arith.constant 8 : index
    %384 = vector.load %arg19[%c1_139, %c8_140] : memref<36x144xf32, #tpu.memory_space<vmem>>, vector<32x128xf32>
    %385 = vector.extract_strided_slice %373 {offsets = [1, 0], sizes = [1, 128], strides = [1, 1]} : vector<9x128xf32> to vector<1x128xf32>
    %386 = vector.shape_cast %385 : vector<1x128xf32> to vector<128xf32>
    %387 = vector.shape_cast %386 : vector<128xf32> to vector<1x128xf32>
    %388 = vector.broadcast %387 : vector<1x128xf32> to vector<32x128xf32>
    %389 = arith.mulf %384, %388 : vector<32x128xf32>
    %390 = arith.addf %383, %389 : vector<32x128xf32>
    %c1_141 = arith.constant 1 : index
    %c12_142 = arith.constant 12 : index
    %391 = vector.load %arg19[%c1_141, %c12_142] : memref<36x144xf32, #tpu.memory_space<vmem>>, vector<32x128xf32>
    %392 = vector.extract_strided_slice %373 {offsets = [2, 0], sizes = [1, 128], strides = [1, 1]} : vector<9x128xf32> to vector<1x128xf32>
    %393 = vector.shape_cast %392 : vector<1x128xf32> to vector<128xf32>
    %394 = vector.shape_cast %393 : vector<128xf32> to vector<1x128xf32>
    %395 = vector.broadcast %394 : vector<1x128xf32> to vector<32x128xf32>
    %396 = arith.mulf %391, %395 : vector<32x128xf32>
    %397 = arith.addf %390, %396 : vector<32x128xf32>
    %c2_143 = arith.constant 2 : index
    %c4_144 = arith.constant 4 : index
    %398 = vector.load %arg19[%c2_143, %c4_144] : memref<36x144xf32, #tpu.memory_space<vmem>>, vector<32x128xf32>
    %399 = vector.extract_strided_slice %373 {offsets = [3, 0], sizes = [1, 128], strides = [1, 1]} : vector<9x128xf32> to vector<1x128xf32>
    %400 = vector.shape_cast %399 : vector<1x128xf32> to vector<128xf32>
    %401 = vector.shape_cast %400 : vector<128xf32> to vector<1x128xf32>
    %402 = vector.broadcast %401 : vector<1x128xf32> to vector<32x128xf32>
    %403 = arith.mulf %398, %402 : vector<32x128xf32>
    %404 = arith.addf %397, %403 : vector<32x128xf32>
    %c2_145 = arith.constant 2 : index
    %c8_146 = arith.constant 8 : index
    %405 = vector.load %arg19[%c2_145, %c8_146] : memref<36x144xf32, #tpu.memory_space<vmem>>, vector<32x128xf32>
    %406 = vector.extract_strided_slice %373 {offsets = [4, 0], sizes = [1, 128], strides = [1, 1]} : vector<9x128xf32> to vector<1x128xf32>
    %407 = vector.shape_cast %406 : vector<1x128xf32> to vector<128xf32>
    %408 = vector.shape_cast %407 : vector<128xf32> to vector<1x128xf32>
    %409 = vector.broadcast %408 : vector<1x128xf32> to vector<32x128xf32>
    %410 = arith.mulf %405, %409 : vector<32x128xf32>
    %411 = arith.addf %404, %410 : vector<32x128xf32>
    %c2_147 = arith.constant 2 : index
    %c12_148 = arith.constant 12 : index
    %412 = vector.load %arg19[%c2_147, %c12_148] : memref<36x144xf32, #tpu.memory_space<vmem>>, vector<32x128xf32>
    %413 = vector.extract_strided_slice %373 {offsets = [5, 0], sizes = [1, 128], strides = [1, 1]} : vector<9x128xf32> to vector<1x128xf32>
    %414 = vector.shape_cast %413 : vector<1x128xf32> to vector<128xf32>
    %415 = vector.shape_cast %414 : vector<128xf32> to vector<1x128xf32>
    %416 = vector.broadcast %415 : vector<1x128xf32> to vector<32x128xf32>
    %417 = arith.mulf %412, %416 : vector<32x128xf32>
    %418 = arith.addf %411, %417 : vector<32x128xf32>
    %c3_149 = arith.constant 3 : index
    %c4_150 = arith.constant 4 : index
    %419 = vector.load %arg19[%c3_149, %c4_150] : memref<36x144xf32, #tpu.memory_space<vmem>>, vector<32x128xf32>
    %420 = vector.extract_strided_slice %373 {offsets = [6, 0], sizes = [1, 128], strides = [1, 1]} : vector<9x128xf32> to vector<1x128xf32>
    %421 = vector.shape_cast %420 : vector<1x128xf32> to vector<128xf32>
    %422 = vector.shape_cast %421 : vector<128xf32> to vector<1x128xf32>
    %423 = vector.broadcast %422 : vector<1x128xf32> to vector<32x128xf32>
    %424 = arith.mulf %419, %423 : vector<32x128xf32>
    %425 = arith.addf %418, %424 : vector<32x128xf32>
    %c3_151 = arith.constant 3 : index
    %c8_152 = arith.constant 8 : index
    %426 = vector.load %arg19[%c3_151, %c8_152] : memref<36x144xf32, #tpu.memory_space<vmem>>, vector<32x128xf32>
    %427 = vector.extract_strided_slice %373 {offsets = [7, 0], sizes = [1, 128], strides = [1, 1]} : vector<9x128xf32> to vector<1x128xf32>
    %428 = vector.shape_cast %427 : vector<1x128xf32> to vector<128xf32>
    %429 = vector.shape_cast %428 : vector<128xf32> to vector<1x128xf32>
    %430 = vector.broadcast %429 : vector<1x128xf32> to vector<32x128xf32>
    %431 = arith.mulf %426, %430 : vector<32x128xf32>
    %432 = arith.addf %425, %431 : vector<32x128xf32>
    %c3_153 = arith.constant 3 : index
    %c12_154 = arith.constant 12 : index
    %433 = vector.load %arg19[%c3_153, %c12_154] : memref<36x144xf32, #tpu.memory_space<vmem>>, vector<32x128xf32>
    %434 = vector.extract_strided_slice %373 {offsets = [8, 0], sizes = [1, 128], strides = [1, 1]} : vector<9x128xf32> to vector<1x128xf32>
    %435 = vector.shape_cast %434 : vector<1x128xf32> to vector<128xf32>
    %436 = vector.shape_cast %435 : vector<128xf32> to vector<1x128xf32>
    %437 = vector.broadcast %436 : vector<1x128xf32> to vector<32x128xf32>
    %438 = arith.mulf %433, %437 : vector<32x128xf32>
    %439 = arith.addf %432, %438 : vector<32x128xf32>
    %440 = vector.broadcast %374 : vector<1x128xf32> to vector<32x128xf32>
    %441 = arith.addf %439, %440 : vector<32x128xf32>
    %cst_155 = arith.constant 5.000000e-01 : f32
    %442 = vector.broadcast %cst_155 : f32 to vector<32x128xf32>
    %443 = arith.mulf %442, %72 : vector<32x128xf32>
    %cst_156 = arith.constant 0.707106769 : f32
    %444 = vector.broadcast %cst_156 : f32 to vector<32x128xf32>
    %445 = arith.mulf %72, %444 : vector<32x128xf32>
    %cst_157 = arith.constant 0.000000e+00 : f32
    %446 = vector.broadcast %cst_157 : f32 to vector<32x128xf32>
    %447 = arith.cmpf oge, %445, %446 : vector<32x128xf32>
    %cst_158 = arith.constant 1.000000e+00 : f32
    %cst_159 = arith.constant -1.000000e+00 : f32
    %448 = vector.broadcast %cst_158 : f32 to vector<32x128xf32>
    %449 = vector.broadcast %cst_159 : f32 to vector<32x128xf32>
    %450 = arith.select %447, %448, %449 : vector<32x128xi1>, vector<32x128xf32>
    %451 = math.absf %445 : vector<32x128xf32>
    %cst_160 = arith.constant 0.327591091 : f32
    %452 = vector.broadcast %cst_160 : f32 to vector<32x128xf32>
    %453 = arith.mulf %452, %451 : vector<32x128xf32>
    %cst_161 = arith.constant 1.000000e+00 : f32
    %454 = vector.broadcast %cst_161 : f32 to vector<32x128xf32>
    %455 = arith.addf %454, %453 : vector<32x128xf32>
    %cst_162 = arith.constant 1.000000e+00 : f32
    %456 = vector.broadcast %cst_162 : f32 to vector<32x128xf32>
    %457 = arith.divf %456, %455 : vector<32x128xf32>
    %cst_163 = arith.constant 1.06140542 : f32
    %458 = vector.broadcast %cst_163 : f32 to vector<32x128xf32>
    %459 = arith.mulf %458, %457 : vector<32x128xf32>
    %cst_164 = arith.constant -1.45315206 : f32
    %460 = vector.broadcast %cst_164 : f32 to vector<32x128xf32>
    %461 = arith.addf %459, %460 : vector<32x128xf32>
    %462 = arith.mulf %461, %457 : vector<32x128xf32>
    %cst_165 = arith.constant 1.42141378 : f32
    %463 = vector.broadcast %cst_165 : f32 to vector<32x128xf32>
    %464 = arith.addf %462, %463 : vector<32x128xf32>
    %465 = arith.mulf %464, %457 : vector<32x128xf32>
    %cst_166 = arith.constant -0.284496725 : f32
    %466 = vector.broadcast %cst_166 : f32 to vector<32x128xf32>
    %467 = arith.addf %465, %466 : vector<32x128xf32>
    %468 = arith.mulf %467, %457 : vector<32x128xf32>
    %cst_167 = arith.constant 0.254829586 : f32
    %469 = vector.broadcast %cst_167 : f32 to vector<32x128xf32>
    %470 = arith.addf %468, %469 : vector<32x128xf32>
    %471 = arith.mulf %470, %457 : vector<32x128xf32>
    %cst_168 = arith.constant 0.000000e+00 : f32
    %472 = vector.broadcast %cst_168 : f32 to vector<32x128xf32>
    %473 = arith.subf %472, %451 : vector<32x128xf32>
    %474 = arith.mulf %473, %451 : vector<32x128xf32>
    %475 = math.exp %474 : vector<32x128xf32>
    %476 = arith.mulf %471, %475 : vector<32x128xf32>
    %cst_169 = arith.constant 1.000000e+00 : f32
    %477 = vector.broadcast %cst_169 : f32 to vector<32x128xf32>
    %478 = arith.subf %477, %476 : vector<32x128xf32>
    %479 = arith.mulf %450, %478 : vector<32x128xf32>
    %cst_170 = arith.constant 1.000000e+00 : f32
    %480 = vector.broadcast %cst_170 : f32 to vector<32x128xf32>
    %481 = arith.addf %480, %479 : vector<32x128xf32>
    %482 = arith.mulf %443, %481 : vector<32x128xf32>
    %c0_171 = arith.constant 0 : index
    %c0_172 = arith.constant 0 : index
    %c0_173 = arith.constant 0 : index
    %483 = vector.load %arg15[%c0_171, %c0_172, %c0_173] : memref<1x32x128xf32, #tpu.memory_space<vmem>>, vector<1x32x128xf32>
    %484 = vector.shape_cast %483 : vector<1x32x128xf32> to vector<32x128xf32>
    %485 = vector.shape_cast %482 : vector<32x128xf32> to vector<1x32x128xf32>
    tpu.vector_store %arg15[%c0_171, %c0_172, %c0_173], %485 {strides = array<i32>} : memref<1x32x128xf32, #tpu.memory_space<vmem>>, vector<1x32x128xf32>,
    %cst_174 = arith.constant 5.000000e-01 : f32
    %486 = vector.broadcast %cst_174 : f32 to vector<32x128xf32>
    %487 = arith.mulf %486, %186 : vector<32x128xf32>
    %cst_175 = arith.constant 0.707106769 : f32
    %488 = vector.broadcast %cst_175 : f32 to vector<32x128xf32>
    %489 = arith.mulf %186, %488 : vector<32x128xf32>
    %cst_176 = arith.constant 0.000000e+00 : f32
    %490 = vector.broadcast %cst_176 : f32 to vector<32x128xf32>
    %491 = arith.cmpf oge, %489, %490 : vector<32x128xf32>
    %cst_177 = arith.constant 1.000000e+00 : f32
    %cst_178 = arith.constant -1.000000e+00 : f32
    %492 = vector.broadcast %cst_177 : f32 to vector<32x128xf32>
    %493 = vector.broadcast %cst_178 : f32 to vector<32x128xf32>
    %494 = arith.select %491, %492, %493 : vector<32x128xi1>, vector<32x128xf32>
    %495 = math.absf %489 : vector<32x128xf32>
    %cst_179 = arith.constant 0.327591091 : f32
    %496 = vector.broadcast %cst_179 : f32 to vector<32x128xf32>
    %497 = arith.mulf %496, %495 : vector<32x128xf32>
    %cst_180 = arith.constant 1.000000e+00 : f32
    %498 = vector.broadcast %cst_180 : f32 to vector<32x128xf32>
    %499 = arith.addf %498, %497 : vector<32x128xf32>
    %cst_181 = arith.constant 1.000000e+00 : f32
    %500 = vector.broadcast %cst_181 : f32 to vector<32x128xf32>
    %501 = arith.divf %500, %499 : vector<32x128xf32>
    %cst_182 = arith.constant 1.06140542 : f32
    %502 = vector.broadcast %cst_182 : f32 to vector<32x128xf32>
    %503 = arith.mulf %502, %501 : vector<32x128xf32>
    %cst_183 = arith.constant -1.45315206 : f32
    %504 = vector.broadcast %cst_183 : f32 to vector<32x128xf32>
    %505 = arith.addf %503, %504 : vector<32x128xf32>
    %506 = arith.mulf %505, %501 : vector<32x128xf32>
    %cst_184 = arith.constant 1.42141378 : f32
    %507 = vector.broadcast %cst_184 : f32 to vector<32x128xf32>
    %508 = arith.addf %506, %507 : vector<32x128xf32>
    %509 = arith.mulf %508, %501 : vector<32x128xf32>
    %cst_185 = arith.constant -0.284496725 : f32
    %510 = vector.broadcast %cst_185 : f32 to vector<32x128xf32>
    %511 = arith.addf %509, %510 : vector<32x128xf32>
    %512 = arith.mulf %511, %501 : vector<32x128xf32>
    %cst_186 = arith.constant 0.254829586 : f32
    %513 = vector.broadcast %cst_186 : f32 to vector<32x128xf32>
    %514 = arith.addf %512, %513 : vector<32x128xf32>
    %515 = arith.mulf %514, %501 : vector<32x128xf32>
    %cst_187 = arith.constant 0.000000e+00 : f32
    %516 = vector.broadcast %cst_187 : f32 to vector<32x128xf32>
    %517 = arith.subf %516, %495 : vector<32x128xf32>
    %518 = arith.mulf %517, %495 : vector<32x128xf32>
    %519 = math.exp %518 : vector<32x128xf32>
    %520 = arith.mulf %515, %519 : vector<32x128xf32>
    %cst_188 = arith.constant 1.000000e+00 : f32
    %521 = vector.broadcast %cst_188 : f32 to vector<32x128xf32>
    %522 = arith.subf %521, %520 : vector<32x128xf32>
    %523 = arith.mulf %494, %522 : vector<32x128xf32>
    %cst_189 = arith.constant 1.000000e+00 : f32
    %524 = vector.broadcast %cst_189 : f32 to vector<32x128xf32>
    %525 = arith.addf %524, %523 : vector<32x128xf32>
    %526 = arith.mulf %487, %525 : vector<32x128xf32>
    %c0_190 = arith.constant 0 : index
    %c0_191 = arith.constant 0 : index
    %c0_192 = arith.constant 0 : index
    %527 = vector.load %arg16[%c0_190, %c0_191, %c0_192] : memref<1x32x128xf32, #tpu.memory_space<vmem>>, vector<1x32x128xf32>
    %528 = vector.shape_cast %527 : vector<1x32x128xf32> to vector<32x128xf32>
    %529 = vector.shape_cast %526 : vector<32x128xf32> to vector<1x32x128xf32>
    tpu.vector_store %arg16[%c0_190, %c0_191, %c0_192], %529 {strides = array<i32>} : memref<1x32x128xf32, #tpu.memory_space<vmem>>, vector<1x32x128xf32>,
    %cst_193 = arith.constant 5.000000e-01 : f32
    %530 = vector.broadcast %cst_193 : f32 to vector<32x128xf32>
    %531 = arith.mulf %530, %300 : vector<32x128xf32>
    %cst_194 = arith.constant 0.707106769 : f32
    %532 = vector.broadcast %cst_194 : f32 to vector<32x128xf32>
    %533 = arith.mulf %300, %532 : vector<32x128xf32>
    %cst_195 = arith.constant 0.000000e+00 : f32
    %534 = vector.broadcast %cst_195 : f32 to vector<32x128xf32>
    %535 = arith.cmpf oge, %533, %534 : vector<32x128xf32>
    %cst_196 = arith.constant 1.000000e+00 : f32
    %cst_197 = arith.constant -1.000000e+00 : f32
    %536 = vector.broadcast %cst_196 : f32 to vector<32x128xf32>
    %537 = vector.broadcast %cst_197 : f32 to vector<32x128xf32>
    %538 = arith.select %535, %536, %537 : vector<32x128xi1>, vector<32x128xf32>
    %539 = math.absf %533 : vector<32x128xf32>
    %cst_198 = arith.constant 0.327591091 : f32
    %540 = vector.broadcast %cst_198 : f32 to vector<32x128xf32>
    %541 = arith.mulf %540, %539 : vector<32x128xf32>
    %cst_199 = arith.constant 1.000000e+00 : f32
    %542 = vector.broadcast %cst_199 : f32 to vector<32x128xf32>
    %543 = arith.addf %542, %541 : vector<32x128xf32>
    %cst_200 = arith.constant 1.000000e+00 : f32
    %544 = vector.broadcast %cst_200 : f32 to vector<32x128xf32>
    %545 = arith.divf %544, %543 : vector<32x128xf32>
    %cst_201 = arith.constant 1.06140542 : f32
    %546 = vector.broadcast %cst_201 : f32 to vector<32x128xf32>
    %547 = arith.mulf %546, %545 : vector<32x128xf32>
    %cst_202 = arith.constant -1.45315206 : f32
    %548 = vector.broadcast %cst_202 : f32 to vector<32x128xf32>
    %549 = arith.addf %547, %548 : vector<32x128xf32>
    %550 = arith.mulf %549, %545 : vector<32x128xf32>
    %cst_203 = arith.constant 1.42141378 : f32
    %551 = vector.broadcast %cst_203 : f32 to vector<32x128xf32>
    %552 = arith.addf %550, %551 : vector<32x128xf32>
    %553 = arith.mulf %552, %545 : vector<32x128xf32>
    %cst_204 = arith.constant -0.284496725 : f32
    %554 = vector.broadcast %cst_204 : f32 to vector<32x128xf32>
    %555 = arith.addf %553, %554 : vector<32x128xf32>
    %556 = arith.mulf %555, %545 : vector<32x128xf32>
    %cst_205 = arith.constant 0.254829586 : f32
    %557 = vector.broadcast %cst_205 : f32 to vector<32x128xf32>
    %558 = arith.addf %556, %557 : vector<32x128xf32>
    %559 = arith.mulf %558, %545 : vector<32x128xf32>
    %cst_206 = arith.constant 0.000000e+00 : f32
    %560 = vector.broadcast %cst_206 : f32 to vector<32x128xf32>
    %561 = arith.subf %560, %539 : vector<32x128xf32>
    %562 = arith.mulf %561, %539 : vector<32x128xf32>
    %563 = math.exp %562 : vector<32x128xf32>
    %564 = arith.mulf %559, %563 : vector<32x128xf32>
    %cst_207 = arith.constant 1.000000e+00 : f32
    %565 = vector.broadcast %cst_207 : f32 to vector<32x128xf32>
    %566 = arith.subf %565, %564 : vector<32x128xf32>
    %567 = arith.mulf %538, %566 : vector<32x128xf32>
    %cst_208 = arith.constant 1.000000e+00 : f32
    %568 = vector.broadcast %cst_208 : f32 to vector<32x128xf32>
    %569 = arith.addf %568, %567 : vector<32x128xf32>
    %570 = arith.mulf %531, %569 : vector<32x128xf32>
    %c0_209 = arith.constant 0 : index
    %c0_210 = arith.constant 0 : index
    %c0_211 = arith.constant 0 : index
    %571 = vector.load %arg17[%c0_209, %c0_210, %c0_211] : memref<1x32x128xf32, #tpu.memory_space<vmem>>, vector<1x32x128xf32>
    %572 = vector.shape_cast %571 : vector<1x32x128xf32> to vector<32x128xf32>
    %573 = vector.shape_cast %570 : vector<32x128xf32> to vector<1x32x128xf32>
    tpu.vector_store %arg17[%c0_209, %c0_210, %c0_211], %573 {strides = array<i32>} : memref<1x32x128xf32, #tpu.memory_space<vmem>>, vector<1x32x128xf32>,
    %cst_212 = arith.constant 5.000000e-01 : f32
    %574 = vector.broadcast %cst_212 : f32 to vector<32x128xf32>
    %575 = arith.mulf %574, %441 : vector<32x128xf32>
    %cst_213 = arith.constant 0.707106769 : f32
    %576 = vector.broadcast %cst_213 : f32 to vector<32x128xf32>
    %577 = arith.mulf %441, %576 : vector<32x128xf32>
    %cst_214 = arith.constant 0.000000e+00 : f32
    %578 = vector.broadcast %cst_214 : f32 to vector<32x128xf32>
    %579 = arith.cmpf oge, %577, %578 : vector<32x128xf32>
    %cst_215 = arith.constant 1.000000e+00 : f32
    %cst_216 = arith.constant -1.000000e+00 : f32
    %580 = vector.broadcast %cst_215 : f32 to vector<32x128xf32>
    %581 = vector.broadcast %cst_216 : f32 to vector<32x128xf32>
    %582 = arith.select %579, %580, %581 : vector<32x128xi1>, vector<32x128xf32>
    %583 = math.absf %577 : vector<32x128xf32>
    %cst_217 = arith.constant 0.327591091 : f32
    %584 = vector.broadcast %cst_217 : f32 to vector<32x128xf32>
    %585 = arith.mulf %584, %583 : vector<32x128xf32>
    %cst_218 = arith.constant 1.000000e+00 : f32
    %586 = vector.broadcast %cst_218 : f32 to vector<32x128xf32>
    %587 = arith.addf %586, %585 : vector<32x128xf32>
    %cst_219 = arith.constant 1.000000e+00 : f32
    %588 = vector.broadcast %cst_219 : f32 to vector<32x128xf32>
    %589 = arith.divf %588, %587 : vector<32x128xf32>
    %cst_220 = arith.constant 1.06140542 : f32
    %590 = vector.broadcast %cst_220 : f32 to vector<32x128xf32>
    %591 = arith.mulf %590, %589 : vector<32x128xf32>
    %cst_221 = arith.constant -1.45315206 : f32
    %592 = vector.broadcast %cst_221 : f32 to vector<32x128xf32>
    %593 = arith.addf %591, %592 : vector<32x128xf32>
    %594 = arith.mulf %593, %589 : vector<32x128xf32>
    %cst_222 = arith.constant 1.42141378 : f32
    %595 = vector.broadcast %cst_222 : f32 to vector<32x128xf32>
    %596 = arith.addf %594, %595 : vector<32x128xf32>
    %597 = arith.mulf %596, %589 : vector<32x128xf32>
    %cst_223 = arith.constant -0.284496725 : f32
    %598 = vector.broadcast %cst_223 : f32 to vector<32x128xf32>
    %599 = arith.addf %597, %598 : vector<32x128xf32>
    %600 = arith.mulf %599, %589 : vector<32x128xf32>
    %cst_224 = arith.constant 0.254829586 : f32
    %601 = vector.broadcast %cst_224 : f32 to vector<32x128xf32>
    %602 = arith.addf %600, %601 : vector<32x128xf32>
    %603 = arith.mulf %602, %589 : vector<32x128xf32>
    %cst_225 = arith.constant 0.000000e+00 : f32
    %604 = vector.broadcast %cst_225 : f32 to vector<32x128xf32>
    %605 = arith.subf %604, %583 : vector<32x128xf32>
    %606 = arith.mulf %605, %583 : vector<32x128xf32>
    %607 = math.exp %606 : vector<32x128xf32>
    %608 = arith.mulf %603, %607 : vector<32x128xf32>
    %cst_226 = arith.constant 1.000000e+00 : f32
    %609 = vector.broadcast %cst_226 : f32 to vector<32x128xf32>
    %610 = arith.subf %609, %608 : vector<32x128xf32>
    %611 = arith.mulf %582, %610 : vector<32x128xf32>
    %cst_227 = arith.constant 1.000000e+00 : f32
    %612 = vector.broadcast %cst_227 : f32 to vector<32x128xf32>
    %613 = arith.addf %612, %611 : vector<32x128xf32>
    %614 = arith.mulf %575, %613 : vector<32x128xf32>
    %c0_228 = arith.constant 0 : index
    %c0_229 = arith.constant 0 : index
    %c0_230 = arith.constant 0 : index
    %615 = vector.load %arg18[%c0_228, %c0_229, %c0_230] : memref<1x32x128xf32, #tpu.memory_space<vmem>>, vector<1x32x128xf32>
    %616 = vector.shape_cast %615 : vector<1x32x128xf32> to vector<32x128xf32>
    %617 = vector.shape_cast %614 : vector<32x128xf32> to vector<1x32x128xf32>
    tpu.vector_store %arg18[%c0_228, %c0_229, %c0_230], %617 {strides = array<i32>} : memref<1x32x128xf32, #tpu.memory_space<vmem>>, vector<1x32x128xf32>,
    return
  }
  func.func @transform_0(%arg0: i32) -> (i32, i32, i32) {
    %c0_i32 = arith.constant 0 : i32
    %c0_i32_0 = arith.constant 0 : i32
    %c0_i32_1 = arith.constant 0 : i32
    return %arg0, %c0_i32, %c0_i32_0 : i32, i32, i32
  }
  func.func @transform_1(%arg0: i32) -> (i32, i32, i32) {
    %c0_i32 = arith.constant 0 : i32
    %c0_i32_0 = arith.constant 0 : i32
    %c0_i32_1 = arith.constant 0 : i32
    return %arg0, %c0_i32, %c0_i32_0 : i32, i32, i32
  }
  func.func @transform_2(%arg0: i32) -> (i32, i32, i32) {
    %c0_i32 = arith.constant 0 : i32
    %c0_i32_0 = arith.constant 0 : i32
    %c0_i32_1 = arith.constant 0 : i32
    return %arg0, %c0_i32, %c0_i32_0 : i32, i32, i32
  }
  func.func @transform_3(%arg0: i32) -> (i32, i32, i32) {
    %c0_i32 = arith.constant 0 : i32
    %c0_i32_0 = arith.constant 0 : i32
    %c0_i32_1 = arith.constant 0 : i32
    return %arg0, %c0_i32, %c0_i32_0 : i32, i32, i32
  }
  func.func @transform_4(%arg0: i32) -> (i32, i32) {
    %c0_i32 = arith.constant 0 : i32
    %c0_i32_0 = arith.constant 0 : i32
    %c0_i32_1 = arith.constant 0 : i32
    return %c0_i32, %c0_i32_0 : i32, i32
  }
  func.func @transform_5(%arg0: i32) -> (i32, i32) {
    %c0_i32 = arith.constant 0 : i32
    %c0_i32_0 = arith.constant 0 : i32
    %c0_i32_1 = arith.constant 0 : i32
    return %c0_i32, %c0_i32_0 : i32, i32
  }
  func.func @transform_6(%arg0: i32) -> (i32, i32) {
    %c0_i32 = arith.constant 0 : i32
    %c0_i32_0 = arith.constant 0 : i32
    %c0_i32_1 = arith.constant 0 : i32
    return %c0_i32, %c0_i32_0 : i32, i32
  }
  func.func @transform_7(%arg0: i32) -> (i32, i32) {
    %c0_i32 = arith.constant 0 : i32
    %c0_i32_0 = arith.constant 0 : i32
    %c0_i32_1 = arith.constant 0 : i32
    return %c0_i32, %c0_i32_0 : i32, i32
  }
  func.func @transform_8(%arg0: i32) -> (i32, i32) {
    %c0_i32 = arith.constant 0 : i32
    %c0_i32_0 = arith.constant 0 : i32
    %c0_i32_1 = arith.constant 0 : i32
    return %c0_i32, %c0_i32_0 : i32, i32
  }
  func.func @transform_9(%arg0: i32) -> (i32, i32) {
    %c0_i32 = arith.constant 0 : i32
    %c0_i32_0 = arith.constant 0 : i32
    %c0_i32_1 = arith.constant 0 : i32
    return %c0_i32, %c0_i32_0 : i32, i32
  }
  func.func @transform_10(%arg0: i32) -> (i32, i32) {
    %c0_i32 = arith.constant 0 : i32
    %c0_i32_0 = arith.constant 0 : i32
    %c0_i32_1 = arith.constant 0 : i32
    return %c0_i32, %c0_i32_0 : i32, i32
  }
  func.func @transform_11(%arg0: i32) -> (i32, i32) {
    %c0_i32 = arith.constant 0 : i32
    %c0_i32_0 = arith.constant 0 : i32
    %c0_i32_1 = arith.constant 0 : i32
    return %c0_i32, %c0_i32_0 : i32, i32
  }
  func.func @transform_12(%arg0: i32) -> (i32, i32) {
    %c0_i32 = arith.constant 0 : i32
    %c0_i32_0 = arith.constant 0 : i32
    %c0_i32_1 = arith.constant 0 : i32
    return %c0_i32, %c0_i32_0 : i32, i32
  }
  func.func @transform_13(%arg0: i32) -> (i32, i32) {
    %c0_i32 = arith.constant 0 : i32
    %c0_i32_0 = arith.constant 0 : i32
    %c0_i32_1 = arith.constant 0 : i32
    return %c0_i32, %c0_i32_0 : i32, i32
  }
  func.func @transform_14(%arg0: i32) -> (i32, i32, i32) {
    %c0_i32 = arith.constant 0 : i32
    %c0_i32_0 = arith.constant 0 : i32
    %c0_i32_1 = arith.constant 0 : i32
    return %arg0, %c0_i32, %c0_i32_0 : i32, i32, i32
  }
  func.func @transform_15(%arg0: i32) -> (i32, i32, i32) {
    %c0_i32 = arith.constant 0 : i32
    %c0_i32_0 = arith.constant 0 : i32
    %c0_i32_1 = arith.constant 0 : i32
    return %arg0, %c0_i32, %c0_i32_0 : i32, i32, i32
  }
  func.func @transform_16(%arg0: i32) -> (i32, i32, i32) {
    %c0_i32 = arith.constant 0 : i32
    %c0_i32_0 = arith.constant 0 : i32
    %c0_i32_1 = arith.constant 0 : i32
    return %arg0, %c0_i32, %c0_i32_0 : i32, i32, i32
  }
  func.func @transform_17(%arg0: i32) -> (i32, i32, i32) {
    %c0_i32 = arith.constant 0 : i32
    %c0_i32_0 = arith.constant 0 : i32
    %c0_i32_1 = arith.constant 0 : i32
    return %arg0, %c0_i32, %c0_i32_0 : i32, i32, i32
  }
}

</mosaic_0001>

<llo_original>
// kernel: tile.58
$region0: #{tile.58}
  #allocation0 [shape = 's32[1]{0}', space=sflag, size = 0x4, scoped, tag = 'scoped memory for tile.58']
  %s0 = inlined_call_operand.vmem [shape: f32[4], index: 0, kind: input, shape index: {}]
  %s1 = inlined_call_operand.vmem [shape: f32[32,4], index: 1, kind: output, shape index: {}]
  // Predicated region
  $region2: #{tile.58} parent=0 // pred_check
    _
  $region3: #{tile.58} parent=0 // pred_check_branch
    %3 = sbr.rel (0) target = $region5
  $region4: #{tile.58} parent=0 // pred_region
    _
  $region5: #{tile.58} parent=0 // pred_fallthru
    _
  %v4 = vld [vmem:[%s0] ss:$0 sm:$0xff]
  %5 = vst [vmem:[%s1] sm:$0xff] %v4
  %s6 = scalar_lea.vmem %s1, 8
  %7 = vst [vmem:[%s6] sm:$0xff] %v4
  %s8 = scalar_lea.vmem %s1, 16
  %9 = vst [vmem:[%s8] sm:$0xff] %v4
  %s10 = scalar_lea.vmem %s1, 24
  %11 = vst [vmem:[%s10] sm:$0xff] %v4

// kernel: tile.59
$region0: #{tile.59}
  %s0 = inlined_call_operand.vmem [shape: f32[32,4], index: 0, kind: input, shape index: {}]
  %s1 = inlined_call_operand.vmem [shape: f32[1,128], index: 1, kind: output, shape index: {}]
  $region1: #{tile.59} parent=0
    #allocation0 [shape = 'u8[4096]{0}', space=vmem, size = 0x1000, scoped, tag = 'scoped mem for output reshape']
    %v2 = vld [vmem:[%s0] sm:$0x1]
    %vm3 = vcmask 31744
    %4 = vst.msk [vmem:[#allocation0] sm:$0x1] %vm3, %v2
    %s5 = scalar_lea.vmem %s0, 31
    %v6 = vld [vmem:[%s5] sm:$0x1]
    %7 = vrot.lane.b32.xlu0 %v6, 124
    %v8 = vpop.permute.xlu0 %7
    %vm9 = vcmask 1048544
    %10 = vst.msk [vmem:[#allocation0] sm:$0x1] %vm9, %v8
    %s11 = scalar_lea.vmem %s0, 30
    %v12 = vld [vmem:[%s11] sm:$0x1]
    %13 = vrot.lane.b32.xlu0 %v12, 120
    %v14 = vpop.permute.xlu0 %13
    %vm15 = vcmask 1015744
    %16 = vst.msk [vmem:[#allocation0] sm:$0x1] %vm15, %v14
    %s17 = scalar_lea.vmem %s0, 29
    %v18 = vld [vmem:[%s17] sm:$0x1]
    %19 = vrot.lane.b32.xlu0 %v18, 116
    %v20 = vpop.permute.xlu0 %19
    %vm21 = vcmask 982944
    %22 = vst.msk [vmem:[#allocation0] sm:$0x1] %vm21, %v20
    %s23 = scalar_lea.vmem %s0, 28
    %v24 = vld [vmem:[%s23] sm:$0x1]
    %25 = vrot.lane.b32.xlu0 %v24, 112
    %v26 = vpop.permute.xlu0 %25
    %vm27 = vcmask 950144
    %28 = vst.msk [vmem:[#allocation0] sm:$0x1] %vm27, %v26
    %s29 = scalar_lea.vmem %s0, 27
    %v30 = vld [vmem:[%s29] sm:$0x1]
    %31 = vrot.lane.b32.xlu0 %v30, 108
    %v32 = vpop.permute.xlu0 %31
    %vm33 = vcmask 917344
    %34 = vst.msk [vmem:[#allocation0] sm:$0x1] %vm33, %v32
    %s35 = scalar_lea.vmem %s0, 26
    %v36 = vld [vmem:[%s35] sm:$0x1]
    %37 = vrot.lane.b32.xlu0 %v36, 104
    %v38 = vpop.permute.xlu0 %37
    %vm39 = vcmask 884544
    %40 = vst.msk [vmem:[#allocation0] sm:$0x1] %vm39, %v38
    %s41 = scalar_lea.vmem %s0, 25
    %v42 = vld [vmem:[%s41] sm:$0x1]
    %43 = vrot.lane.b32.xlu0 %v42, 100
    %v44 = vpop.permute.xlu0 %43
    %vm45 = vcmask 851744
    %46 = vst.msk [vmem:[#allocation0] sm:$0x1] %vm45, %v44
    %s47 = scalar_lea.vmem %s0, 24
    %v48 = vld [vmem:[%s47] sm:$0x1]
    %49 = vrot.lane.b32.xlu0 %v48, 96
    %v50 = vpop.permute.xlu0 %49
    %vm51 = vcmask 818944
    %52 = vst.msk [vmem:[#allocation0] sm:$0x1] %vm51, %v50
    %s53 = scalar_lea.vmem %s0, 23
    %v54 = vld [vmem:[%s53] sm:$0x1]
    %55 = vrot.lane.b32.xlu0 %v54, 92
    %v56 = vpop.permute.xlu0 %55
    %vm57 = vcmask 786144
    %58 = vst.msk [vmem:[#allocation0] sm:$0x1] %vm57, %v56
    %s59 = scalar_lea.vmem %s0, 22
    %v60 = vld [vmem:[%s59] sm:$0x1]
    %61 = vrot.lane.b32.xlu0 %v60, 88
    %v62 = vpop.permute.xlu0 %61
    %vm63 = vcmask 753344
    %64 = vst.msk [vmem:[#allocation0] sm:$0x1] %vm63, %v62
    %s65 = scalar_lea.vmem %s0, 21
    %v66 = vld [vmem:[%s65] sm:$0x1]
    %67 = vrot.lane.b32.xlu0 %v66, 84
    %v68 = vpop.permute.xlu0 %67
    %vm69 = vcmask 720544
    %70 = vst.msk [vmem:[#allocation0] sm:$0x1] %vm69, %v68
    %s71 = scalar_lea.vmem %s0, 20
    %v72 = vld [vmem:[%s71] sm:$0x1]
    %73 = vrot.lane.b32.xlu0 %v72, 80
    %v74 = vpop.permute.xlu0 %73
    %vm75 = vcmask 687744
    %76 = vst.msk [vmem:[#allocation0] sm:$0x1] %vm75, %v74
    %s77 = scalar_lea.vmem %s0, 19
    %v78 = vld [vmem:[%s77] sm:$0x1]
    %79 = vrot.lane.b32.xlu0 %v78, 76
    %v80 = vpop.permute.xlu0 %79
    %vm81 = vcmask 654944
    %82 = vst.msk [vmem:[#allocation0] sm:$0x1] %vm81, %v80
    %s83 = scalar_lea.vmem %s0, 18
    %v84 = vld [vmem:[%s83] sm:$0x1]
    %85 = vrot.lane.b32.xlu0 %v84, 72
    %v86 = vpop.permute.xlu0 %85
    %vm87 = vcmask 622144
    %88 = vst.msk [vmem:[#allocation0] sm:$0x1] %vm87, %v86
    %s89 = scalar_lea.vmem %s0, 17
    %v90 = vld [vmem:[%s89] sm:$0x1]
    %91 = vrot.lane.b32.xlu0 %v90, 68
    %v92 = vpop.permute.xlu0 %91
    %vm93 = vcmask 589344
    %94 = vst.msk [vmem:[#allocation0] sm:$0x1] %vm93, %v92
    %s95 = scalar_lea.vmem %s0, 16
    %v96 = vld [vmem:[%s95] sm:$0x1]
    %97 = vrot.lane.b32.xlu0 %v96, 64
    %v98 = vpop.permute.xlu0 %97
    %vm99 = vcmask 556544
    %100 = vst.msk [vmem:[#allocation0] sm:$0x1] %vm99, %v98
    %s101 = scalar_lea.vmem %s0, 15
    %v102 = vld [vmem:[%s101] sm:$0x1]
    %103 = vrot.lane.b32.xlu0 %v102, 60
    %v104 = vpop.permute.xlu0 %103
    %vm105 = vcmask 523744
    %106 = vst.msk [vmem:[#allocation0] sm:$0x1] %vm105, %v104
    %s107 = scalar_lea.vmem %s0, 14
    %v108 = vld [vmem:[%s107] sm:$0x1]
    %109 = vrot.lane.b32.xlu0 %v108, 56
    %v110 = vpop.permute.xlu0 %109
    %vm111 = vcmask 490944
    %112 = vst.msk [vmem:[#allocation0] sm:$0x1] %vm111, %v110
    %s113 = scalar_lea.vmem %s0, 13
    %v114 = vld [vmem:[%s113] sm:$0x1]
    %115 = vrot.lane.b32.xlu0 %v114, 52
    %v116 = vpop.permute.xlu0 %115
    %vm117 = vcmask 458144
    %118 = vst.msk [vmem:[#allocation0] sm:$0x1] %vm117, %v116
    %s119 = scalar_lea.vmem %s0, 12
    %v120 = vld [vmem:[%s119] sm:$0x1]
    %121 = vrot.lane.b32.xlu0 %v120, 48
    %v122 = vpop.permute.xlu0 %121
    %vm123 = vcmask 425344
    %124 = vst.msk [vmem:[#allocation0] sm:$0x1] %vm123, %v122
    %s125 = scalar_lea.vmem %s0, 11
    %v126 = vld [vmem:[%s125] sm:$0x1]
    %127 = vrot.lane.b32.xlu0 %v126, 44
    %v128 = vpop.permute.xlu0 %127
    %vm129 = vcmask 392544
    %130 = vst.msk [vmem:[#allocation0] sm:$0x1] %vm129, %v128
    %s131 = scalar_lea.vmem %s0, 10
    %v132 = vld [vmem:[%s131] sm:$0x1]
    %133 = vrot.lane.b32.xlu0 %v132, 40
    %v134 = vpop.permute.xlu0 %133
    %vm135 = vcmask 359744
    %136 = vst.msk [vmem:[#allocation0] sm:$0x1] %vm135, %v134
    %s137 = scalar_lea.vmem %s0, 9
    %v138 = vld [vmem:[%s137] sm:$0x1]
    %139 = vrot.lane.b32.xlu0 %v138, 36
    %v140 = vpop.permute.xlu0 %139
    %vm141 = vcmask 326944
    %142 = vst.msk [vmem:[#allocation0] sm:$0x1] %vm141, %v140
    %s143 = scalar_lea.vmem %s0, 8
    %v144 = vld [vmem:[%s143] sm:$0x1]
    %145 = vrot.lane.b32.xlu0 %v144, 32
    %v146 = vpop.permute.xlu0 %145
    %vm147 = vcmask 294144
    %148 = vst.msk [vmem:[#allocation0] sm:$0x1] %vm147, %v146
    %s149 = scalar_lea.vmem %s0, 7
    %v150 = vld [vmem:[%s149] sm:$0x1]
    %151 = vrot.lane.b32.xlu0 %v150, 28
    %v152 = vpop.permute.xlu0 %151
    %vm153 = vcmask 261344
    %154 = vst.msk [vmem:[#allocation0] sm:$0x1] %vm153, %v152
    %s155 = scalar_lea.vmem %s0, 6
    %v156 = vld [vmem:[%s155] sm:$0x1]
    %157 = vrot.lane.b32.xlu0 %v156, 24
    %v158 = vpop.permute.xlu0 %157
    %vm159 = vcmask 228544
    %160 = vst.msk [vmem:[#allocation0] sm:$0x1] %vm159, %v158
    %s161 = scalar_lea.vmem %s0, 5
    %v162 = vld [vmem:[%s161] sm:$0x1]
    %163 = vrot.lane.b32.xlu0 %v162, 20
    %v164 = vpop.permute.xlu0 %163
    %vm165 = vcmask 195744
    %166 = vst.msk [vmem:[#allocation0] sm:$0x1] %vm165, %v164
    %s167 = scalar_lea.vmem %s0, 4
    %v168 = vld [vmem:[%s167] sm:$0x1]
    %169 = vrot.lane.b32.xlu0 %v168, 16
    %v170 = vpop.permute.xlu0 %169
    %vm171 = vcmask 162944
    %172 = vst.msk [vmem:[#allocation0] sm:$0x1] %vm171, %v170
    %s173 = scalar_lea.vmem %s0, 3
    %v174 = vld [vmem:[%s173] sm:$0x1]
    %175 = vrot.lane.b32.xlu0 %v174, 12
    %v176 = vpop.permute.xlu0 %175
    %vm177 = vcmask 130144
    %178 = vst.msk [vmem:[#allocation0] sm:$0x1] %vm177, %v176
    %s179 = scalar_lea.vmem %s0, 2
    %v180 = vld [vmem:[%s179] sm:$0x1]
    %181 = vrot.lane.b32.xlu0 %v180, 8
    %v182 = vpop.permute.xlu0 %181
    %vm183 = vcmask 97344
    %184 = vst.msk [vmem:[#allocation0] sm:$0x1] %vm183, %v182
    %s185 = scalar_lea.vmem %s0, 1
    %v186 = vld [vmem:[%s185] sm:$0x1]
    %187 = vrot.lane.b32.xlu0 %v186, 4
    %v188 = vpop.permute.xlu0 %187
    %vm189 = vcmask 64544
    %190 = vst.msk [vmem:[#allocation0] sm:$0x1] %vm189, %v188
    %s192 = ssub.s32 2, 1
    %v193 = vld [vmem:[#allocation0] sm:%s192]
    %s195 = ssub.s32 2, 1
    %196 = vst [vmem:[%s1] sm:%s195] %v193

// kernel: dconv_forward.3
$region0: #{dconv_forward.3}
  #allocation0 [shape = 'u32[]', space=smem, size = 0x4, offset = 0x4, fixed_abs, tag = 'smem constant byte address 0x4 - core index']
  #allocation1 [shape = 'u32[72,128]{1,0:T(1,128)}', space=vmem, size = 0x9000, scoped, tag = 'internal scratch']
  %s0 = inlined_call_operand.vmem [shape: f32[16,2048], index: 0, kind: input, shape index: {}]
  %s1 = inlined_call_operand.vmem [shape: f32[16,16], index: 1, kind: input, shape index: {}]
  %s2 = inlined_call_operand.vmem [shape: f32[16,1], index: 2, kind: input, shape index: {}]
  %s3 = inlined_call_operand.vmem [shape: f32[16,2048], index: 3, kind: output, shape index: {}]
  %s4 = sld [smem:[#allocation0]]
  $region87: #{dconv_forward.3} parent=0
    _
  %s6 = ssub.s32 1, %s4
  %s7 = scalar_select 0, %s6, %s4
  $region1: #{dconv_forward.3} parent=0
    #allocation2 [shape = 'u8[131072]{0}', space=vmem, size = 0x20000, scoped, tag = 'input window, operand 0']
    #allocation3 [shape = 'u8[131072]{0}', space=vmem, size = 0x20000, scoped, tag = 'output window, operand 0']
    loop: start=0, step=1, limit=4
    $region2: #{dconv_forward.3} parent=1 // loop_pre_header
      _
    $region3: #{dconv_forward.3} parent=1 // loop_header
      %s9 = sphi 0, %s13
      %p10 = scmp.ge.s32.totalorder %s9, 4
      %s19 = sphi 0, %s21
      %s22 = sphi 0, %s19
      %s23 = sphi 0, %s22
      %s39 = sphi 0, %s23
      %s43 = sphi 0, %s43
      %s45 = sphi 0, %s43
      %s46 = sphi 0, %s45
      %s60 = sphi 0, %s46
      %s64 = sphi 0, %s64
      %s66 = sphi 0, %s64
      %s67 = sphi 0, %s66
      %s81 = sphi 0, %s67
      %s87 = sphi 0, %s89
      %s90 = sphi 0, %s87
      %s91 = sphi 0, %s90
      %s107 = sphi 0, %s91
    $region4: #{dconv_forward.3} parent=1 // loop_header_branch
      %12 = sbr.rel (%p10) target = $region8
    $region5: #{dconv_forward.3} parent=1 // loop_body
      %s14 = ssub.s32 %s9, 1
      %s15 = ssub.s32 %s9, 2
      %s16 = sadd.s32 %s9, 1
      %s17 = ssub.s32 %s9, %s16
      %p18 = scmp.eq.s32.totalorder %s17, 0
      %s20 = sadd.s32 %s19, 1
      %s21 = scalar_select %p18, %s19, %s20
      %p24 = pneg %p18
      %p25 = scmp.eq.s32.totalorder %s9, 1
      %p26 = por %p24, %p25
      %p27 = scmp.ne.s32.totalorder %s19, %s22
      %p28 = scmp.eq.s32.totalorder %s9, 0
      %p29 = por %p27, %p28
      %p30 = scmp.ne.s32.totalorder %s19, %s22
      %p31 = scmp.eq.s32.totalorder %s14, 1
      %p32 = por %p30, %p31
      %p33 = scmp.ne.s32.totalorder %s22, %s23
      %p34 = scmp.eq.s32.totalorder %s14, 0
      %p35 = por %p33, %p34
      %p36 = scmp.ne.s32.totalorder %s22, %s23
      %p37 = scmp.eq.s32.totalorder %s15, 1
      %p38 = por %p36, %p37
      %p40 = scmp.ne.s32.totalorder %s23, %s39
      %p41 = scmp.eq.s32.totalorder %s15, 0
      %p42 = por %p40, %p41
      %s44 = sadd.s32 %s43, 1
      %p47 = scmp.eq.s32.totalorder %s9, 1
      %p48 = scmp.ne.s32.totalorder %s43, %s45
      %p49 = scmp.eq.s32.totalorder %s9, 0
      %p50 = por %p48, %p49
      %p51 = scmp.ne.s32.totalorder %s43, %s45
      %p52 = scmp.eq.s32.totalorder %s14, 1
      %p53 = por %p51, %p52
      %p54 = scmp.ne.s32.totalorder %s45, %s46
      %p55 = scmp.eq.s32.totalorder %s14, 0
      %p56 = por %p54, %p55
      %p57 = scmp.ne.s32.totalorder %s45, %s46
      %p58 = scmp.eq.s32.totalorder %s15, 1
      %p59 = por %p57, %p58
      %p61 = scmp.ne.s32.totalorder %s46, %s60
      %p62 = scmp.eq.s32.totalorder %s15, 0
      %p63 = por %p61, %p62
      %s65 = sadd.s32 %s64, 1
      %p68 = scmp.eq.s32.totalorder %s9, 1
      %p69 = scmp.ne.s32.totalorder %s64, %s66
      %p70 = scmp.eq.s32.totalorder %s9, 0
      %p71 = por %p69, %p70
      %p72 = scmp.ne.s32.totalorder %s64, %s66
      %p73 = scmp.eq.s32.totalorder %s14, 1
      %p74 = por %p72, %p73
      %p75 = scmp.ne.s32.totalorder %s66, %s67
      %p76 = scmp.eq.s32.totalorder %s14, 0
      %p77 = por %p75, %p76
      %p78 = scmp.ne.s32.totalorder %s66, %s67
      %p79 = scmp.eq.s32.totalorder %s15, 1
      %p80 = por %p78, %p79
      %p82 = scmp.ne.s32.totalorder %s67, %s81
      %p83 = scmp.eq.s32.totalorder %s15, 0
      %p84 = por %p82, %p83
      %s85 = ssub.s32 %s9, %s16
      %p86 = scmp.eq.s32.totalorder %s85, 0
      %s88 = sadd.s32 %s87, 1
      %s89 = scalar_select %p86, %s87, %s88
      %p92 = pneg %p86
      %p93 = scmp.eq.s32.totalorder %s9, 1
      %p94 = por %p92, %p93
      %p95 = scmp.ne.s32.totalorder %s87, %s90
      %p96 = scmp.eq.s32.totalorder %s9, 0
      %p97 = por %p95, %p96
      %p98 = scmp.ne.s32.totalorder %s87, %s90
      %p99 = scmp.eq.s32.totalorder %s14, 1
      %p100 = por %p98, %p99
      %p101 = scmp.ne.s32.totalorder %s90, %s91
      %p102 = scmp.eq.s32.totalorder %s14, 0
      %p103 = por %p101, %p102
      %p104 = scmp.ne.s32.totalorder %s90, %s91
      %p105 = scmp.eq.s32.totalorder %s15, 1
      %p106 = por %p104, %p105
      %p108 = scmp.ne.s32.totalorder %s91, %s107
      %p109 = scmp.eq.s32.totalorder %s15, 0
      %p110 = por %p108, %p109
      %p111 = scmp.le.s32.totalorder 1, %s9
      %p112 = scmp.lt.s32.totalorder %s9, 3
      %p113 = pnand %p111, %p112
      %p114 = pneg %p113
      // Predicated region
      $region9: #{dconv_forward.3} parent=5 // pred_check
        _
      $region10: #{dconv_forward.3} parent=5 // pred_check_branch
        %116 = sbr.rel (%p113) target = $region12
      $region11: #{dconv_forward.3} parent=5 // pred_region
        %s117 = ssub.s32 %s9, 1
        // Predicated region
        $region13: #{dconv_forward.3} parent=11 // pred_check
          %p118 = pneg %p56
        $region14: #{dconv_forward.3} parent=11 // pred_check_branch
          %120 = sbr.rel (%p118) target = $region16
        $region15: #{dconv_forward.3} parent=11 // pred_region
          _
        $region16: #{dconv_forward.3} parent=11 // pred_fallthru
          _
        // Predicated region
        $region17: #{dconv_forward.3} parent=11 // pred_check
          %p121 = pneg %p77
        $region18: #{dconv_forward.3} parent=11 // pred_check_branch
          %123 = sbr.rel (%p121) target = $region20
        $region19: #{dconv_forward.3} parent=11 // pred_region
          _
        $region20: #{dconv_forward.3} parent=11 // pred_fallthru
          _
      $region12: #{dconv_forward.3} parent=5 // pred_fallthru
        _
      %p124 = scmp.lt.s32.totalorder %s9, 2
      // Predicated region
      $region21: #{dconv_forward.3} parent=5 // pred_check
        %p125 = pneg %p124
      $region22: #{dconv_forward.3} parent=5 // pred_check_branch
        %127 = sbr.rel (%p125) target = $region24
      $region23: #{dconv_forward.3} parent=5 // pred_region
        // Predicated region
        $region25: #{dconv_forward.3} parent=23 // pred_check
          %p128 = pneg %p29
        $region26: #{dconv_forward.3} parent=23 // pred_check_branch
          %130 = sbr.rel (%p128) target = $region28
        $region27: #{dconv_forward.3} parent=23 // pred_region
          %s131 = sand.u32 %s19, 1
          %s132 = sand.u32 %s19, 1
          %s133 = smul.addr %s132, 128
          %s134 = scalar_lea.vmem [#allocation2], %s133
          %s135 = smul.u32 8, %s9
          %s136 = smul.addr %s135, 8
          %s137 = scalar_lea.vmem %s0, %s136
          // Predicated region
          $region29: #{dconv_forward.3} parent=27 // pred_check
            _
          $region30: #{dconv_forward.3} parent=27 // pred_check_branch
            %139 = sbr.rel (0) target = $region32
          $region31: #{dconv_forward.3} parent=27 // pred_region
            // Predicated region
            $region33: #{dconv_forward.3} parent=31 // pred_check
              _
            $region34: #{dconv_forward.3} parent=31 // pred_check_branch
              %141 = sbr.rel (0) target = $region36
            $region35: #{dconv_forward.3} parent=31 // pred_region
              loop: start=0, step=1, limit=1
              $region37: #{dconv_forward.3} parent=35 // loop_pre_header
                _
              $region38: #{dconv_forward.3} parent=35 // loop_header
                %s143 = sphi 0, %s147
                %p144 = scmp.ge.s32.totalorder %s143, 1
                %s148 = sphi %s137, %s137
                %s149 = sphi %s134, %s134
              $region39: #{dconv_forward.3} parent=35 // loop_header_branch
                %146 = sbr.rel (%p144) target = $region43
              $region40: #{dconv_forward.3} parent=35 // loop_body
                %v150 = vld [vmem:[%s148] sm:$0xff]
                %151 = vst [vmem:[%s149] sm:$0xff] %v150
                %v152 = vld [vmem:[%s148 + $0x8] sm:$0xff]
                %153 = vst [vmem:[%s149 + $0x8] sm:$0xff] %v152
                %v154 = vld [vmem:[%s148 + $0x10] sm:$0xff]
                %155 = vst [vmem:[%s149 + $0x10] sm:$0xff] %v154
                %v156 = vld [vmem:[%s148 + $0x18] sm:$0xff]
                %157 = vst [vmem:[%s149 + $0x18] sm:$0xff] %v156
                %v158 = vld [vmem:[%s148 + $0x20] sm:$0xff]
                %159 = vst [vmem:[%s149 + $0x20] sm:$0xff] %v158
                %v160 = vld [vmem:[%s148 + $0x28] sm:$0xff]
                %161 = vst [vmem:[%s149 + $0x28] sm:$0xff] %v160
                %v162 = vld [vmem:[%s148 + $0x30] sm:$0xff]
                %163 = vst [vmem:[%s149 + $0x30] sm:$0xff] %v162
                %v164 = vld [vmem:[%s148 + $0x38] sm:$0xff]
                %165 = vst [vmem:[%s149 + $0x38] sm:$0xff] %v164
                %v166 = vld [vmem:[%s148 + $0x80] sm:$0xff]
                %167 = vst [vmem:[%s149 + $0x40] sm:$0xff] %v166
                %v168 = vld [vmem:[%s148 + $0x88] sm:$0xff]
                %169 = vst [vmem:[%s149 + $0x48] sm:$0xff] %v168
                %v170 = vld [vmem:[%s148 + $0x90] sm:$0xff]
                %171 = vst [vmem:[%s149 + $0x50] sm:$0xff] %v170
                %v172 = vld [vmem:[%s148 + $0x98] sm:$0xff]
                %173 = vst [vmem:[%s149 + $0x58] sm:$0xff] %v172
                %v174 = vld [vmem:[%s148 + $0xa0] sm:$0xff]
                %175 = vst [vmem:[%s149 + $0x60] sm:$0xff] %v174
                %v176 = vld [vmem:[%s148 + $0xa8] sm:$0xff]
                %177 = vst [vmem:[%s149 + $0x68] sm:$0xff] %v176
                %v178 = vld [vmem:[%s148 + $0xb0] sm:$0xff]
                %179 = vst [vmem:[%s149 + $0x70] sm:$0xff] %v178
                %v180 = vld [vmem:[%s148 + $0xb8] sm:$0xff]
                %181 = vst [vmem:[%s149 + $0x78] sm:$0xff] %v180
              $region41: #{dconv_forward.3} parent=35 // loop_footer
                %s147 = sadd.s32 1, %s143
              $region42: #{dconv_forward.3} parent=35 // loop_footer_branch
                %142 = sbr.rel target = $region38
              $region43: #{dconv_forward.3} parent=35 // loop_exit
                _
            $region36: #{dconv_forward.3} parent=31 // pred_fallthru
              _
            // Predicated region
            $region44: #{dconv_forward.3} parent=31 // pred_check
              _
            $region45: #{dconv_forward.3} parent=31 // pred_check_branch
              %183 = sbr.rel target = $region47
            $region46: #{dconv_forward.3} parent=31 // pred_region
              _
            $region47: #{dconv_forward.3} parent=31 // pred_fallthru
              _
          $region32: #{dconv_forward.3} parent=27 // pred_fallthru
            _
          %184 = vnop
        $region28: #{dconv_forward.3} parent=23 // pred_fallthru
          _
      $region24: #{dconv_forward.3} parent=5 // pred_fallthru
        _
      %p185 = scmp.le.s32.totalorder 1, %s9
      %p186 = scmp.lt.s32.totalorder %s9, 3
      %p187 = pnand %p185, %p186
      %p188 = pneg %p187
      // Predicated region
      $region48: #{dconv_forward.3} parent=5 // pred_check
        _
      $region49: #{dconv_forward.3} parent=5 // pred_check_branch
        %190 = sbr.rel (%p187) target = $region51
      $region50: #{dconv_forward.3} parent=5 // pred_region
        %s191 = ssub.s32 %s9, 1
        %s192 = sand.u32 %s22, 1
        %s193 = sand.u32 %s22, 1
        %s194 = smul.addr %s193, 128
        %s195 = scalar_lea.vmem [#allocation2], %s194
        // Predicated region
        $region52: #{dconv_forward.3} parent=50 // pred_check
          %p196 = pneg %p35
        $region53: #{dconv_forward.3} parent=50 // pred_check_branch
          %198 = sbr.rel (%p196) target = $region55
        $region54: #{dconv_forward.3} parent=50 // pred_region
          _
        $region55: #{dconv_forward.3} parent=50 // pred_fallthru
          _
        %s199 = sand.u32 %s22, 1
        %s200 = sand.u32 %s22, 1
        %s201 = smul.addr %s200, 128
        %s202 = scalar_lea.vmem [#allocation2], %s201
        %p203 = pneg %p35
        %p204 = pneg %p32
        %p205 = pneg %p56
        %p206 = pneg %p53
        %p207 = pneg %p77
        %p208 = pneg %p74
        %p209 = pneg %p103
        %p210 = pneg %p100
        %s211 = sand.u32 %s90, 1
        %s212 = sand.u32 %s90, 1
        %s213 = smul.addr %s212, 128
        %s214 = scalar_lea.vmem [#allocation3], %s213
        %s215 = smul.u32 8, %s14
        %s216 = smul.u32 8, %s14
        %v217 = vld [vmem:[%s1] sm:$0xff]
        %v218 = vld [vmem:[%s1 + $0x8] sm:$0xff]
        %v219 = vld [vmem:[%s195] sm:$0xff]
        %v220 = vld [vmem:[%s195 + $0x8] sm:$0xff]
        %v221 = vld [vmem:[%s195 + $0x10] sm:$0xff]
        %v222 = vld [vmem:[%s195 + $0x18] sm:$0xff]
        %v223 = vld [vmem:[%s195 + $0x20] sm:$0xff]
        %v224 = vld [vmem:[%s195 + $0x28] sm:$0xff]
        %v225 = vld [vmem:[%s195 + $0x30] sm:$0xff]
        %v226 = vld [vmem:[%s195 + $0x38] sm:$0xff]
        %v227 = vld [vmem:[%s195 + $0x40] sm:$0xff]
        %v228 = vld [vmem:[%s195 + $0x48] sm:$0xff]
        %v229 = vld [vmem:[%s195 + $0x50] sm:$0xff]
        %v230 = vld [vmem:[%s195 + $0x58] sm:$0xff]
        %v231 = vld [vmem:[%s195 + $0x60] sm:$0xff]
        %v232 = vld [vmem:[%s195 + $0x68] sm:$0xff]
        %v233 = vld [vmem:[%s195 + $0x70] sm:$0xff]
        %v234 = vld [vmem:[%s195 + $0x78] sm:$0xff]
        %v235 = vld [vmem:[%s2] sm:$0xff]
        %v236 = vld [vmem:[%s2 + $0x8] sm:$0xff]
        %238 = vset.pattern.permute.xlu0 0
        %239 = vperm.xlu0 %238, %v235
        %v240 = vpop.permute.xlu0 %239
        %243 = vset.pattern.permute.xlu0 0
        %244 = vperm.xlu0 %243, %v236
        %v245 = vpop.permute.xlu0 %244
        %vm247 = vcmask 130048
        %v249 = vsel %vm247, %v217, 0
        %v252 = vsel %vm247, %v218, 0
        %254 = vmatpush.msra.mxu0 0.0
        %255 = vmatpush.msra.mxu0 0.0
        %256 = vmatpush.msra.mxu0 0.0
        %257 = vmatpush.msra.mxu0 0.0
        %258 = vmatpush.msra.mxu0 0.0
        %259 = vmatpush.msra.mxu0 0.0
        %260 = vmatpush.msra.mxu0 0.0
        %261 = vmatpush.msra.mxu0 0.0
        %262 = vmatpush.msra.mxu0 0.0
        %263 = vmatpush.msra.mxu0 0.0
        %264 = vmatpush.msra.mxu0 0.0
        %265 = vmatpush.msra.mxu0 0.0
        %266 = vmatpush.msra.mxu0 0.0
        %267 = vmatpush.msra.mxu0 0.0
        %268 = vmatpush.msra.mxu0 %v227
        %269 = vmatpush.msra.mxu0 %v219
        %270 = vmatmul.f32.gmra.mxu0 %v249
        %v271 = vpop.f32.mrf.mxu0
        %v272 = vadd.f32 %v240, %v271
        %273 = vmatmul.f32.gmra.mxu0 %v252
        %v274 = vpop.f32.mrf.mxu0
        %v275 = vadd.f32 %v245, %v274
        %276 = vdwg.mxu0
        %277 = vmatpush.msra.mxu0 0.0
        %278 = vmatpush.msra.mxu0 0.0
        %279 = vmatpush.msra.mxu0 0.0
        %280 = vmatpush.msra.mxu0 0.0
        %281 = vmatpush.msra.mxu0 0.0
        %282 = vmatpush.msra.mxu0 0.0
        %283 = vmatpush.msra.mxu0 0.0
        %284 = vmatpush.msra.mxu0 0.0
        %285 = vmatpush.msra.mxu0 0.0
        %286 = vmatpush.msra.mxu0 0.0
        %287 = vmatpush.msra.mxu0 0.0
        %288 = vmatpush.msra.mxu0 0.0
        %289 = vmatpush.msra.mxu0 0.0
        %290 = vmatpush.msra.mxu0 0.0
        %291 = vmatpush.msra.mxu0 %v228
        %292 = vmatpush.msra.mxu0 %v220
        %293 = vmatmul.f32.gmra.mxu0 %v249
        %v294 = vpop.f32.mrf.mxu0
        %v295 = vadd.f32 %v240, %v294
        %296 = vmatmul.f32.gmra.mxu0 %v252
        %v297 = vpop.f32.mrf.mxu0
        %v298 = vadd.f32 %v245, %v297
        %299 = vdwg.mxu0
        %300 = vmatpush.msra.mxu0 0.0
        %301 = vmatpush.msra.mxu0 0.0
        %302 = vmatpush.msra.mxu0 0.0
        %303 = vmatpush.msra.mxu0 0.0
        %304 = vmatpush.msra.mxu0 0.0
        %305 = vmatpush.msra.mxu0 0.0
        %306 = vmatpush.msra.mxu0 0.0
        %307 = vmatpush.msra.mxu0 0.0
        %308 = vmatpush.msra.mxu0 0.0
        %309 = vmatpush.msra.mxu0 0.0
        %310 = vmatpush.msra.mxu0 0.0
        %311 = vmatpush.msra.mxu0 0.0
        %312 = vmatpush.msra.mxu0 0.0
        %313 = vmatpush.msra.mxu0 0.0
        %314 = vmatpush.msra.mxu0 %v229
        %315 = vmatpush.msra.mxu0 %v221
        %316 = vmatmul.f32.gmra.mxu0 %v249
        %v317 = vpop.f32.mrf.mxu0
        %v318 = vadd.f32 %v240, %v317
        %319 = vmatmul.f32.gmra.mxu0 %v252
        %v320 = vpop.f32.mrf.mxu0
        %v321 = vadd.f32 %v245, %v320
        %322 = vdwg.mxu0
        %323 = vmatpush.msra.mxu0 0.0
        %324 = vmatpush.msra.mxu0 0.0
        %325 = vmatpush.msra.mxu0 0.0
        %326 = vmatpush.msra.mxu0 0.0
        %327 = vmatpush.msra.mxu0 0.0
        %328 = vmatpush.msra.mxu0 0.0
        %329 = vmatpush.msra.mxu0 0.0
        %330 = vmatpush.msra.mxu0 0.0
        %331 = vmatpush.msra.mxu0 0.0
        %332 = vmatpush.msra.mxu0 0.0
        %333 = vmatpush.msra.mxu0 0.0
        %334 = vmatpush.msra.mxu0 0.0
        %335 = vmatpush.msra.mxu0 0.0
        %336 = vmatpush.msra.mxu0 0.0
        %337 = vmatpush.msra.mxu0 %v230
        %338 = vmatpush.msra.mxu0 %v222
        %339 = vmatmul.f32.gmra.mxu0 %v249
        %v340 = vpop.f32.mrf.mxu0
        %v341 = vadd.f32 %v240, %v340
        %342 = vmatmul.f32.gmra.mxu0 %v252
        %v343 = vpop.f32.mrf.mxu0
        %v344 = vadd.f32 %v245, %v343
        %345 = vdwg.mxu0
        %346 = vmatpush.msra.mxu0 0.0
        %347 = vmatpush.msra.mxu0 0.0
        %348 = vmatpush.msra.mxu0 0.0
        %349 = vmatpush.msra.mxu0 0.0
        %350 = vmatpush.msra.mxu0 0.0
        %351 = vmatpush.msra.mxu0 0.0
        %352 = vmatpush.msra.mxu0 0.0
        %353 = vmatpush.msra.mxu0 0.0
        %354 = vmatpush.msra.mxu0 0.0
        %355 = vmatpush.msra.mxu0 0.0
        %356 = vmatpush.msra.mxu0 0.0
        %357 = vmatpush.msra.mxu0 0.0
        %358 = vmatpush.msra.mxu0 0.0
        %359 = vmatpush.msra.mxu0 0.0
        %360 = vmatpush.msra.mxu0 %v231
        %361 = vmatpush.msra.mxu0 %v223
        %362 = vmatmul.f32.gmra.mxu0 %v249
        %v363 = vpop.f32.mrf.mxu0
        %v364 = vadd.f32 %v240, %v363
        %365 = vmatmul.f32.gmra.mxu0 %v252
        %v366 = vpop.f32.mrf.mxu0
        %v367 = vadd.f32 %v245, %v366
        %368 = vdwg.mxu0
        %369 = vmatpush.msra.mxu0 0.0
        %370 = vmatpush.msra.mxu0 0.0
        %371 = vmatpush.msra.mxu0 0.0
        %372 = vmatpush.msra.mxu0 0.0
        %373 = vmatpush.msra.mxu0 0.0
        %374 = vmatpush.msra.mxu0 0.0
        %375 = vmatpush.msra.mxu0 0.0
        %376 = vmatpush.msra.mxu0 0.0
        %377 = vmatpush.msra.mxu0 0.0
        %378 = vmatpush.msra.mxu0 0.0
        %379 = vmatpush.msra.mxu0 0.0
        %380 = vmatpush.msra.mxu0 0.0
        %381 = vmatpush.msra.mxu0 0.0
        %382 = vmatpush.msra.mxu0 0.0
        %383 = vmatpush.msra.mxu0 %v232
        %384 = vmatpush.msra.mxu0 %v224
        %385 = vmatmul.f32.gmra.mxu0 %v249
        %v386 = vpop.f32.mrf.mxu0
        %v387 = vadd.f32 %v240, %v386
        %388 = vmatmul.f32.gmra.mxu0 %v252
        %v389 = vpop.f32.mrf.mxu0
        %v390 = vadd.f32 %v245, %v389
        %391 = vdwg.mxu0
        %392 = vmatpush.msra.mxu0 0.0
        %393 = vmatpush.msra.mxu0 0.0
        %394 = vmatpush.msra.mxu0 0.0
        %395 = vmatpush.msra.mxu0 0.0
        %396 = vmatpush.msra.mxu0 0.0
        %397 = vmatpush.msra.mxu0 0.0
        %398 = vmatpush.msra.mxu0 0.0
        %399 = vmatpush.msra.mxu0 0.0
        %400 = vmatpush.msra.mxu0 0.0
        %401 = vmatpush.msra.mxu0 0.0
        %402 = vmatpush.msra.mxu0 0.0
        %403 = vmatpush.msra.mxu0 0.0
        %404 = vmatpush.msra.mxu0 0.0
        %405 = vmatpush.msra.mxu0 0.0
        %406 = vmatpush.msra.mxu0 %v233
        %407 = vmatpush.msra.mxu0 %v225
        %408 = vmatmul.f32.gmra.mxu0 %v249
        %v409 = vpop.f32.mrf.mxu0
        %v410 = vadd.f32 %v240, %v409
        %411 = vmatmul.f32.gmra.mxu0 %v252
        %v412 = vpop.f32.mrf.mxu0
        %v413 = vadd.f32 %v245, %v412
        %414 = vdwg.mxu0
        %415 = vmatpush.msra.mxu0 0.0
        %416 = vmatpush.msra.mxu0 0.0
        %417 = vmatpush.msra.mxu0 0.0
        %418 = vmatpush.msra.mxu0 0.0
        %419 = vmatpush.msra.mxu0 0.0
        %420 = vmatpush.msra.mxu0 0.0
        %421 = vmatpush.msra.mxu0 0.0
        %422 = vmatpush.msra.mxu0 0.0
        %423 = vmatpush.msra.mxu0 0.0
        %424 = vmatpush.msra.mxu0 0.0
        %425 = vmatpush.msra.mxu0 0.0
        %426 = vmatpush.msra.mxu0 0.0
        %427 = vmatpush.msra.mxu0 0.0
        %428 = vmatpush.msra.mxu0 0.0
        %429 = vmatpush.msra.mxu0 %v234
        %430 = vmatpush.msra.mxu0 %v226
        %431 = vmatmul.f32.gmra.mxu0 %v249
        %v432 = vpop.f32.mrf.mxu0
        %v433 = vadd.f32 %v240, %v432
        %434 = vmatmul.f32.gmra.mxu0 %v252
        %v435 = vpop.f32.mrf.mxu0
        %v436 = vadd.f32 %v245, %v435
        %437 = vdwg.mxu0
        %438 = vst [vmem:[%s214] sm:$0xff] %v272
        %439 = vst [vmem:[%s214 + $0x8] sm:$0xff] %v295
        %440 = vst [vmem:[%s214 + $0x10] sm:$0xff] %v318
        %441 = vst [vmem:[%s214 + $0x18] sm:$0xff] %v341
        %442 = vst [vmem:[%s214 + $0x20] sm:$0xff] %v364
        %443 = vst [vmem:[%s214 + $0x28] sm:$0xff] %v387
        %444 = vst [vmem:[%s214 + $0x30] sm:$0xff] %v410
        %445 = vst [vmem:[%s214 + $0x38] sm:$0xff] %v433
        %446 = vst [vmem:[%s214 + $0x40] sm:$0xff] %v275
        %447 = vst [vmem:[%s214 + $0x48] sm:$0xff] %v298
        %448 = vst [vmem:[%s214 + $0x50] sm:$0xff] %v321
        %449 = vst [vmem:[%s214 + $0x58] sm:$0xff] %v344
        %450 = vst [vmem:[%s214 + $0x60] sm:$0xff] %v367
        %451 = vst [vmem:[%s214 + $0x68] sm:$0xff] %v390
        %452 = vst [vmem:[%s214 + $0x70] sm:$0xff] %v413
        %453 = vst [vmem:[%s214 + $0x78] sm:$0xff] %v436
        %s454 = sand.u32 %s90, 1
        %s455 = sand.u32 %s90, 1
        %s456 = smul.addr %s455, 128
        %s457 = scalar_lea.vmem [#allocation3], %s456
        // Predicated region
        $region56: #{dconv_forward.3} parent=50 // pred_check
          %p458 = pneg %p100
        $region57: #{dconv_forward.3} parent=50 // pred_check_branch
          %460 = sbr.rel (%p458) target = $region59
        $region58: #{dconv_forward.3} parent=50 // pred_region
          %s461 = smul.u32 8, %s14
          %s462 = smul.addr %s461, 8
          %s463 = scalar_lea.vmem %s3, %s462
          // Predicated region
          $region60: #{dconv_forward.3} parent=58 // pred_check
            _
          $region61: #{dconv_forward.3} parent=58 // pred_check_branch
            %465 = sbr.rel (0) target = $region63
          $region62: #{dconv_forward.3} parent=58 // pred_region
            // Predicated region
            $region64: #{dconv_forward.3} parent=62 // pred_check
              _
            $region65: #{dconv_forward.3} parent=62 // pred_check_branch
              %467 = sbr.rel (0) target = $region67
            $region66: #{dconv_forward.3} parent=62 // pred_region
              loop: start=0, step=1, limit=1
              $region68: #{dconv_forward.3} parent=66 // loop_pre_header
                _
              $region69: #{dconv_forward.3} parent=66 // loop_header
                %s469 = sphi 0, %s473
                %p470 = scmp.ge.s32.totalorder %s469, 1
                %s474 = sphi %s457, %s457
                %s475 = sphi %s463, %s463
              $region70: #{dconv_forward.3} parent=66 // loop_header_branch
                %472 = sbr.rel (%p470) target = $region74
              $region71: #{dconv_forward.3} parent=66 // loop_body
                %v476 = vld [vmem:[%s474] sm:$0xff]
                %477 = vst [vmem:[%s475] sm:$0xff] %v476
                %v478 = vld [vmem:[%s474 + $0x8] sm:$0xff]
                %479 = vst [vmem:[%s475 + $0x8] sm:$0xff] %v478
                %v480 = vld [vmem:[%s474 + $0x10] sm:$0xff]
                %481 = vst [vmem:[%s475 + $0x10] sm:$0xff] %v480
                %v482 = vld [vmem:[%s474 + $0x18] sm:$0xff]
                %483 = vst [vmem:[%s475 + $0x18] sm:$0xff] %v482
                %v484 = vld [vmem:[%s474 + $0x20] sm:$0xff]
                %485 = vst [vmem:[%s475 + $0x20] sm:$0xff] %v484
                %v486 = vld [vmem:[%s474 + $0x28] sm:$0xff]
                %487 = vst [vmem:[%s475 + $0x28] sm:$0xff] %v486
                %v488 = vld [vmem:[%s474 + $0x30] sm:$0xff]
                %489 = vst [vmem:[%s475 + $0x30] sm:$0xff] %v488
                %v490 = vld [vmem:[%s474 + $0x38] sm:$0xff]
                %491 = vst [vmem:[%s475 + $0x38] sm:$0xff] %v490
                %v492 = vld [vmem:[%s474 + $0x40] sm:$0xff]
                %493 = vst [vmem:[%s475 + $0x80] sm:$0xff] %v492
                %v494 = vld [vmem:[%s474 + $0x48] sm:$0xff]
                %495 = vst [vmem:[%s475 + $0x88] sm:$0xff] %v494
                %v496 = vld [vmem:[%s474 + $0x50] sm:$0xff]
                %497 = vst [vmem:[%s475 + $0x90] sm:$0xff] %v496
                %v498 = vld [vmem:[%s474 + $0x58] sm:$0xff]
                %499 = vst [vmem:[%s475 + $0x98] sm:$0xff] %v498
                %v500 = vld [vmem:[%s474 + $0x60] sm:$0xff]
                %501 = vst [vmem:[%s475 + $0xa0] sm:$0xff] %v500
                %v502 = vld [vmem:[%s474 + $0x68] sm:$0xff]
                %503 = vst [vmem:[%s475 + $0xa8] sm:$0xff] %v502
                %v504 = vld [vmem:[%s474 + $0x70] sm:$0xff]
                %505 = vst [vmem:[%s475 + $0xb0] sm:$0xff] %v504
                %v506 = vld [vmem:[%s474 + $0x78] sm:$0xff]
                %507 = vst [vmem:[%s475 + $0xb8] sm:$0xff] %v506
              $region72: #{dconv_forward.3} parent=66 // loop_footer
                %s473 = sadd.s32 1, %s469
              $region73: #{dconv_forward.3} parent=66 // loop_footer_branch
                %468 = sbr.rel target = $region69
              $region74: #{dconv_forward.3} parent=66 // loop_exit
                _
            $region67: #{dconv_forward.3} parent=62 // pred_fallthru
              _
            // Predicated region
            $region75: #{dconv_forward.3} parent=62 // pred_check
              _
            $region76: #{dconv_forward.3} parent=62 // pred_check_branch
              %509 = sbr.rel target = $region78
            $region77: #{dconv_forward.3} parent=62 // pred_region
              _
            $region78: #{dconv_forward.3} parent=62 // pred_fallthru
              _
          $region63: #{dconv_forward.3} parent=58 // pred_fallthru
            _
          %510 = vnop
        $region59: #{dconv_forward.3} parent=50 // pred_fallthru
          _
      $region51: #{dconv_forward.3} parent=5 // pred_fallthru
        _
      %p511 = scmp.le.s32.totalorder 2, %s9
      // Predicated region
      $region79: #{dconv_forward.3} parent=5 // pred_check
        %p512 = pneg %p511
      $region80: #{dconv_forward.3} parent=5 // pred_check_branch
        %514 = sbr.rel (%p512) target = $region82
      $region81: #{dconv_forward.3} parent=5 // pred_region
        %s515 = ssub.s32 %s9, 2
        // Predicated region
        $region83: #{dconv_forward.3} parent=81 // pred_check
          %p516 = pneg %p106
        $region84: #{dconv_forward.3} parent=81 // pred_check_branch
          %518 = sbr.rel (%p516) target = $region86
        $region85: #{dconv_forward.3} parent=81 // pred_region
          %s519 = sand.u32 %s91, 1
          %s520 = sand.u32 %s91, 1
          %s521 = smul.addr %s520, 128
          %s522 = scalar_lea.vmem [#allocation3], %s521
        $region86: #{dconv_forward.3} parent=81 // pred_fallthru
          _
      $region82: #{dconv_forward.3} parent=5 // pred_fallthru
        _
    $region6: #{dconv_forward.3} parent=1 // loop_footer
      %s13 = sadd.s32 1, %s9
    $region7: #{dconv_forward.3} parent=1 // loop_footer_branch
      %8 = sbr.rel target = $region3
    $region8: #{dconv_forward.3} parent=1 // loop_exit
      _

// kernel: dconv_forward.4
$region0: #{dconv_forward.4}
  #allocation0 [shape = 'u32[]', space=smem, size = 0x4, offset = 0x4, fixed_abs, tag = 'smem constant byte address 0x4 - core index']
  #allocation1 [shape = 'u32[72,128]{1,0:T(1,128)}', space=vmem, size = 0x9000, scoped, tag = 'internal scratch']
  #allocation2 [shape = 'f32[36,144]{1,0:T(8,128)}', space=vmem, size = 0xa000, scoped, tag = 'scratch operand']
  %s0 = inlined_call_operand.vmem [shape: f32[2,32,128], index: 0, kind: input, shape index: {}]
  %s1 = inlined_call_operand.vmem [shape: f32[2,32,128], index: 1, kind: input, shape index: {}]
  %s2 = inlined_call_operand.vmem [shape: f32[2,32,128], index: 2, kind: input, shape index: {}]
  %s3 = inlined_call_operand.vmem [shape: f32[2,32,128], index: 3, kind: input, shape index: {}]
  %s4 = inlined_call_operand.vmem [shape: f32[9,128], index: 4, kind: input, shape index: {}]
  %s5 = inlined_call_operand.vmem [shape: f32[1,128], index: 5, kind: input, shape index: {}]
  %s6 = inlined_call_operand.vmem [shape: f32[15,128], index: 6, kind: input, shape index: {}]
  %s7 = inlined_call_operand.vmem [shape: f32[1,128], index: 7, kind: input, shape index: {}]
  %s8 = inlined_call_operand.vmem [shape: f32[15,128], index: 8, kind: input, shape index: {}]
  %s9 = inlined_call_operand.vmem [shape: f32[1,128], index: 9, kind: input, shape index: {}]
  %s10 = inlined_call_operand.vmem [shape: f32[9,128], index: 10, kind: input, shape index: {}]
  %s11 = inlined_call_operand.vmem [shape: f32[1,128], index: 11, kind: input, shape index: {}]
  %s12 = inlined_call_operand.vmem [shape: f32[9,128], index: 12, kind: input, shape index: {}]
  %s13 = inlined_call_operand.vmem [shape: f32[1,128], index: 13, kind: input, shape index: {}]
  %s14 = inlined_call_operand.vmem [shape: f32[2,32,128], index: 14, kind: output, shape index: {0}]
  %s15 = inlined_call_operand.vmem [shape: f32[2,32,128], index: 15, kind: output, shape index: {1}]
  %s16 = inlined_call_operand.vmem [shape: f32[2,32,128], index: 16, kind: output, shape index: {2}]
  %s17 = inlined_call_operand.vmem [shape: f32[2,32,128], index: 17, kind: output, shape index: {3}]
  %18 = xla_tuple %s14, %s15, %s16, %s17
  %s19 = sld [smem:[#allocation0]]
  $region113: #{dconv_forward.4} parent=0
    _
  %s21 = ssub.s32 1, %s19
  %s22 = scalar_select 0, %s21, %s19
  loop: start=0, step=1, limit=4
  $region2: #{dconv_forward.4} parent=0 // loop_pre_header
    _
  $region3: #{dconv_forward.4} parent=0 // loop_header
    %s24 = sphi 0, %s28
    %p25 = scmp.ge.s32.totalorder %s24, 4
    %s34 = sphi 0, %s36
    %s37 = sphi 0, %s34
    %s38 = sphi 0, %s37
    %s54 = sphi 0, %s38
    %s60 = sphi 0, %s62
    %s63 = sphi 0, %s60
    %s64 = sphi 0, %s63
    %s80 = sphi 0, %s64
    %s86 = sphi 0, %s88
    %s89 = sphi 0, %s86
    %s90 = sphi 0, %s89
    %s106 = sphi 0, %s90
    %s112 = sphi 0, %s114
    %s115 = sphi 0, %s112
    %s116 = sphi 0, %s115
    %s132 = sphi 0, %s116
    %s136 = sphi 0, %s136
    %s138 = sphi 0, %s136
    %s139 = sphi 0, %s138
    %s153 = sphi 0, %s139
    %s157 = sphi 0, %s157
    %s159 = sphi 0, %s157
    %s160 = sphi 0, %s159
    %s174 = sphi 0, %s160
    %s178 = sphi 0, %s178
    %s180 = sphi 0, %s178
    %s181 = sphi 0, %s180
    %s195 = sphi 0, %s181
    %s199 = sphi 0, %s199
    %s201 = sphi 0, %s199
    %s202 = sphi 0, %s201
    %s216 = sphi 0, %s202
    %s220 = sphi 0, %s220
    %s222 = sphi 0, %s220
    %s223 = sphi 0, %s222
    %s237 = sphi 0, %s223
    %s241 = sphi 0, %s241
    %s243 = sphi 0, %s241
    %s244 = sphi 0, %s243
    %s258 = sphi 0, %s244
    %s262 = sphi 0, %s262
    %s264 = sphi 0, %s262
    %s265 = sphi 0, %s264
    %s279 = sphi 0, %s265
    %s283 = sphi 0, %s283
    %s285 = sphi 0, %s283
    %s286 = sphi 0, %s285
    %s300 = sphi 0, %s286
    %s304 = sphi 0, %s304
    %s306 = sphi 0, %s304
    %s307 = sphi 0, %s306
    %s321 = sphi 0, %s307
    %s325 = sphi 0, %s325
    %s327 = sphi 0, %s325
    %s328 = sphi 0, %s327
    %s342 = sphi 0, %s328
    %s348 = sphi 0, %s350
    %s351 = sphi 0, %s348
    %s352 = sphi 0, %s351
    %s368 = sphi 0, %s352
    %s374 = sphi 0, %s376
    %s377 = sphi 0, %s374
    %s378 = sphi 0, %s377
    %s394 = sphi 0, %s378
    %s400 = sphi 0, %s402
    %s403 = sphi 0, %s400
    %s404 = sphi 0, %s403
    %s420 = sphi 0, %s404
    %s426 = sphi 0, %s428
    %s429 = sphi 0, %s426
    %s430 = sphi 0, %s429
    %s446 = sphi 0, %s430
  $region4: #{dconv_forward.4} parent=0 // loop_header_branch
    %27 = sbr.rel (%p25) target = $region8
  $region5: #{dconv_forward.4} parent=0 // loop_body
    %s29 = ssub.s32 %s24, 1
    %s30 = ssub.s32 %s24, 2
    %s31 = sadd.s32 %s24, 1
    %s32 = ssub.s32 %s24, %s31
    %p33 = scmp.eq.s32.totalorder %s32, 0
    %s35 = sadd.s32 %s34, 1
    %s36 = scalar_select %p33, %s34, %s35
    %p39 = pneg %p33
    %p40 = scmp.eq.s32.totalorder %s24, 1
    %p41 = por %p39, %p40
    %p42 = scmp.ne.s32.totalorder %s34, %s37
    %p43 = scmp.eq.s32.totalorder %s24, 0
    %p44 = por %p42, %p43
    %p45 = scmp.ne.s32.totalorder %s34, %s37
    %p46 = scmp.eq.s32.totalorder %s29, 1
    %p47 = por %p45, %p46
    %p48 = scmp.ne.s32.totalorder %s37, %s38
    %p49 = scmp.eq.s32.totalorder %s29, 0
    %p50 = por %p48, %p49
    %p51 = scmp.ne.s32.totalorder %s37, %s38
    %p52 = scmp.eq.s32.totalorder %s30, 1
    %p53 = por %p51, %p52
    %p55 = scmp.ne.s32.totalorder %s38, %s54
    %p56 = scmp.eq.s32.totalorder %s30, 0
    %p57 = por %p55, %p56
    %s58 = ssub.s32 %s24, %s31
    %p59 = scmp.eq.s32.totalorder %s58, 0
    %s61 = sadd.s32 %s60, 1
    %s62 = scalar_select %p59, %s60, %s61
    %p65 = pneg %p59
    %p66 = scmp.eq.s32.totalorder %s24, 1
    %p67 = por %p65, %p66
    %p68 = scmp.ne.s32.totalorder %s60, %s63
    %p69 = scmp.eq.s32.totalorder %s24, 0
    %p70 = por %p68, %p69
    %p71 = scmp.ne.s32.totalorder %s60, %s63
    %p72 = scmp.eq.s32.totalorder %s29, 1
    %p73 = por %p71, %p72
    %p74 = scmp.ne.s32.totalorder %s63, %s64
    %p75 = scmp.eq.s32.totalorder %s29, 0
    %p76 = por %p74, %p75
    %p77 = scmp.ne.s32.totalorder %s63, %s64
    %p78 = scmp.eq.s32.totalorder %s30, 1
    %p79 = por %p77, %p78
    %p81 = scmp.ne.s32.totalorder %s64, %s80
    %p82 = scmp.eq.s32.totalorder %s30, 0
    %p83 = por %p81, %p82
    %s84 = ssub.s32 %s24, %s31
    %p85 = scmp.eq.s32.totalorder %s84, 0
    %s87 = sadd.s32 %s86, 1
    %s88 = scalar_select %p85, %s86, %s87
    %p91 = pneg %p85
    %p92 = scmp.eq.s32.totalorder %s24, 1
    %p93 = por %p91, %p92
    %p94 = scmp.ne.s32.totalorder %s86, %s89
    %p95 = scmp.eq.s32.totalorder %s24, 0
    %p96 = por %p94, %p95
    %p97 = scmp.ne.s32.totalorder %s86, %s89
    %p98 = scmp.eq.s32.totalorder %s29, 1
    %p99 = por %p97, %p98
    %p100 = scmp.ne.s32.totalorder %s89, %s90
    %p101 = scmp.eq.s32.totalorder %s29, 0
    %p102 = por %p100, %p101
    %p103 = scmp.ne.s32.totalorder %s89, %s90
    %p104 = scmp.eq.s32.totalorder %s30, 1
    %p105 = por %p103, %p104
    %p107 = scmp.ne.s32.totalorder %s90, %s106
    %p108 = scmp.eq.s32.totalorder %s30, 0
    %p109 = por %p107, %p108
    %s110 = ssub.s32 %s24, %s31
    %p111 = scmp.eq.s32.totalorder %s110, 0
    %s113 = sadd.s32 %s112, 1
    %s114 = scalar_select %p111, %s112, %s113
    %p117 = pneg %p111
    %p118 = scmp.eq.s32.totalorder %s24, 1
    %p119 = por %p117, %p118
    %p120 = scmp.ne.s32.totalorder %s112, %s115
    %p121 = scmp.eq.s32.totalorder %s24, 0
    %p122 = por %p120, %p121
    %p123 = scmp.ne.s32.totalorder %s112, %s115
    %p124 = scmp.eq.s32.totalorder %s29, 1
    %p125 = por %p123, %p124
    %p126 = scmp.ne.s32.totalorder %s115, %s116
    %p127 = scmp.eq.s32.totalorder %s29, 0
    %p128 = por %p126, %p127
    %p129 = scmp.ne.s32.totalorder %s115, %s116
    %p130 = scmp.eq.s32.totalorder %s30, 1
    %p131 = por %p129, %p130
    %p133 = scmp.ne.s32.totalorder %s116, %s132
    %p134 = scmp.eq.s32.totalorder %s30, 0
    %p135 = por %p133, %p134
    %s137 = sadd.s32 %s136, 1
    %p140 = scmp.eq.s32.totalorder %s24, 1
    %p141 = scmp.ne.s32.totalorder %s136, %s138
    %p142 = scmp.eq.s32.totalorder %s24, 0
    %p143 = por %p141, %p142
    %p144 = scmp.ne.s32.totalorder %s136, %s138
    %p145 = scmp.eq.s32.totalorder %s29, 1
    %p146 = por %p144, %p145
    %p147 = scmp.ne.s32.totalorder %s138, %s139
    %p148 = scmp.eq.s32.totalorder %s29, 0
    %p149 = por %p147, %p148
    %p150 = scmp.ne.s32.totalorder %s138, %s139
    %p151 = scmp.eq.s32.totalorder %s30, 1
    %p152 = por %p150, %p151
    %p154 = scmp.ne.s32.totalorder %s139, %s153
    %p155 = scmp.eq.s32.totalorder %s30, 0
    %p156 = por %p154, %p155
    %s158 = sadd.s32 %s157, 1
    %p161 = scmp.eq.s32.totalorder %s24, 1
    %p162 = scmp.ne.s32.totalorder %s157, %s159
    %p163 = scmp.eq.s32.totalorder %s24, 0
    %p164 = por %p162, %p163
    %p165 = scmp.ne.s32.totalorder %s157, %s159
    %p166 = scmp.eq.s32.totalorder %s29, 1
    %p167 = por %p165, %p166
    %p168 = scmp.ne.s32.totalorder %s159, %s160
    %p169 = scmp.eq.s32.totalorder %s29, 0
    %p170 = por %p168, %p169
    %p171 = scmp.ne.s32.totalorder %s159, %s160
    %p172 = scmp.eq.s32.totalorder %s30, 1
    %p173 = por %p171, %p172
    %p175 = scmp.ne.s32.totalorder %s160, %s174
    %p176 = scmp.eq.s32.totalorder %s30, 0
    %p177 = por %p175, %p176
    %s179 = sadd.s32 %s178, 1
    %p182 = scmp.eq.s32.totalorder %s24, 1
    %p183 = scmp.ne.s32.totalorder %s178, %s180
    %p184 = scmp.eq.s32.totalorder %s24, 0
    %p185 = por %p183, %p184
    %p186 = scmp.ne.s32.totalorder %s178, %s180
    %p187 = scmp.eq.s32.totalorder %s29, 1
    %p188 = por %p186, %p187
    %p189 = scmp.ne.s32.totalorder %s180, %s181
    %p190 = scmp.eq.s32.totalorder %s29, 0
    %p191 = por %p189, %p190
    %p192 = scmp.ne.s32.totalorder %s180, %s181
    %p193 = scmp.eq.s32.totalorder %s30, 1
    %p194 = por %p192, %p193
    %p196 = scmp.ne.s32.totalorder %s181, %s195
    %p197 = scmp.eq.s32.totalorder %s30, 0
    %p198 = por %p196, %p197
    %s200 = sadd.s32 %s199, 1
    %p203 = scmp.eq.s32.totalorder %s24, 1
    %p204 = scmp.ne.s32.totalorder %s199, %s201
    %p205 = scmp.eq.s32.totalorder %s24, 0
    %p206 = por %p204, %p205
    %p207 = scmp.ne.s32.totalorder %s199, %s201
    %p208 = scmp.eq.s32.totalorder %s29, 1
    %p209 = por %p207, %p208
    %p210 = scmp.ne.s32.totalorder %s201, %s202
    %p211 = scmp.eq.s32.totalorder %s29, 0
    %p212 = por %p210, %p211
    %p213 = scmp.ne.s32.totalorder %s201, %s202
    %p214 = scmp.eq.s32.totalorder %s30, 1
    %p215 = por %p213, %p214
    %p217 = scmp.ne.s32.totalorder %s202, %s216
    %p218 = scmp.eq.s32.totalorder %s30, 0
    %p219 = por %p217, %p218
    %s221 = sadd.s32 %s220, 1
    %p224 = scmp.eq.s32.totalorder %s24, 1
    %p225 = scmp.ne.s32.totalorder %s220, %s222
    %p226 = scmp.eq.s32.totalorder %s24, 0
    %p227 = por %p225, %p226
    %p228 = scmp.ne.s32.totalorder %s220, %s222
    %p229 = scmp.eq.s32.totalorder %s29, 1
    %p230 = por %p228, %p229
    %p231 = scmp.ne.s32.totalorder %s222, %s223
    %p232 = scmp.eq.s32.totalorder %s29, 0
    %p233 = por %p231, %p232
    %p234 = scmp.ne.s32.totalorder %s222, %s223
    %p235 = scmp.eq.s32.totalorder %s30, 1
    %p236 = por %p234, %p235
    %p238 = scmp.ne.s32.totalorder %s223, %s237
    %p239 = scmp.eq.s32.totalorder %s30, 0
    %p240 = por %p238, %p239
    %s242 = sadd.s32 %s241, 1
    %p245 = scmp.eq.s32.totalorder %s24, 1
    %p246 = scmp.ne.s32.totalorder %s241, %s243
    %p247 = scmp.eq.s32.totalorder %s24, 0
    %p248 = por %p246, %p247
    %p249 = scmp.ne.s32.totalorder %s241, %s243
    %p250 = scmp.eq.s32.totalorder %s29, 1
    %p251 = por %p249, %p250
    %p252 = scmp.ne.s32.totalorder %s243, %s244
    %p253 = scmp.eq.s32.totalorder %s29, 0
    %p254 = por %p252, %p253
    %p255 = scmp.ne.s32.totalorder %s243, %s244
    %p256 = scmp.eq.s32.totalorder %s30, 1
    %p257 = por %p255, %p256
    %p259 = scmp.ne.s32.totalorder %s244, %s258
    %p260 = scmp.eq.s32.totalorder %s30, 0
    %p261 = por %p259, %p260
    %s263 = sadd.s32 %s262, 1
    %p266 = scmp.eq.s32.totalorder %s24, 1
    %p267 = scmp.ne.s32.totalorder %s262, %s264
    %p268 = scmp.eq.s32.totalorder %s24, 0
    %p269 = por %p267, %p268
    %p270 = scmp.ne.s32.totalorder %s262, %s264
    %p271 = scmp.eq.s32.totalorder %s29, 1
    %p272 = por %p270, %p271
    %p273 = scmp.ne.s32.totalorder %s264, %s265
    %p274 = scmp.eq.s32.totalorder %s29, 0
    %p275 = por %p273, %p274
    %p276 = scmp.ne.s32.totalorder %s264, %s265
    %p277 = scmp.eq.s32.totalorder %s30, 1
    %p278 = por %p276, %p277
    %p280 = scmp.ne.s32.totalorder %s265, %s279
    %p281 = scmp.eq.s32.totalorder %s30, 0
    %p282 = por %p280, %p281
    %s284 = sadd.s32 %s283, 1
    %p287 = scmp.eq.s32.totalorder %s24, 1
    %p288 = scmp.ne.s32.totalorder %s283, %s285
    %p289 = scmp.eq.s32.totalorder %s24, 0
    %p290 = por %p288, %p289
    %p291 = scmp.ne.s32.totalorder %s283, %s285
    %p292 = scmp.eq.s32.totalorder %s29, 1
    %p293 = por %p291, %p292
    %p294 = scmp.ne.s32.totalorder %s285, %s286
    %p295 = scmp.eq.s32.totalorder %s29, 0
    %p296 = por %p294, %p295
    %p297 = scmp.ne.s32.totalorder %s285, %s286
    %p298 = scmp.eq.s32.totalorder %s30, 1
    %p299 = por %p297, %p298
    %p301 = scmp.ne.s32.totalorder %s286, %s300
    %p302 = scmp.eq.s32.totalorder %s30, 0
    %p303 = por %p301, %p302
    %s305 = sadd.s32 %s304, 1
    %p308 = scmp.eq.s32.totalorder %s24, 1
    %p309 = scmp.ne.s32.totalorder %s304, %s306
    %p310 = scmp.eq.s32.totalorder %s24, 0
    %p311 = por %p309, %p310
    %p312 = scmp.ne.s32.totalorder %s304, %s306
    %p313 = scmp.eq.s32.totalorder %s29, 1
    %p314 = por %p312, %p313
    %p315 = scmp.ne.s32.totalorder %s306, %s307
    %p316 = scmp.eq.s32.totalorder %s29, 0
    %p317 = por %p315, %p316
    %p318 = scmp.ne.s32.totalorder %s306, %s307
    %p319 = scmp.eq.s32.totalorder %s30, 1
    %p320 = por %p318, %p319
    %p322 = scmp.ne.s32.totalorder %s307, %s321
    %p323 = scmp.eq.s32.totalorder %s30, 0
    %p324 = por %p322, %p323
    %s326 = sadd.s32 %s325, 1
    %p329 = scmp.eq.s32.totalorder %s24, 1
    %p330 = scmp.ne.s32.totalorder %s325, %s327
    %p331 = scmp.eq.s32.totalorder %s24, 0
    %p332 = por %p330, %p331
    %p333 = scmp.ne.s32.totalorder %s325, %s327
    %p334 = scmp.eq.s32.totalorder %s29, 1
    %p335 = por %p333, %p334
    %p336 = scmp.ne.s32.totalorder %s327, %s328
    %p337 = scmp.eq.s32.totalorder %s29, 0
    %p338 = por %p336, %p337
    %p339 = scmp.ne.s32.totalorder %s327, %s328
    %p340 = scmp.eq.s32.totalorder %s30, 1
    %p341 = por %p339, %p340
    %p343 = scmp.ne.s32.totalorder %s328, %s342
    %p344 = scmp.eq.s32.totalorder %s30, 0
    %p345 = por %p343, %p344
    %s346 = ssub.s32 %s24, %s31
    %p347 = scmp.eq.s32.totalorder %s346, 0
    %s349 = sadd.s32 %s348, 1
    %s350 = scalar_select %p347, %s348, %s349
    %p353 = pneg %p347
    %p354 = scmp.eq.s32.totalorder %s24, 1
    %p355 = por %p353, %p354
    %p356 = scmp.ne.s32.totalorder %s348, %s351
    %p357 = scmp.eq.s32.totalorder %s24, 0
    %p358 = por %p356, %p357
    %p359 = scmp.ne.s32.totalorder %s348, %s351
    %p360 = scmp.eq.s32.totalorder %s29, 1
    %p361 = por %p359, %p360
    %p362 = scmp.ne.s32.totalorder %s351, %s352
    %p363 = scmp.eq.s32.totalorder %s29, 0
    %p364 = por %p362, %p363
    %p365 = scmp.ne.s32.totalorder %s351, %s352
    %p366 = scmp.eq.s32.totalorder %s30, 1
    %p367 = por %p365, %p366
    %p369 = scmp.ne.s32.totalorder %s352, %s368
    %p370 = scmp.eq.s32.totalorder %s30, 0
    %p371 = por %p369, %p370
    %s372 = ssub.s32 %s24, %s31
    %p373 = scmp.eq.s32.totalorder %s372, 0
    %s375 = sadd.s32 %s374, 1
    %s376 = scalar_select %p373, %s374, %s375
    %p379 = pneg %p373
    %p380 = scmp.eq.s32.totalorder %s24, 1
    %p381 = por %p379, %p380
    %p382 = scmp.ne.s32.totalorder %s374, %s377
    %p383 = scmp.eq.s32.totalorder %s24, 0
    %p384 = por %p382, %p383
    %p385 = scmp.ne.s32.totalorder %s374, %s377
    %p386 = scmp.eq.s32.totalorder %s29, 1
    %p387 = por %p385, %p386
    %p388 = scmp.ne.s32.totalorder %s377, %s378
    %p389 = scmp.eq.s32.totalorder %s29, 0
    %p390 = por %p388, %p389
    %p391 = scmp.ne.s32.totalorder %s377, %s378
    %p392 = scmp.eq.s32.totalorder %s30, 1
    %p393 = por %p391, %p392
    %p395 = scmp.ne.s32.totalorder %s378, %s394
    %p396 = scmp.eq.s32.totalorder %s30, 0
    %p397 = por %p395, %p396
    %s398 = ssub.s32 %s24, %s31
    %p399 = scmp.eq.s32.totalorder %s398, 0
    %s401 = sadd.s32 %s400, 1
    %s402 = scalar_select %p399, %s400, %s401
    %p405 = pneg %p399
    %p406 = scmp.eq.s32.totalorder %s24, 1
    %p407 = por %p405, %p406
    %p408 = scmp.ne.s32.totalorder %s400, %s403
    %p409 = scmp.eq.s32.totalorder %s24, 0
    %p410 = por %p408, %p409
    %p411 = scmp.ne.s32.totalorder %s400, %s403
    %p412 = scmp.eq.s32.totalorder %s29, 1
    %p413 = por %p411, %p412
    %p414 = scmp.ne.s32.totalorder %s403, %s404
    %p415 = scmp.eq.s32.totalorder %s29, 0
    %p416 = por %p414, %p415
    %p417 = scmp.ne.s32.totalorder %s403, %s404
    %p418 = scmp.eq.s32.totalorder %s30, 1
    %p419 = por %p417, %p418
    %p421 = scmp.ne.s32.totalorder %s404, %s420
    %p422 = scmp.eq.s32.totalorder %s30, 0
    %p423 = por %p421, %p422
    %s424 = ssub.s32 %s24, %s31
    %p425 = scmp.eq.s32.totalorder %s424, 0
    %s427 = sadd.s32 %s426, 1
    %s428 = scalar_select %p425, %s426, %s427
    %p431 = pneg %p425
    %p432 = scmp.eq.s32.totalorder %s24, 1
    %p433 = por %p431, %p432
    %p434 = scmp.ne.s32.totalorder %s426, %s429
    %p435 = scmp.eq.s32.totalorder %s24, 0
    %p436 = por %p434, %p435
    %p437 = scmp.ne.s32.totalorder %s426, %s429
    %p438 = scmp.eq.s32.totalorder %s29, 1
    %p439 = por %p437, %p438
    %p440 = scmp.ne.s32.totalorder %s429, %s430
    %p441 = scmp.eq.s32.totalorder %s29, 0
    %p442 = por %p440, %p441
    %p443 = scmp.ne.s32.totalorder %s429, %s430
    %p444 = scmp.eq.s32.totalorder %s30, 1
    %p445 = por %p443, %p444
    %p447 = scmp.ne.s32.totalorder %s430, %s446
    %p448 = scmp.eq.s32.totalorder %s30, 0
    %p449 = por %p447, %p448
    %p450 = scmp.le.s32.totalorder 1, %s24
    %p451 = scmp.lt.s32.totalorder %s24, 3
    %p452 = pnand %p450, %p451
    %p453 = pneg %p452
    // Predicated region
    $region9: #{dconv_forward.4} parent=5 // pred_check
      _
    $region10: #{dconv_forward.4} parent=5 // pred_check_branch
      %455 = sbr.rel (%p452) target = $region12
    $region11: #{dconv_forward.4} parent=5 // pred_region
      %s456 = ssub.s32 %s24, 1
      // Predicated region
      $region13: #{dconv_forward.4} parent=11 // pred_check
        %p457 = pneg %p149
      $region14: #{dconv_forward.4} parent=11 // pred_check_branch
        %459 = sbr.rel (%p457) target = $region16
      $region15: #{dconv_forward.4} parent=11 // pred_region
        _
      $region16: #{dconv_forward.4} parent=11 // pred_fallthru
        _
      // Predicated region
      $region17: #{dconv_forward.4} parent=11 // pred_check
        %p460 = pneg %p170
      $region18: #{dconv_forward.4} parent=11 // pred_check_branch
        %462 = sbr.rel (%p460) target = $region20
      $region19: #{dconv_forward.4} parent=11 // pred_region
        _
      $region20: #{dconv_forward.4} parent=11 // pred_fallthru
        _
      // Predicated region
      $region21: #{dconv_forward.4} parent=11 // pred_check
        %p463 = pneg %p191
      $region22: #{dconv_forward.4} parent=11 // pred_check_branch
        %465 = sbr.rel (%p463) target = $region24
      $region23: #{dconv_forward.4} parent=11 // pred_region
        _
      $region24: #{dconv_forward.4} parent=11 // pred_fallthru
        _
      // Predicated region
      $region25: #{dconv_forward.4} parent=11 // pred_check
        %p466 = pneg %p212
      $region26: #{dconv_forward.4} parent=11 // pred_check_branch
        %468 = sbr.rel (%p466) target = $region28
      $region27: #{dconv_forward.4} parent=11 // pred_region
        _
      $region28: #{dconv_forward.4} parent=11 // pred_fallthru
        _
      // Predicated region
      $region29: #{dconv_forward.4} parent=11 // pred_check
        %p469 = pneg %p233
      $region30: #{dconv_forward.4} parent=11 // pred_check_branch
        %471 = sbr.rel (%p469) target = $region32
      $region31: #{dconv_forward.4} parent=11 // pred_region
        _
      $region32: #{dconv_forward.4} parent=11 // pred_fallthru
        _
      // Predicated region
      $region33: #{dconv_forward.4} parent=11 // pred_check
        %p472 = pneg %p254
      $region34: #{dconv_forward.4} parent=11 // pred_check_branch
        %474 = sbr.rel (%p472) target = $region36
      $region35: #{dconv_forward.4} parent=11 // pred_region
        _
      $region36: #{dconv_forward.4} parent=11 // pred_fallthru
        _
      // Predicated region
      $region37: #{dconv_forward.4} parent=11 // pred_check
        %p475 = pneg %p275
      $region38: #{dconv_forward.4} parent=11 // pred_check_branch
        %477 = sbr.rel (%p475) target = $region40
      $region39: #{dconv_forward.4} parent=11 // pred_region
        _
      $region40: #{dconv_forward.4} parent=11 // pred_fallthru
        _
      // Predicated region
      $region41: #{dconv_forward.4} parent=11 // pred_check
        %p478 = pneg %p296
      $region42: #{dconv_forward.4} parent=11 // pred_check_branch
        %480 = sbr.rel (%p478) target = $region44
      $region43: #{dconv_forward.4} parent=11 // pred_region
        _
      $region44: #{dconv_forward.4} parent=11 // pred_fallthru
        _
      // Predicated region
      $region45: #{dconv_forward.4} parent=11 // pred_check
        %p481 = pneg %p317
      $region46: #{dconv_forward.4} parent=11 // pred_check_branch
        %483 = sbr.rel (%p481) target = $region48
      $region47: #{dconv_forward.4} parent=11 // pred_region
        _
      $region48: #{dconv_forward.4} parent=11 // pred_fallthru
        _
      // Predicated region
      $region49: #{dconv_forward.4} parent=11 // pred_check
        %p484 = pneg %p338
      $region50: #{dconv_forward.4} parent=11 // pred_check_branch
        %486 = sbr.rel (%p484) target = $region52
      $region51: #{dconv_forward.4} parent=11 // pred_region
        _
      $region52: #{dconv_forward.4} parent=11 // pred_fallthru
        _
    $region12: #{dconv_forward.4} parent=5 // pred_fallthru
      _
    %p487 = scmp.lt.s32.totalorder %s24, 2
    // Predicated region
    $region53: #{dconv_forward.4} parent=5 // pred_check
      %p488 = pneg %p487
    $region54: #{dconv_forward.4} parent=5 // pred_check_branch
      %490 = sbr.rel (%p488) target = $region56
    $region55: #{dconv_forward.4} parent=5 // pred_region
      // Predicated region
      $region57: #{dconv_forward.4} parent=55 // pred_check
        %p491 = pneg %p44
      $region58: #{dconv_forward.4} parent=55 // pred_check_branch
        %493 = sbr.rel (%p491) target = $region60
      $region59: #{dconv_forward.4} parent=55 // pred_region
        %p494 = scmp.lt.s32.totalorder %s24, 1
        %s495 = scalar_select %p494, %s24, 1
        %s496 = smul.addr %s495, 4
        %s497 = smul.addr %s496, 8
        %s498 = scalar_lea.vmem %s0, %s497
      $region60: #{dconv_forward.4} parent=55 // pred_fallthru
        _
      // Predicated region
      $region61: #{dconv_forward.4} parent=55 // pred_check
        %p499 = pneg %p70
      $region62: #{dconv_forward.4} parent=55 // pred_check_branch
        %501 = sbr.rel (%p499) target = $region64
      $region63: #{dconv_forward.4} parent=55 // pred_region
        %p502 = scmp.lt.s32.totalorder %s24, 1
        %s503 = scalar_select %p502, %s24, 1
        %s504 = smul.addr %s503, 4
        %s505 = smul.addr %s504, 8
        %s506 = scalar_lea.vmem %s1, %s505
      $region64: #{dconv_forward.4} parent=55 // pred_fallthru
        _
      // Predicated region
      $region65: #{dconv_forward.4} parent=55 // pred_check
        %p507 = pneg %p96
      $region66: #{dconv_forward.4} parent=55 // pred_check_branch
        %509 = sbr.rel (%p507) target = $region68
      $region67: #{dconv_forward.4} parent=55 // pred_region
        %p510 = scmp.lt.s32.totalorder %s24, 1
        %s511 = scalar_select %p510, %s24, 1
        %s512 = smul.addr %s511, 4
        %s513 = smul.addr %s512, 8
        %s514 = scalar_lea.vmem %s2, %s513
      $region68: #{dconv_forward.4} parent=55 // pred_fallthru
        _
      // Predicated region
      $region69: #{dconv_forward.4} parent=55 // pred_check
        %p515 = pneg %p122
      $region70: #{dconv_forward.4} parent=55 // pred_check_branch
        %517 = sbr.rel (%p515) target = $region72
      $region71: #{dconv_forward.4} parent=55 // pred_region
        %p518 = scmp.lt.s32.totalorder %s24, 1
        %s519 = scalar_select %p518, %s24, 1
        %s520 = smul.addr %s519, 4
        %s521 = smul.addr %s520, 8
        %s522 = scalar_lea.vmem %s3, %s521
      $region72: #{dconv_forward.4} parent=55 // pred_fallthru
        _
    $region56: #{dconv_forward.4} parent=5 // pred_fallthru
      _
    %p523 = scmp.le.s32.totalorder 1, %s24
    %p524 = scmp.lt.s32.totalorder %s24, 3
    %p525 = pnand %p523, %p524
    %p526 = pneg %p525
    // Predicated region
    $region73: #{dconv_forward.4} parent=5 // pred_check
      _
    $region74: #{dconv_forward.4} parent=5 // pred_check_branch
      %528 = sbr.rel (%p525) target = $region76
    $region75: #{dconv_forward.4} parent=5 // pred_region
      %s529 = ssub.s32 %s24, 1
      %p530 = scmp.lt.s32.totalorder %s29, 1
      %s531 = scalar_select %p530, %s29, 1
      %s532 = smul.addr %s531, 4
      %s533 = smul.addr %s532, 8
      %s534 = scalar_lea.vmem %s0, %s533
      %p535 = pneg %p50
      %p536 = pneg %p47
      %p537 = scmp.lt.s32.totalorder %s29, 1
      %s538 = scalar_select %p537, %s29, 1
      %s539 = smul.addr %s538, 4
      %s540 = smul.addr %s539, 8
      %s541 = scalar_lea.vmem %s1, %s540
      %p542 = pneg %p76
      %p543 = pneg %p73
      %p544 = scmp.lt.s32.totalorder %s29, 1
      %s545 = scalar_select %p544, %s29, 1
      %s546 = smul.addr %s545, 4
      %s547 = smul.addr %s546, 8
      %s548 = scalar_lea.vmem %s2, %s547
      %p549 = pneg %p102
      %p550 = pneg %p99
      %p551 = scmp.lt.s32.totalorder %s29, 1
      %s552 = scalar_select %p551, %s29, 1
      %s553 = smul.addr %s552, 4
      %s554 = smul.addr %s553, 8
      %s555 = scalar_lea.vmem %s3, %s554
      %p556 = pneg %p128
      %p557 = pneg %p125
      %p558 = pneg %p149
      %p559 = pneg %p146
      %p560 = pneg %p170
      %p561 = pneg %p167
      %p562 = pneg %p191
      %p563 = pneg %p188
      %p564 = pneg %p212
      %p565 = pneg %p209
      %p566 = pneg %p233
      %p567 = pneg %p230
      %p568 = pneg %p254
      %p569 = pneg %p251
      %p570 = pneg %p275
      %p571 = pneg %p272
      %p572 = pneg %p296
      %p573 = pneg %p293
      %p574 = pneg %p317
      %p575 = pneg %p314
      %p576 = pneg %p338
      %p577 = pneg %p335
      %p578 = pneg %p364
      %p579 = pneg %p361
      %p580 = scmp.lt.s32.totalorder %s29, 1
      %s581 = scalar_select %p580, %s29, 1
      %s582 = smul.addr %s581, 4
      %s583 = smul.addr %s582, 8
      %s584 = scalar_lea.vmem %s14, %s583
      %p585 = pneg %p390
      %p586 = pneg %p387
      %p587 = scmp.lt.s32.totalorder %s29, 1
      %s588 = scalar_select %p587, %s29, 1
      %s589 = smul.addr %s588, 4
      %s590 = smul.addr %s589, 8
      %s591 = scalar_lea.vmem %s15, %s590
      %p592 = pneg %p416
      %p593 = pneg %p413
      %p594 = scmp.lt.s32.totalorder %s29, 1
      %s595 = scalar_select %p594, %s29, 1
      %s596 = smul.addr %s595, 4
      %s597 = smul.addr %s596, 8
      %s598 = scalar_lea.vmem %s16, %s597
      %p599 = pneg %p442
      %p600 = pneg %p439
      %p601 = scmp.lt.s32.totalorder %s29, 1
      %s602 = scalar_select %p601, %s29, 1
      %s603 = smul.addr %s602, 4
      %s604 = smul.addr %s603, 8
      %s605 = scalar_lea.vmem %s17, %s604
      %p606 = scmp.lt.s32.totalorder %s29, 1
      %s607 = scalar_select %p606, %s29, 1
      %s608 = smul.addr %s607, 4
      %s609 = smul.addr %s608, 8
      %s610 = scalar_lea.vmem %s0, %s609
      %p611 = scmp.lt.s32.totalorder %s29, 1
      %s612 = scalar_select %p611, %s29, 1
      %s613 = smul.addr %s612, 4
      %s614 = smul.addr %s613, 8
      %s615 = scalar_lea.vmem %s1, %s614
      %p616 = scmp.lt.s32.totalorder %s29, 1
      %s617 = scalar_select %p616, %s29, 1
      %s618 = smul.addr %s617, 4
      %s619 = smul.addr %s618, 8
      %s620 = scalar_lea.vmem %s2, %s619
      %p621 = scmp.lt.s32.totalorder %s29, 1
      %s622 = scalar_select %p621, %s29, 1
      %s623 = smul.addr %s622, 4
      %s624 = smul.addr %s623, 8
      %s625 = scalar_lea.vmem %s3, %s624
      %p626 = scmp.lt.s32.totalorder %s29, 1
      %s627 = scalar_select %p626, %s29, 1
      %s628 = smul.addr %s627, 4
      %s629 = smul.addr %s628, 8
      %s630 = scalar_lea.vmem %s14, %s629
      %p631 = scmp.lt.s32.totalorder %s29, 1
      %s632 = scalar_select %p631, %s29, 1
      %s633 = smul.addr %s632, 4
      %s634 = smul.addr %s633, 8
      %s635 = scalar_lea.vmem %s15, %s634
      %p636 = scmp.lt.s32.totalorder %s29, 1
      %s637 = scalar_select %p636, %s29, 1
      %s638 = smul.addr %s637, 4
      %s639 = smul.addr %s638, 8
      %s640 = scalar_lea.vmem %s16, %s639
      %p641 = scmp.lt.s32.totalorder %s29, 1
      %s642 = scalar_select %p641, %s29, 1
      %s643 = smul.addr %s642, 4
      %s644 = smul.addr %s643, 8
      %s645 = scalar_lea.vmem %s17, %s644
      %646 = vst [vmem:[#allocation2] sm:$0xff] 0.0
      %vm647 = vcmask 130048
      %648 = vst.msk [vmem:[#allocation2 + $0x8] sm:$0xff] %vm647, 0.0
      %649 = vst [vmem:[#allocation2 + $0x10] sm:$0xff] 0.0
      %650 = vst.msk [vmem:[#allocation2 + $0x18] sm:$0xff] %vm647, 0.0
      %651 = vst [vmem:[#allocation2 + $0x20] sm:$0xff] 0.0
      %652 = vst.msk [vmem:[#allocation2 + $0x28] sm:$0xff] %vm647, 0.0
      %653 = vst [vmem:[#allocation2 + $0x30] sm:$0xff] 0.0
      %654 = vst.msk [vmem:[#allocation2 + $0x38] sm:$0xff] %vm647, 0.0
      %655 = vst [vmem:[#allocation2 + $0x40] sm:$0xf] 0.0
      %vm656 = vcmask 125952
      %657 = vst.msk [vmem:[#allocation2 + $0x48] sm:$0xf] %vm656, 0.0
      %v658 = vld [vmem:[%s610] sm:$0xff]
      %v659 = vld [vmem:[%s610 + $0x8] sm:$0xff]
      %v660 = vld [vmem:[%s610 + $0x10] sm:$0xff]
      %v661 = vld [vmem:[%s610 + $0x18] sm:$0xff]
      %v662 = vld [vmem:[%s4] sm:$0xff]
      %v663 = vld [vmem:[%s4 + $0x8] sm:$0x1]
      %v664 = vld [vmem:[%s5] sm:$0x1]
      %vm669 = vcmask 1041408
      %v670 = vrot.slane %v658, 6
      %v671 = vrot.slane %v659, 6
      %v672 = vsel %vm669, %v670, %v671
      %v673 = vrot.slane %v660, 6
      %v674 = vsel %vm669, %v671, %v673
      %v675 = vrot.slane %v661, 6
      %v676 = vsel %vm669, %v673, %v675
      %677 = vrot.lane.b32.xlu0 %v670, 8
      %v678 = vpop.permute.xlu0 %677
      %679 = vrot.lane.b32.xlu0 %v672, 8
      %v680 = vpop.permute.xlu0 %679
      %681 = vrot.lane.b32.xlu0 %v674, 8
      %v682 = vpop.permute.xlu0 %681
      %683 = vrot.lane.b32.xlu0 %v676, 8
      %v684 = vpop.permute.xlu0 %683
      %685 = vrot.lane.b32.xlu0 %v675, 8
      %v686 = vpop.permute.xlu0 %685
      %vm692 = vcmask 1047618
      %693 = vst.msk [vmem:[#allocation2] sm:$0xfc] %vm692, %v678
      %vm694 = vcmask 64514
      %695 = vst.msk [vmem:[#allocation2 + $0x8] sm:$0xfc] %vm694, %v678
      %vm696 = vcmask 1047616
      %697 = vst.msk [vmem:[#allocation2 + $0x10] sm:$0xff] %vm696, %v680
      %vm698 = vcmask 64512
      %699 = vst.msk [vmem:[#allocation2 + $0x18] sm:$0xff] %vm698, %v680
      %700 = vst.msk [vmem:[#allocation2 + $0x20] sm:$0xff] %vm696, %v682
      %701 = vst.msk [vmem:[#allocation2 + $0x28] sm:$0xff] %vm698, %v682
      %702 = vst.msk [vmem:[#allocation2 + $0x30] sm:$0xff] %vm696, %v684
      %703 = vst.msk [vmem:[#allocation2 + $0x38] sm:$0xff] %vm698, %v684
      %vm704 = vcmask 1041472
      %705 = vst.msk [vmem:[#allocation2 + $0x40] sm:$0x3] %vm704, %v686
      %vm706 = vcmask 58368
      %707 = vst.msk [vmem:[#allocation2 + $0x48] sm:$0x3] %vm706, %v686
      %v708 = vld [vmem:[#allocation2] sm:$0xfe]
      %v709 = vld [vmem:[#allocation2 + $0x8] sm:$0xfe]
      %v710 = vld [vmem:[#allocation2 + $0x10] sm:$0xff]
      %v711 = vld [vmem:[#allocation2 + $0x18] sm:$0xff]
      %v712 = vld [vmem:[#allocation2 + $0x20] sm:$0xff]
      %v713 = vld [vmem:[#allocation2 + $0x28] sm:$0xff]
      %v714 = vld [vmem:[#allocation2 + $0x30] sm:$0xff]
      %v715 = vld [vmem:[#allocation2 + $0x38] sm:$0xff]
      %v716 = vld [vmem:[#allocation2 + $0x40] sm:$0x1]
      %v717 = vld [vmem:[#allocation2 + $0x48] sm:$0x1]
      %v718 = vperm.slane %v662, 0
      %720 = vrot.lane.b32.xlu0 %v718, 4
      %v721 = vpop.permute.xlu0 %720
      %v723 = vmul.f32 %v708, %v721
      %v724 = vmul.f32 %v709, %v721
      %v725 = vmul.f32 %v710, %v721
      %v726 = vmul.f32 %v711, %v721
      %v727 = vmul.f32 %v712, %v721
      %v728 = vmul.f32 %v713, %v721
      %v729 = vmul.f32 %v714, %v721
      %v730 = vmul.f32 %v715, %v721
      %v731 = vmul.f32 %v716, %v721
      %v732 = vmul.f32 %v717, %v721
      %v733 = vadd.f32 %v723, 0.0
      %v734 = vadd.f32 %v724, 0.0
      %v735 = vadd.f32 %v725, 0.0
      %v736 = vadd.f32 %v726, 0.0
      %v737 = vadd.f32 %v727, 0.0
      %v738 = vadd.f32 %v728, 0.0
      %v739 = vadd.f32 %v729, 0.0
      %v740 = vadd.f32 %v730, 0.0
      %v741 = vadd.f32 %v731, 0.0
      %v742 = vadd.f32 %v732, 0.0
      %v743 = vperm.slane %v662, 1
      %745 = vrot.lane.b32.xlu0 %v743, 8
      %v746 = vpop.permute.xlu0 %745
      %v748 = vmul.f32 %v708, %v746
      %v749 = vmul.f32 %v709, %v746
      %v750 = vmul.f32 %v710, %v746
      %v751 = vmul.f32 %v711, %v746
      %v752 = vmul.f32 %v712, %v746
      %v753 = vmul.f32 %v713, %v746
      %v754 = vmul.f32 %v714, %v746
      %v755 = vmul.f32 %v715, %v746
      %v756 = vmul.f32 %v716, %v746
      %v757 = vmul.f32 %v717, %v746
      %768 = vrot.lane.b32.xlu0 %v748, 124
      %v769 = vpop.permute.xlu0 %768
      %770 = vrot.lane.b32.xlu0 %v749, 124
      %v771 = vpop.permute.xlu0 %770
      %772 = vrot.lane.b32.xlu0 %v750, 124
      %v773 = vpop.permute.xlu0 %772
      %774 = vrot.lane.b32.xlu0 %v751, 124
      %v775 = vpop.permute.xlu0 %774
      %776 = vrot.lane.b32.xlu0 %v752, 124
      %v777 = vpop.permute.xlu0 %776
      %778 = vrot.lane.b32.xlu0 %v753, 124
      %v779 = vpop.permute.xlu0 %778
      %780 = vrot.lane.b32.xlu0 %v754, 124
      %v781 = vpop.permute.xlu0 %780
      %782 = vrot.lane.b32.xlu0 %v755, 124
      %v783 = vpop.permute.xlu0 %782
      %784 = vrot.lane.b32.xlu0 %v756, 124
      %v785 = vpop.permute.xlu0 %784
      %786 = vrot.lane.b32.xlu0 %v757, 124
      %v787 = vpop.permute.xlu0 %786
      %vm788 = vcmask 1014784
      %v789 = vsel %vm788, %v769, %v771
      %v790 = vsel %vm788, %v773, %v775
      %v791 = vsel %vm788, %v777, %v779
      %v792 = vsel %vm788, %v781, %v783
      %v793 = vsel %vm788, %v785, %v787
      %v804 = vadd.f32 %v733, %v789
      %v805 = vadd.f32 %v734, %v771
      %v806 = vadd.f32 %v735, %v790
      %v807 = vadd.f32 %v736, %v775
      %v808 = vadd.f32 %v737, %v791
      %v809 = vadd.f32 %v738, %v779
      %v810 = vadd.f32 %v739, %v792
      %v811 = vadd.f32 %v740, %v783
      %v812 = vadd.f32 %v741, %v793
      %v813 = vadd.f32 %v742, %v787
      %v814 = vperm.slane %v662, 2
      %816 = vrot.lane.b32.xlu0 %v814, 12
      %v817 = vpop.permute.xlu0 %816
      %v819 = vmul.f32 %v708, %v817
      %v820 = vmul.f32 %v709, %v817
      %v821 = vmul.f32 %v710, %v817
      %v822 = vmul.f32 %v711, %v817
      %v823 = vmul.f32 %v712, %v817
      %v824 = vmul.f32 %v713, %v817
      %v825 = vmul.f32 %v714, %v817
      %v826 = vmul.f32 %v715, %v817
      %v827 = vmul.f32 %v716, %v817
      %v828 = vmul.f32 %v717, %v817
      %839 = vrot.lane.b32.xlu0 %v819, 120
      %v840 = vpop.permute.xlu0 %839
      %841 = vrot.lane.b32.xlu0 %v820, 120
      %v842 = vpop.permute.xlu0 %841
      %843 = vrot.lane.b32.xlu0 %v821, 120
      %v844 = vpop.permute.xlu0 %843
      %845 = vrot.lane.b32.xlu0 %v822, 120
      %v846 = vpop.permute.xlu0 %845
      %847 = vrot.lane.b32.xlu0 %v823, 120
      %v848 = vpop.permute.xlu0 %847
      %849 = vrot.lane.b32.xlu0 %v824, 120
      %v850 = vpop.permute.xlu0 %849
      %851 = vrot.lane.b32.xlu0 %v825, 120
      %v852 = vpop.permute.xlu0 %851
      %853 = vrot.lane.b32.xlu0 %v826, 120
      %v854 = vpop.permute.xlu0 %853
      %855 = vrot.lane.b32.xlu0 %v827, 120
      %v856 = vpop.permute.xlu0 %855
      %857 = vrot.lane.b32.xlu0 %v828, 120
      %v858 = vpop.permute.xlu0 %857
      %vm859 = vcmask 982016
      %v860 = vsel %vm859, %v840, %v842
      %v861 = vsel %vm859, %v844, %v846
      %v862 = vsel %vm859, %v848, %v850
      %v863 = vsel %vm859, %v852, %v854
      %v864 = vsel %vm859, %v856, %v858
      %v875 = vadd.f32 %v804, %v860
      %v876 = vadd.f32 %v805, %v842
      %v877 = vadd.f32 %v806, %v861
      %v878 = vadd.f32 %v807, %v846
      %v879 = vadd.f32 %v808, %v862
      %v880 = vadd.f32 %v809, %v850
      %v881 = vadd.f32 %v810, %v863
      %v882 = vadd.f32 %v811, %v854
      %v883 = vadd.f32 %v812, %v864
      %v884 = vadd.f32 %v813, %v858
      %v885 = vld [vmem:[#allocation2] sm:$0xfc]
      %v886 = vld [vmem:[#allocation2 + $0x8] sm:$0xfc]
      %v887 = vld [vmem:[#allocation2 + $0x40] sm:$0x3]
      %v888 = vld [vmem:[#allocation2 + $0x48] sm:$0x3]
      %v889 = vperm.slane %v662, 3
      %891 = vrot.lane.b32.xlu0 %v889, 4
      %v892 = vpop.permute.xlu0 %891
      %v894 = vmul.f32 %v885, %v892
      %v895 = vmul.f32 %v886, %v892
      %v896 = vmul.f32 %v710, %v892
      %v897 = vmul.f32 %v711, %v892
      %v898 = vmul.f32 %v712, %v892
      %v899 = vmul.f32 %v713, %v892
      %v900 = vmul.f32 %v714, %v892
      %v901 = vmul.f32 %v715, %v892
      %v902 = vmul.f32 %v887, %v892
      %v903 = vmul.f32 %v888, %v892
      %vm914 = vcmask 1046528
      %v915 = vrot.slane %v894, 1
      %v916 = vrot.slane %v896, 1
      %v917 = vsel %vm914, %v915, %v916
      %v918 = vrot.slane %v895, 1
      %v919 = vrot.slane %v897, 1
      %v920 = vsel %vm914, %v918, %v919
      %v921 = vrot.slane %v898, 1
      %v922 = vsel %vm914, %v916, %v921
      %v923 = vrot.slane %v899, 1
      %v924 = vsel %vm914, %v919, %v923
      %v925 = vrot.slane %v900, 1
      %v926 = vsel %vm914, %v921, %v925
      %v927 = vrot.slane %v901, 1
      %v928 = vsel %vm914, %v923, %v927
      %v929 = vrot.slane %v902, 1
      %v930 = vsel %vm914, %v925, %v929
      %v931 = vrot.slane %v903, 1
      %v932 = vsel %vm914, %v927, %v931
      %v943 = vadd.f32 %v875, %v917
      %v944 = vadd.f32 %v876, %v920
      %v945 = vadd.f32 %v877, %v922
      %v946 = vadd.f32 %v878, %v924
      %v947 = vadd.f32 %v879, %v926
      %v948 = vadd.f32 %v880, %v928
      %v949 = vadd.f32 %v881, %v930
      %v950 = vadd.f32 %v882, %v932
      %v951 = vadd.f32 %v883, %v929
      %v952 = vadd.f32 %v884, %v931
      %v953 = vperm.slane %v662, 4
      %955 = vrot.lane.b32.xlu0 %v953, 8
      %v956 = vpop.permute.xlu0 %955
      %v958 = vmul.f32 %v885, %v956
      %v959 = vmul.f32 %v886, %v956
      %v960 = vmul.f32 %v710, %v956
      %v961 = vmul.f32 %v711, %v956
      %v962 = vmul.f32 %v712, %v956
      %v963 = vmul.f32 %v713, %v956
      %v964 = vmul.f32 %v714, %v956
      %v965 = vmul.f32 %v715, %v956
      %v966 = vmul.f32 %v887, %v956
      %v967 = vmul.f32 %v888, %v956
      %v978 = vrot.slane %v958, 1
      %v979 = vrot.slane %v960, 1
      %v980 = vsel %vm914, %v978, %v979
      %v981 = vrot.slane %v959, 1
      %v982 = vrot.slane %v961, 1
      %v983 = vsel %vm914, %v981, %v982
      %v984 = vrot.slane %v962, 1
      %v985 = vsel %vm914, %v979, %v984
      %v986 = vrot.slane %v963, 1
      %v987 = vsel %vm914, %v982, %v986
      %v988 = vrot.slane %v964, 1
      %v989 = vsel %vm914, %v984, %v988
      %v990 = vrot.slane %v965, 1
      %v991 = vsel %vm914, %v986, %v990
      %v992 = vrot.slane %v966, 1
      %v993 = vsel %vm914, %v988, %v992
      %v994 = vrot.slane %v967, 1
      %v995 = vsel %vm914, %v990, %v994
      %996 = vrot.lane.b32.xlu0 %v980, 124
      %v997 = vpop.permute.xlu0 %996
      %998 = vrot.lane.b32.xlu0 %v983, 124
      %v999 = vpop.permute.xlu0 %998
      %1000 = vrot.lane.b32.xlu0 %v985, 124
      %v1001 = vpop.permute.xlu0 %1000
      %1002 = vrot.lane.b32.xlu0 %v987, 124
      %v1003 = vpop.permute.xlu0 %1002
      %1004 = vrot.lane.b32.xlu0 %v989, 124
      %v1005 = vpop.permute.xlu0 %1004
      %1006 = vrot.lane.b32.xlu0 %v991, 124
      %v1007 = vpop.permute.xlu0 %1006
      %1008 = vrot.lane.b32.xlu0 %v993, 124
      %v1009 = vpop.permute.xlu0 %1008
      %1010 = vrot.lane.b32.xlu0 %v995, 124
      %v1011 = vpop.permute.xlu0 %1010
      %1012 = vrot.lane.b32.xlu0 %v992, 124
      %v1013 = vpop.permute.xlu0 %1012
      %1014 = vrot.lane.b32.xlu0 %v994, 124
      %v1015 = vpop.permute.xlu0 %1014
      %v1016 = vsel %vm788, %v997, %v999
      %v1017 = vsel %vm788, %v1001, %v1003
      %v1018 = vsel %vm788, %v1005, %v1007
      %v1019 = vsel %vm788, %v1009, %v1011
      %v1020 = vsel %vm788, %v1013, %v1015
      %v1031 = vadd.f32 %v943, %v1016
      %v1032 = vadd.f32 %v944, %v999
      %v1033 = vadd.f32 %v945, %v1017
      %v1034 = vadd.f32 %v946, %v1003
      %v1035 = vadd.f32 %v947, %v1018
      %v1036 = vadd.f32 %v948, %v1007
      %v1037 = vadd.f32 %v949, %v1019
      %v1038 = vadd.f32 %v950, %v1011
      %v1039 = vadd.f32 %v951, %v1020
      %v1040 = vadd.f32 %v952, %v1015
      %v1041 = vperm.slane %v662, 5
      %1043 = vrot.lane.b32.xlu0 %v1041, 12
      %v1044 = vpop.permute.xlu0 %1043
      %v1046 = vmul.f32 %v885, %v1044
      %v1047 = vmul.f32 %v886, %v1044
      %v1048 = vmul.f32 %v710, %v1044
      %v1049 = vmul.f32 %v711, %v1044
      %v1050 = vmul.f32 %v712, %v1044
      %v1051 = vmul.f32 %v713, %v1044
      %v1052 = vmul.f32 %v714, %v1044
      %v1053 = vmul.f32 %v715, %v1044
      %v1054 = vmul.f32 %v887, %v1044
      %v1055 = vmul.f32 %v888, %v1044
      %v1066 = vrot.slane %v1046, 1
      %v1067 = vrot.slane %v1048, 1
      %v1068 = vsel %vm914, %v1066, %v1067
      %v1069 = vrot.slane %v1047, 1
      %v1070 = vrot.slane %v1049, 1
      %v1071 = vsel %vm914, %v1069, %v1070
      %v1072 = vrot.slane %v1050, 1
      %v1073 = vsel %vm914, %v1067, %v1072
      %v1074 = vrot.slane %v1051, 1
      %v1075 = vsel %vm914, %v1070, %v1074
      %v1076 = vrot.slane %v1052, 1
      %v1077 = vsel %vm914, %v1072, %v1076
      %v1078 = vrot.slane %v1053, 1
      %v1079 = vsel %vm914, %v1074, %v1078
      %v1080 = vrot.slane %v1054, 1
      %v1081 = vsel %vm914, %v1076, %v1080
      %v1082 = vrot.slane %v1055, 1
      %v1083 = vsel %vm914, %v1078, %v1082
      %1084 = vrot.lane.b32.xlu0 %v1068, 120
      %v1085 = vpop.permute.xlu0 %1084
      %1086 = vrot.lane.b32.xlu0 %v1071, 120
      %v1087 = vpop.permute.xlu0 %1086
      %1088 = vrot.lane.b32.xlu0 %v1073, 120
      %v1089 = vpop.permute.xlu0 %1088
      %1090 = vrot.lane.b32.xlu0 %v1075, 120
      %v1091 = vpop.permute.xlu0 %1090
      %1092 = vrot.lane.b32.xlu0 %v1077, 120
      %v1093 = vpop.permute.xlu0 %1092
      %1094 = vrot.lane.b32.xlu0 %v1079, 120
      %v1095 = vpop.permute.xlu0 %1094
      %1096 = vrot.lane.b32.xlu0 %v1081, 120
      %v1097 = vpop.permute.xlu0 %1096
      %1098 = vrot.lane.b32.xlu0 %v1083, 120
      %v1099 = vpop.permute.xlu0 %1098
      %1100 = vrot.lane.b32.xlu0 %v1080, 120
      %v1101 = vpop.permute.xlu0 %1100
      %1102 = vrot.lane.b32.xlu0 %v1082, 120
      %v1103 = vpop.permute.xlu0 %1102
      %v1104 = vsel %vm859, %v1085, %v1087
      %v1105 = vsel %vm859, %v1089, %v1091
      %v1106 = vsel %vm859, %v1093, %v1095
      %v1107 = vsel %vm859, %v1097, %v1099
      %v1108 = vsel %vm859, %v1101, %v1103
      %v1119 = vadd.f32 %v1031, %v1104
      %v1120 = vadd.f32 %v1032, %v1087
      %v1121 = vadd.f32 %v1033, %v1105
      %v1122 = vadd.f32 %v1034, %v1091
      %v1123 = vadd.f32 %v1035, %v1106
      %v1124 = vadd.f32 %v1036, %v1095
      %v1125 = vadd.f32 %v1037, %v1107
      %v1126 = vadd.f32 %v1038, %v1099
      %v1127 = vadd.f32 %v1039, %v1108
      %v1128 = vadd.f32 %v1040, %v1103
      %v1129 = vld [vmem:[#allocation2] sm:$0xf8]
      %v1130 = vld [vmem:[#allocation2 + $0x8] sm:$0xf8]
      %v1131 = vld [vmem:[#allocation2 + $0x40] sm:$0x7]
      %v1132 = vld [vmem:[#allocation2 + $0x48] sm:$0x7]
      %v1133 = vperm.slane %v662, 6
      %1135 = vrot.lane.b32.xlu0 %v1133, 4
      %v1136 = vpop.permute.xlu0 %1135
      %v1138 = vmul.f32 %v1129, %v1136
      %v1139 = vmul.f32 %v1130, %v1136
      %v1140 = vmul.f32 %v710, %v1136
      %v1141 = vmul.f32 %v711, %v1136
      %v1142 = vmul.f32 %v712, %v1136
      %v1143 = vmul.f32 %v713, %v1136
      %v1144 = vmul.f32 %v714, %v1136
      %v1145 = vmul.f32 %v715, %v1136
      %v1146 = vmul.f32 %v1131, %v1136
      %v1147 = vmul.f32 %v1132, %v1136
      %vm1158 = vcmask 1045504
      %v1159 = vrot.slane %v1138, 2
      %v1160 = vrot.slane %v1140, 2
      %v1161 = vsel %vm1158, %v1159, %v1160
      %v1162 = vrot.slane %v1139, 2
      %v1163 = vrot.slane %v1141, 2
      %v1164 = vsel %vm1158, %v1162, %v1163
      %v1165 = vrot.slane %v1142, 2
      %v1166 = vsel %vm1158, %v1160, %v1165
      %v1167 = vrot.slane %v1143, 2
      %v1168 = vsel %vm1158, %v1163, %v1167
      %v1169 = vrot.slane %v1144, 2
      %v1170 = vsel %vm1158, %v1165, %v1169
      %v1171 = vrot.slane %v1145, 2
      %v1172 = vsel %vm1158, %v1167, %v1171
      %v1173 = vrot.slane %v1146, 2
      %v1174 = vsel %vm1158, %v1169, %v1173
      %v1175 = vrot.slane %v1147, 2
      %v1176 = vsel %vm1158, %v1171, %v1175
      %v1187 = vadd.f32 %v1119, %v1161
      %v1188 = vadd.f32 %v1120, %v1164
      %v1189 = vadd.f32 %v1121, %v1166
      %v1190 = vadd.f32 %v1122, %v1168
      %v1191 = vadd.f32 %v1123, %v1170
      %v1192 = vadd.f32 %v1124, %v1172
      %v1193 = vadd.f32 %v1125, %v1174
      %v1194 = vadd.f32 %v1126, %v1176
      %v1195 = vadd.f32 %v1127, %v1173
      %v1196 = vadd.f32 %v1128, %v1175
      %v1197 = vperm.slane %v662, 7
      %1199 = vrot.lane.b32.xlu0 %v1197, 8
      %v1200 = vpop.permute.xlu0 %1199
      %v1202 = vmul.f32 %v1129, %v1200
      %v1203 = vmul.f32 %v1130, %v1200
      %v1204 = vmul.f32 %v710, %v1200
      %v1205 = vmul.f32 %v711, %v1200
      %v1206 = vmul.f32 %v712, %v1200
      %v1207 = vmul.f32 %v713, %v1200
      %v1208 = vmul.f32 %v714, %v1200
      %v1209 = vmul.f32 %v715, %v1200
      %v1210 = vmul.f32 %v1131, %v1200
      %v1211 = vmul.f32 %v1132, %v1200
      %v1222 = vrot.slane %v1202, 2
      %v1223 = vrot.slane %v1204, 2
      %v1224 = vsel %vm1158, %v1222, %v1223
      %v1225 = vrot.slane %v1203, 2
      %v1226 = vrot.slane %v1205, 2
      %v1227 = vsel %vm1158, %v1225, %v1226
      %v1228 = vrot.slane %v1206, 2
      %v1229 = vsel %vm1158, %v1223, %v1228
      %v1230 = vrot.slane %v1207, 2
      %v1231 = vsel %vm1158, %v1226, %v1230
      %v1232 = vrot.slane %v1208, 2
      %v1233 = vsel %vm1158, %v1228, %v1232
      %v1234 = vrot.slane %v1209, 2
      %v1235 = vsel %vm1158, %v1230, %v1234
      %v1236 = vrot.slane %v1210, 2
      %v1237 = vsel %vm1158, %v1232, %v1236
      %v1238 = vrot.slane %v1211, 2
      %v1239 = vsel %vm1158, %v1234, %v1238
      %1240 = vrot.lane.b32.xlu0 %v1224, 124
      %v1241 = vpop.permute.xlu0 %1240
      %1242 = vrot.lane.b32.xlu0 %v1227, 124
      %v1243 = vpop.permute.xlu0 %1242
      %1244 = vrot.lane.b32.xlu0 %v1229, 124
      %v1245 = vpop.permute.xlu0 %1244
      %1246 = vrot.lane.b32.xlu0 %v1231, 124
      %v1247 = vpop.permute.xlu0 %1246
      %1248 = vrot.lane.b32.xlu0 %v1233, 124
      %v1249 = vpop.permute.xlu0 %1248
      %1250 = vrot.lane.b32.xlu0 %v1235, 124
      %v1251 = vpop.permute.xlu0 %1250
      %1252 = vrot.lane.b32.xlu0 %v1237, 124
      %v1253 = vpop.permute.xlu0 %1252
      %1254 = vrot.lane.b32.xlu0 %v1239, 124
      %v1255 = vpop.permute.xlu0 %1254
      %1256 = vrot.lane.b32.xlu0 %v1236, 124
      %v1257 = vpop.permute.xlu0 %1256
      %1258 = vrot.lane.b32.xlu0 %v1238, 124
      %v1259 = vpop.permute.xlu0 %1258
      %v1260 = vsel %vm788, %v1241, %v1243
      %v1261 = vsel %vm788, %v1245, %v1247
      %v1262 = vsel %vm788, %v1249, %v1251
      %v1263 = vsel %vm788, %v1253, %v1255
      %v1264 = vsel %vm788, %v1257, %v1259
      %v1275 = vadd.f32 %v1187, %v1260
      %v1276 = vadd.f32 %v1188, %v1243
      %v1277 = vadd.f32 %v1189, %v1261
      %v1278 = vadd.f32 %v1190, %v1247
      %v1279 = vadd.f32 %v1191, %v1262
      %v1280 = vadd.f32 %v1192, %v1251
      %v1281 = vadd.f32 %v1193, %v1263
      %v1282 = vadd.f32 %v1194, %v1255
      %v1283 = vadd.f32 %v1195, %v1264
      %v1284 = vadd.f32 %v1196, %v1259
      %v1285 = vperm.slane %v663, 0
      %1287 = vrot.lane.b32.xlu0 %v1285, 12
      %v1288 = vpop.permute.xlu0 %1287
      %v1290 = vmul.f32 %v1129, %v1288
      %v1291 = vmul.f32 %v1130, %v1288
      %v1292 = vmul.f32 %v710, %v1288
      %v1293 = vmul.f32 %v711, %v1288
      %v1294 = vmul.f32 %v712, %v1288
      %v1295 = vmul.f32 %v713, %v1288
      %v1296 = vmul.f32 %v714, %v1288
      %v1297 = vmul.f32 %v715, %v1288
      %v1298 = vmul.f32 %v1131, %v1288
      %v1299 = vmul.f32 %v1132, %v1288
      %v1310 = vrot.slane %v1290, 2
      %v1311 = vrot.slane %v1292, 2
      %v1312 = vsel %vm1158, %v1310, %v1311
      %v1313 = vrot.slane %v1291, 2
      %v1314 = vrot.slane %v1293, 2
      %v1315 = vsel %vm1158, %v1313, %v1314
      %v1316 = vrot.slane %v1294, 2
      %v1317 = vsel %vm1158, %v1311, %v1316
      %v1318 = vrot.slane %v1295, 2
      %v1319 = vsel %vm1158, %v1314, %v1318
      %v1320 = vrot.slane %v1296, 2
      %v1321 = vsel %vm1158, %v1316, %v1320
      %v1322 = vrot.slane %v1297, 2
      %v1323 = vsel %vm1158, %v1318, %v1322
      %v1324 = vrot.slane %v1298, 2
      %v1325 = vsel %vm1158, %v1320, %v1324
      %v1326 = vrot.slane %v1299, 2
      %v1327 = vsel %vm1158, %v1322, %v1326
      %1328 = vrot.lane.b32.xlu0 %v1312, 120
      %v1329 = vpop.permute.xlu0 %1328
      %1330 = vrot.lane.b32.xlu0 %v1315, 120
      %v1331 = vpop.permute.xlu0 %1330
      %1332 = vrot.lane.b32.xlu0 %v1317, 120
      %v1333 = vpop.permute.xlu0 %1332
      %1334 = vrot.lane.b32.xlu0 %v1319, 120
      %v1335 = vpop.permute.xlu0 %1334
      %1336 = vrot.lane.b32.xlu0 %v1321, 120
      %v1337 = vpop.permute.xlu0 %1336
      %1338 = vrot.lane.b32.xlu0 %v1323, 120
      %v1339 = vpop.permute.xlu0 %1338
      %1340 = vrot.lane.b32.xlu0 %v1325, 120
      %v1341 = vpop.permute.xlu0 %1340
      %1342 = vrot.lane.b32.xlu0 %v1327, 120
      %v1343 = vpop.permute.xlu0 %1342
      %1344 = vrot.lane.b32.xlu0 %v1324, 120
      %v1345 = vpop.permute.xlu0 %1344
      %1346 = vrot.lane.b32.xlu0 %v1326, 120
      %v1347 = vpop.permute.xlu0 %1346
      %v1348 = vsel %vm859, %v1329, %v1331
      %v1349 = vsel %vm859, %v1333, %v1335
      %v1350 = vsel %vm859, %v1337, %v1339
      %v1351 = vsel %vm859, %v1341, %v1343
      %v1352 = vsel %vm859, %v1345, %v1347
      %v1363 = vadd.f32 %v1275, %v1348
      %v1364 = vadd.f32 %v1276, %v1331
      %v1365 = vadd.f32 %v1277, %v1349
      %v1366 = vadd.f32 %v1278, %v1335
      %v1367 = vadd.f32 %v1279, %v1350
      %v1368 = vadd.f32 %v1280, %v1339
      %v1369 = vadd.f32 %v1281, %v1351
      %v1370 = vadd.f32 %v1282, %v1343
      %v1371 = vadd.f32 %v1283, %v1352
      %v1372 = vadd.f32 %v1284, %v1347
      %v1374 = vperm.slane %v664, 0
      %1375 = vrot.lane.b32.xlu0 %v1374, 4
      %v1376 = vpop.permute.xlu0 %1375
      %v1378 = vadd.f32 %v1363, %v1376
      %v1379 = vadd.f32 %v1364, %v1376
      %v1380 = vadd.f32 %v1365, %v1376
      %v1381 = vadd.f32 %v1366, %v1376
      %v1382 = vadd.f32 %v1367, %v1376
      %v1383 = vadd.f32 %v1368, %v1376
      %v1384 = vadd.f32 %v1369, %v1376
      %v1385 = vadd.f32 %v1370, %v1376
      %v1386 = vadd.f32 %v1371, %v1376
      %v1387 = vadd.f32 %v1372, %v1376
      %v1388 = vld [vmem:[%s615] sm:$0xff]
      %v1389 = vld [vmem:[%s615 + $0x8] sm:$0xff]
      %v1390 = vld [vmem:[%s615 + $0x10] sm:$0xff]
      %v1391 = vld [vmem:[%s615 + $0x18] sm:$0xff]
      %v1402 = vrot.slane %v1378, 1
      %v1403 = vrot.slane %v1380, 1
      %v1404 = vsel %vm914, %v1402, %v1403
      %v1405 = vrot.slane %v1379, 1
      %v1406 = vrot.slane %v1381, 1
      %v1407 = vsel %vm914, %v1405, %v1406
      %v1408 = vrot.slane %v1382, 1
      %v1409 = vsel %vm914, %v1403, %v1408
      %v1410 = vrot.slane %v1383, 1
      %v1411 = vsel %vm914, %v1406, %v1410
      %v1412 = vrot.slane %v1384, 1
      %v1413 = vsel %vm914, %v1408, %v1412
      %v1414 = vrot.slane %v1385, 1
      %v1415 = vsel %vm914, %v1410, %v1414
      %v1416 = vrot.slane %v1386, 1
      %v1417 = vsel %vm914, %v1412, %v1416
      %v1418 = vrot.slane %v1387, 1
      %v1419 = vsel %vm914, %v1414, %v1418
      %1420 = vrot.lane.b32.xlu0 %v1404, 124
      %v1421 = vpop.permute.xlu0 %1420
      %1422 = vrot.lane.b32.xlu0 %v1407, 124
      %v1423 = vpop.permute.xlu0 %1422
      %1424 = vrot.lane.b32.xlu0 %v1409, 124
      %v1425 = vpop.permute.xlu0 %1424
      %1426 = vrot.lane.b32.xlu0 %v1411, 124
      %v1427 = vpop.permute.xlu0 %1426
      %1428 = vrot.lane.b32.xlu0 %v1413, 124
      %v1429 = vpop.permute.xlu0 %1428
      %1430 = vrot.lane.b32.xlu0 %v1415, 124
      %v1431 = vpop.permute.xlu0 %1430
      %1432 = vrot.lane.b32.xlu0 %v1417, 124
      %v1433 = vpop.permute.xlu0 %1432
      %1434 = vrot.lane.b32.xlu0 %v1419, 124
      %v1435 = vpop.permute.xlu0 %1434
      %v1436 = vsel %vm788, %v1421, %v1423
      %v1437 = vsel %vm788, %v1425, %v1427
      %v1438 = vsel %vm788, %v1429, %v1431
      %v1439 = vsel %vm788, %v1433, %v1435
      %v1444 = vadd.f32 %v1388, %v1436
      %v1445 = vadd.f32 %v1389, %v1437
      %v1446 = vadd.f32 %v1390, %v1438
      %v1447 = vadd.f32 %v1391, %v1439
      %v1448 = vld [vmem:[%s6] sm:$0xff]
      %v1449 = vld [vmem:[%s6 + $0x8] sm:$0x7f]
      %v1450 = vld [vmem:[%s7] sm:$0x1]
      %v1455 = vrot.slane %v1444, 6
      %v1456 = vrot.slane %v1445, 6
      %v1457 = vsel %vm669, %v1455, %v1456
      %v1458 = vrot.slane %v1446, 6
      %v1459 = vsel %vm669, %v1456, %v1458
      %v1460 = vrot.slane %v1447, 6
      %v1461 = vsel %vm669, %v1458, %v1460
      %1462 = vrot.lane.b32.xlu0 %v1455, 8
      %v1463 = vpop.permute.xlu0 %1462
      %1464 = vrot.lane.b32.xlu0 %v1457, 8
      %v1465 = vpop.permute.xlu0 %1464
      %1466 = vrot.lane.b32.xlu0 %v1459, 8
      %v1467 = vpop.permute.xlu0 %1466
      %1468 = vrot.lane.b32.xlu0 %v1461, 8
      %v1469 = vpop.permute.xlu0 %1468
      %1470 = vrot.lane.b32.xlu0 %v1460, 8
      %v1471 = vpop.permute.xlu0 %1470
      %1477 = vst.msk [vmem:[#allocation2] sm:$0xfc] %vm692, %v1463
      %1478 = vst.msk [vmem:[#allocation2 + $0x8] sm:$0xfc] %vm694, %v1463
      %1479 = vst.msk [vmem:[#allocation2 + $0x10] sm:$0xff] %vm696, %v1465
      %1480 = vst.msk [vmem:[#allocation2 + $0x18] sm:$0xff] %vm698, %v1465
      %1481 = vst.msk [vmem:[#allocation2 + $0x20] sm:$0xff] %vm696, %v1467
      %1482 = vst.msk [vmem:[#allocation2 + $0x28] sm:$0xff] %vm698, %v1467
      %1483 = vst.msk [vmem:[#allocation2 + $0x30] sm:$0xff] %vm696, %v1469
      %1484 = vst.msk [vmem:[#allocation2 + $0x38] sm:$0xff] %vm698, %v1469
      %1485 = vst.msk [vmem:[#allocation2 + $0x40] sm:$0x3] %vm704, %v1471
      %1486 = vst.msk [vmem:[#allocation2 + $0x48] sm:$0x3] %vm706, %v1471
      %v1487 = vld [vmem:[#allocation2] sm:$0xff]
      %v1488 = vld [vmem:[#allocation2 + $0x8] sm:$0xff]
      %v1489 = vld [vmem:[#allocation2 + $0x10] sm:$0xff]
      %v1490 = vld [vmem:[#allocation2 + $0x18] sm:$0xff]
      %v1491 = vld [vmem:[#allocation2 + $0x20] sm:$0xff]
      %v1492 = vld [vmem:[#allocation2 + $0x28] sm:$0xff]
      %v1493 = vld [vmem:[#allocation2 + $0x30] sm:$0xff]
      %v1494 = vld [vmem:[#allocation2 + $0x38] sm:$0xff]
      %v1495 = vperm.slane %v1448, 0
      %1497 = vrot.lane.b32.xlu0 %v1495, 4
      %v1498 = vpop.permute.xlu0 %1497
      %v1500 = vmul.f32 %v1487, %v1498
      %v1501 = vmul.f32 %v1488, %v1498
      %v1502 = vmul.f32 %v1489, %v1498
      %v1503 = vmul.f32 %v1490, %v1498
      %v1504 = vmul.f32 %v1491, %v1498
      %v1505 = vmul.f32 %v1492, %v1498
      %v1506 = vmul.f32 %v1493, %v1498
      %v1507 = vmul.f32 %v1494, %v1498
      %v1508 = vadd.f32 %v1500, 0.0
      %v1509 = vadd.f32 %v1501, 0.0
      %v1510 = vadd.f32 %v1502, 0.0
      %v1511 = vadd.f32 %v1503, 0.0
      %v1512 = vadd.f32 %v1504, 0.0
      %v1513 = vadd.f32 %v1505, 0.0
      %v1514 = vadd.f32 %v1506, 0.0
      %v1515 = vadd.f32 %v1507, 0.0
      %v1516 = vperm.slane %v1448, 1
      %1518 = vrot.lane.b32.xlu0 %v1516, 8
      %v1519 = vpop.permute.xlu0 %1518
      %v1521 = vmul.f32 %v1487, %v1519
      %v1522 = vmul.f32 %v1488, %v1519
      %v1523 = vmul.f32 %v1489, %v1519
      %v1524 = vmul.f32 %v1490, %v1519
      %v1525 = vmul.f32 %v1491, %v1519
      %v1526 = vmul.f32 %v1492, %v1519
      %v1527 = vmul.f32 %v1493, %v1519
      %v1528 = vmul.f32 %v1494, %v1519
      %1537 = vrot.lane.b32.xlu0 %v1521, 124
      %v1538 = vpop.permute.xlu0 %1537
      %1539 = vrot.lane.b32.xlu0 %v1522, 124
      %v1540 = vpop.permute.xlu0 %1539
      %1541 = vrot.lane.b32.xlu0 %v1523, 124
      %v1542 = vpop.permute.xlu0 %1541
      %1543 = vrot.lane.b32.xlu0 %v1524, 124
      %v1544 = vpop.permute.xlu0 %1543
      %1545 = vrot.lane.b32.xlu0 %v1525, 124
      %v1546 = vpop.permute.xlu0 %1545
      %1547 = vrot.lane.b32.xlu0 %v1526, 124
      %v1548 = vpop.permute.xlu0 %1547
      %1549 = vrot.lane.b32.xlu0 %v1527, 124
      %v1550 = vpop.permute.xlu0 %1549
      %1551 = vrot.lane.b32.xlu0 %v1528, 124
      %v1552 = vpop.permute.xlu0 %1551
      %v1553 = vsel %vm788, %v1538, %v1540
      %v1554 = vsel %vm788, %v1542, %v1544
      %v1555 = vsel %vm788, %v1546, %v1548
      %v1556 = vsel %vm788, %v1550, %v1552
      %v1565 = vadd.f32 %v1508, %v1553
      %v1566 = vadd.f32 %v1509, %v1540
      %v1567 = vadd.f32 %v1510, %v1554
      %v1568 = vadd.f32 %v1511, %v1544
      %v1569 = vadd.f32 %v1512, %v1555
      %v1570 = vadd.f32 %v1513, %v1548
      %v1571 = vadd.f32 %v1514, %v1556
      %v1572 = vadd.f32 %v1515, %v1552
      %v1573 = vperm.slane %v1448, 2
      %1575 = vrot.lane.b32.xlu0 %v1573, 12
      %v1576 = vpop.permute.xlu0 %1575
      %v1578 = vmul.f32 %v1487, %v1576
      %v1579 = vmul.f32 %v1488, %v1576
      %v1580 = vmul.f32 %v1489, %v1576
      %v1581 = vmul.f32 %v1490, %v1576
      %v1582 = vmul.f32 %v1491, %v1576
      %v1583 = vmul.f32 %v1492, %v1576
      %v1584 = vmul.f32 %v1493, %v1576
      %v1585 = vmul.f32 %v1494, %v1576
      %1594 = vrot.lane.b32.xlu0 %v1578, 120
      %v1595 = vpop.permute.xlu0 %1594
      %1596 = vrot.lane.b32.xlu0 %v1579, 120
      %v1597 = vpop.permute.xlu0 %1596
      %1598 = vrot.lane.b32.xlu0 %v1580, 120
      %v1599 = vpop.permute.xlu0 %1598
      %1600 = vrot.lane.b32.xlu0 %v1581, 120
      %v1601 = vpop.permute.xlu0 %1600
      %1602 = vrot.lane.b32.xlu0 %v1582, 120
      %v1603 = vpop.permute.xlu0 %1602
      %1604 = vrot.lane.b32.xlu0 %v1583, 120
      %v1605 = vpop.permute.xlu0 %1604
      %1606 = vrot.lane.b32.xlu0 %v1584, 120
      %v1607 = vpop.permute.xlu0 %1606
      %1608 = vrot.lane.b32.xlu0 %v1585, 120
      %v1609 = vpop.permute.xlu0 %1608
      %v1610 = vsel %vm859, %v1595, %v1597
      %v1611 = vsel %vm859, %v1599, %v1601
      %v1612 = vsel %vm859, %v1603, %v1605
      %v1613 = vsel %vm859, %v1607, %v1609
      %v1622 = vadd.f32 %v1565, %v1610
      %v1623 = vadd.f32 %v1566, %v1597
      %v1624 = vadd.f32 %v1567, %v1611
      %v1625 = vadd.f32 %v1568, %v1601
      %v1626 = vadd.f32 %v1569, %v1612
      %v1627 = vadd.f32 %v1570, %v1605
      %v1628 = vadd.f32 %v1571, %v1613
      %v1629 = vadd.f32 %v1572, %v1609
      %v1630 = vld [vmem:[#allocation2] sm:$0xfe]
      %v1631 = vld [vmem:[#allocation2 + $0x8] sm:$0xfe]
      %v1632 = vld [vmem:[#allocation2 + $0x40] sm:$0x1]
      %v1633 = vld [vmem:[#allocation2 + $0x48] sm:$0x1]
      %v1634 = vperm.slane %v1448, 3
      %1636 = vrot.lane.b32.xlu0 %v1634, 4
      %v1637 = vpop.permute.xlu0 %1636
      %v1639 = vmul.f32 %v1630, %v1637
      %v1640 = vmul.f32 %v1631, %v1637
      %v1641 = vmul.f32 %v1489, %v1637
      %v1642 = vmul.f32 %v1490, %v1637
      %v1643 = vmul.f32 %v1491, %v1637
      %v1644 = vmul.f32 %v1492, %v1637
      %v1645 = vmul.f32 %v1493, %v1637
      %v1646 = vmul.f32 %v1494, %v1637
      %v1647 = vmul.f32 %v1632, %v1637
      %v1648 = vmul.f32 %v1633, %v1637
      %v1659 = vrot.slane %v1639, 1
      %v1660 = vrot.slane %v1641, 1
      %v1661 = vsel %vm914, %v1659, %v1660
      %v1662 = vrot.slane %v1640, 1
      %v1663 = vrot.slane %v1642, 1
      %v1664 = vsel %vm914, %v1662, %v1663
      %v1665 = vrot.slane %v1643, 1
      %v1666 = vsel %vm914, %v1660, %v1665
      %v1667 = vrot.slane %v1644, 1
      %v1668 = vsel %vm914, %v1663, %v1667
      %v1669 = vrot.slane %v1645, 1
      %v1670 = vsel %vm914, %v1665, %v1669
      %v1671 = vrot.slane %v1646, 1
      %v1672 = vsel %vm914, %v1667, %v1671
      %v1673 = vrot.slane %v1647, 1
      %v1674 = vsel %vm914, %v1669, %v1673
      %v1675 = vrot.slane %v1648, 1
      %v1676 = vsel %vm914, %v1671, %v1675
      %v1685 = vadd.f32 %v1622, %v1661
      %v1686 = vadd.f32 %v1623, %v1664
      %v1687 = vadd.f32 %v1624, %v1666
      %v1688 = vadd.f32 %v1625, %v1668
      %v1689 = vadd.f32 %v1626, %v1670
      %v1690 = vadd.f32 %v1627, %v1672
      %v1691 = vadd.f32 %v1628, %v1674
      %v1692 = vadd.f32 %v1629, %v1676
      %v1693 = vperm.slane %v1448, 4
      %1695 = vrot.lane.b32.xlu0 %v1693, 8
      %v1696 = vpop.permute.xlu0 %1695
      %v1698 = vmul.f32 %v1630, %v1696
      %v1699 = vmul.f32 %v1631, %v1696
      %v1700 = vmul.f32 %v1489, %v1696
      %v1701 = vmul.f32 %v1490, %v1696
      %v1702 = vmul.f32 %v1491, %v1696
      %v1703 = vmul.f32 %v1492, %v1696
      %v1704 = vmul.f32 %v1493, %v1696
      %v1705 = vmul.f32 %v1494, %v1696
      %v1706 = vmul.f32 %v1632, %v1696
      %v1707 = vmul.f32 %v1633, %v1696
      %v1718 = vrot.slane %v1698, 1
      %v1719 = vrot.slane %v1700, 1
      %v1720 = vsel %vm914, %v1718, %v1719
      %v1721 = vrot.slane %v1699, 1
      %v1722 = vrot.slane %v1701, 1
      %v1723 = vsel %vm914, %v1721, %v1722
      %v1724 = vrot.slane %v1702, 1
      %v1725 = vsel %vm914, %v1719, %v1724
      %v1726 = vrot.slane %v1703, 1
      %v1727 = vsel %vm914, %v1722, %v1726
      %v1728 = vrot.slane %v1704, 1
      %v1729 = vsel %vm914, %v1724, %v1728
      %v1730 = vrot.slane %v1705, 1
      %v1731 = vsel %vm914, %v1726, %v1730
      %v1732 = vrot.slane %v1706, 1
      %v1733 = vsel %vm914, %v1728, %v1732
      %v1734 = vrot.slane %v1707, 1
      %v1735 = vsel %vm914, %v1730, %v1734
      %1736 = vrot.lane.b32.xlu0 %v1720, 124
      %v1737 = vpop.permute.xlu0 %1736
      %1738 = vrot.lane.b32.xlu0 %v1723, 124
      %v1739 = vpop.permute.xlu0 %1738
      %1740 = vrot.lane.b32.xlu0 %v1725, 124
      %v1741 = vpop.permute.xlu0 %1740
      %1742 = vrot.lane.b32.xlu0 %v1727, 124
      %v1743 = vpop.permute.xlu0 %1742
      %1744 = vrot.lane.b32.xlu0 %v1729, 124
      %v1745 = vpop.permute.xlu0 %1744
      %1746 = vrot.lane.b32.xlu0 %v1731, 124
      %v1747 = vpop.permute.xlu0 %1746
      %1748 = vrot.lane.b32.xlu0 %v1733, 124
      %v1749 = vpop.permute.xlu0 %1748
      %1750 = vrot.lane.b32.xlu0 %v1735, 124
      %v1751 = vpop.permute.xlu0 %1750
      %v1752 = vsel %vm788, %v1737, %v1739
      %v1753 = vsel %vm788, %v1741, %v1743
      %v1754 = vsel %vm788, %v1745, %v1747
      %v1755 = vsel %vm788, %v1749, %v1751
      %v1764 = vadd.f32 %v1685, %v1752
      %v1765 = vadd.f32 %v1686, %v1739
      %v1766 = vadd.f32 %v1687, %v1753
      %v1767 = vadd.f32 %v1688, %v1743
      %v1768 = vadd.f32 %v1689, %v1754
      %v1769 = vadd.f32 %v1690, %v1747
      %v1770 = vadd.f32 %v1691, %v1755
      %v1771 = vadd.f32 %v1692, %v1751
      %v1772 = vperm.slane %v1448, 5
      %1774 = vrot.lane.b32.xlu0 %v1772, 12
      %v1775 = vpop.permute.xlu0 %1774
      %v1777 = vmul.f32 %v1630, %v1775
      %v1778 = vmul.f32 %v1631, %v1775
      %v1779 = vmul.f32 %v1489, %v1775
      %v1780 = vmul.f32 %v1490, %v1775
      %v1781 = vmul.f32 %v1491, %v1775
      %v1782 = vmul.f32 %v1492, %v1775
      %v1783 = vmul.f32 %v1493, %v1775
      %v1784 = vmul.f32 %v1494, %v1775
      %v1785 = vmul.f32 %v1632, %v1775
      %v1786 = vmul.f32 %v1633, %v1775
      %v1797 = vrot.slane %v1777, 1
      %v1798 = vrot.slane %v1779, 1
      %v1799 = vsel %vm914, %v1797, %v1798
      %v1800 = vrot.slane %v1778, 1
      %v1801 = vrot.slane %v1780, 1
      %v1802 = vsel %vm914, %v1800, %v1801
      %v1803 = vrot.slane %v1781, 1
      %v1804 = vsel %vm914, %v1798, %v1803
      %v1805 = vrot.slane %v1782, 1
      %v1806 = vsel %vm914, %v1801, %v1805
      %v1807 = vrot.slane %v1783, 1
      %v1808 = vsel %vm914, %v1803, %v1807
      %v1809 = vrot.slane %v1784, 1
      %v1810 = vsel %vm914, %v1805, %v1809
      %v1811 = vrot.slane %v1785, 1
      %v1812 = vsel %vm914, %v1807, %v1811
      %v1813 = vrot.slane %v1786, 1
      %v1814 = vsel %vm914, %v1809, %v1813
      %1815 = vrot.lane.b32.xlu0 %v1799, 120
      %v1816 = vpop.permute.xlu0 %1815
      %1817 = vrot.lane.b32.xlu0 %v1802, 120
      %v1818 = vpop.permute.xlu0 %1817
      %1819 = vrot.lane.b32.xlu0 %v1804, 120
      %v1820 = vpop.permute.xlu0 %1819
      %1821 = vrot.lane.b32.xlu0 %v1806, 120
      %v1822 = vpop.permute.xlu0 %1821
      %1823 = vrot.lane.b32.xlu0 %v1808, 120
      %v1824 = vpop.permute.xlu0 %1823
      %1825 = vrot.lane.b32.xlu0 %v1810, 120
      %v1826 = vpop.permute.xlu0 %1825
      %1827 = vrot.lane.b32.xlu0 %v1812, 120
      %v1828 = vpop.permute.xlu0 %1827
      %1829 = vrot.lane.b32.xlu0 %v1814, 120
      %v1830 = vpop.permute.xlu0 %1829
      %v1831 = vsel %vm859, %v1816, %v1818
      %v1832 = vsel %vm859, %v1820, %v1822
      %v1833 = vsel %vm859, %v1824, %v1826
      %v1834 = vsel %vm859, %v1828, %v1830
      %v1843 = vadd.f32 %v1764, %v1831
      %v1844 = vadd.f32 %v1765, %v1818
      %v1845 = vadd.f32 %v1766, %v1832
      %v1846 = vadd.f32 %v1767, %v1822
      %v1847 = vadd.f32 %v1768, %v1833
      %v1848 = vadd.f32 %v1769, %v1826
      %v1849 = vadd.f32 %v1770, %v1834
      %v1850 = vadd.f32 %v1771, %v1830
      %v1851 = vld [vmem:[#allocation2] sm:$0xfc]
      %v1852 = vld [vmem:[#allocation2 + $0x8] sm:$0xfc]
      %v1853 = vld [vmem:[#allocation2 + $0x40] sm:$0x3]
      %v1854 = vld [vmem:[#allocation2 + $0x48] sm:$0x3]
      %v1855 = vperm.slane %v1448, 6
      %1857 = vrot.lane.b32.xlu0 %v1855, 4
      %v1858 = vpop.permute.xlu0 %1857
      %v1860 = vmul.f32 %v1851, %v1858
      %v1861 = vmul.f32 %v1852, %v1858
      %v1862 = vmul.f32 %v1489, %v1858
      %v1863 = vmul.f32 %v1490, %v1858
      %v1864 = vmul.f32 %v1491, %v1858
      %v1865 = vmul.f32 %v1492, %v1858
      %v1866 = vmul.f32 %v1493, %v1858
      %v1867 = vmul.f32 %v1494, %v1858
      %v1868 = vmul.f32 %v1853, %v1858
      %v1869 = vmul.f32 %v1854, %v1858
      %v1880 = vrot.slane %v1860, 2
      %v1881 = vrot.slane %v1862, 2
      %v1882 = vsel %vm1158, %v1880, %v1881
      %v1883 = vrot.slane %v1861, 2
      %v1884 = vrot.slane %v1863, 2
      %v1885 = vsel %vm1158, %v1883, %v1884
      %v1886 = vrot.slane %v1864, 2
      %v1887 = vsel %vm1158, %v1881, %v1886
      %v1888 = vrot.slane %v1865, 2
      %v1889 = vsel %vm1158, %v1884, %v1888
      %v1890 = vrot.slane %v1866, 2
      %v1891 = vsel %vm1158, %v1886, %v1890
      %v1892 = vrot.slane %v1867, 2
      %v1893 = vsel %vm1158, %v1888, %v1892
      %v1894 = vrot.slane %v1868, 2
      %v1895 = vsel %vm1158, %v1890, %v1894
      %v1896 = vrot.slane %v1869, 2
      %v1897 = vsel %vm1158, %v1892, %v1896
      %v1906 = vadd.f32 %v1843, %v1882
      %v1907 = vadd.f32 %v1844, %v1885
      %v1908 = vadd.f32 %v1845, %v1887
      %v1909 = vadd.f32 %v1846, %v1889
      %v1910 = vadd.f32 %v1847, %v1891
      %v1911 = vadd.f32 %v1848, %v1893
      %v1912 = vadd.f32 %v1849, %v1895
      %v1913 = vadd.f32 %v1850, %v1897
      %v1914 = vperm.slane %v1448, 7
      %1916 = vrot.lane.b32.xlu0 %v1914, 8
      %v1917 = vpop.permute.xlu0 %1916
      %v1919 = vmul.f32 %v1851, %v1917
      %v1920 = vmul.f32 %v1852, %v1917
      %v1921 = vmul.f32 %v1489, %v1917
      %v1922 = vmul.f32 %v1490, %v1917
      %v1923 = vmul.f32 %v1491, %v1917
      %v1924 = vmul.f32 %v1492, %v1917
      %v1925 = vmul.f32 %v1493, %v1917
      %v1926 = vmul.f32 %v1494, %v1917
      %v1927 = vmul.f32 %v1853, %v1917
      %v1928 = vmul.f32 %v1854, %v1917
      %v1939 = vrot.slane %v1919, 2
      %v1940 = vrot.slane %v1921, 2
      %v1941 = vsel %vm1158, %v1939, %v1940
      %v1942 = vrot.slane %v1920, 2
      %v1943 = vrot.slane %v1922, 2
      %v1944 = vsel %vm1158, %v1942, %v1943
      %v1945 = vrot.slane %v1923, 2
      %v1946 = vsel %vm1158, %v1940, %v1945
      %v1947 = vrot.slane %v1924, 2
      %v1948 = vsel %vm1158, %v1943, %v1947
      %v1949 = vrot.slane %v1925, 2
      %v1950 = vsel %vm1158, %v1945, %v1949
      %v1951 = vrot.slane %v1926, 2
      %v1952 = vsel %vm1158, %v1947, %v1951
      %v1953 = vrot.slane %v1927, 2
      %v1954 = vsel %vm1158, %v1949, %v1953
      %v1955 = vrot.slane %v1928, 2
      %v1956 = vsel %vm1158, %v1951, %v1955
      %1957 = vrot.lane.b32.xlu0 %v1941, 124
      %v1958 = vpop.permute.xlu0 %1957
      %1959 = vrot.lane.b32.xlu0 %v1944, 124
      %v1960 = vpop.permute.xlu0 %1959
      %1961 = vrot.lane.b32.xlu0 %v1946, 124
      %v1962 = vpop.permute.xlu0 %1961
      %1963 = vrot.lane.b32.xlu0 %v1948, 124
      %v1964 = vpop.permute.xlu0 %1963
      %1965 = vrot.lane.b32.xlu0 %v1950, 124
      %v1966 = vpop.permute.xlu0 %1965
      %1967 = vrot.lane.b32.xlu0 %v1952, 124
      %v1968 = vpop.permute.xlu0 %1967
      %1969 = vrot.lane.b32.xlu0 %v1954, 124
      %v1970 = vpop.permute.xlu0 %1969
      %1971 = vrot.lane.b32.xlu0 %v1956, 124
      %v1972 = vpop.permute.xlu0 %1971
      %v1973 = vsel %vm788, %v1958, %v1960
      %v1974 = vsel %vm788, %v1962, %v1964
      %v1975 = vsel %vm788, %v1966, %v1968
      %v1976 = vsel %vm788, %v1970, %v1972
      %v1985 = vadd.f32 %v1906, %v1973
      %v1986 = vadd.f32 %v1907, %v1960
      %v1987 = vadd.f32 %v1908, %v1974
      %v1988 = vadd.f32 %v1909, %v1964
      %v1989 = vadd.f32 %v1910, %v1975
      %v1990 = vadd.f32 %v1911, %v1968
      %v1991 = vadd.f32 %v1912, %v1976
      %v1992 = vadd.f32 %v1913, %v1972
      %v1993 = vperm.slane %v1449, 0
      %1995 = vrot.lane.b32.xlu0 %v1993, 12
      %v1996 = vpop.permute.xlu0 %1995
      %v1998 = vmul.f32 %v1851, %v1996
      %v1999 = vmul.f32 %v1852, %v1996
      %v2000 = vmul.f32 %v1489, %v1996
      %v2001 = vmul.f32 %v1490, %v1996
      %v2002 = vmul.f32 %v1491, %v1996
      %v2003 = vmul.f32 %v1492, %v1996
      %v2004 = vmul.f32 %v1493, %v1996
      %v2005 = vmul.f32 %v1494, %v1996
      %v2006 = vmul.f32 %v1853, %v1996
      %v2007 = vmul.f32 %v1854, %v1996
      %v2018 = vrot.slane %v1998, 2
      %v2019 = vrot.slane %v2000, 2
      %v2020 = vsel %vm1158, %v2018, %v2019
      %v2021 = vrot.slane %v1999, 2
      %v2022 = vrot.slane %v2001, 2
      %v2023 = vsel %vm1158, %v2021, %v2022
      %v2024 = vrot.slane %v2002, 2
      %v2025 = vsel %vm1158, %v2019, %v2024
      %v2026 = vrot.slane %v2003, 2
      %v2027 = vsel %vm1158, %v2022, %v2026
      %v2028 = vrot.slane %v2004, 2
      %v2029 = vsel %vm1158, %v2024, %v2028
      %v2030 = vrot.slane %v2005, 2
      %v2031 = vsel %vm1158, %v2026, %v2030
      %v2032 = vrot.slane %v2006, 2
      %v2033 = vsel %vm1158, %v2028, %v2032
      %v2034 = vrot.slane %v2007, 2
      %v2035 = vsel %vm1158, %v2030, %v2034
      %2036 = vrot.lane.b32.xlu0 %v2020, 120
      %v2037 = vpop.permute.xlu0 %2036
      %2038 = vrot.lane.b32.xlu0 %v2023, 120
      %v2039 = vpop.permute.xlu0 %2038
      %2040 = vrot.lane.b32.xlu0 %v2025, 120
      %v2041 = vpop.permute.xlu0 %2040
      %2042 = vrot.lane.b32.xlu0 %v2027, 120
      %v2043 = vpop.permute.xlu0 %2042
      %2044 = vrot.lane.b32.xlu0 %v2029, 120
      %v2045 = vpop.permute.xlu0 %2044
      %2046 = vrot.lane.b32.xlu0 %v2031, 120
      %v2047 = vpop.permute.xlu0 %2046
      %2048 = vrot.lane.b32.xlu0 %v2033, 120
      %v2049 = vpop.permute.xlu0 %2048
      %2050 = vrot.lane.b32.xlu0 %v2035, 120
      %v2051 = vpop.permute.xlu0 %2050
      %v2052 = vsel %vm859, %v2037, %v2039
      %v2053 = vsel %vm859, %v2041, %v2043
      %v2054 = vsel %vm859, %v2045, %v2047
      %v2055 = vsel %vm859, %v2049, %v2051
      %v2064 = vadd.f32 %v1985, %v2052
      %v2065 = vadd.f32 %v1986, %v2039
      %v2066 = vadd.f32 %v1987, %v2053
      %v2067 = vadd.f32 %v1988, %v2043
      %v2068 = vadd.f32 %v1989, %v2054
      %v2069 = vadd.f32 %v1990, %v2047
      %v2070 = vadd.f32 %v1991, %v2055
      %v2071 = vadd.f32 %v1992, %v2051
      %v2072 = vld [vmem:[#allocation2] sm:$0xf8]
      %v2073 = vld [vmem:[#allocation2 + $0x8] sm:$0xf8]
      %v2074 = vld [vmem:[#allocation2 + $0x40] sm:$0x7]
      %v2075 = vld [vmem:[#allocation2 + $0x48] sm:$0x7]
      %v2076 = vperm.slane %v1449, 1
      %2078 = vrot.lane.b32.xlu0 %v2076, 4
      %v2079 = vpop.permute.xlu0 %2078
      %v2081 = vmul.f32 %v2072, %v2079
      %v2082 = vmul.f32 %v2073, %v2079
      %v2083 = vmul.f32 %v1489, %v2079
      %v2084 = vmul.f32 %v1490, %v2079
      %v2085 = vmul.f32 %v1491, %v2079
      %v2086 = vmul.f32 %v1492, %v2079
      %v2087 = vmul.f32 %v1493, %v2079
      %v2088 = vmul.f32 %v1494, %v2079
      %v2089 = vmul.f32 %v2074, %v2079
      %v2090 = vmul.f32 %v2075, %v2079
      %vm2101 = vcmask 1044480
      %v2102 = vrot.slane %v2081, 3
      %v2103 = vrot.slane %v2083, 3
      %v2104 = vsel %vm2101, %v2102, %v2103
      %v2105 = vrot.slane %v2082, 3
      %v2106 = vrot.slane %v2084, 3
      %v2107 = vsel %vm2101, %v2105, %v2106
      %v2108 = vrot.slane %v2085, 3
      %v2109 = vsel %vm2101, %v2103, %v2108
      %v2110 = vrot.slane %v2086, 3
      %v2111 = vsel %vm2101, %v2106, %v2110
      %v2112 = vrot.slane %v2087, 3
      %v2113 = vsel %vm2101, %v2108, %v2112
      %v2114 = vrot.slane %v2088, 3
      %v2115 = vsel %vm2101, %v2110, %v2114
      %v2116 = vrot.slane %v2089, 3
      %v2117 = vsel %vm2101, %v2112, %v2116
      %v2118 = vrot.slane %v2090, 3
      %v2119 = vsel %vm2101, %v2114, %v2118
      %v2128 = vadd.f32 %v2064, %v2104
      %v2129 = vadd.f32 %v2065, %v2107
      %v2130 = vadd.f32 %v2066, %v2109
      %v2131 = vadd.f32 %v2067, %v2111
      %v2132 = vadd.f32 %v2068, %v2113
      %v2133 = vadd.f32 %v2069, %v2115
      %v2134 = vadd.f32 %v2070, %v2117
      %v2135 = vadd.f32 %v2071, %v2119
      %v2136 = vperm.slane %v1449, 2
      %2138 = vrot.lane.b32.xlu0 %v2136, 8
      %v2139 = vpop.permute.xlu0 %2138
      %v2141 = vmul.f32 %v2072, %v2139
      %v2142 = vmul.f32 %v2073, %v2139
      %v2143 = vmul.f32 %v1489, %v2139
      %v2144 = vmul.f32 %v1490, %v2139
      %v2145 = vmul.f32 %v1491, %v2139
      %v2146 = vmul.f32 %v1492, %v2139
      %v2147 = vmul.f32 %v1493, %v2139
      %v2148 = vmul.f32 %v1494, %v2139
      %v2149 = vmul.f32 %v2074, %v2139
      %v2150 = vmul.f32 %v2075, %v2139
      %v2161 = vrot.slane %v2141, 3
      %v2162 = vrot.slane %v2143, 3
      %v2163 = vsel %vm2101, %v2161, %v2162
      %v2164 = vrot.slane %v2142, 3
      %v2165 = vrot.slane %v2144, 3
      %v2166 = vsel %vm2101, %v2164, %v2165
      %v2167 = vrot.slane %v2145, 3
      %v2168 = vsel %vm2101, %v2162, %v2167
      %v2169 = vrot.slane %v2146, 3
      %v2170 = vsel %vm2101, %v2165, %v2169
      %v2171 = vrot.slane %v2147, 3
      %v2172 = vsel %vm2101, %v2167, %v2171
      %v2173 = vrot.slane %v2148, 3
      %v2174 = vsel %vm2101, %v2169, %v2173
      %v2175 = vrot.slane %v2149, 3
      %v2176 = vsel %vm2101, %v2171, %v2175
      %v2177 = vrot.slane %v2150, 3
      %v2178 = vsel %vm2101, %v2173, %v2177
      %2179 = vrot.lane.b32.xlu0 %v2163, 124
      %v2180 = vpop.permute.xlu0 %2179
      %2181 = vrot.lane.b32.xlu0 %v2166, 124
      %v2182 = vpop.permute.xlu0 %2181
      %2183 = vrot.lane.b32.xlu0 %v2168, 124
      %v2184 = vpop.permute.xlu0 %2183
      %2185 = vrot.lane.b32.xlu0 %v2170, 124
      %v2186 = vpop.permute.xlu0 %2185
      %2187 = vrot.lane.b32.xlu0 %v2172, 124
      %v2188 = vpop.permute.xlu0 %2187
      %2189 = vrot.lane.b32.xlu0 %v2174, 124
      %v2190 = vpop.permute.xlu0 %2189
      %2191 = vrot.lane.b32.xlu0 %v2176, 124
      %v2192 = vpop.permute.xlu0 %2191
      %2193 = vrot.lane.b32.xlu0 %v2178, 124
      %v2194 = vpop.permute.xlu0 %2193
      %v2195 = vsel %vm788, %v2180, %v2182
      %v2196 = vsel %vm788, %v2184, %v2186
      %v2197 = vsel %vm788, %v2188, %v2190
      %v2198 = vsel %vm788, %v2192, %v2194
      %v2207 = vadd.f32 %v2128, %v2195
      %v2208 = vadd.f32 %v2129, %v2182
      %v2209 = vadd.f32 %v2130, %v2196
      %v2210 = vadd.f32 %v2131, %v2186
      %v2211 = vadd.f32 %v2132, %v2197
      %v2212 = vadd.f32 %v2133, %v2190
      %v2213 = vadd.f32 %v2134, %v2198
      %v2214 = vadd.f32 %v2135, %v2194
      %v2215 = vperm.slane %v1449, 3
      %2217 = vrot.lane.b32.xlu0 %v2215, 12
      %v2218 = vpop.permute.xlu0 %2217
      %v2220 = vmul.f32 %v2072, %v2218
      %v2221 = vmul.f32 %v2073, %v2218
      %v2222 = vmul.f32 %v1489, %v2218
      %v2223 = vmul.f32 %v1490, %v2218
      %v2224 = vmul.f32 %v1491, %v2218
      %v2225 = vmul.f32 %v1492, %v2218
      %v2226 = vmul.f32 %v1493, %v2218
      %v2227 = vmul.f32 %v1494, %v2218
      %v2228 = vmul.f32 %v2074, %v2218
      %v2229 = vmul.f32 %v2075, %v2218
      %v2240 = vrot.slane %v2220, 3
      %v2241 = vrot.slane %v2222, 3
      %v2242 = vsel %vm2101, %v2240, %v2241
      %v2243 = vrot.slane %v2221, 3
      %v2244 = vrot.slane %v2223, 3
      %v2245 = vsel %vm2101, %v2243, %v2244
      %v2246 = vrot.slane %v2224, 3
      %v2247 = vsel %vm2101, %v2241, %v2246
      %v2248 = vrot.slane %v2225, 3
      %v2249 = vsel %vm2101, %v2244, %v2248
      %v2250 = vrot.slane %v2226, 3
      %v2251 = vsel %vm2101, %v2246, %v2250
      %v2252 = vrot.slane %v2227, 3
      %v2253 = vsel %vm2101, %v2248, %v2252
      %v2254 = vrot.slane %v2228, 3
      %v2255 = vsel %vm2101, %v2250, %v2254
      %v2256 = vrot.slane %v2229, 3
      %v2257 = vsel %vm2101, %v2252, %v2256
      %2258 = vrot.lane.b32.xlu0 %v2242, 120
      %v2259 = vpop.permute.xlu0 %2258
      %2260 = vrot.lane.b32.xlu0 %v2245, 120
      %v2261 = vpop.permute.xlu0 %2260
      %2262 = vrot.lane.b32.xlu0 %v2247, 120
      %v2263 = vpop.permute.xlu0 %2262
      %2264 = vrot.lane.b32.xlu0 %v2249, 120
      %v2265 = vpop.permute.xlu0 %2264
      %2266 = vrot.lane.b32.xlu0 %v2251, 120
      %v2267 = vpop.permute.xlu0 %2266
      %2268 = vrot.lane.b32.xlu0 %v2253, 120
      %v2269 = vpop.permute.xlu0 %2268
      %2270 = vrot.lane.b32.xlu0 %v2255, 120
      %v2271 = vpop.permute.xlu0 %2270
      %2272 = vrot.lane.b32.xlu0 %v2257, 120
      %v2273 = vpop.permute.xlu0 %2272
      %v2274 = vsel %vm859, %v2259, %v2261
      %v2275 = vsel %vm859, %v2263, %v2265
      %v2276 = vsel %vm859, %v2267, %v2269
      %v2277 = vsel %vm859, %v2271, %v2273
      %v2286 = vadd.f32 %v2207, %v2274
      %v2287 = vadd.f32 %v2208, %v2261
      %v2288 = vadd.f32 %v2209, %v2275
      %v2289 = vadd.f32 %v2210, %v2265
      %v2290 = vadd.f32 %v2211, %v2276
      %v2291 = vadd.f32 %v2212, %v2269
      %v2292 = vadd.f32 %v2213, %v2277
      %v2293 = vadd.f32 %v2214, %v2273
      %v2294 = vld [vmem:[#allocation2] sm:$0xf0]
      %v2295 = vld [vmem:[#allocation2 + $0x8] sm:$0xf0]
      %v2296 = vld [vmem:[#allocation2 + $0x40] sm:$0xf]
      %v2297 = vld [vmem:[#allocation2 + $0x48] sm:$0xf]
      %v2298 = vperm.slane %v1449, 4
      %2300 = vrot.lane.b32.xlu0 %v2298, 4
      %v2301 = vpop.permute.xlu0 %2300
      %v2303 = vmul.f32 %v2294, %v2301
      %v2304 = vmul.f32 %v2295, %v2301
      %v2305 = vmul.f32 %v1489, %v2301
      %v2306 = vmul.f32 %v1490, %v2301
      %v2307 = vmul.f32 %v1491, %v2301
      %v2308 = vmul.f32 %v1492, %v2301
      %v2309 = vmul.f32 %v1493, %v2301
      %v2310 = vmul.f32 %v1494, %v2301
      %v2311 = vmul.f32 %v2296, %v2301
      %v2312 = vmul.f32 %v2297, %v2301
      %vm2323 = vcmask 1043456
      %v2324 = vrot.slane %v2303, 4
      %v2325 = vrot.slane %v2305, 4
      %v2326 = vsel %vm2323, %v2324, %v2325
      %v2327 = vrot.slane %v2304, 4
      %v2328 = vrot.slane %v2306, 4
      %v2329 = vsel %vm2323, %v2327, %v2328
      %v2330 = vrot.slane %v2307, 4
      %v2331 = vsel %vm2323, %v2325, %v2330
      %v2332 = vrot.slane %v2308, 4
      %v2333 = vsel %vm2323, %v2328, %v2332
      %v2334 = vrot.slane %v2309, 4
      %v2335 = vsel %vm2323, %v2330, %v2334
      %v2336 = vrot.slane %v2310, 4
      %v2337 = vsel %vm2323, %v2332, %v2336
      %v2338 = vrot.slane %v2311, 4
      %v2339 = vsel %vm2323, %v2334, %v2338
      %v2340 = vrot.slane %v2312, 4
      %v2341 = vsel %vm2323, %v2336, %v2340
      %v2350 = vadd.f32 %v2286, %v2326
      %v2351 = vadd.f32 %v2287, %v2329
      %v2352 = vadd.f32 %v2288, %v2331
      %v2353 = vadd.f32 %v2289, %v2333
      %v2354 = vadd.f32 %v2290, %v2335
      %v2355 = vadd.f32 %v2291, %v2337
      %v2356 = vadd.f32 %v2292, %v2339
      %v2357 = vadd.f32 %v2293, %v2341
      %v2358 = vperm.slane %v1449, 5
      %2360 = vrot.lane.b32.xlu0 %v2358, 8
      %v2361 = vpop.permute.xlu0 %2360
      %v2363 = vmul.f32 %v2294, %v2361
      %v2364 = vmul.f32 %v2295, %v2361
      %v2365 = vmul.f32 %v1489, %v2361
      %v2366 = vmul.f32 %v1490, %v2361
      %v2367 = vmul.f32 %v1491, %v2361
      %v2368 = vmul.f32 %v1492, %v2361
      %v2369 = vmul.f32 %v1493, %v2361
      %v2370 = vmul.f32 %v1494, %v2361
      %v2371 = vmul.f32 %v2296, %v2361
      %v2372 = vmul.f32 %v2297, %v2361
      %v2383 = vrot.slane %v2363, 4
      %v2384 = vrot.slane %v2365, 4
      %v2385 = vsel %vm2323, %v2383, %v2384
      %v2386 = vrot.slane %v2364, 4
      %v2387 = vrot.slane %v2366, 4
      %v2388 = vsel %vm2323, %v2386, %v2387
      %v2389 = vrot.slane %v2367, 4
      %v2390 = vsel %vm2323, %v2384, %v2389
      %v2391 = vrot.slane %v2368, 4
      %v2392 = vsel %vm2323, %v2387, %v2391
      %v2393 = vrot.slane %v2369, 4
      %v2394 = vsel %vm2323, %v2389, %v2393
      %v2395 = vrot.slane %v2370, 4
      %v2396 = vsel %vm2323, %v2391, %v2395
      %v2397 = vrot.slane %v2371, 4
      %v2398 = vsel %vm2323, %v2393, %v2397
      %v2399 = vrot.slane %v2372, 4
      %v2400 = vsel %vm2323, %v2395, %v2399
      %2401 = vrot.lane.b32.xlu0 %v2385, 124
      %v2402 = vpop.permute.xlu0 %2401
      %2403 = vrot.lane.b32.xlu0 %v2388, 124
      %v2404 = vpop.permute.xlu0 %2403
      %2405 = vrot.lane.b32.xlu0 %v2390, 124
      %v2406 = vpop.permute.xlu0 %2405
      %2407 = vrot.lane.b32.xlu0 %v2392, 124
      %v2408 = vpop.permute.xlu0 %2407
      %2409 = vrot.lane.b32.xlu0 %v2394, 124
      %v2410 = vpop.permute.xlu0 %2409
      %2411 = vrot.lane.b32.xlu0 %v2396, 124
      %v2412 = vpop.permute.xlu0 %2411
      %2413 = vrot.lane.b32.xlu0 %v2398, 124
      %v2414 = vpop.permute.xlu0 %2413
      %2415 = vrot.lane.b32.xlu0 %v2400, 124
      %v2416 = vpop.permute.xlu0 %2415
      %v2417 = vsel %vm788, %v2402, %v2404
      %v2418 = vsel %vm788, %v2406, %v2408
      %v2419 = vsel %vm788, %v2410, %v2412
      %v2420 = vsel %vm788, %v2414, %v2416
      %v2429 = vadd.f32 %v2350, %v2417
      %v2430 = vadd.f32 %v2351, %v2404
      %v2431 = vadd.f32 %v2352, %v2418
      %v2432 = vadd.f32 %v2353, %v2408
      %v2433 = vadd.f32 %v2354, %v2419
      %v2434 = vadd.f32 %v2355, %v2412
      %v2435 = vadd.f32 %v2356, %v2420
      %v2436 = vadd.f32 %v2357, %v2416
      %v2437 = vperm.slane %v1449, 6
      %2439 = vrot.lane.b32.xlu0 %v2437, 12
      %v2440 = vpop.permute.xlu0 %2439
      %v2442 = vmul.f32 %v2294, %v2440
      %v2443 = vmul.f32 %v2295, %v2440
      %v2444 = vmul.f32 %v1489, %v2440
      %v2445 = vmul.f32 %v1490, %v2440
      %v2446 = vmul.f32 %v1491, %v2440
      %v2447 = vmul.f32 %v1492, %v2440
      %v2448 = vmul.f32 %v1493, %v2440
      %v2449 = vmul.f32 %v1494, %v2440
      %v2450 = vmul.f32 %v2296, %v2440
      %v2451 = vmul.f32 %v2297, %v2440
      %v2462 = vrot.slane %v2442, 4
      %v2463 = vrot.slane %v2444, 4
      %v2464 = vsel %vm2323, %v2462, %v2463
      %v2465 = vrot.slane %v2443, 4
      %v2466 = vrot.slane %v2445, 4
      %v2467 = vsel %vm2323, %v2465, %v2466
      %v2468 = vrot.slane %v2446, 4
      %v2469 = vsel %vm2323, %v2463, %v2468
      %v2470 = vrot.slane %v2447, 4
      %v2471 = vsel %vm2323, %v2466, %v2470
      %v2472 = vrot.slane %v2448, 4
      %v2473 = vsel %vm2323, %v2468, %v2472
      %v2474 = vrot.slane %v2449, 4
      %v2475 = vsel %vm2323, %v2470, %v2474
      %v2476 = vrot.slane %v2450, 4
      %v2477 = vsel %vm2323, %v2472, %v2476
      %v2478 = vrot.slane %v2451, 4
      %v2479 = vsel %vm2323, %v2474, %v2478
      %2480 = vrot.lane.b32.xlu0 %v2464, 120
      %v2481 = vpop.permute.xlu0 %2480
      %2482 = vrot.lane.b32.xlu0 %v2467, 120
      %v2483 = vpop.permute.xlu0 %2482
      %2484 = vrot.lane.b32.xlu0 %v2469, 120
      %v2485 = vpop.permute.xlu0 %2484
      %2486 = vrot.lane.b32.xlu0 %v2471, 120
      %v2487 = vpop.permute.xlu0 %2486
      %2488 = vrot.lane.b32.xlu0 %v2473, 120
      %v2489 = vpop.permute.xlu0 %2488
      %2490 = vrot.lane.b32.xlu0 %v2475, 120
      %v2491 = vpop.permute.xlu0 %2490
      %2492 = vrot.lane.b32.xlu0 %v2477, 120
      %v2493 = vpop.permute.xlu0 %2492
      %2494 = vrot.lane.b32.xlu0 %v2479, 120
      %v2495 = vpop.permute.xlu0 %2494
      %v2496 = vsel %vm859, %v2481, %v2483
      %v2497 = vsel %vm859, %v2485, %v2487
      %v2498 = vsel %vm859, %v2489, %v2491
      %v2499 = vsel %vm859, %v2493, %v2495
      %v2508 = vadd.f32 %v2429, %v2496
      %v2509 = vadd.f32 %v2430, %v2483
      %v2510 = vadd.f32 %v2431, %v2497
      %v2511 = vadd.f32 %v2432, %v2487
      %v2512 = vadd.f32 %v2433, %v2498
      %v2513 = vadd.f32 %v2434, %v2491
      %v2514 = vadd.f32 %v2435, %v2499
      %v2515 = vadd.f32 %v2436, %v2495
      %v2517 = vperm.slane %v1450, 0
      %2518 = vrot.lane.b32.xlu0 %v2517, 4
      %v2519 = vpop.permute.xlu0 %2518
      %v2521 = vadd.f32 %v2508, %v2519
      %v2522 = vadd.f32 %v2509, %v2519
      %v2523 = vadd.f32 %v2510, %v2519
      %v2524 = vadd.f32 %v2511, %v2519
      %v2525 = vadd.f32 %v2512, %v2519
      %v2526 = vadd.f32 %v2513, %v2519
      %v2527 = vadd.f32 %v2514, %v2519
      %v2528 = vadd.f32 %v2515, %v2519
      %v2529 = vld [vmem:[%s620] sm:$0xff]
      %v2530 = vld [vmem:[%s620 + $0x8] sm:$0xff]
      %v2531 = vld [vmem:[%s620 + $0x10] sm:$0xff]
      %v2532 = vld [vmem:[%s620 + $0x18] sm:$0xff]
      %2541 = vrot.lane.b32.xlu0 %v2521, 124
      %v2542 = vpop.permute.xlu0 %2541
      %2543 = vrot.lane.b32.xlu0 %v2522, 124
      %v2544 = vpop.permute.xlu0 %2543
      %2545 = vrot.lane.b32.xlu0 %v2523, 124
      %v2546 = vpop.permute.xlu0 %2545
      %2547 = vrot.lane.b32.xlu0 %v2524, 124
      %v2548 = vpop.permute.xlu0 %2547
      %2549 = vrot.lane.b32.xlu0 %v2525, 124
      %v2550 = vpop.permute.xlu0 %2549
      %2551 = vrot.lane.b32.xlu0 %v2526, 124
      %v2552 = vpop.permute.xlu0 %2551
      %2553 = vrot.lane.b32.xlu0 %v2527, 124
      %v2554 = vpop.permute.xlu0 %2553
      %2555 = vrot.lane.b32.xlu0 %v2528, 124
      %v2556 = vpop.permute.xlu0 %2555
      %v2557 = vsel %vm788, %v2542, %v2544
      %v2558 = vsel %vm788, %v2546, %v2548
      %v2559 = vsel %vm788, %v2550, %v2552
      %v2560 = vsel %vm788, %v2554, %v2556
      %v2565 = vadd.f32 %v2529, %v2557
      %v2566 = vadd.f32 %v2530, %v2558
      %v2567 = vadd.f32 %v2531, %v2559
      %v2568 = vadd.f32 %v2532, %v2560
      %v2569 = vld [vmem:[%s8] sm:$0xff]
      %v2570 = vld [vmem:[%s8 + $0x8] sm:$0x7f]
      %v2571 = vld [vmem:[%s9] sm:$0x1]
      %v2576 = vrot.slane %v2565, 6
      %v2577 = vrot.slane %v2566, 6
      %v2578 = vsel %vm669, %v2576, %v2577
      %v2579 = vrot.slane %v2567, 6
      %v2580 = vsel %vm669, %v2577, %v2579
      %v2581 = vrot.slane %v2568, 6
      %v2582 = vsel %vm669, %v2579, %v2581
      %2583 = vrot.lane.b32.xlu0 %v2576, 8
      %v2584 = vpop.permute.xlu0 %2583
      %2585 = vrot.lane.b32.xlu0 %v2578, 8
      %v2586 = vpop.permute.xlu0 %2585
      %2587 = vrot.lane.b32.xlu0 %v2580, 8
      %v2588 = vpop.permute.xlu0 %2587
      %2589 = vrot.lane.b32.xlu0 %v2582, 8
      %v2590 = vpop.permute.xlu0 %2589
      %2591 = vrot.lane.b32.xlu0 %v2581, 8
      %v2592 = vpop.permute.xlu0 %2591
      %2598 = vst.msk [vmem:[#allocation2] sm:$0xfc] %vm692, %v2584
      %2599 = vst.msk [vmem:[#allocation2 + $0x8] sm:$0xfc] %vm694, %v2584
      %2600 = vst.msk [vmem:[#allocation2 + $0x10] sm:$0xff] %vm696, %v2586
      %2601 = vst.msk [vmem:[#allocation2 + $0x18] sm:$0xff] %vm698, %v2586
      %2602 = vst.msk [vmem:[#allocation2 + $0x20] sm:$0xff] %vm696, %v2588
      %2603 = vst.msk [vmem:[#allocation2 + $0x28] sm:$0xff] %vm698, %v2588
      %2604 = vst.msk [vmem:[#allocation2 + $0x30] sm:$0xff] %vm696, %v2590
      %2605 = vst.msk [vmem:[#allocation2 + $0x38] sm:$0xff] %vm698, %v2590
      %2606 = vst.msk [vmem:[#allocation2 + $0x40] sm:$0x3] %vm704, %v2592
      %2607 = vst.msk [vmem:[#allocation2 + $0x48] sm:$0x3] %vm706, %v2592
      %v2608 = vld [vmem:[#allocation2] sm:$0xfe]
      %v2609 = vld [vmem:[#allocation2 + $0x10] sm:$0xff]
      %v2610 = vld [vmem:[#allocation2 + $0x20] sm:$0xff]
      %v2611 = vld [vmem:[#allocation2 + $0x30] sm:$0xff]
      %v2612 = vld [vmem:[#allocation2 + $0x40] sm:$0x1]
      %v2613 = vperm.slane %v2569, 0
      %v2614 = vmul.f32 %v2608, %v2613
      %v2615 = vmul.f32 %v2609, %v2613
      %v2616 = vmul.f32 %v2610, %v2613
      %v2617 = vmul.f32 %v2611, %v2613
      %v2618 = vmul.f32 %v2612, %v2613
      %v2619 = vadd.f32 %v2614, 0.0
      %v2620 = vadd.f32 %v2615, 0.0
      %v2621 = vadd.f32 %v2616, 0.0
      %v2622 = vadd.f32 %v2617, 0.0
      %v2623 = vadd.f32 %v2618, 0.0
      %v2624 = vld [vmem:[#allocation2 + $0x8] sm:$0xfe]
      %v2625 = vld [vmem:[#allocation2 + $0x18] sm:$0xff]
      %v2626 = vld [vmem:[#allocation2 + $0x28] sm:$0xff]
      %v2627 = vld [vmem:[#allocation2 + $0x38] sm:$0xff]
      %v2628 = vld [vmem:[#allocation2 + $0x48] sm:$0x1]
      %v2629 = vperm.slane %v2569, 1
      %2631 = vrot.lane.b32.xlu0 %v2629, 4
      %v2632 = vpop.permute.xlu0 %2631
      %v2634 = vmul.f32 %v2608, %v2632
      %v2635 = vmul.f32 %v2624, %v2632
      %v2636 = vmul.f32 %v2609, %v2632
      %v2637 = vmul.f32 %v2625, %v2632
      %v2638 = vmul.f32 %v2610, %v2632
      %v2639 = vmul.f32 %v2626, %v2632
      %v2640 = vmul.f32 %v2611, %v2632
      %v2641 = vmul.f32 %v2627, %v2632
      %v2642 = vmul.f32 %v2612, %v2632
      %v2643 = vmul.f32 %v2628, %v2632
      %2654 = vrot.lane.b32.xlu0 %v2634, 124
      %v2655 = vpop.permute.xlu0 %2654
      %2656 = vrot.lane.b32.xlu0 %v2635, 124
      %v2657 = vpop.permute.xlu0 %2656
      %2658 = vrot.lane.b32.xlu0 %v2636, 124
      %v2659 = vpop.permute.xlu0 %2658
      %2660 = vrot.lane.b32.xlu0 %v2637, 124
      %v2661 = vpop.permute.xlu0 %2660
      %2662 = vrot.lane.b32.xlu0 %v2638, 124
      %v2663 = vpop.permute.xlu0 %2662
      %2664 = vrot.lane.b32.xlu0 %v2639, 124
      %v2665 = vpop.permute.xlu0 %2664
      %2666 = vrot.lane.b32.xlu0 %v2640, 124
      %v2667 = vpop.permute.xlu0 %2666
      %2668 = vrot.lane.b32.xlu0 %v2641, 124
      %v2669 = vpop.permute.xlu0 %2668
      %2670 = vrot.lane.b32.xlu0 %v2642, 124
      %v2671 = vpop.permute.xlu0 %2670
      %2672 = vrot.lane.b32.xlu0 %v2643, 124
      %v2673 = vpop.permute.xlu0 %2672
      %v2674 = vsel %vm788, %v2655, %v2657
      %v2675 = vsel %vm788, %v2659, %v2661
      %v2676 = vsel %vm788, %v2663, %v2665
      %v2677 = vsel %vm788, %v2667, %v2669
      %v2678 = vsel %vm788, %v2671, %v2673
      %v2684 = vadd.f32 %v2619, %v2674
      %v2685 = vadd.f32 %v2620, %v2675
      %v2686 = vadd.f32 %v2621, %v2676
      %v2687 = vadd.f32 %v2622, %v2677
      %v2688 = vadd.f32 %v2623, %v2678
      %v2689 = vperm.slane %v2569, 2
      %2691 = vrot.lane.b32.xlu0 %v2689, 8
      %v2692 = vpop.permute.xlu0 %2691
      %v2694 = vmul.f32 %v2608, %v2692
      %v2695 = vmul.f32 %v2624, %v2692
      %v2696 = vmul.f32 %v2609, %v2692
      %v2697 = vmul.f32 %v2625, %v2692
      %v2698 = vmul.f32 %v2610, %v2692
      %v2699 = vmul.f32 %v2626, %v2692
      %v2700 = vmul.f32 %v2611, %v2692
      %v2701 = vmul.f32 %v2627, %v2692
      %v2702 = vmul.f32 %v2612, %v2692
      %v2703 = vmul.f32 %v2628, %v2692
      %2714 = vrot.lane.b32.xlu0 %v2694, 120
      %v2715 = vpop.permute.xlu0 %2714
      %2716 = vrot.lane.b32.xlu0 %v2695, 120
      %v2717 = vpop.permute.xlu0 %2716
      %2718 = vrot.lane.b32.xlu0 %v2696, 120
      %v2719 = vpop.permute.xlu0 %2718
      %2720 = vrot.lane.b32.xlu0 %v2697, 120
      %v2721 = vpop.permute.xlu0 %2720
      %2722 = vrot.lane.b32.xlu0 %v2698, 120
      %v2723 = vpop.permute.xlu0 %2722
      %2724 = vrot.lane.b32.xlu0 %v2699, 120
      %v2725 = vpop.permute.xlu0 %2724
      %2726 = vrot.lane.b32.xlu0 %v2700, 120
      %v2727 = vpop.permute.xlu0 %2726
      %2728 = vrot.lane.b32.xlu0 %v2701, 120
      %v2729 = vpop.permute.xlu0 %2728
      %2730 = vrot.lane.b32.xlu0 %v2702, 120
      %v2731 = vpop.permute.xlu0 %2730
      %2732 = vrot.lane.b32.xlu0 %v2703, 120
      %v2733 = vpop.permute.xlu0 %2732
      %v2734 = vsel %vm859, %v2715, %v2717
      %v2735 = vsel %vm859, %v2719, %v2721
      %v2736 = vsel %vm859, %v2723, %v2725
      %v2737 = vsel %vm859, %v2727, %v2729
      %v2738 = vsel %vm859, %v2731, %v2733
      %v2744 = vadd.f32 %v2684, %v2734
      %v2745 = vadd.f32 %v2685, %v2735
      %v2746 = vadd.f32 %v2686, %v2736
      %v2747 = vadd.f32 %v2687, %v2737
      %v2748 = vadd.f32 %v2688, %v2738
      %v2749 = vperm.slane %v2569, 3
      %2751 = vrot.lane.b32.xlu0 %v2749, 12
      %v2752 = vpop.permute.xlu0 %2751
      %v2754 = vmul.f32 %v2608, %v2752
      %v2755 = vmul.f32 %v2624, %v2752
      %v2756 = vmul.f32 %v2609, %v2752
      %v2757 = vmul.f32 %v2625, %v2752
      %v2758 = vmul.f32 %v2610, %v2752
      %v2759 = vmul.f32 %v2626, %v2752
      %v2760 = vmul.f32 %v2611, %v2752
      %v2761 = vmul.f32 %v2627, %v2752
      %v2762 = vmul.f32 %v2612, %v2752
      %v2763 = vmul.f32 %v2628, %v2752
      %2774 = vrot.lane.b32.xlu0 %v2754, 116
      %v2775 = vpop.permute.xlu0 %2774
      %2776 = vrot.lane.b32.xlu0 %v2755, 116
      %v2777 = vpop.permute.xlu0 %2776
      %2778 = vrot.lane.b32.xlu0 %v2756, 116
      %v2779 = vpop.permute.xlu0 %2778
      %2780 = vrot.lane.b32.xlu0 %v2757, 116
      %v2781 = vpop.permute.xlu0 %2780
      %2782 = vrot.lane.b32.xlu0 %v2758, 116
      %v2783 = vpop.permute.xlu0 %2782
      %2784 = vrot.lane.b32.xlu0 %v2759, 116
      %v2785 = vpop.permute.xlu0 %2784
      %2786 = vrot.lane.b32.xlu0 %v2760, 116
      %v2787 = vpop.permute.xlu0 %2786
      %2788 = vrot.lane.b32.xlu0 %v2761, 116
      %v2789 = vpop.permute.xlu0 %2788
      %2790 = vrot.lane.b32.xlu0 %v2762, 116
      %v2791 = vpop.permute.xlu0 %2790
      %2792 = vrot.lane.b32.xlu0 %v2763, 116
      %v2793 = vpop.permute.xlu0 %2792
      %vm2794 = vcmask 949248
      %v2795 = vsel %vm2794, %v2775, %v2777
      %v2796 = vsel %vm2794, %v2779, %v2781
      %v2797 = vsel %vm2794, %v2783, %v2785
      %v2798 = vsel %vm2794, %v2787, %v2789
      %v2799 = vsel %vm2794, %v2791, %v2793
      %v2805 = vadd.f32 %v2744, %v2795
      %v2806 = vadd.f32 %v2745, %v2796
      %v2807 = vadd.f32 %v2746, %v2797
      %v2808 = vadd.f32 %v2747, %v2798
      %v2809 = vadd.f32 %v2748, %v2799
      %v2810 = vperm.slane %v2569, 4
      %2812 = vrot.lane.b32.xlu0 %v2810, 16
      %v2813 = vpop.permute.xlu0 %2812
      %v2815 = vmul.f32 %v2608, %v2813
      %v2816 = vmul.f32 %v2624, %v2813
      %v2817 = vmul.f32 %v2609, %v2813
      %v2818 = vmul.f32 %v2625, %v2813
      %v2819 = vmul.f32 %v2610, %v2813
      %v2820 = vmul.f32 %v2626, %v2813
      %v2821 = vmul.f32 %v2611, %v2813
      %v2822 = vmul.f32 %v2627, %v2813
      %v2823 = vmul.f32 %v2612, %v2813
      %v2824 = vmul.f32 %v2628, %v2813
      %2835 = vrot.lane.b32.xlu0 %v2815, 112
      %v2836 = vpop.permute.xlu0 %2835
      %2837 = vrot.lane.b32.xlu0 %v2816, 112
      %v2838 = vpop.permute.xlu0 %2837
      %2839 = vrot.lane.b32.xlu0 %v2817, 112
      %v2840 = vpop.permute.xlu0 %2839
      %2841 = vrot.lane.b32.xlu0 %v2818, 112
      %v2842 = vpop.permute.xlu0 %2841
      %2843 = vrot.lane.b32.xlu0 %v2819, 112
      %v2844 = vpop.permute.xlu0 %2843
      %2845 = vrot.lane.b32.xlu0 %v2820, 112
      %v2846 = vpop.permute.xlu0 %2845
      %2847 = vrot.lane.b32.xlu0 %v2821, 112
      %v2848 = vpop.permute.xlu0 %2847
      %2849 = vrot.lane.b32.xlu0 %v2822, 112
      %v2850 = vpop.permute.xlu0 %2849
      %2851 = vrot.lane.b32.xlu0 %v2823, 112
      %v2852 = vpop.permute.xlu0 %2851
      %2853 = vrot.lane.b32.xlu0 %v2824, 112
      %v2854 = vpop.permute.xlu0 %2853
      %vm2855 = vcmask 916480
      %v2856 = vsel %vm2855, %v2836, %v2838
      %v2857 = vsel %vm2855, %v2840, %v2842
      %v2858 = vsel %vm2855, %v2844, %v2846
      %v2859 = vsel %vm2855, %v2848, %v2850
      %v2860 = vsel %vm2855, %v2852, %v2854
      %v2866 = vadd.f32 %v2805, %v2856
      %v2867 = vadd.f32 %v2806, %v2857
      %v2868 = vadd.f32 %v2807, %v2858
      %v2869 = vadd.f32 %v2808, %v2859
      %v2870 = vadd.f32 %v2809, %v2860
      %v2871 = vld [vmem:[#allocation2] sm:$0xfc]
      %v2872 = vld [vmem:[#allocation2 + $0x40] sm:$0x3]
      %v2873 = vperm.slane %v2569, 5
      %v2874 = vmul.f32 %v2871, %v2873
      %v2875 = vmul.f32 %v2609, %v2873
      %v2876 = vmul.f32 %v2610, %v2873
      %v2877 = vmul.f32 %v2611, %v2873
      %v2878 = vmul.f32 %v2872, %v2873
      %v2884 = vrot.slane %v2874, 1
      %v2885 = vrot.slane %v2875, 1
      %v2886 = vsel %vm914, %v2884, %v2885
      %v2887 = vrot.slane %v2876, 1
      %v2888 = vsel %vm914, %v2885, %v2887
      %v2889 = vrot.slane %v2877, 1
      %v2890 = vsel %vm914, %v2887, %v2889
      %v2891 = vrot.slane %v2878, 1
      %v2892 = vsel %vm914, %v2889, %v2891
      %v2898 = vadd.f32 %v2866, %v2886
      %v2899 = vadd.f32 %v2867, %v2888
      %v2900 = vadd.f32 %v2868, %v2890
      %v2901 = vadd.f32 %v2869, %v2892
      %v2902 = vadd.f32 %v2870, %v2891
      %v2903 = vld [vmem:[#allocation2 + $0x8] sm:$0xfc]
      %v2904 = vld [vmem:[#allocation2 + $0x48] sm:$0x3]
      %v2905 = vperm.slane %v2569, 6
      %2907 = vrot.lane.b32.xlu0 %v2905, 4
      %v2908 = vpop.permute.xlu0 %2907
      %v2910 = vmul.f32 %v2871, %v2908
      %v2911 = vmul.f32 %v2903, %v2908
      %v2912 = vmul.f32 %v2609, %v2908
      %v2913 = vmul.f32 %v2625, %v2908
      %v2914 = vmul.f32 %v2610, %v2908
      %v2915 = vmul.f32 %v2626, %v2908
      %v2916 = vmul.f32 %v2611, %v2908
      %v2917 = vmul.f32 %v2627, %v2908
      %v2918 = vmul.f32 %v2872, %v2908
      %v2919 = vmul.f32 %v2904, %v2908
      %v2930 = vrot.slane %v2910, 1
      %v2931 = vrot.slane %v2912, 1
      %v2932 = vsel %vm914, %v2930, %v2931
      %v2933 = vrot.slane %v2911, 1
      %v2934 = vrot.slane %v2913, 1
      %v2935 = vsel %vm914, %v2933, %v2934
      %v2936 = vrot.slane %v2914, 1
      %v2937 = vsel %vm914, %v2931, %v2936
      %v2938 = vrot.slane %v2915, 1
      %v2939 = vsel %vm914, %v2934, %v2938
      %v2940 = vrot.slane %v2916, 1
      %v2941 = vsel %vm914, %v2936, %v2940
      %v2942 = vrot.slane %v2917, 1
      %v2943 = vsel %vm914, %v2938, %v2942
      %v2944 = vrot.slane %v2918, 1
      %v2945 = vsel %vm914, %v2940, %v2944
      %v2946 = vrot.slane %v2919, 1
      %v2947 = vsel %vm914, %v2942, %v2946
      %2948 = vrot.lane.b32.xlu0 %v2932, 124
      %v2949 = vpop.permute.xlu0 %2948
      %2950 = vrot.lane.b32.xlu0 %v2935, 124
      %v2951 = vpop.permute.xlu0 %2950
      %2952 = vrot.lane.b32.xlu0 %v2937, 124
      %v2953 = vpop.permute.xlu0 %2952
      %2954 = vrot.lane.b32.xlu0 %v2939, 124
      %v2955 = vpop.permute.xlu0 %2954
      %2956 = vrot.lane.b32.xlu0 %v2941, 124
      %v2957 = vpop.permute.xlu0 %2956
      %2958 = vrot.lane.b32.xlu0 %v2943, 124
      %v2959 = vpop.permute.xlu0 %2958
      %2960 = vrot.lane.b32.xlu0 %v2945, 124
      %v2961 = vpop.permute.xlu0 %2960
      %2962 = vrot.lane.b32.xlu0 %v2947, 124
      %v2963 = vpop.permute.xlu0 %2962
      %2964 = vrot.lane.b32.xlu0 %v2944, 124
      %v2965 = vpop.permute.xlu0 %2964
      %2966 = vrot.lane.b32.xlu0 %v2946, 124
      %v2967 = vpop.permute.xlu0 %2966
      %v2968 = vsel %vm788, %v2949, %v2951
      %v2969 = vsel %vm788, %v2953, %v2955
      %v2970 = vsel %vm788, %v2957, %v2959
      %v2971 = vsel %vm788, %v2961, %v2963
      %v2972 = vsel %vm788, %v2965, %v2967
      %v2978 = vadd.f32 %v2898, %v2968
      %v2979 = vadd.f32 %v2899, %v2969
      %v2980 = vadd.f32 %v2900, %v2970
      %v2981 = vadd.f32 %v2901, %v2971
      %v2982 = vadd.f32 %v2902, %v2972
      %v2983 = vperm.slane %v2569, 7
      %2985 = vrot.lane.b32.xlu0 %v2983, 8
      %v2986 = vpop.permute.xlu0 %2985
      %v2988 = vmul.f32 %v2871, %v2986
      %v2989 = vmul.f32 %v2903, %v2986
      %v2990 = vmul.f32 %v2609, %v2986
      %v2991 = vmul.f32 %v2625, %v2986
      %v2992 = vmul.f32 %v2610, %v2986
      %v2993 = vmul.f32 %v2626, %v2986
      %v2994 = vmul.f32 %v2611, %v2986
      %v2995 = vmul.f32 %v2627, %v2986
      %v2996 = vmul.f32 %v2872, %v2986
      %v2997 = vmul.f32 %v2904, %v2986
      %v3008 = vrot.slane %v2988, 1
      %v3009 = vrot.slane %v2990, 1
      %v3010 = vsel %vm914, %v3008, %v3009
      %v3011 = vrot.slane %v2989, 1
      %v3012 = vrot.slane %v2991, 1
      %v3013 = vsel %vm914, %v3011, %v3012
      %v3014 = vrot.slane %v2992, 1
      %v3015 = vsel %vm914, %v3009, %v3014
      %v3016 = vrot.slane %v2993, 1
      %v3017 = vsel %vm914, %v3012, %v3016
      %v3018 = vrot.slane %v2994, 1
      %v3019 = vsel %vm914, %v3014, %v3018
      %v3020 = vrot.slane %v2995, 1
      %v3021 = vsel %vm914, %v3016, %v3020
      %v3022 = vrot.slane %v2996, 1
      %v3023 = vsel %vm914, %v3018, %v3022
      %v3024 = vrot.slane %v2997, 1
      %v3025 = vsel %vm914, %v3020, %v3024
      %3026 = vrot.lane.b32.xlu0 %v3010, 120
      %v3027 = vpop.permute.xlu0 %3026
      %3028 = vrot.lane.b32.xlu0 %v3013, 120
      %v3029 = vpop.permute.xlu0 %3028
      %3030 = vrot.lane.b32.xlu0 %v3015, 120
      %v3031 = vpop.permute.xlu0 %3030
      %3032 = vrot.lane.b32.xlu0 %v3017, 120
      %v3033 = vpop.permute.xlu0 %3032
      %3034 = vrot.lane.b32.xlu0 %v3019, 120
      %v3035 = vpop.permute.xlu0 %3034
      %3036 = vrot.lane.b32.xlu0 %v3021, 120
      %v3037 = vpop.permute.xlu0 %3036
      %3038 = vrot.lane.b32.xlu0 %v3023, 120
      %v3039 = vpop.permute.xlu0 %3038
      %3040 = vrot.lane.b32.xlu0 %v3025, 120
      %v3041 = vpop.permute.xlu0 %3040
      %3042 = vrot.lane.b32.xlu0 %v3022, 120
      %v3043 = vpop.permute.xlu0 %3042
      %3044 = vrot.lane.b32.xlu0 %v3024, 120
      %v3045 = vpop.permute.xlu0 %3044
      %v3046 = vsel %vm859, %v3027, %v3029
      %v3047 = vsel %vm859, %v3031, %v3033
      %v3048 = vsel %vm859, %v3035, %v3037
      %v3049 = vsel %vm859, %v3039, %v3041
      %v3050 = vsel %vm859, %v3043, %v3045
      %v3056 = vadd.f32 %v2978, %v3046
      %v3057 = vadd.f32 %v2979, %v3047
      %v3058 = vadd.f32 %v2980, %v3048
      %v3059 = vadd.f32 %v2981, %v3049
      %v3060 = vadd.f32 %v2982, %v3050
      %v3061 = vperm.slane %v2570, 0
      %3063 = vrot.lane.b32.xlu0 %v3061, 12
      %v3064 = vpop.permute.xlu0 %3063
      %v3066 = vmul.f32 %v2871, %v3064
      %v3067 = vmul.f32 %v2903, %v3064
      %v3068 = vmul.f32 %v2609, %v3064
      %v3069 = vmul.f32 %v2625, %v3064
      %v3070 = vmul.f32 %v2610, %v3064
      %v3071 = vmul.f32 %v2626, %v3064
      %v3072 = vmul.f32 %v2611, %v3064
      %v3073 = vmul.f32 %v2627, %v3064
      %v3074 = vmul.f32 %v2872, %v3064
      %v3075 = vmul.f32 %v2904, %v3064
      %v3086 = vrot.slane %v3066, 1
      %v3087 = vrot.slane %v3068, 1
      %v3088 = vsel %vm914, %v3086, %v3087
      %v3089 = vrot.slane %v3067, 1
      %v3090 = vrot.slane %v3069, 1
      %v3091 = vsel %vm914, %v3089, %v3090
      %v3092 = vrot.slane %v3070, 1
      %v3093 = vsel %vm914, %v3087, %v3092
      %v3094 = vrot.slane %v3071, 1
      %v3095 = vsel %vm914, %v3090, %v3094
      %v3096 = vrot.slane %v3072, 1
      %v3097 = vsel %vm914, %v3092, %v3096
      %v3098 = vrot.slane %v3073, 1
      %v3099 = vsel %vm914, %v3094, %v3098
      %v3100 = vrot.slane %v3074, 1
      %v3101 = vsel %vm914, %v3096, %v3100
      %v3102 = vrot.slane %v3075, 1
      %v3103 = vsel %vm914, %v3098, %v3102
      %3104 = vrot.lane.b32.xlu0 %v3088, 116
      %v3105 = vpop.permute.xlu0 %3104
      %3106 = vrot.lane.b32.xlu0 %v3091, 116
      %v3107 = vpop.permute.xlu0 %3106
      %3108 = vrot.lane.b32.xlu0 %v3093, 116
      %v3109 = vpop.permute.xlu0 %3108
      %3110 = vrot.lane.b32.xlu0 %v3095, 116
      %v3111 = vpop.permute.xlu0 %3110
      %3112 = vrot.lane.b32.xlu0 %v3097, 116
      %v3113 = vpop.permute.xlu0 %3112
      %3114 = vrot.lane.b32.xlu0 %v3099, 116
      %v3115 = vpop.permute.xlu0 %3114
      %3116 = vrot.lane.b32.xlu0 %v3101, 116
      %v3117 = vpop.permute.xlu0 %3116
      %3118 = vrot.lane.b32.xlu0 %v3103, 116
      %v3119 = vpop.permute.xlu0 %3118
      %3120 = vrot.lane.b32.xlu0 %v3100, 116
      %v3121 = vpop.permute.xlu0 %3120
      %3122 = vrot.lane.b32.xlu0 %v3102, 116
      %v3123 = vpop.permute.xlu0 %3122
      %v3124 = vsel %vm2794, %v3105, %v3107
      %v3125 = vsel %vm2794, %v3109, %v3111
      %v3126 = vsel %vm2794, %v3113, %v3115
      %v3127 = vsel %vm2794, %v3117, %v3119
      %v3128 = vsel %vm2794, %v3121, %v3123
      %v3134 = vadd.f32 %v3056, %v3124
      %v3135 = vadd.f32 %v3057, %v3125
      %v3136 = vadd.f32 %v3058, %v3126
      %v3137 = vadd.f32 %v3059, %v3127
      %v3138 = vadd.f32 %v3060, %v3128
      %v3139 = vperm.slane %v2570, 1
      %3141 = vrot.lane.b32.xlu0 %v3139, 16
      %v3142 = vpop.permute.xlu0 %3141
      %v3144 = vmul.f32 %v2871, %v3142
      %v3145 = vmul.f32 %v2903, %v3142
      %v3146 = vmul.f32 %v2609, %v3142
      %v3147 = vmul.f32 %v2625, %v3142
      %v3148 = vmul.f32 %v2610, %v3142
      %v3149 = vmul.f32 %v2626, %v3142
      %v3150 = vmul.f32 %v2611, %v3142
      %v3151 = vmul.f32 %v2627, %v3142
      %v3152 = vmul.f32 %v2872, %v3142
      %v3153 = vmul.f32 %v2904, %v3142
      %v3164 = vrot.slane %v3144, 1
      %v3165 = vrot.slane %v3146, 1
      %v3166 = vsel %vm914, %v3164, %v3165
      %v3167 = vrot.slane %v3145, 1
      %v3168 = vrot.slane %v3147, 1
      %v3169 = vsel %vm914, %v3167, %v3168
      %v3170 = vrot.slane %v3148, 1
      %v3171 = vsel %vm914, %v3165, %v3170
      %v3172 = vrot.slane %v3149, 1
      %v3173 = vsel %vm914, %v3168, %v3172
      %v3174 = vrot.slane %v3150, 1
      %v3175 = vsel %vm914, %v3170, %v3174
      %v3176 = vrot.slane %v3151, 1
      %v3177 = vsel %vm914, %v3172, %v3176
      %v3178 = vrot.slane %v3152, 1
      %v3179 = vsel %vm914, %v3174, %v3178
      %v3180 = vrot.slane %v3153, 1
      %v3181 = vsel %vm914, %v3176, %v3180
      %3182 = vrot.lane.b32.xlu0 %v3166, 112
      %v3183 = vpop.permute.xlu0 %3182
      %3184 = vrot.lane.b32.xlu0 %v3169, 112
      %v3185 = vpop.permute.xlu0 %3184
      %3186 = vrot.lane.b32.xlu0 %v3171, 112
      %v3187 = vpop.permute.xlu0 %3186
      %3188 = vrot.lane.b32.xlu0 %v3173, 112
      %v3189 = vpop.permute.xlu0 %3188
      %3190 = vrot.lane.b32.xlu0 %v3175, 112
      %v3191 = vpop.permute.xlu0 %3190
      %3192 = vrot.lane.b32.xlu0 %v3177, 112
      %v3193 = vpop.permute.xlu0 %3192
      %3194 = vrot.lane.b32.xlu0 %v3179, 112
      %v3195 = vpop.permute.xlu0 %3194
      %3196 = vrot.lane.b32.xlu0 %v3181, 112
      %v3197 = vpop.permute.xlu0 %3196
      %3198 = vrot.lane.b32.xlu0 %v3178, 112
      %v3199 = vpop.permute.xlu0 %3198
      %3200 = vrot.lane.b32.xlu0 %v3180, 112
      %v3201 = vpop.permute.xlu0 %3200
      %v3202 = vsel %vm2855, %v3183, %v3185
      %v3203 = vsel %vm2855, %v3187, %v3189
      %v3204 = vsel %vm2855, %v3191, %v3193
      %v3205 = vsel %vm2855, %v3195, %v3197
      %v3206 = vsel %vm2855, %v3199, %v3201
      %v3212 = vadd.f32 %v3134, %v3202
      %v3213 = vadd.f32 %v3135, %v3203
      %v3214 = vadd.f32 %v3136, %v3204
      %v3215 = vadd.f32 %v3137, %v3205
      %v3216 = vadd.f32 %v3138, %v3206
      %v3217 = vld [vmem:[#allocation2] sm:$0xf8]
      %v3218 = vld [vmem:[#allocation2 + $0x40] sm:$0x7]
      %v3219 = vperm.slane %v2570, 2
      %v3220 = vmul.f32 %v3217, %v3219
      %v3221 = vmul.f32 %v2609, %v3219
      %v3222 = vmul.f32 %v2610, %v3219
      %v3223 = vmul.f32 %v2611, %v3219
      %v3224 = vmul.f32 %v3218, %v3219
      %v3230 = vrot.slane %v3220, 2
      %v3231 = vrot.slane %v3221, 2
      %v3232 = vsel %vm1158, %v3230, %v3231
      %v3233 = vrot.slane %v3222, 2
      %v3234 = vsel %vm1158, %v3231, %v3233
      %v3235 = vrot.slane %v3223, 2
      %v3236 = vsel %vm1158, %v3233, %v3235
      %v3237 = vrot.slane %v3224, 2
      %v3238 = vsel %vm1158, %v3235, %v3237
      %v3244 = vadd.f32 %v3212, %v3232
      %v3245 = vadd.f32 %v3213, %v3234
      %v3246 = vadd.f32 %v3214, %v3236
      %v3247 = vadd.f32 %v3215, %v3238
      %v3248 = vadd.f32 %v3216, %v3237
      %v3249 = vld [vmem:[#allocation2 + $0x8] sm:$0xf8]
      %v3250 = vld [vmem:[#allocation2 + $0x48] sm:$0x7]
      %v3251 = vperm.slane %v2570, 3
      %3253 = vrot.lane.b32.xlu0 %v3251, 4
      %v3254 = vpop.permute.xlu0 %3253
      %v3256 = vmul.f32 %v3217, %v3254
      %v3257 = vmul.f32 %v3249, %v3254
      %v3258 = vmul.f32 %v2609, %v3254
      %v3259 = vmul.f32 %v2625, %v3254
      %v3260 = vmul.f32 %v2610, %v3254
      %v3261 = vmul.f32 %v2626, %v3254
      %v3262 = vmul.f32 %v2611, %v3254
      %v3263 = vmul.f32 %v2627, %v3254
      %v3264 = vmul.f32 %v3218, %v3254
      %v3265 = vmul.f32 %v3250, %v3254
      %v3276 = vrot.slane %v3256, 2
      %v3277 = vrot.slane %v3258, 2
      %v3278 = vsel %vm1158, %v3276, %v3277
      %v3279 = vrot.slane %v3257, 2
      %v3280 = vrot.slane %v3259, 2
      %v3281 = vsel %vm1158, %v3279, %v3280
      %v3282 = vrot.slane %v3260, 2
      %v3283 = vsel %vm1158, %v3277, %v3282
      %v3284 = vrot.slane %v3261, 2
      %v3285 = vsel %vm1158, %v3280, %v3284
      %v3286 = vrot.slane %v3262, 2
      %v3287 = vsel %vm1158, %v3282, %v3286
      %v3288 = vrot.slane %v3263, 2
      %v3289 = vsel %vm1158, %v3284, %v3288
      %v3290 = vrot.slane %v3264, 2
      %v3291 = vsel %vm1158, %v3286, %v3290
      %v3292 = vrot.slane %v3265, 2
      %v3293 = vsel %vm1158, %v3288, %v3292
      %3294 = vrot.lane.b32.xlu0 %v3278, 124
      %v3295 = vpop.permute.xlu0 %3294
      %3296 = vrot.lane.b32.xlu0 %v3281, 124
      %v3297 = vpop.permute.xlu0 %3296
      %3298 = vrot.lane.b32.xlu0 %v3283, 124
      %v3299 = vpop.permute.xlu0 %3298
      %3300 = vrot.lane.b32.xlu0 %v3285, 124
      %v3301 = vpop.permute.xlu0 %3300
      %3302 = vrot.lane.b32.xlu0 %v3287, 124
      %v3303 = vpop.permute.xlu0 %3302
      %3304 = vrot.lane.b32.xlu0 %v3289, 124
      %v3305 = vpop.permute.xlu0 %3304
      %3306 = vrot.lane.b32.xlu0 %v3291, 124
      %v3307 = vpop.permute.xlu0 %3306
      %3308 = vrot.lane.b32.xlu0 %v3293, 124
      %v3309 = vpop.permute.xlu0 %3308
      %3310 = vrot.lane.b32.xlu0 %v3290, 124
      %v3311 = vpop.permute.xlu0 %3310
      %3312 = vrot.lane.b32.xlu0 %v3292, 124
      %v3313 = vpop.permute.xlu0 %3312
      %v3314 = vsel %vm788, %v3295, %v3297
      %v3315 = vsel %vm788, %v3299, %v3301
      %v3316 = vsel %vm788, %v3303, %v3305
      %v3317 = vsel %vm788, %v3307, %v3309
      %v3318 = vsel %vm788, %v3311, %v3313
      %v3324 = vadd.f32 %v3244, %v3314
      %v3325 = vadd.f32 %v3245, %v3315
      %v3326 = vadd.f32 %v3246, %v3316
      %v3327 = vadd.f32 %v3247, %v3317
      %v3328 = vadd.f32 %v3248, %v3318
      %v3329 = vperm.slane %v2570, 4
      %3331 = vrot.lane.b32.xlu0 %v3329, 8
      %v3332 = vpop.permute.xlu0 %3331
      %v3334 = vmul.f32 %v3217, %v3332
      %v3335 = vmul.f32 %v3249, %v3332
      %v3336 = vmul.f32 %v2609, %v3332
      %v3337 = vmul.f32 %v2625, %v3332
      %v3338 = vmul.f32 %v2610, %v3332
      %v3339 = vmul.f32 %v2626, %v3332
      %v3340 = vmul.f32 %v2611, %v3332
      %v3341 = vmul.f32 %v2627, %v3332
      %v3342 = vmul.f32 %v3218, %v3332
      %v3343 = vmul.f32 %v3250, %v3332
      %v3354 = vrot.slane %v3334, 2
      %v3355 = vrot.slane %v3336, 2
      %v3356 = vsel %vm1158, %v3354, %v3355
      %v3357 = vrot.slane %v3335, 2
      %v3358 = vrot.slane %v3337, 2
      %v3359 = vsel %vm1158, %v3357, %v3358
      %v3360 = vrot.slane %v3338, 2
      %v3361 = vsel %vm1158, %v3355, %v3360
      %v3362 = vrot.slane %v3339, 2
      %v3363 = vsel %vm1158, %v3358, %v3362
      %v3364 = vrot.slane %v3340, 2
      %v3365 = vsel %vm1158, %v3360, %v3364
      %v3366 = vrot.slane %v3341, 2
      %v3367 = vsel %vm1158, %v3362, %v3366
      %v3368 = vrot.slane %v3342, 2
      %v3369 = vsel %vm1158, %v3364, %v3368
      %v3370 = vrot.slane %v3343, 2
      %v3371 = vsel %vm1158, %v3366, %v3370
      %3372 = vrot.lane.b32.xlu0 %v3356, 120
      %v3373 = vpop.permute.xlu0 %3372
      %3374 = vrot.lane.b32.xlu0 %v3359, 120
      %v3375 = vpop.permute.xlu0 %3374
      %3376 = vrot.lane.b32.xlu0 %v3361, 120
      %v3377 = vpop.permute.xlu0 %3376
      %3378 = vrot.lane.b32.xlu0 %v3363, 120
      %v3379 = vpop.permute.xlu0 %3378
      %3380 = vrot.lane.b32.xlu0 %v3365, 120
      %v3381 = vpop.permute.xlu0 %3380
      %3382 = vrot.lane.b32.xlu0 %v3367, 120
      %v3383 = vpop.permute.xlu0 %3382
      %3384 = vrot.lane.b32.xlu0 %v3369, 120
      %v3385 = vpop.permute.xlu0 %3384
      %3386 = vrot.lane.b32.xlu0 %v3371, 120
      %v3387 = vpop.permute.xlu0 %3386
      %3388 = vrot.lane.b32.xlu0 %v3368, 120
      %v3389 = vpop.permute.xlu0 %3388
      %3390 = vrot.lane.b32.xlu0 %v3370, 120
      %v3391 = vpop.permute.xlu0 %3390
      %v3392 = vsel %vm859, %v3373, %v3375
      %v3393 = vsel %vm859, %v3377, %v3379
      %v3394 = vsel %vm859, %v3381, %v3383
      %v3395 = vsel %vm859, %v3385, %v3387
      %v3396 = vsel %vm859, %v3389, %v3391
      %v3402 = vadd.f32 %v3324, %v3392
      %v3403 = vadd.f32 %v3325, %v3393
      %v3404 = vadd.f32 %v3326, %v3394
      %v3405 = vadd.f32 %v3327, %v3395
      %v3406 = vadd.f32 %v3328, %v3396
      %v3407 = vperm.slane %v2570, 5
      %3409 = vrot.lane.b32.xlu0 %v3407, 12
      %v3410 = vpop.permute.xlu0 %3409
      %v3412 = vmul.f32 %v3217, %v3410
      %v3413 = vmul.f32 %v3249, %v3410
      %v3414 = vmul.f32 %v2609, %v3410
      %v3415 = vmul.f32 %v2625, %v3410
      %v3416 = vmul.f32 %v2610, %v3410
      %v3417 = vmul.f32 %v2626, %v3410
      %v3418 = vmul.f32 %v2611, %v3410
      %v3419 = vmul.f32 %v2627, %v3410
      %v3420 = vmul.f32 %v3218, %v3410
      %v3421 = vmul.f32 %v3250, %v3410
      %v3432 = vrot.slane %v3412, 2
      %v3433 = vrot.slane %v3414, 2
      %v3434 = vsel %vm1158, %v3432, %v3433
      %v3435 = vrot.slane %v3413, 2
      %v3436 = vrot.slane %v3415, 2
      %v3437 = vsel %vm1158, %v3435, %v3436
      %v3438 = vrot.slane %v3416, 2
      %v3439 = vsel %vm1158, %v3433, %v3438
      %v3440 = vrot.slane %v3417, 2
      %v3441 = vsel %vm1158, %v3436, %v3440
      %v3442 = vrot.slane %v3418, 2
      %v3443 = vsel %vm1158, %v3438, %v3442
      %v3444 = vrot.slane %v3419, 2
      %v3445 = vsel %vm1158, %v3440, %v3444
      %v3446 = vrot.slane %v3420, 2
      %v3447 = vsel %vm1158, %v3442, %v3446
      %v3448 = vrot.slane %v3421, 2
      %v3449 = vsel %vm1158, %v3444, %v3448
      %3450 = vrot.lane.b32.xlu0 %v3434, 116
      %v3451 = vpop.permute.xlu0 %3450
      %3452 = vrot.lane.b32.xlu0 %v3437, 116
      %v3453 = vpop.permute.xlu0 %3452
      %3454 = vrot.lane.b32.xlu0 %v3439, 116
      %v3455 = vpop.permute.xlu0 %3454
      %3456 = vrot.lane.b32.xlu0 %v3441, 116
      %v3457 = vpop.permute.xlu0 %3456
      %3458 = vrot.lane.b32.xlu0 %v3443, 116
      %v3459 = vpop.permute.xlu0 %3458
      %3460 = vrot.lane.b32.xlu0 %v3445, 116
      %v3461 = vpop.permute.xlu0 %3460
      %3462 = vrot.lane.b32.xlu0 %v3447, 116
      %v3463 = vpop.permute.xlu0 %3462
      %3464 = vrot.lane.b32.xlu0 %v3449, 116
      %v3465 = vpop.permute.xlu0 %3464
      %3466 = vrot.lane.b32.xlu0 %v3446, 116
      %v3467 = vpop.permute.xlu0 %3466
      %3468 = vrot.lane.b32.xlu0 %v3448, 116
      %v3469 = vpop.permute.xlu0 %3468
      %v3470 = vsel %vm2794, %v3451, %v3453
      %v3471 = vsel %vm2794, %v3455, %v3457
      %v3472 = vsel %vm2794, %v3459, %v3461
      %v3473 = vsel %vm2794, %v3463, %v3465
      %v3474 = vsel %vm2794, %v3467, %v3469
      %v3480 = vadd.f32 %v3402, %v3470
      %v3481 = vadd.f32 %v3403, %v3471
      %v3482 = vadd.f32 %v3404, %v3472
      %v3483 = vadd.f32 %v3405, %v3473
      %v3484 = vadd.f32 %v3406, %v3474
      %v3485 = vperm.slane %v2570, 6
      %3487 = vrot.lane.b32.xlu0 %v3485, 16
      %v3488 = vpop.permute.xlu0 %3487
      %v3490 = vmul.f32 %v3217, %v3488
      %v3491 = vmul.f32 %v3249, %v3488
      %v3492 = vmul.f32 %v2609, %v3488
      %v3493 = vmul.f32 %v2625, %v3488
      %v3494 = vmul.f32 %v2610, %v3488
      %v3495 = vmul.f32 %v2626, %v3488
      %v3496 = vmul.f32 %v2611, %v3488
      %v3497 = vmul.f32 %v2627, %v3488
      %v3498 = vmul.f32 %v3218, %v3488
      %v3499 = vmul.f32 %v3250, %v3488
      %v3510 = vrot.slane %v3490, 2
      %v3511 = vrot.slane %v3492, 2
      %v3512 = vsel %vm1158, %v3510, %v3511
      %v3513 = vrot.slane %v3491, 2
      %v3514 = vrot.slane %v3493, 2
      %v3515 = vsel %vm1158, %v3513, %v3514
      %v3516 = vrot.slane %v3494, 2
      %v3517 = vsel %vm1158, %v3511, %v3516
      %v3518 = vrot.slane %v3495, 2
      %v3519 = vsel %vm1158, %v3514, %v3518
      %v3520 = vrot.slane %v3496, 2
      %v3521 = vsel %vm1158, %v3516, %v3520
      %v3522 = vrot.slane %v3497, 2
      %v3523 = vsel %vm1158, %v3518, %v3522
      %v3524 = vrot.slane %v3498, 2
      %v3525 = vsel %vm1158, %v3520, %v3524
      %v3526 = vrot.slane %v3499, 2
      %v3527 = vsel %vm1158, %v3522, %v3526
      %3528 = vrot.lane.b32.xlu0 %v3512, 112
      %v3529 = vpop.permute.xlu0 %3528
      %3530 = vrot.lane.b32.xlu0 %v3515, 112
      %v3531 = vpop.permute.xlu0 %3530
      %3532 = vrot.lane.b32.xlu0 %v3517, 112
      %v3533 = vpop.permute.xlu0 %3532
      %3534 = vrot.lane.b32.xlu0 %v3519, 112
      %v3535 = vpop.permute.xlu0 %3534
      %3536 = vrot.lane.b32.xlu0 %v3521, 112
      %v3537 = vpop.permute.xlu0 %3536
      %3538 = vrot.lane.b32.xlu0 %v3523, 112
      %v3539 = vpop.permute.xlu0 %3538
      %3540 = vrot.lane.b32.xlu0 %v3525, 112
      %v3541 = vpop.permute.xlu0 %3540
      %3542 = vrot.lane.b32.xlu0 %v3527, 112
      %v3543 = vpop.permute.xlu0 %3542
      %3544 = vrot.lane.b32.xlu0 %v3524, 112
      %v3545 = vpop.permute.xlu0 %3544
      %3546 = vrot.lane.b32.xlu0 %v3526, 112
      %v3547 = vpop.permute.xlu0 %3546
      %v3548 = vsel %vm2855, %v3529, %v3531
      %v3549 = vsel %vm2855, %v3533, %v3535
      %v3550 = vsel %vm2855, %v3537, %v3539
      %v3551 = vsel %vm2855, %v3541, %v3543
      %v3552 = vsel %vm2855, %v3545, %v3547
      %v3558 = vadd.f32 %v3480, %v3548
      %v3559 = vadd.f32 %v3481, %v3549
      %v3560 = vadd.f32 %v3482, %v3550
      %v3561 = vadd.f32 %v3483, %v3551
      %v3562 = vadd.f32 %v3484, %v3552
      %v3564 = vperm.slane %v2571, 0
      %v3566 = vadd.f32 %v3558, %v3564
      %v3567 = vadd.f32 %v3559, %v3564
      %v3568 = vadd.f32 %v3560, %v3564
      %v3569 = vadd.f32 %v3561, %v3564
      %v3570 = vadd.f32 %v3562, %v3564
      %v3571 = vld [vmem:[%s625] sm:$0xff]
      %v3572 = vld [vmem:[%s625 + $0x8] sm:$0xff]
      %v3573 = vld [vmem:[%s625 + $0x10] sm:$0xff]
      %v3574 = vld [vmem:[%s625 + $0x18] sm:$0xff]
      %v3580 = vrot.slane %v3566, 1
      %v3581 = vrot.slane %v3567, 1
      %v3582 = vsel %vm914, %v3580, %v3581
      %v3583 = vrot.slane %v3568, 1
      %v3584 = vsel %vm914, %v3581, %v3583
      %v3585 = vrot.slane %v3569, 1
      %v3586 = vsel %vm914, %v3583, %v3585
      %v3587 = vrot.slane %v3570, 1
      %v3588 = vsel %vm914, %v3585, %v3587
      %v3593 = vadd.f32 %v3571, %v3582
      %v3594 = vadd.f32 %v3572, %v3584
      %v3595 = vadd.f32 %v3573, %v3586
      %v3596 = vadd.f32 %v3574, %v3588
      %v3597 = vld [vmem:[%s10] sm:$0xff]
      %v3598 = vld [vmem:[%s10 + $0x8] sm:$0x1]
      %v3599 = vld [vmem:[%s11] sm:$0x1]
      %v3604 = vrot.slane %v3593, 6
      %v3605 = vrot.slane %v3594, 6
      %v3606 = vsel %vm669, %v3604, %v3605
      %v3607 = vrot.slane %v3595, 6
      %v3608 = vsel %vm669, %v3605, %v3607
      %v3609 = vrot.slane %v3596, 6
      %v3610 = vsel %vm669, %v3607, %v3609
      %3611 = vrot.lane.b32.xlu0 %v3604, 8
      %v3612 = vpop.permute.xlu0 %3611
      %3613 = vrot.lane.b32.xlu0 %v3606, 8
      %v3614 = vpop.permute.xlu0 %3613
      %3615 = vrot.lane.b32.xlu0 %v3608, 8
      %v3616 = vpop.permute.xlu0 %3615
      %3617 = vrot.lane.b32.xlu0 %v3610, 8
      %v3618 = vpop.permute.xlu0 %3617
      %3619 = vrot.lane.b32.xlu0 %v3609, 8
      %v3620 = vpop.permute.xlu0 %3619
      %3626 = vst.msk [vmem:[#allocation2] sm:$0xfc] %vm692, %v3612
      %3627 = vst.msk [vmem:[#allocation2 + $0x8] sm:$0xfc] %vm694, %v3612
      %3628 = vst.msk [vmem:[#allocation2 + $0x10] sm:$0xff] %vm696, %v3614
      %3629 = vst.msk [vmem:[#allocation2 + $0x18] sm:$0xff] %vm698, %v3614
      %3630 = vst.msk [vmem:[#allocation2 + $0x20] sm:$0xff] %vm696, %v3616
      %3631 = vst.msk [vmem:[#allocation2 + $0x28] sm:$0xff] %vm698, %v3616
      %3632 = vst.msk [vmem:[#allocation2 + $0x30] sm:$0xff] %vm696, %v3618
      %3633 = vst.msk [vmem:[#allocation2 + $0x38] sm:$0xff] %vm698, %v3618
      %3634 = vst.msk [vmem:[#allocation2 + $0x40] sm:$0x3] %vm704, %v3620
      %3635 = vst.msk [vmem:[#allocation2 + $0x48] sm:$0x3] %vm706, %v3620
      %v3636 = vld [vmem:[#allocation2] sm:$0xfe]
      %v3637 = vld [vmem:[#allocation2 + $0x8] sm:$0xfe]
      %v3638 = vld [vmem:[#allocation2 + $0x10] sm:$0xff]
      %v3639 = vld [vmem:[#allocation2 + $0x18] sm:$0xff]
      %v3640 = vld [vmem:[#allocation2 + $0x20] sm:$0xff]
      %v3641 = vld [vmem:[#allocation2 + $0x28] sm:$0xff]
      %v3642 = vld [vmem:[#allocation2 + $0x30] sm:$0xff]
      %v3643 = vld [vmem:[#allocation2 + $0x38] sm:$0xff]
      %v3644 = vld [vmem:[#allocation2 + $0x40] sm:$0x1]
      %v3645 = vld [vmem:[#allocation2 + $0x48] sm:$0x1]
      %v3646 = vperm.slane %v3597, 0
      %3648 = vrot.lane.b32.xlu0 %v3646, 4
      %v3649 = vpop.permute.xlu0 %3648
      %v3651 = vmul.f32 %v3636, %v3649
      %v3652 = vmul.f32 %v3637, %v3649
      %v3653 = vmul.f32 %v3638, %v3649
      %v3654 = vmul.f32 %v3639, %v3649
      %v3655 = vmul.f32 %v3640, %v3649
      %v3656 = vmul.f32 %v3641, %v3649
      %v3657 = vmul.f32 %v3642, %v3649
      %v3658 = vmul.f32 %v3643, %v3649
      %v3659 = vmul.f32 %v3644, %v3649
      %v3660 = vmul.f32 %v3645, %v3649
      %v3661 = vadd.f32 %v3651, 0.0
      %v3662 = vadd.f32 %v3652, 0.0
      %v3663 = vadd.f32 %v3653, 0.0
      %v3664 = vadd.f32 %v3654, 0.0
      %v3665 = vadd.f32 %v3655, 0.0
      %v3666 = vadd.f32 %v3656, 0.0
      %v3667 = vadd.f32 %v3657, 0.0
      %v3668 = vadd.f32 %v3658, 0.0
      %v3669 = vadd.f32 %v3659, 0.0
      %v3670 = vadd.f32 %v3660, 0.0
      %v3671 = vperm.slane %v3597, 1
      %3673 = vrot.lane.b32.xlu0 %v3671, 8
      %v3674 = vpop.permute.xlu0 %3673
      %v3676 = vmul.f32 %v3636, %v3674
      %v3677 = vmul.f32 %v3637, %v3674
      %v3678 = vmul.f32 %v3638, %v3674
      %v3679 = vmul.f32 %v3639, %v3674
      %v3680 = vmul.f32 %v3640, %v3674
      %v3681 = vmul.f32 %v3641, %v3674
      %v3682 = vmul.f32 %v3642, %v3674
      %v3683 = vmul.f32 %v3643, %v3674
      %v3684 = vmul.f32 %v3644, %v3674
      %v3685 = vmul.f32 %v3645, %v3674
      %3696 = vrot.lane.b32.xlu0 %v3676, 124
      %v3697 = vpop.permute.xlu0 %3696
      %3698 = vrot.lane.b32.xlu0 %v3677, 124
      %v3699 = vpop.permute.xlu0 %3698
      %3700 = vrot.lane.b32.xlu0 %v3678, 124
      %v3701 = vpop.permute.xlu0 %3700
      %3702 = vrot.lane.b32.xlu0 %v3679, 124
      %v3703 = vpop.permute.xlu0 %3702
      %3704 = vrot.lane.b32.xlu0 %v3680, 124
      %v3705 = vpop.permute.xlu0 %3704
      %3706 = vrot.lane.b32.xlu0 %v3681, 124
      %v3707 = vpop.permute.xlu0 %3706
      %3708 = vrot.lane.b32.xlu0 %v3682, 124
      %v3709 = vpop.permute.xlu0 %3708
      %3710 = vrot.lane.b32.xlu0 %v3683, 124
      %v3711 = vpop.permute.xlu0 %3710
      %3712 = vrot.lane.b32.xlu0 %v3684, 124
      %v3713 = vpop.permute.xlu0 %3712
      %3714 = vrot.lane.b32.xlu0 %v3685, 124
      %v3715 = vpop.permute.xlu0 %3714
      %v3716 = vsel %vm788, %v3697, %v3699
      %v3717 = vsel %vm788, %v3701, %v3703
      %v3718 = vsel %vm788, %v3705, %v3707
      %v3719 = vsel %vm788, %v3709, %v3711
      %v3720 = vsel %vm788, %v3713, %v3715
      %v3731 = vadd.f32 %v3661, %v3716
      %v3732 = vadd.f32 %v3662, %v3699
      %v3733 = vadd.f32 %v3663, %v3717
      %v3734 = vadd.f32 %v3664, %v3703
      %v3735 = vadd.f32 %v3665, %v3718
      %v3736 = vadd.f32 %v3666, %v3707
      %v3737 = vadd.f32 %v3667, %v3719
      %v3738 = vadd.f32 %v3668, %v3711
      %v3739 = vadd.f32 %v3669, %v3720
      %v3740 = vadd.f32 %v3670, %v3715
      %v3741 = vperm.slane %v3597, 2
      %3743 = vrot.lane.b32.xlu0 %v3741, 12
      %v3744 = vpop.permute.xlu0 %3743
      %v3746 = vmul.f32 %v3636, %v3744
      %v3747 = vmul.f32 %v3637, %v3744
      %v3748 = vmul.f32 %v3638, %v3744
      %v3749 = vmul.f32 %v3639, %v3744
      %v3750 = vmul.f32 %v3640, %v3744
      %v3751 = vmul.f32 %v3641, %v3744
      %v3752 = vmul.f32 %v3642, %v3744
      %v3753 = vmul.f32 %v3643, %v3744
      %v3754 = vmul.f32 %v3644, %v3744
      %v3755 = vmul.f32 %v3645, %v3744
      %3766 = vrot.lane.b32.xlu0 %v3746, 120
      %v3767 = vpop.permute.xlu0 %3766
      %3768 = vrot.lane.b32.xlu0 %v3747, 120
      %v3769 = vpop.permute.xlu0 %3768
      %3770 = vrot.lane.b32.xlu0 %v3748, 120
      %v3771 = vpop.permute.xlu0 %3770
      %3772 = vrot.lane.b32.xlu0 %v3749, 120
      %v3773 = vpop.permute.xlu0 %3772
      %3774 = vrot.lane.b32.xlu0 %v3750, 120
      %v3775 = vpop.permute.xlu0 %3774
      %3776 = vrot.lane.b32.xlu0 %v3751, 120
      %v3777 = vpop.permute.xlu0 %3776
      %3778 = vrot.lane.b32.xlu0 %v3752, 120
      %v3779 = vpop.permute.xlu0 %3778
      %3780 = vrot.lane.b32.xlu0 %v3753, 120
      %v3781 = vpop.permute.xlu0 %3780
      %3782 = vrot.lane.b32.xlu0 %v3754, 120
      %v3783 = vpop.permute.xlu0 %3782
      %3784 = vrot.lane.b32.xlu0 %v3755, 120
      %v3785 = vpop.permute.xlu0 %3784
      %v3786 = vsel %vm859, %v3767, %v3769
      %v3787 = vsel %vm859, %v3771, %v3773
      %v3788 = vsel %vm859, %v3775, %v3777
      %v3789 = vsel %vm859, %v3779, %v3781
      %v3790 = vsel %vm859, %v3783, %v3785
      %v3801 = vadd.f32 %v3731, %v3786
      %v3802 = vadd.f32 %v3732, %v3769
      %v3803 = vadd.f32 %v3733, %v3787
      %v3804 = vadd.f32 %v3734, %v3773
      %v3805 = vadd.f32 %v3735, %v3788
      %v3806 = vadd.f32 %v3736, %v3777
      %v3807 = vadd.f32 %v3737, %v3789
      %v3808 = vadd.f32 %v3738, %v3781
      %v3809 = vadd.f32 %v3739, %v3790
      %v3810 = vadd.f32 %v3740, %v3785
      %v3811 = vld [vmem:[#allocation2] sm:$0xfc]
      %v3812 = vld [vmem:[#allocation2 + $0x8] sm:$0xfc]
      %v3813 = vld [vmem:[#allocation2 + $0x40] sm:$0x3]
      %v3814 = vld [vmem:[#allocation2 + $0x48] sm:$0x3]
      %v3815 = vperm.slane %v3597, 3
      %3817 = vrot.lane.b32.xlu0 %v3815, 4
      %v3818 = vpop.permute.xlu0 %3817
      %v3820 = vmul.f32 %v3811, %v3818
      %v3821 = vmul.f32 %v3812, %v3818
      %v3822 = vmul.f32 %v3638, %v3818
      %v3823 = vmul.f32 %v3639, %v3818
      %v3824 = vmul.f32 %v3640, %v3818
      %v3825 = vmul.f32 %v3641, %v3818
      %v3826 = vmul.f32 %v3642, %v3818
      %v3827 = vmul.f32 %v3643, %v3818
      %v3828 = vmul.f32 %v3813, %v3818
      %v3829 = vmul.f32 %v3814, %v3818
      %v3840 = vrot.slane %v3820, 1
      %v3841 = vrot.slane %v3822, 1
      %v3842 = vsel %vm914, %v3840, %v3841
      %v3843 = vrot.slane %v3821, 1
      %v3844 = vrot.slane %v3823, 1
      %v3845 = vsel %vm914, %v3843, %v3844
      %v3846 = vrot.slane %v3824, 1
      %v3847 = vsel %vm914, %v3841, %v3846
      %v3848 = vrot.slane %v3825, 1
      %v3849 = vsel %vm914, %v3844, %v3848
      %v3850 = vrot.slane %v3826, 1
      %v3851 = vsel %vm914, %v3846, %v3850
      %v3852 = vrot.slane %v3827, 1
      %v3853 = vsel %vm914, %v3848, %v3852
      %v3854 = vrot.slane %v3828, 1
      %v3855 = vsel %vm914, %v3850, %v3854
      %v3856 = vrot.slane %v3829, 1
      %v3857 = vsel %vm914, %v3852, %v3856
      %v3868 = vadd.f32 %v3801, %v3842
      %v3869 = vadd.f32 %v3802, %v3845
      %v3870 = vadd.f32 %v3803, %v3847
      %v3871 = vadd.f32 %v3804, %v3849
      %v3872 = vadd.f32 %v3805, %v3851
      %v3873 = vadd.f32 %v3806, %v3853
      %v3874 = vadd.f32 %v3807, %v3855
      %v3875 = vadd.f32 %v3808, %v3857
      %v3876 = vadd.f32 %v3809, %v3854
      %v3877 = vadd.f32 %v3810, %v3856
      %v3878 = vperm.slane %v3597, 4
      %3880 = vrot.lane.b32.xlu0 %v3878, 8
      %v3881 = vpop.permute.xlu0 %3880
      %v3883 = vmul.f32 %v3811, %v3881
      %v3884 = vmul.f32 %v3812, %v3881
      %v3885 = vmul.f32 %v3638, %v3881
      %v3886 = vmul.f32 %v3639, %v3881
      %v3887 = vmul.f32 %v3640, %v3881
      %v3888 = vmul.f32 %v3641, %v3881
      %v3889 = vmul.f32 %v3642, %v3881
      %v3890 = vmul.f32 %v3643, %v3881
      %v3891 = vmul.f32 %v3813, %v3881
      %v3892 = vmul.f32 %v3814, %v3881
      %v3903 = vrot.slane %v3883, 1
      %v3904 = vrot.slane %v3885, 1
      %v3905 = vsel %vm914, %v3903, %v3904
      %v3906 = vrot.slane %v3884, 1
      %v3907 = vrot.slane %v3886, 1
      %v3908 = vsel %vm914, %v3906, %v3907
      %v3909 = vrot.slane %v3887, 1
      %v3910 = vsel %vm914, %v3904, %v3909
      %v3911 = vrot.slane %v3888, 1
      %v3912 = vsel %vm914, %v3907, %v3911
      %v3913 = vrot.slane %v3889, 1
      %v3914 = vsel %vm914, %v3909, %v3913
      %v3915 = vrot.slane %v3890, 1
      %v3916 = vsel %vm914, %v3911, %v3915
      %v3917 = vrot.slane %v3891, 1
      %v3918 = vsel %vm914, %v3913, %v3917
      %v3919 = vrot.slane %v3892, 1
      %v3920 = vsel %vm914, %v3915, %v3919
      %3921 = vrot.lane.b32.xlu0 %v3905, 124
      %v3922 = vpop.permute.xlu0 %3921
      %3923 = vrot.lane.b32.xlu0 %v3908, 124
      %v3924 = vpop.permute.xlu0 %3923
      %3925 = vrot.lane.b32.xlu0 %v3910, 124
      %v3926 = vpop.permute.xlu0 %3925
      %3927 = vrot.lane.b32.xlu0 %v3912, 124
      %v3928 = vpop.permute.xlu0 %3927
      %3929 = vrot.lane.b32.xlu0 %v3914, 124
      %v3930 = vpop.permute.xlu0 %3929
      %3931 = vrot.lane.b32.xlu0 %v3916, 124
      %v3932 = vpop.permute.xlu0 %3931
      %3933 = vrot.lane.b32.xlu0 %v3918, 124
      %v3934 = vpop.permute.xlu0 %3933
      %3935 = vrot.lane.b32.xlu0 %v3920, 124
      %v3936 = vpop.permute.xlu0 %3935
      %3937 = vrot.lane.b32.xlu0 %v3917, 124
      %v3938 = vpop.permute.xlu0 %3937
      %3939 = vrot.lane.b32.xlu0 %v3919, 124
      %v3940 = vpop.permute.xlu0 %3939
      %v3941 = vsel %vm788, %v3922, %v3924
      %v3942 = vsel %vm788, %v3926, %v3928
      %v3943 = vsel %vm788, %v3930, %v3932
      %v3944 = vsel %vm788, %v3934, %v3936
      %v3945 = vsel %vm788, %v3938, %v3940
      %v3956 = vadd.f32 %v3868, %v3941
      %v3957 = vadd.f32 %v3869, %v3924
      %v3958 = vadd.f32 %v3870, %v3942
      %v3959 = vadd.f32 %v3871, %v3928
      %v3960 = vadd.f32 %v3872, %v3943
      %v3961 = vadd.f32 %v3873, %v3932
      %v3962 = vadd.f32 %v3874, %v3944
      %v3963 = vadd.f32 %v3875, %v3936
      %v3964 = vadd.f32 %v3876, %v3945
      %v3965 = vadd.f32 %v3877, %v3940
      %v3966 = vperm.slane %v3597, 5
      %3968 = vrot.lane.b32.xlu0 %v3966, 12
      %v3969 = vpop.permute.xlu0 %3968
      %v3971 = vmul.f32 %v3811, %v3969
      %v3972 = vmul.f32 %v3812, %v3969
      %v3973 = vmul.f32 %v3638, %v3969
      %v3974 = vmul.f32 %v3639, %v3969
      %v3975 = vmul.f32 %v3640, %v3969
      %v3976 = vmul.f32 %v3641, %v3969
      %v3977 = vmul.f32 %v3642, %v3969
      %v3978 = vmul.f32 %v3643, %v3969
      %v3979 = vmul.f32 %v3813, %v3969
      %v3980 = vmul.f32 %v3814, %v3969
      %v3991 = vrot.slane %v3971, 1
      %v3992 = vrot.slane %v3973, 1
      %v3993 = vsel %vm914, %v3991, %v3992
      %v3994 = vrot.slane %v3972, 1
      %v3995 = vrot.slane %v3974, 1
      %v3996 = vsel %vm914, %v3994, %v3995
      %v3997 = vrot.slane %v3975, 1
      %v3998 = vsel %vm914, %v3992, %v3997
      %v3999 = vrot.slane %v3976, 1
      %v4000 = vsel %vm914, %v3995, %v3999
      %v4001 = vrot.slane %v3977, 1
      %v4002 = vsel %vm914, %v3997, %v4001
      %v4003 = vrot.slane %v3978, 1
      %v4004 = vsel %vm914, %v3999, %v4003
      %v4005 = vrot.slane %v3979, 1
      %v4006 = vsel %vm914, %v4001, %v4005
      %v4007 = vrot.slane %v3980, 1
      %v4008 = vsel %vm914, %v4003, %v4007
      %4009 = vrot.lane.b32.xlu0 %v3993, 120
      %v4010 = vpop.permute.xlu0 %4009
      %4011 = vrot.lane.b32.xlu0 %v3996, 120
      %v4012 = vpop.permute.xlu0 %4011
      %4013 = vrot.lane.b32.xlu0 %v3998, 120
      %v4014 = vpop.permute.xlu0 %4013
      %4015 = vrot.lane.b32.xlu0 %v4000, 120
      %v4016 = vpop.permute.xlu0 %4015
      %4017 = vrot.lane.b32.xlu0 %v4002, 120
      %v4018 = vpop.permute.xlu0 %4017
      %4019 = vrot.lane.b32.xlu0 %v4004, 120
      %v4020 = vpop.permute.xlu0 %4019
      %4021 = vrot.lane.b32.xlu0 %v4006, 120
      %v4022 = vpop.permute.xlu0 %4021
      %4023 = vrot.lane.b32.xlu0 %v4008, 120
      %v4024 = vpop.permute.xlu0 %4023
      %4025 = vrot.lane.b32.xlu0 %v4005, 120
      %v4026 = vpop.permute.xlu0 %4025
      %4027 = vrot.lane.b32.xlu0 %v4007, 120
      %v4028 = vpop.permute.xlu0 %4027
      %v4029 = vsel %vm859, %v4010, %v4012
      %v4030 = vsel %vm859, %v4014, %v4016
      %v4031 = vsel %vm859, %v4018, %v4020
      %v4032 = vsel %vm859, %v4022, %v4024
      %v4033 = vsel %vm859, %v4026, %v4028
      %v4044 = vadd.f32 %v3956, %v4029
      %v4045 = vadd.f32 %v3957, %v4012
      %v4046 = vadd.f32 %v3958, %v4030
      %v4047 = vadd.f32 %v3959, %v4016
      %v4048 = vadd.f32 %v3960, %v4031
      %v4049 = vadd.f32 %v3961, %v4020
      %v4050 = vadd.f32 %v3962, %v4032
      %v4051 = vadd.f32 %v3963, %v4024
      %v4052 = vadd.f32 %v3964, %v4033
      %v4053 = vadd.f32 %v3965, %v4028
      %v4054 = vld [vmem:[#allocation2] sm:$0xf8]
      %v4055 = vld [vmem:[#allocation2 + $0x8] sm:$0xf8]
      %v4056 = vld [vmem:[#allocation2 + $0x40] sm:$0x7]
      %v4057 = vld [vmem:[#allocation2 + $0x48] sm:$0x7]
      %v4058 = vperm.slane %v3597, 6
      %4060 = vrot.lane.b32.xlu0 %v4058, 4
      %v4061 = vpop.permute.xlu0 %4060
      %v4063 = vmul.f32 %v4054, %v4061
      %v4064 = vmul.f32 %v4055, %v4061
      %v4065 = vmul.f32 %v3638, %v4061
      %v4066 = vmul.f32 %v3639, %v4061
      %v4067 = vmul.f32 %v3640, %v4061
      %v4068 = vmul.f32 %v3641, %v4061
      %v4069 = vmul.f32 %v3642, %v4061
      %v4070 = vmul.f32 %v3643, %v4061
      %v4071 = vmul.f32 %v4056, %v4061
      %v4072 = vmul.f32 %v4057, %v4061
      %v4083 = vrot.slane %v4063, 2
      %v4084 = vrot.slane %v4065, 2
      %v4085 = vsel %vm1158, %v4083, %v4084
      %v4086 = vrot.slane %v4064, 2
      %v4087 = vrot.slane %v4066, 2
      %v4088 = vsel %vm1158, %v4086, %v4087
      %v4089 = vrot.slane %v4067, 2
      %v4090 = vsel %vm1158, %v4084, %v4089
      %v4091 = vrot.slane %v4068, 2
      %v4092 = vsel %vm1158, %v4087, %v4091
      %v4093 = vrot.slane %v4069, 2
      %v4094 = vsel %vm1158, %v4089, %v4093
      %v4095 = vrot.slane %v4070, 2
      %v4096 = vsel %vm1158, %v4091, %v4095
      %v4097 = vrot.slane %v4071, 2
      %v4098 = vsel %vm1158, %v4093, %v4097
      %v4099 = vrot.slane %v4072, 2
      %v4100 = vsel %vm1158, %v4095, %v4099
      %v4111 = vadd.f32 %v4044, %v4085
      %v4112 = vadd.f32 %v4045, %v4088
      %v4113 = vadd.f32 %v4046, %v4090
      %v4114 = vadd.f32 %v4047, %v4092
      %v4115 = vadd.f32 %v4048, %v4094
      %v4116 = vadd.f32 %v4049, %v4096
      %v4117 = vadd.f32 %v4050, %v4098
      %v4118 = vadd.f32 %v4051, %v4100
      %v4119 = vadd.f32 %v4052, %v4097
      %v4120 = vadd.f32 %v4053, %v4099
      %v4121 = vperm.slane %v3597, 7
      %4123 = vrot.lane.b32.xlu0 %v4121, 8
      %v4124 = vpop.permute.xlu0 %4123
      %v4126 = vmul.f32 %v4054, %v4124
      %v4127 = vmul.f32 %v4055, %v4124
      %v4128 = vmul.f32 %v3638, %v4124
      %v4129 = vmul.f32 %v3639, %v4124
      %v4130 = vmul.f32 %v3640, %v4124
      %v4131 = vmul.f32 %v3641, %v4124
      %v4132 = vmul.f32 %v3642, %v4124
      %v4133 = vmul.f32 %v3643, %v4124
      %v4134 = vmul.f32 %v4056, %v4124
      %v4135 = vmul.f32 %v4057, %v4124
      %v4146 = vrot.slane %v4126, 2
      %v4147 = vrot.slane %v4128, 2
      %v4148 = vsel %vm1158, %v4146, %v4147
      %v4149 = vrot.slane %v4127, 2
      %v4150 = vrot.slane %v4129, 2
      %v4151 = vsel %vm1158, %v4149, %v4150
      %v4152 = vrot.slane %v4130, 2
      %v4153 = vsel %vm1158, %v4147, %v4152
      %v4154 = vrot.slane %v4131, 2
      %v4155 = vsel %vm1158, %v4150, %v4154
      %v4156 = vrot.slane %v4132, 2
      %v4157 = vsel %vm1158, %v4152, %v4156
      %v4158 = vrot.slane %v4133, 2
      %v4159 = vsel %vm1158, %v4154, %v4158
      %v4160 = vrot.slane %v4134, 2
      %v4161 = vsel %vm1158, %v4156, %v4160
      %v4162 = vrot.slane %v4135, 2
      %v4163 = vsel %vm1158, %v4158, %v4162
      %4164 = vrot.lane.b32.xlu0 %v4148, 124
      %v4165 = vpop.permute.xlu0 %4164
      %4166 = vrot.lane.b32.xlu0 %v4151, 124
      %v4167 = vpop.permute.xlu0 %4166
      %4168 = vrot.lane.b32.xlu0 %v4153, 124
      %v4169 = vpop.permute.xlu0 %4168
      %4170 = vrot.lane.b32.xlu0 %v4155, 124
      %v4171 = vpop.permute.xlu0 %4170
      %4172 = vrot.lane.b32.xlu0 %v4157, 124
      %v4173 = vpop.permute.xlu0 %4172
      %4174 = vrot.lane.b32.xlu0 %v4159, 124
      %v4175 = vpop.permute.xlu0 %4174
      %4176 = vrot.lane.b32.xlu0 %v4161, 124
      %v4177 = vpop.permute.xlu0 %4176
      %4178 = vrot.lane.b32.xlu0 %v4163, 124
      %v4179 = vpop.permute.xlu0 %4178
      %4180 = vrot.lane.b32.xlu0 %v4160, 124
      %v4181 = vpop.permute.xlu0 %4180
      %4182 = vrot.lane.b32.xlu0 %v4162, 124
      %v4183 = vpop.permute.xlu0 %4182
      %v4184 = vsel %vm788, %v4165, %v4167
      %v4185 = vsel %vm788, %v4169, %v4171
      %v4186 = vsel %vm788, %v4173, %v4175
      %v4187 = vsel %vm788, %v4177, %v4179
      %v4188 = vsel %vm788, %v4181, %v4183
      %v4199 = vadd.f32 %v4111, %v4184
      %v4200 = vadd.f32 %v4112, %v4167
      %v4201 = vadd.f32 %v4113, %v4185
      %v4202 = vadd.f32 %v4114, %v4171
      %v4203 = vadd.f32 %v4115, %v4186
      %v4204 = vadd.f32 %v4116, %v4175
      %v4205 = vadd.f32 %v4117, %v4187
      %v4206 = vadd.f32 %v4118, %v4179
      %v4207 = vadd.f32 %v4119, %v4188
      %v4208 = vadd.f32 %v4120, %v4183
      %v4209 = vperm.slane %v3598, 0
      %4211 = vrot.lane.b32.xlu0 %v4209, 12
      %v4212 = vpop.permute.xlu0 %4211
      %v4214 = vmul.f32 %v4054, %v4212
      %v4215 = vmul.f32 %v4055, %v4212
      %v4216 = vmul.f32 %v3638, %v4212
      %v4217 = vmul.f32 %v3639, %v4212
      %v4218 = vmul.f32 %v3640, %v4212
      %v4219 = vmul.f32 %v3641, %v4212
      %v4220 = vmul.f32 %v3642, %v4212
      %v4221 = vmul.f32 %v3643, %v4212
      %v4222 = vmul.f32 %v4056, %v4212
      %v4223 = vmul.f32 %v4057, %v4212
      %v4234 = vrot.slane %v4214, 2
      %v4235 = vrot.slane %v4216, 2
      %v4236 = vsel %vm1158, %v4234, %v4235
      %v4237 = vrot.slane %v4215, 2
      %v4238 = vrot.slane %v4217, 2
      %v4239 = vsel %vm1158, %v4237, %v4238
      %v4240 = vrot.slane %v4218, 2
      %v4241 = vsel %vm1158, %v4235, %v4240
      %v4242 = vrot.slane %v4219, 2
      %v4243 = vsel %vm1158, %v4238, %v4242
      %v4244 = vrot.slane %v4220, 2
      %v4245 = vsel %vm1158, %v4240, %v4244
      %v4246 = vrot.slane %v4221, 2
      %v4247 = vsel %vm1158, %v4242, %v4246
      %v4248 = vrot.slane %v4222, 2
      %v4249 = vsel %vm1158, %v4244, %v4248
      %v4250 = vrot.slane %v4223, 2
      %v4251 = vsel %vm1158, %v4246, %v4250
      %4252 = vrot.lane.b32.xlu0 %v4236, 120
      %v4253 = vpop.permute.xlu0 %4252
      %4254 = vrot.lane.b32.xlu0 %v4239, 120
      %v4255 = vpop.permute.xlu0 %4254
      %4256 = vrot.lane.b32.xlu0 %v4241, 120
      %v4257 = vpop.permute.xlu0 %4256
      %4258 = vrot.lane.b32.xlu0 %v4243, 120
      %v4259 = vpop.permute.xlu0 %4258
      %4260 = vrot.lane.b32.xlu0 %v4245, 120
      %v4261 = vpop.permute.xlu0 %4260
      %4262 = vrot.lane.b32.xlu0 %v4247, 120
      %v4263 = vpop.permute.xlu0 %4262
      %4264 = vrot.lane.b32.xlu0 %v4249, 120
      %v4265 = vpop.permute.xlu0 %4264
      %4266 = vrot.lane.b32.xlu0 %v4251, 120
      %v4267 = vpop.permute.xlu0 %4266
      %4268 = vrot.lane.b32.xlu0 %v4248, 120
      %v4269 = vpop.permute.xlu0 %4268
      %4270 = vrot.lane.b32.xlu0 %v4250, 120
      %v4271 = vpop.permute.xlu0 %4270
      %v4272 = vsel %vm859, %v4253, %v4255
      %v4273 = vsel %vm859, %v4257, %v4259
      %v4274 = vsel %vm859, %v4261, %v4263
      %v4275 = vsel %vm859, %v4265, %v4267
      %v4276 = vsel %vm859, %v4269, %v4271
      %v4287 = vadd.f32 %v4199, %v4272
      %v4288 = vadd.f32 %v4200, %v4255
      %v4289 = vadd.f32 %v4201, %v4273
      %v4290 = vadd.f32 %v4202, %v4259
      %v4291 = vadd.f32 %v4203, %v4274
      %v4292 = vadd.f32 %v4204, %v4263
      %v4293 = vadd.f32 %v4205, %v4275
      %v4294 = vadd.f32 %v4206, %v4267
      %v4295 = vadd.f32 %v4207, %v4276
      %v4296 = vadd.f32 %v4208, %v4271
      %v4298 = vperm.slane %v3599, 0
      %4299 = vrot.lane.b32.xlu0 %v4298, 4
      %v4300 = vpop.permute.xlu0 %4299
      %v4302 = vadd.f32 %v4287, %v4300
      %v4303 = vadd.f32 %v4288, %v4300
      %v4304 = vadd.f32 %v4289, %v4300
      %v4305 = vadd.f32 %v4290, %v4300
      %v4306 = vadd.f32 %v4291, %v4300
      %v4307 = vadd.f32 %v4292, %v4300
      %v4308 = vadd.f32 %v4293, %v4300
      %v4309 = vadd.f32 %v4294, %v4300
      %v4310 = vadd.f32 %v4295, %v4300
      %v4311 = vadd.f32 %v4296, %v4300
      %v4312 = vld [vmem:[%s12] sm:$0xff]
      %v4313 = vld [vmem:[%s12 + $0x8] sm:$0x1]
      %v4314 = vld [vmem:[%s13] sm:$0x1]
      %vm4325 = vcmask 1040384
      %v4326 = vrot.slane %v4302, 7
      %v4327 = vrot.slane %v4303, 7
      %v4328 = vrot.slane %v4304, 7
      %v4329 = vsel %vm4325, %v4326, %v4328
      %v4330 = vrot.slane %v4305, 7
      %v4331 = vsel %vm4325, %v4327, %v4330
      %v4332 = vrot.slane %v4306, 7
      %v4333 = vsel %vm4325, %v4328, %v4332
      %v4334 = vrot.slane %v4307, 7
      %v4335 = vsel %vm4325, %v4330, %v4334
      %v4336 = vrot.slane %v4308, 7
      %v4337 = vsel %vm4325, %v4332, %v4336
      %v4338 = vrot.slane %v4309, 7
      %v4339 = vsel %vm4325, %v4334, %v4338
      %v4340 = vrot.slane %v4310, 7
      %v4341 = vsel %vm4325, %v4336, %v4340
      %v4342 = vrot.slane %v4311, 7
      %v4343 = vsel %vm4325, %v4338, %v4342
      %4344 = vrot.lane.b32.xlu0 %v4326, 4
      %v4345 = vpop.permute.xlu0 %4344
      %4346 = vrot.lane.b32.xlu0 %v4327, 4
      %v4347 = vpop.permute.xlu0 %4346
      %4348 = vrot.lane.b32.xlu0 %v4329, 4
      %v4349 = vpop.permute.xlu0 %4348
      %4350 = vrot.lane.b32.xlu0 %v4331, 4
      %v4351 = vpop.permute.xlu0 %4350
      %4352 = vrot.lane.b32.xlu0 %v4333, 4
      %v4353 = vpop.permute.xlu0 %4352
      %4354 = vrot.lane.b32.xlu0 %v4335, 4
      %v4355 = vpop.permute.xlu0 %4354
      %4356 = vrot.lane.b32.xlu0 %v4337, 4
      %v4357 = vpop.permute.xlu0 %4356
      %4358 = vrot.lane.b32.xlu0 %v4339, 4
      %v4359 = vpop.permute.xlu0 %4358
      %4360 = vrot.lane.b32.xlu0 %v4341, 4
      %v4361 = vpop.permute.xlu0 %4360
      %4362 = vrot.lane.b32.xlu0 %v4343, 4
      %v4363 = vpop.permute.xlu0 %4362
      %vm4364 = vcmask 31744
      %v4365 = vsel %vm4364, %v4345, %v4347
      %v4366 = vsel %vm4364, %v4349, %v4351
      %v4367 = vsel %vm4364, %v4353, %v4355
      %v4368 = vsel %vm4364, %v4357, %v4359
      %v4369 = vsel %vm4364, %v4361, %v4363
      %4380 = vst.msk [vmem:[#allocation2] sm:$0xfc] %vm692, %v4345
      %4381 = vst.msk [vmem:[#allocation2 + $0x8] sm:$0xfc] %vm694, %v4365
      %4382 = vst.msk [vmem:[#allocation2 + $0x10] sm:$0xff] %vm696, %v4349
      %4383 = vst.msk [vmem:[#allocation2 + $0x18] sm:$0xff] %vm698, %v4366
      %4384 = vst.msk [vmem:[#allocation2 + $0x20] sm:$0xff] %vm696, %v4353
      %4385 = vst.msk [vmem:[#allocation2 + $0x28] sm:$0xff] %vm698, %v4367
      %4386 = vst.msk [vmem:[#allocation2 + $0x30] sm:$0xff] %vm696, %v4357
      %4387 = vst.msk [vmem:[#allocation2 + $0x38] sm:$0xff] %vm698, %v4368
      %4388 = vst.msk [vmem:[#allocation2 + $0x40] sm:$0x3] %vm704, %v4361
      %4389 = vst.msk [vmem:[#allocation2 + $0x48] sm:$0x3] %vm706, %v4369
      %v4390 = vld [vmem:[#allocation2] sm:$0xfe]
      %v4391 = vld [vmem:[#allocation2 + $0x8] sm:$0xfe]
      %v4392 = vld [vmem:[#allocation2 + $0x10] sm:$0xff]
      %v4393 = vld [vmem:[#allocation2 + $0x18] sm:$0xff]
      %v4394 = vld [vmem:[#allocation2 + $0x20] sm:$0xff]
      %v4395 = vld [vmem:[#allocation2 + $0x28] sm:$0xff]
      %v4396 = vld [vmem:[#allocation2 + $0x30] sm:$0xff]
      %v4397 = vld [vmem:[#allocation2 + $0x38] sm:$0xff]
      %v4398 = vld [vmem:[#allocation2 + $0x40] sm:$0x1]
      %v4399 = vld [vmem:[#allocation2 + $0x48] sm:$0x1]
      %v4400 = vperm.slane %v4312, 0
      %4402 = vrot.lane.b32.xlu0 %v4400, 4
      %v4403 = vpop.permute.xlu0 %4402
      %v4405 = vmul.f32 %v4390, %v4403
      %v4406 = vmul.f32 %v4391, %v4403
      %v4407 = vmul.f32 %v4392, %v4403
      %v4408 = vmul.f32 %v4393, %v4403
      %v4409 = vmul.f32 %v4394, %v4403
      %v4410 = vmul.f32 %v4395, %v4403
      %v4411 = vmul.f32 %v4396, %v4403
      %v4412 = vmul.f32 %v4397, %v4403
      %v4413 = vmul.f32 %v4398, %v4403
      %v4414 = vmul.f32 %v4399, %v4403
      %v4415 = vadd.f32 %v4405, 0.0
      %v4416 = vadd.f32 %v4406, 0.0
      %v4417 = vadd.f32 %v4407, 0.0
      %v4418 = vadd.f32 %v4408, 0.0
      %v4419 = vadd.f32 %v4409, 0.0
      %v4420 = vadd.f32 %v4410, 0.0
      %v4421 = vadd.f32 %v4411, 0.0
      %v4422 = vadd.f32 %v4412, 0.0
      %v4423 = vadd.f32 %v4413, 0.0
      %v4424 = vadd.f32 %v4414, 0.0
      %v4425 = vperm.slane %v4312, 1
      %4427 = vrot.lane.b32.xlu0 %v4425, 8
      %v4428 = vpop.permute.xlu0 %4427
      %v4430 = vmul.f32 %v4390, %v4428
      %v4431 = vmul.f32 %v4391, %v4428
      %v4432 = vmul.f32 %v4392, %v4428
      %v4433 = vmul.f32 %v4393, %v4428
      %v4434 = vmul.f32 %v4394, %v4428
      %v4435 = vmul.f32 %v4395, %v4428
      %v4436 = vmul.f32 %v4396, %v4428
      %v4437 = vmul.f32 %v4397, %v4428
      %v4438 = vmul.f32 %v4398, %v4428
      %v4439 = vmul.f32 %v4399, %v4428
      %4450 = vrot.lane.b32.xlu0 %v4430, 124
      %v4451 = vpop.permute.xlu0 %4450
      %4452 = vrot.lane.b32.xlu0 %v4431, 124
      %v4453 = vpop.permute.xlu0 %4452
      %4454 = vrot.lane.b32.xlu0 %v4432, 124
      %v4455 = vpop.permute.xlu0 %4454
      %4456 = vrot.lane.b32.xlu0 %v4433, 124
      %v4457 = vpop.permute.xlu0 %4456
      %4458 = vrot.lane.b32.xlu0 %v4434, 124
      %v4459 = vpop.permute.xlu0 %4458
      %4460 = vrot.lane.b32.xlu0 %v4435, 124
      %v4461 = vpop.permute.xlu0 %4460
      %4462 = vrot.lane.b32.xlu0 %v4436, 124
      %v4463 = vpop.permute.xlu0 %4462
      %4464 = vrot.lane.b32.xlu0 %v4437, 124
      %v4465 = vpop.permute.xlu0 %4464
      %4466 = vrot.lane.b32.xlu0 %v4438, 124
      %v4467 = vpop.permute.xlu0 %4466
      %4468 = vrot.lane.b32.xlu0 %v4439, 124
      %v4469 = vpop.permute.xlu0 %4468
      %v4470 = vsel %vm788, %v4451, %v4453
      %v4471 = vsel %vm788, %v4455, %v4457
      %v4472 = vsel %vm788, %v4459, %v4461
      %v4473 = vsel %vm788, %v4463, %v4465
      %v4474 = vsel %vm788, %v4467, %v4469
      %v4485 = vadd.f32 %v4415, %v4470
      %v4486 = vadd.f32 %v4416, %v4453
      %v4487 = vadd.f32 %v4417, %v4471
      %v4488 = vadd.f32 %v4418, %v4457
      %v4489 = vadd.f32 %v4419, %v4472
      %v4490 = vadd.f32 %v4420, %v4461
      %v4491 = vadd.f32 %v4421, %v4473
      %v4492 = vadd.f32 %v4422, %v4465
      %v4493 = vadd.f32 %v4423, %v4474
      %v4494 = vadd.f32 %v4424, %v4469
      %v4495 = vperm.slane %v4312, 2
      %4497 = vrot.lane.b32.xlu0 %v4495, 12
      %v4498 = vpop.permute.xlu0 %4497
      %v4500 = vmul.f32 %v4390, %v4498
      %v4501 = vmul.f32 %v4391, %v4498
      %v4502 = vmul.f32 %v4392, %v4498
      %v4503 = vmul.f32 %v4393, %v4498
      %v4504 = vmul.f32 %v4394, %v4498
      %v4505 = vmul.f32 %v4395, %v4498
      %v4506 = vmul.f32 %v4396, %v4498
      %v4507 = vmul.f32 %v4397, %v4498
      %v4508 = vmul.f32 %v4398, %v4498
      %v4509 = vmul.f32 %v4399, %v4498
      %4520 = vrot.lane.b32.xlu0 %v4500, 120
      %v4521 = vpop.permute.xlu0 %4520
      %4522 = vrot.lane.b32.xlu0 %v4501, 120
      %v4523 = vpop.permute.xlu0 %4522
      %4524 = vrot.lane.b32.xlu0 %v4502, 120
      %v4525 = vpop.permute.xlu0 %4524
      %4526 = vrot.lane.b32.xlu0 %v4503, 120
      %v4527 = vpop.permute.xlu0 %4526
      %4528 = vrot.lane.b32.xlu0 %v4504, 120
      %v4529 = vpop.permute.xlu0 %4528
      %4530 = vrot.lane.b32.xlu0 %v4505, 120
      %v4531 = vpop.permute.xlu0 %4530
      %4532 = vrot.lane.b32.xlu0 %v4506, 120
      %v4533 = vpop.permute.xlu0 %4532
      %4534 = vrot.lane.b32.xlu0 %v4507, 120
      %v4535 = vpop.permute.xlu0 %4534
      %4536 = vrot.lane.b32.xlu0 %v4508, 120
      %v4537 = vpop.permute.xlu0 %4536
      %4538 = vrot.lane.b32.xlu0 %v4509, 120
      %v4539 = vpop.permute.xlu0 %4538
      %v4540 = vsel %vm859, %v4521, %v4523
      %v4541 = vsel %vm859, %v4525, %v4527
      %v4542 = vsel %vm859, %v4529, %v4531
      %v4543 = vsel %vm859, %v4533, %v4535
      %v4544 = vsel %vm859, %v4537, %v4539
      %v4555 = vadd.f32 %v4485, %v4540
      %v4556 = vadd.f32 %v4486, %v4523
      %v4557 = vadd.f32 %v4487, %v4541
      %v4558 = vadd.f32 %v4488, %v4527
      %v4559 = vadd.f32 %v4489, %v4542
      %v4560 = vadd.f32 %v4490, %v4531
      %v4561 = vadd.f32 %v4491, %v4543
      %v4562 = vadd.f32 %v4492, %v4535
      %v4563 = vadd.f32 %v4493, %v4544
      %v4564 = vadd.f32 %v4494, %v4539
      %v4565 = vld [vmem:[#allocation2] sm:$0xfc]
      %v4566 = vld [vmem:[#allocation2 + $0x8] sm:$0xfc]
      %v4567 = vld [vmem:[#allocation2 + $0x40] sm:$0x3]
      %v4568 = vld [vmem:[#allocation2 + $0x48] sm:$0x3]
      %v4569 = vperm.slane %v4312, 3
      %4571 = vrot.lane.b32.xlu0 %v4569, 4
      %v4572 = vpop.permute.xlu0 %4571
      %v4574 = vmul.f32 %v4565, %v4572
      %v4575 = vmul.f32 %v4566, %v4572
      %v4576 = vmul.f32 %v4392, %v4572
      %v4577 = vmul.f32 %v4393, %v4572
      %v4578 = vmul.f32 %v4394, %v4572
      %v4579 = vmul.f32 %v4395, %v4572
      %v4580 = vmul.f32 %v4396, %v4572
      %v4581 = vmul.f32 %v4397, %v4572
      %v4582 = vmul.f32 %v4567, %v4572
      %v4583 = vmul.f32 %v4568, %v4572
      %v4594 = vrot.slane %v4574, 1
      %v4595 = vrot.slane %v4576, 1
      %v4596 = vsel %vm914, %v4594, %v4595
      %v4597 = vrot.slane %v4575, 1
      %v4598 = vrot.slane %v4577, 1
      %v4599 = vsel %vm914, %v4597, %v4598
      %v4600 = vrot.slane %v4578, 1
      %v4601 = vsel %vm914, %v4595, %v4600
      %v4602 = vrot.slane %v4579, 1
      %v4603 = vsel %vm914, %v4598, %v4602
      %v4604 = vrot.slane %v4580, 1
      %v4605 = vsel %vm914, %v4600, %v4604
      %v4606 = vrot.slane %v4581, 1
      %v4607 = vsel %vm914, %v4602, %v4606
      %v4608 = vrot.slane %v4582, 1
      %v4609 = vsel %vm914, %v4604, %v4608
      %v4610 = vrot.slane %v4583, 1
      %v4611 = vsel %vm914, %v4606, %v4610
      %v4622 = vadd.f32 %v4555, %v4596
      %v4623 = vadd.f32 %v4556, %v4599
      %v4624 = vadd.f32 %v4557, %v4601
      %v4625 = vadd.f32 %v4558, %v4603
      %v4626 = vadd.f32 %v4559, %v4605
      %v4627 = vadd.f32 %v4560, %v4607
      %v4628 = vadd.f32 %v4561, %v4609
      %v4629 = vadd.f32 %v4562, %v4611
      %v4630 = vadd.f32 %v4563, %v4608
      %v4631 = vadd.f32 %v4564, %v4610
      %v4632 = vperm.slane %v4312, 4
      %4634 = vrot.lane.b32.xlu0 %v4632, 8
      %v4635 = vpop.permute.xlu0 %4634
      %v4637 = vmul.f32 %v4565, %v4635
      %v4638 = vmul.f32 %v4566, %v4635
      %v4639 = vmul.f32 %v4392, %v4635
      %v4640 = vmul.f32 %v4393, %v4635
      %v4641 = vmul.f32 %v4394, %v4635
      %v4642 = vmul.f32 %v4395, %v4635
      %v4643 = vmul.f32 %v4396, %v4635
      %v4644 = vmul.f32 %v4397, %v4635
      %v4645 = vmul.f32 %v4567, %v4635
      %v4646 = vmul.f32 %v4568, %v4635
      %v4657 = vrot.slane %v4637, 1
      %v4658 = vrot.slane %v4639, 1
      %v4659 = vsel %vm914, %v4657, %v4658
      %v4660 = vrot.slane %v4638, 1
      %v4661 = vrot.slane %v4640, 1
      %v4662 = vsel %vm914, %v4660, %v4661
      %v4663 = vrot.slane %v4641, 1
      %v4664 = vsel %vm914, %v4658, %v4663
      %v4665 = vrot.slane %v4642, 1
      %v4666 = vsel %vm914, %v4661, %v4665
      %v4667 = vrot.slane %v4643, 1
      %v4668 = vsel %vm914, %v4663, %v4667
      %v4669 = vrot.slane %v4644, 1
      %v4670 = vsel %vm914, %v4665, %v4669
      %v4671 = vrot.slane %v4645, 1
      %v4672 = vsel %vm914, %v4667, %v4671
      %v4673 = vrot.slane %v4646, 1
      %v4674 = vsel %vm914, %v4669, %v4673
      %4675 = vrot.lane.b32.xlu0 %v4659, 124
      %v4676 = vpop.permute.xlu0 %4675
      %4677 = vrot.lane.b32.xlu0 %v4662, 124
      %v4678 = vpop.permute.xlu0 %4677
      %4679 = vrot.lane.b32.xlu0 %v4664, 124
      %v4680 = vpop.permute.xlu0 %4679
      %4681 = vrot.lane.b32.xlu0 %v4666, 124
      %v4682 = vpop.permute.xlu0 %4681
      %4683 = vrot.lane.b32.xlu0 %v4668, 124
      %v4684 = vpop.permute.xlu0 %4683
      %4685 = vrot.lane.b32.xlu0 %v4670, 124
      %v4686 = vpop.permute.xlu0 %4685
      %4687 = vrot.lane.b32.xlu0 %v4672, 124
      %v4688 = vpop.permute.xlu0 %4687
      %4689 = vrot.lane.b32.xlu0 %v4674, 124
      %v4690 = vpop.permute.xlu0 %4689
      %4691 = vrot.lane.b32.xlu0 %v4671, 124
      %v4692 = vpop.permute.xlu0 %4691
      %4693 = vrot.lane.b32.xlu0 %v4673, 124
      %v4694 = vpop.permute.xlu0 %4693
      %v4695 = vsel %vm788, %v4676, %v4678
      %v4696 = vsel %vm788, %v4680, %v4682
      %v4697 = vsel %vm788, %v4684, %v4686
      %v4698 = vsel %vm788, %v4688, %v4690
      %v4699 = vsel %vm788, %v4692, %v4694
      %v4710 = vadd.f32 %v4622, %v4695
      %v4711 = vadd.f32 %v4623, %v4678
      %v4712 = vadd.f32 %v4624, %v4696
      %v4713 = vadd.f32 %v4625, %v4682
      %v4714 = vadd.f32 %v4626, %v4697
      %v4715 = vadd.f32 %v4627, %v4686
      %v4716 = vadd.f32 %v4628, %v4698
      %v4717 = vadd.f32 %v4629, %v4690
      %v4718 = vadd.f32 %v4630, %v4699
      %v4719 = vadd.f32 %v4631, %v4694
      %v4720 = vperm.slane %v4312, 5
      %4722 = vrot.lane.b32.xlu0 %v4720, 12
      %v4723 = vpop.permute.xlu0 %4722
      %v4725 = vmul.f32 %v4565, %v4723
      %v4726 = vmul.f32 %v4566, %v4723
      %v4727 = vmul.f32 %v4392, %v4723
      %v4728 = vmul.f32 %v4393, %v4723
      %v4729 = vmul.f32 %v4394, %v4723
      %v4730 = vmul.f32 %v4395, %v4723
      %v4731 = vmul.f32 %v4396, %v4723
      %v4732 = vmul.f32 %v4397, %v4723
      %v4733 = vmul.f32 %v4567, %v4723
      %v4734 = vmul.f32 %v4568, %v4723
      %v4745 = vrot.slane %v4725, 1
      %v4746 = vrot.slane %v4727, 1
      %v4747 = vsel %vm914, %v4745, %v4746
      %v4748 = vrot.slane %v4726, 1
      %v4749 = vrot.slane %v4728, 1
      %v4750 = vsel %vm914, %v4748, %v4749
      %v4751 = vrot.slane %v4729, 1
      %v4752 = vsel %vm914, %v4746, %v4751
      %v4753 = vrot.slane %v4730, 1
      %v4754 = vsel %vm914, %v4749, %v4753
      %v4755 = vrot.slane %v4731, 1
      %v4756 = vsel %vm914, %v4751, %v4755
      %v4757 = vrot.slane %v4732, 1
      %v4758 = vsel %vm914, %v4753, %v4757
      %v4759 = vrot.slane %v4733, 1
      %v4760 = vsel %vm914, %v4755, %v4759
      %v4761 = vrot.slane %v4734, 1
      %v4762 = vsel %vm914, %v4757, %v4761
      %4763 = vrot.lane.b32.xlu0 %v4747, 120
      %v4764 = vpop.permute.xlu0 %4763
      %4765 = vrot.lane.b32.xlu0 %v4750, 120
      %v4766 = vpop.permute.xlu0 %4765
      %4767 = vrot.lane.b32.xlu0 %v4752, 120
      %v4768 = vpop.permute.xlu0 %4767
      %4769 = vrot.lane.b32.xlu0 %v4754, 120
      %v4770 = vpop.permute.xlu0 %4769
      %4771 = vrot.lane.b32.xlu0 %v4756, 120
      %v4772 = vpop.permute.xlu0 %4771
      %4773 = vrot.lane.b32.xlu0 %v4758, 120
      %v4774 = vpop.permute.xlu0 %4773
      %4775 = vrot.lane.b32.xlu0 %v4760, 120
      %v4776 = vpop.permute.xlu0 %4775
      %4777 = vrot.lane.b32.xlu0 %v4762, 120
      %v4778 = vpop.permute.xlu0 %4777
      %4779 = vrot.lane.b32.xlu0 %v4759, 120
      %v4780 = vpop.permute.xlu0 %4779
      %4781 = vrot.lane.b32.xlu0 %v4761, 120
      %v4782 = vpop.permute.xlu0 %4781
      %v4783 = vsel %vm859, %v4764, %v4766
      %v4784 = vsel %vm859, %v4768, %v4770
      %v4785 = vsel %vm859, %v4772, %v4774
      %v4786 = vsel %vm859, %v4776, %v4778
      %v4787 = vsel %vm859, %v4780, %v4782
      %v4798 = vadd.f32 %v4710, %v4783
      %v4799 = vadd.f32 %v4711, %v4766
      %v4800 = vadd.f32 %v4712, %v4784
      %v4801 = vadd.f32 %v4713, %v4770
      %v4802 = vadd.f32 %v4714, %v4785
      %v4803 = vadd.f32 %v4715, %v4774
      %v4804 = vadd.f32 %v4716, %v4786
      %v4805 = vadd.f32 %v4717, %v4778
      %v4806 = vadd.f32 %v4718, %v4787
      %v4807 = vadd.f32 %v4719, %v4782
      %v4808 = vld [vmem:[#allocation2] sm:$0xf8]
      %v4809 = vld [vmem:[#allocation2 + $0x8] sm:$0xf8]
      %v4810 = vld [vmem:[#allocation2 + $0x40] sm:$0x7]
      %v4811 = vld [vmem:[#allocation2 + $0x48] sm:$0x7]
      %v4812 = vperm.slane %v4312, 6
      %4814 = vrot.lane.b32.xlu0 %v4812, 4
      %v4815 = vpop.permute.xlu0 %4814
      %v4817 = vmul.f32 %v4808, %v4815
      %v4818 = vmul.f32 %v4809, %v4815
      %v4819 = vmul.f32 %v4392, %v4815
      %v4820 = vmul.f32 %v4393, %v4815
      %v4821 = vmul.f32 %v4394, %v4815
      %v4822 = vmul.f32 %v4395, %v4815
      %v4823 = vmul.f32 %v4396, %v4815
      %v4824 = vmul.f32 %v4397, %v4815
      %v4825 = vmul.f32 %v4810, %v4815
      %v4826 = vmul.f32 %v4811, %v4815
      %v4837 = vrot.slane %v4817, 2
      %v4838 = vrot.slane %v4819, 2
      %v4839 = vsel %vm1158, %v4837, %v4838
      %v4840 = vrot.slane %v4818, 2
      %v4841 = vrot.slane %v4820, 2
      %v4842 = vsel %vm1158, %v4840, %v4841
      %v4843 = vrot.slane %v4821, 2
      %v4844 = vsel %vm1158, %v4838, %v4843
      %v4845 = vrot.slane %v4822, 2
      %v4846 = vsel %vm1158, %v4841, %v4845
      %v4847 = vrot.slane %v4823, 2
      %v4848 = vsel %vm1158, %v4843, %v4847
      %v4849 = vrot.slane %v4824, 2
      %v4850 = vsel %vm1158, %v4845, %v4849
      %v4851 = vrot.slane %v4825, 2
      %v4852 = vsel %vm1158, %v4847, %v4851
      %v4853 = vrot.slane %v4826, 2
      %v4854 = vsel %vm1158, %v4849, %v4853
      %v4865 = vadd.f32 %v4798, %v4839
      %v4866 = vadd.f32 %v4799, %v4842
      %v4867 = vadd.f32 %v4800, %v4844
      %v4868 = vadd.f32 %v4801, %v4846
      %v4869 = vadd.f32 %v4802, %v4848
      %v4870 = vadd.f32 %v4803, %v4850
      %v4871 = vadd.f32 %v4804, %v4852
      %v4872 = vadd.f32 %v4805, %v4854
      %v4873 = vadd.f32 %v4806, %v4851
      %v4874 = vadd.f32 %v4807, %v4853
      %v4875 = vperm.slane %v4312, 7
      %4877 = vrot.lane.b32.xlu0 %v4875, 8
      %v4878 = vpop.permute.xlu0 %4877
      %v4880 = vmul.f32 %v4808, %v4878
      %v4881 = vmul.f32 %v4809, %v4878
      %v4882 = vmul.f32 %v4392, %v4878
      %v4883 = vmul.f32 %v4393, %v4878
      %v4884 = vmul.f32 %v4394, %v4878
      %v4885 = vmul.f32 %v4395, %v4878
      %v4886 = vmul.f32 %v4396, %v4878
      %v4887 = vmul.f32 %v4397, %v4878
      %v4888 = vmul.f32 %v4810, %v4878
      %v4889 = vmul.f32 %v4811, %v4878
      %v4900 = vrot.slane %v4880, 2
      %v4901 = vrot.slane %v4882, 2
      %v4902 = vsel %vm1158, %v4900, %v4901
      %v4903 = vrot.slane %v4881, 2
      %v4904 = vrot.slane %v4883, 2
      %v4905 = vsel %vm1158, %v4903, %v4904
      %v4906 = vrot.slane %v4884, 2
      %v4907 = vsel %vm1158, %v4901, %v4906
      %v4908 = vrot.slane %v4885, 2
      %v4909 = vsel %vm1158, %v4904, %v4908
      %v4910 = vrot.slane %v4886, 2
      %v4911 = vsel %vm1158, %v4906, %v4910
      %v4912 = vrot.slane %v4887, 2
      %v4913 = vsel %vm1158, %v4908, %v4912
      %v4914 = vrot.slane %v4888, 2
      %v4915 = vsel %vm1158, %v4910, %v4914
      %v4916 = vrot.slane %v4889, 2
      %v4917 = vsel %vm1158, %v4912, %v4916
      %4918 = vrot.lane.b32.xlu0 %v4902, 124
      %v4919 = vpop.permute.xlu0 %4918
      %4920 = vrot.lane.b32.xlu0 %v4905, 124
      %v4921 = vpop.permute.xlu0 %4920
      %4922 = vrot.lane.b32.xlu0 %v4907, 124
      %v4923 = vpop.permute.xlu0 %4922
      %4924 = vrot.lane.b32.xlu0 %v4909, 124
      %v4925 = vpop.permute.xlu0 %4924
      %4926 = vrot.lane.b32.xlu0 %v4911, 124
      %v4927 = vpop.permute.xlu0 %4926
      %4928 = vrot.lane.b32.xlu0 %v4913, 124
      %v4929 = vpop.permute.xlu0 %4928
      %4930 = vrot.lane.b32.xlu0 %v4915, 124
      %v4931 = vpop.permute.xlu0 %4930
      %4932 = vrot.lane.b32.xlu0 %v4917, 124
      %v4933 = vpop.permute.xlu0 %4932
      %4934 = vrot.lane.b32.xlu0 %v4914, 124
      %v4935 = vpop.permute.xlu0 %4934
      %4936 = vrot.lane.b32.xlu0 %v4916, 124
      %v4937 = vpop.permute.xlu0 %4936
      %v4938 = vsel %vm788, %v4919, %v4921
      %v4939 = vsel %vm788, %v4923, %v4925
      %v4940 = vsel %vm788, %v4927, %v4929
      %v4941 = vsel %vm788, %v4931, %v4933
      %v4942 = vsel %vm788, %v4935, %v4937
      %v4953 = vadd.f32 %v4865, %v4938
      %v4954 = vadd.f32 %v4866, %v4921
      %v4955 = vadd.f32 %v4867, %v4939
      %v4956 = vadd.f32 %v4868, %v4925
      %v4957 = vadd.f32 %v4869, %v4940
      %v4958 = vadd.f32 %v4870, %v4929
      %v4959 = vadd.f32 %v4871, %v4941
      %v4960 = vadd.f32 %v4872, %v4933
      %v4961 = vadd.f32 %v4873, %v4942
      %v4962 = vadd.f32 %v4874, %v4937
      %v4963 = vperm.slane %v4313, 0
      %4965 = vrot.lane.b32.xlu0 %v4963, 12
      %v4966 = vpop.permute.xlu0 %4965
      %v4968 = vmul.f32 %v4808, %v4966
      %v4969 = vmul.f32 %v4809, %v4966
      %v4970 = vmul.f32 %v4392, %v4966
      %v4971 = vmul.f32 %v4393, %v4966
      %v4972 = vmul.f32 %v4394, %v4966
      %v4973 = vmul.f32 %v4395, %v4966
      %v4974 = vmul.f32 %v4396, %v4966
      %v4975 = vmul.f32 %v4397, %v4966
      %v4976 = vmul.f32 %v4810, %v4966
      %v4977 = vmul.f32 %v4811, %v4966
      %v4988 = vrot.slane %v4968, 2
      %v4989 = vrot.slane %v4970, 2
      %v4990 = vsel %vm1158, %v4988, %v4989
      %v4991 = vrot.slane %v4969, 2
      %v4992 = vrot.slane %v4971, 2
      %v4993 = vsel %vm1158, %v4991, %v4992
      %v4994 = vrot.slane %v4972, 2
      %v4995 = vsel %vm1158, %v4989, %v4994
      %v4996 = vrot.slane %v4973, 2
      %v4997 = vsel %vm1158, %v4992, %v4996
      %v4998 = vrot.slane %v4974, 2
      %v4999 = vsel %vm1158, %v4994, %v4998
      %v5000 = vrot.slane %v4975, 2
      %v5001 = vsel %vm1158, %v4996, %v5000
      %v5002 = vrot.slane %v4976, 2
      %v5003 = vsel %vm1158, %v4998, %v5002
      %v5004 = vrot.slane %v4977, 2
      %v5005 = vsel %vm1158, %v5000, %v5004
      %5006 = vrot.lane.b32.xlu0 %v4990, 120
      %v5007 = vpop.permute.xlu0 %5006
      %5008 = vrot.lane.b32.xlu0 %v4993, 120
      %v5009 = vpop.permute.xlu0 %5008
      %5010 = vrot.lane.b32.xlu0 %v4995, 120
      %v5011 = vpop.permute.xlu0 %5010
      %5012 = vrot.lane.b32.xlu0 %v4997, 120
      %v5013 = vpop.permute.xlu0 %5012
      %5014 = vrot.lane.b32.xlu0 %v4999, 120
      %v5015 = vpop.permute.xlu0 %5014
      %5016 = vrot.lane.b32.xlu0 %v5001, 120
      %v5017 = vpop.permute.xlu0 %5016
      %5018 = vrot.lane.b32.xlu0 %v5003, 120
      %v5019 = vpop.permute.xlu0 %5018
      %5020 = vrot.lane.b32.xlu0 %v5005, 120
      %v5021 = vpop.permute.xlu0 %5020
      %5022 = vrot.lane.b32.xlu0 %v5002, 120
      %v5023 = vpop.permute.xlu0 %5022
      %5024 = vrot.lane.b32.xlu0 %v5004, 120
      %v5025 = vpop.permute.xlu0 %5024
      %v5026 = vsel %vm859, %v5007, %v5009
      %v5027 = vsel %vm859, %v5011, %v5013
      %v5028 = vsel %vm859, %v5015, %v5017
      %v5029 = vsel %vm859, %v5019, %v5021
      %v5030 = vsel %vm859, %v5023, %v5025
      %v5041 = vadd.f32 %v4953, %v5026
      %v5042 = vadd.f32 %v4954, %v5009
      %v5043 = vadd.f32 %v4955, %v5027
      %v5044 = vadd.f32 %v4956, %v5013
      %v5045 = vadd.f32 %v4957, %v5028
      %v5046 = vadd.f32 %v4958, %v5017
      %v5047 = vadd.f32 %v4959, %v5029
      %v5048 = vadd.f32 %v4960, %v5021
      %v5049 = vadd.f32 %v4961, %v5030
      %v5050 = vadd.f32 %v4962, %v5025
      %v5052 = vperm.slane %v4314, 0
      %5053 = vrot.lane.b32.xlu0 %v5052, 4
      %v5054 = vpop.permute.xlu0 %5053
      %v5056 = vadd.f32 %v5041, %v5054
      %v5057 = vadd.f32 %v5042, %v5054
      %v5058 = vadd.f32 %v5043, %v5054
      %v5059 = vadd.f32 %v5044, %v5054
      %v5060 = vadd.f32 %v5045, %v5054
      %v5061 = vadd.f32 %v5046, %v5054
      %v5062 = vadd.f32 %v5047, %v5054
      %v5063 = vadd.f32 %v5048, %v5054
      %v5064 = vadd.f32 %v5049, %v5054
      %v5065 = vadd.f32 %v5050, %v5054
      %v5066 = vmul.f32 %v1378, 0.5
      %v5067 = vmul.f32 %v1379, 0.5
      %v5068 = vmul.f32 %v1380, 0.5
      %v5069 = vmul.f32 %v1381, 0.5
      %v5070 = vmul.f32 %v1382, 0.5
      %v5071 = vmul.f32 %v1383, 0.5
      %v5072 = vmul.f32 %v1384, 0.5
      %v5073 = vmul.f32 %v1385, 0.5
      %v5074 = vmul.f32 %v1386, 0.5
      %v5075 = vmul.f32 %v1387, 0.5
      %v5076 = vmul.f32 %v1378, 0.70710677
      %v5077 = vmul.f32 %v1379, 0.70710677
      %v5078 = vmul.f32 %v1380, 0.70710677
      %v5079 = vmul.f32 %v1381, 0.70710677
      %v5080 = vmul.f32 %v1382, 0.70710677
      %v5081 = vmul.f32 %v1383, 0.70710677
      %v5082 = vmul.f32 %v1384, 0.70710677
      %v5083 = vmul.f32 %v1385, 0.70710677
      %v5084 = vmul.f32 %v1386, 0.70710677
      %v5085 = vmul.f32 %v1387, 0.70710677
      %vm5086 = vcmp.ge.f32.partialorder %v5076, 0.0
      %vm5087 = vcmp.ge.f32.partialorder %v5077, 0.0
      %vm5088 = vcmp.ge.f32.partialorder %v5078, 0.0
      %vm5089 = vcmp.ge.f32.partialorder %v5079, 0.0
      %vm5090 = vcmp.ge.f32.partialorder %v5080, 0.0
      %vm5091 = vcmp.ge.f32.partialorder %v5081, 0.0
      %vm5092 = vcmp.ge.f32.partialorder %v5082, 0.0
      %vm5093 = vcmp.ge.f32.partialorder %v5083, 0.0
      %vm5094 = vcmp.ge.f32.partialorder %v5084, 0.0
      %vm5095 = vcmp.ge.f32.partialorder %v5085, 0.0
      %v5096 = vsel %vm5086, 1.0, -1.0
      %v5097 = vsel %vm5087, 1.0, -1.0
      %v5098 = vsel %vm5088, 1.0, -1.0
      %v5099 = vsel %vm5089, 1.0, -1.0
      %v5100 = vsel %vm5090, 1.0, -1.0
      %v5101 = vsel %vm5091, 1.0, -1.0
      %v5102 = vsel %vm5092, 1.0, -1.0
      %v5103 = vsel %vm5093, 1.0, -1.0
      %v5104 = vsel %vm5094, 1.0, -1.0
      %v5105 = vsel %vm5095, 1.0, -1.0
      %v5106 = vand.u32 2147483647, %v5076
      %v5107 = vand.u32 2147483647, %v5077
      %v5108 = vand.u32 2147483647, %v5078
      %v5109 = vand.u32 2147483647, %v5079
      %v5110 = vand.u32 2147483647, %v5080
      %v5111 = vand.u32 2147483647, %v5081
      %v5112 = vand.u32 2147483647, %v5082
      %v5113 = vand.u32 2147483647, %v5083
      %v5114 = vand.u32 2147483647, %v5084
      %v5115 = vand.u32 2147483647, %v5085
      %v5116 = vmul.f32 %v5106, 0.3275911
      %v5117 = vmul.f32 %v5107, 0.3275911
      %v5118 = vmul.f32 %v5108, 0.3275911
      %v5119 = vmul.f32 %v5109, 0.3275911
      %v5120 = vmul.f32 %v5110, 0.3275911
      %v5121 = vmul.f32 %v5111, 0.3275911
      %v5122 = vmul.f32 %v5112, 0.3275911
      %v5123 = vmul.f32 %v5113, 0.3275911
      %v5124 = vmul.f32 %v5114, 0.3275911
      %v5125 = vmul.f32 %v5115, 0.3275911
      %v5126 = vadd.f32 %v5116, 1.0
      %v5127 = vadd.f32 %v5117, 1.0
      %v5128 = vadd.f32 %v5118, 1.0
      %v5129 = vadd.f32 %v5119, 1.0
      %v5130 = vadd.f32 %v5120, 1.0
      %v5131 = vadd.f32 %v5121, 1.0
      %v5132 = vadd.f32 %v5122, 1.0
      %v5133 = vadd.f32 %v5123, 1.0
      %v5134 = vadd.f32 %v5124, 1.0
      %v5135 = vadd.f32 %v5125, 1.0
      %v5136 = vrcp.pop %v5126
      %v5137 = vmul.f32 %v5126, %v5136
      %v5138 = vsub.f32 1.0, %v5137
      %v5139 = vmul.f32 %v5136, %v5138
      %v5140 = vadd.f32 %v5136, %v5139
      %vm5141 = vweird.f32 %v5126
      %vm5142 = vweird.f32 %v5136
      %vm5143 = vmor %vm5141, %vm5142
      %v5144 = vsel %vm5143, %v5136, %v5140
      %v5145 = vand.u32 2147483647, %v5126
      %vm5146 = vcmp.eq.f32.partialorder %v5145, 8.507059e+37
      %v5147 = vand.u32 %v5126, 2147483648
      %v5148 = vor.u32 1.1754944e-38, %v5147
      %v5149 = vsel %vm5146, %v5148, %v5144
      %v5150 = vmul.f32 1.0, %v5149
      %v5151 = vrcp.pop %v5127
      %v5152 = vmul.f32 %v5127, %v5151
      %v5153 = vsub.f32 1.0, %v5152
      %v5154 = vmul.f32 %v5151, %v5153
      %v5155 = vadd.f32 %v5151, %v5154
      %vm5156 = vweird.f32 %v5127
      %vm5157 = vweird.f32 %v5151
      %vm5158 = vmor %vm5156, %vm5157
      %v5159 = vsel %vm5158, %v5151, %v5155
      %v5160 = vand.u32 2147483647, %v5127
      %vm5161 = vcmp.eq.f32.partialorder %v5160, 8.507059e+37
      %v5162 = vand.u32 %v5127, 2147483648
      %v5163 = vor.u32 1.1754944e-38, %v5162
      %v5164 = vsel %vm5161, %v5163, %v5159
      %v5165 = vmul.f32 1.0, %v5164
      %v5166 = vrcp.pop %v5128
      %v5167 = vmul.f32 %v5128, %v5166
      %v5168 = vsub.f32 1.0, %v5167
      %v5169 = vmul.f32 %v5166, %v5168
      %v5170 = vadd.f32 %v5166, %v5169
      %vm5171 = vweird.f32 %v5128
      %vm5172 = vweird.f32 %v5166
      %vm5173 = vmor %vm5171, %vm5172
      %v5174 = vsel %vm5173, %v5166, %v5170
      %v5175 = vand.u32 2147483647, %v5128
      %vm5176 = vcmp.eq.f32.partialorder %v5175, 8.507059e+37
      %v5177 = vand.u32 %v5128, 2147483648
      %v5178 = vor.u32 1.1754944e-38, %v5177
      %v5179 = vsel %vm5176, %v5178, %v5174
      %v5180 = vmul.f32 1.0, %v5179
      %v5181 = vrcp.pop %v5129
      %v5182 = vmul.f32 %v5129, %v5181
      %v5183 = vsub.f32 1.0, %v5182
      %v5184 = vmul.f32 %v5181, %v5183
      %v5185 = vadd.f32 %v5181, %v5184
      %vm5186 = vweird.f32 %v5129
      %vm5187 = vweird.f32 %v5181
      %vm5188 = vmor %vm5186, %vm5187
      %v5189 = vsel %vm5188, %v5181, %v5185
      %v5190 = vand.u32 2147483647, %v5129
      %vm5191 = vcmp.eq.f32.partialorder %v5190, 8.507059e+37
      %v5192 = vand.u32 %v5129, 2147483648
      %v5193 = vor.u32 1.1754944e-38, %v5192
      %v5194 = vsel %vm5191, %v5193, %v5189
      %v5195 = vmul.f32 1.0, %v5194
      %v5196 = vrcp.pop %v5130
      %v5197 = vmul.f32 %v5130, %v5196
      %v5198 = vsub.f32 1.0, %v5197
      %v5199 = vmul.f32 %v5196, %v5198
      %v5200 = vadd.f32 %v5196, %v5199
      %vm5201 = vweird.f32 %v5130
      %vm5202 = vweird.f32 %v5196
      %vm5203 = vmor %vm5201, %vm5202
      %v5204 = vsel %vm5203, %v5196, %v5200
      %v5205 = vand.u32 2147483647, %v5130
      %vm5206 = vcmp.eq.f32.partialorder %v5205, 8.507059e+37
      %v5207 = vand.u32 %v5130, 2147483648
      %v5208 = vor.u32 1.1754944e-38, %v5207
      %v5209 = vsel %vm5206, %v5208, %v5204
      %v5210 = vmul.f32 1.0, %v5209
      %v5211 = vrcp.pop %v5131
      %v5212 = vmul.f32 %v5131, %v5211
      %v5213 = vsub.f32 1.0, %v5212
      %v5214 = vmul.f32 %v5211, %v5213
      %v5215 = vadd.f32 %v5211, %v5214
      %vm5216 = vweird.f32 %v5131
      %vm5217 = vweird.f32 %v5211
      %vm5218 = vmor %vm5216, %vm5217
      %v5219 = vsel %vm5218, %v5211, %v5215
      %v5220 = vand.u32 2147483647, %v5131
      %vm5221 = vcmp.eq.f32.partialorder %v5220, 8.507059e+37
      %v5222 = vand.u32 %v5131, 2147483648
      %v5223 = vor.u32 1.1754944e-38, %v5222
      %v5224 = vsel %vm5221, %v5223, %v5219
      %v5225 = vmul.f32 1.0, %v5224
      %v5226 = vrcp.pop %v5132
      %v5227 = vmul.f32 %v5132, %v5226
      %v5228 = vsub.f32 1.0, %v5227
      %v5229 = vmul.f32 %v5226, %v5228
      %v5230 = vadd.f32 %v5226, %v5229
      %vm5231 = vweird.f32 %v5132
      %vm5232 = vweird.f32 %v5226
      %vm5233 = vmor %vm5231, %vm5232
      %v5234 = vsel %vm5233, %v5226, %v5230
      %v5235 = vand.u32 2147483647, %v5132
      %vm5236 = vcmp.eq.f32.partialorder %v5235, 8.507059e+37
      %v5237 = vand.u32 %v5132, 2147483648
      %v5238 = vor.u32 1.1754944e-38, %v5237
      %v5239 = vsel %vm5236, %v5238, %v5234
      %v5240 = vmul.f32 1.0, %v5239
      %v5241 = vrcp.pop %v5133
      %v5242 = vmul.f32 %v5133, %v5241
      %v5243 = vsub.f32 1.0, %v5242
      %v5244 = vmul.f32 %v5241, %v5243
      %v5245 = vadd.f32 %v5241, %v5244
      %vm5246 = vweird.f32 %v5133
      %vm5247 = vweird.f32 %v5241
      %vm5248 = vmor %vm5246, %vm5247
      %v5249 = vsel %vm5248, %v5241, %v5245
      %v5250 = vand.u32 2147483647, %v5133
      %vm5251 = vcmp.eq.f32.partialorder %v5250, 8.507059e+37
      %v5252 = vand.u32 %v5133, 2147483648
      %v5253 = vor.u32 1.1754944e-38, %v5252
      %v5254 = vsel %vm5251, %v5253, %v5249
      %v5255 = vmul.f32 1.0, %v5254
      %v5256 = vrcp.pop %v5134
      %v5257 = vmul.f32 %v5134, %v5256
      %v5258 = vsub.f32 1.0, %v5257
      %v5259 = vmul.f32 %v5256, %v5258
      %v5260 = vadd.f32 %v5256, %v5259
      %vm5261 = vweird.f32 %v5134
      %vm5262 = vweird.f32 %v5256
      %vm5263 = vmor %vm5261, %vm5262
      %v5264 = vsel %vm5263, %v5256, %v5260
      %v5265 = vand.u32 2147483647, %v5134
      %vm5266 = vcmp.eq.f32.partialorder %v5265, 8.507059e+37
      %v5267 = vand.u32 %v5134, 2147483648
      %v5268 = vor.u32 1.1754944e-38, %v5267
      %v5269 = vsel %vm5266, %v5268, %v5264
      %v5270 = vmul.f32 1.0, %v5269
      %v5271 = vrcp.pop %v5135
      %v5272 = vmul.f32 %v5135, %v5271
      %v5273 = vsub.f32 1.0, %v5272
      %v5274 = vmul.f32 %v5271, %v5273
      %v5275 = vadd.f32 %v5271, %v5274
      %vm5276 = vweird.f32 %v5135
      %vm5277 = vweird.f32 %v5271
      %vm5278 = vmor %vm5276, %vm5277
      %v5279 = vsel %vm5278, %v5271, %v5275
      %v5280 = vand.u32 2147483647, %v5135
      %vm5281 = vcmp.eq.f32.partialorder %v5280, 8.507059e+37
      %v5282 = vand.u32 %v5135, 2147483648
      %v5283 = vor.u32 1.1754944e-38, %v5282
      %v5284 = vsel %vm5281, %v5283, %v5279
      %v5285 = vmul.f32 1.0, %v5284
      %v5286 = vmul.f32 %v5150, 1.0614054
      %v5287 = vmul.f32 %v5165, 1.0614054
      %v5288 = vmul.f32 %v5180, 1.0614054
      %v5289 = vmul.f32 %v5195, 1.0614054
      %v5290 = vmul.f32 %v5210, 1.0614054
      %v5291 = vmul.f32 %v5225, 1.0614054
      %v5292 = vmul.f32 %v5240, 1.0614054
      %v5293 = vmul.f32 %v5255, 1.0614054
      %v5294 = vmul.f32 %v5270, 1.0614054
      %v5295 = vmul.f32 %v5285, 1.0614054
      %v5296 = vadd.f32 %v5286, -1.4531521
      %v5297 = vadd.f32 %v5287, -1.4531521
      %v5298 = vadd.f32 %v5288, -1.4531521
      %v5299 = vadd.f32 %v5289, -1.4531521
      %v5300 = vadd.f32 %v5290, -1.4531521
      %v5301 = vadd.f32 %v5291, -1.4531521
      %v5302 = vadd.f32 %v5292, -1.4531521
      %v5303 = vadd.f32 %v5293, -1.4531521
      %v5304 = vadd.f32 %v5294, -1.4531521
      %v5305 = vadd.f32 %v5295, -1.4531521
      %v5306 = vmul.f32 %v5296, %v5150
      %v5307 = vmul.f32 %v5297, %v5165
      %v5308 = vmul.f32 %v5298, %v5180
      %v5309 = vmul.f32 %v5299, %v5195
      %v5310 = vmul.f32 %v5300, %v5210
      %v5311 = vmul.f32 %v5301, %v5225
      %v5312 = vmul.f32 %v5302, %v5240
      %v5313 = vmul.f32 %v5303, %v5255
      %v5314 = vmul.f32 %v5304, %v5270
      %v5315 = vmul.f32 %v5305, %v5285
      %v5316 = vadd.f32 %v5306, 1.4214138
      %v5317 = vadd.f32 %v5307, 1.4214138
      %v5318 = vadd.f32 %v5308, 1.4214138
      %v5319 = vadd.f32 %v5309, 1.4214138
      %v5320 = vadd.f32 %v5310, 1.4214138
      %v5321 = vadd.f32 %v5311, 1.4214138
      %v5322 = vadd.f32 %v5312, 1.4214138
      %v5323 = vadd.f32 %v5313, 1.4214138
      %v5324 = vadd.f32 %v5314, 1.4214138
      %v5325 = vadd.f32 %v5315, 1.4214138
      %v5326 = vmul.f32 %v5316, %v5150
      %v5327 = vmul.f32 %v5317, %v5165
      %v5328 = vmul.f32 %v5318, %v5180
      %v5329 = vmul.f32 %v5319, %v5195
      %v5330 = vmul.f32 %v5320, %v5210
      %v5331 = vmul.f32 %v5321, %v5225
      %v5332 = vmul.f32 %v5322, %v5240
      %v5333 = vmul.f32 %v5323, %v5255
      %v5334 = vmul.f32 %v5324, %v5270
      %v5335 = vmul.f32 %v5325, %v5285
      %v5336 = vadd.f32 %v5326, -0.28449672
      %v5337 = vadd.f32 %v5327, -0.28449672
      %v5338 = vadd.f32 %v5328, -0.28449672
      %v5339 = vadd.f32 %v5329, -0.28449672
      %v5340 = vadd.f32 %v5330, -0.28449672
      %v5341 = vadd.f32 %v5331, -0.28449672
      %v5342 = vadd.f32 %v5332, -0.28449672
      %v5343 = vadd.f32 %v5333, -0.28449672
      %v5344 = vadd.f32 %v5334, -0.28449672
      %v5345 = vadd.f32 %v5335, -0.28449672
      %v5346 = vmul.f32 %v5336, %v5150
      %v5347 = vmul.f32 %v5337, %v5165
      %v5348 = vmul.f32 %v5338, %v5180
      %v5349 = vmul.f32 %v5339, %v5195
      %v5350 = vmul.f32 %v5340, %v5210
      %v5351 = vmul.f32 %v5341, %v5225
      %v5352 = vmul.f32 %v5342, %v5240
      %v5353 = vmul.f32 %v5343, %v5255
      %v5354 = vmul.f32 %v5344, %v5270
      %v5355 = vmul.f32 %v5345, %v5285
      %v5356 = vadd.f32 %v5346, 0.2548296
      %v5357 = vadd.f32 %v5347, 0.2548296
      %v5358 = vadd.f32 %v5348, 0.2548296
      %v5359 = vadd.f32 %v5349, 0.2548296
      %v5360 = vadd.f32 %v5350, 0.2548296
      %v5361 = vadd.f32 %v5351, 0.2548296
      %v5362 = vadd.f32 %v5352, 0.2548296
      %v5363 = vadd.f32 %v5353, 0.2548296
      %v5364 = vadd.f32 %v5354, 0.2548296
      %v5365 = vadd.f32 %v5355, 0.2548296
      %v5366 = vmul.f32 %v5356, %v5150
      %v5367 = vmul.f32 %v5357, %v5165
      %v5368 = vmul.f32 %v5358, %v5180
      %v5369 = vmul.f32 %v5359, %v5195
      %v5370 = vmul.f32 %v5360, %v5210
      %v5371 = vmul.f32 %v5361, %v5225
      %v5372 = vmul.f32 %v5362, %v5240
      %v5373 = vmul.f32 %v5363, %v5255
      %v5374 = vmul.f32 %v5364, %v5270
      %v5375 = vmul.f32 %v5365, %v5285
      %v5376 = vsub.f32 0.0, %v5106
      %v5377 = vsub.f32 0.0, %v5107
      %v5378 = vsub.f32 0.0, %v5108
      %v5379 = vsub.f32 0.0, %v5109
      %v5380 = vsub.f32 0.0, %v5110
      %v5381 = vsub.f32 0.0, %v5111
      %v5382 = vsub.f32 0.0, %v5112
      %v5383 = vsub.f32 0.0, %v5113
      %v5384 = vsub.f32 0.0, %v5114
      %v5385 = vsub.f32 0.0, %v5115
      %v5386 = vmul.f32 %v5376, %v5106
      %v5387 = vmul.f32 %v5377, %v5107
      %v5388 = vmul.f32 %v5378, %v5108
      %v5389 = vmul.f32 %v5379, %v5109
      %v5390 = vmul.f32 %v5380, %v5110
      %v5391 = vmul.f32 %v5381, %v5111
      %v5392 = vmul.f32 %v5382, %v5112
      %v5393 = vmul.f32 %v5383, %v5113
      %v5394 = vmul.f32 %v5384, %v5114
      %v5395 = vmul.f32 %v5385, %v5115
      %v5396 = vmul.f32 %v5386, 1.442695
      %v5397 = vpow.pop %v5396
      %v5398 = vmul.f32 %v5387, 1.442695
      %v5399 = vpow.pop %v5398
      %v5400 = vmul.f32 %v5388, 1.442695
      %v5401 = vpow.pop %v5400
      %v5402 = vmul.f32 %v5389, 1.442695
      %v5403 = vpow.pop %v5402
      %v5404 = vmul.f32 %v5390, 1.442695
      %v5405 = vpow.pop %v5404
      %v5406 = vmul.f32 %v5391, 1.442695
      %v5407 = vpow.pop %v5406
      %v5408 = vmul.f32 %v5392, 1.442695
      %v5409 = vpow.pop %v5408
      %v5410 = vmul.f32 %v5393, 1.442695
      %v5411 = vpow.pop %v5410
      %v5412 = vmul.f32 %v5394, 1.442695
      %v5413 = vpow.pop %v5412
      %v5414 = vmul.f32 %v5395, 1.442695
      %v5415 = vpow.pop %v5414
      %v5416 = vmul.f32 %v5366, %v5397
      %v5417 = vmul.f32 %v5367, %v5399
      %v5418 = vmul.f32 %v5368, %v5401
      %v5419 = vmul.f32 %v5369, %v5403
      %v5420 = vmul.f32 %v5370, %v5405
      %v5421 = vmul.f32 %v5371, %v5407
      %v5422 = vmul.f32 %v5372, %v5409
      %v5423 = vmul.f32 %v5373, %v5411
      %v5424 = vmul.f32 %v5374, %v5413
      %v5425 = vmul.f32 %v5375, %v5415
      %v5426 = vsub.f32 1.0, %v5416
      %v5427 = vsub.f32 1.0, %v5417
      %v5428 = vsub.f32 1.0, %v5418
      %v5429 = vsub.f32 1.0, %v5419
      %v5430 = vsub.f32 1.0, %v5420
      %v5431 = vsub.f32 1.0, %v5421
      %v5432 = vsub.f32 1.0, %v5422
      %v5433 = vsub.f32 1.0, %v5423
      %v5434 = vsub.f32 1.0, %v5424
      %v5435 = vsub.f32 1.0, %v5425
      %v5436 = vmul.f32 %v5096, %v5426
      %v5437 = vmul.f32 %v5097, %v5427
      %v5438 = vmul.f32 %v5098, %v5428
      %v5439 = vmul.f32 %v5099, %v5429
      %v5440 = vmul.f32 %v5100, %v5430
      %v5441 = vmul.f32 %v5101, %v5431
      %v5442 = vmul.f32 %v5102, %v5432
      %v5443 = vmul.f32 %v5103, %v5433
      %v5444 = vmul.f32 %v5104, %v5434
      %v5445 = vmul.f32 %v5105, %v5435
      %v5446 = vadd.f32 %v5436, 1.0
      %v5447 = vadd.f32 %v5437, 1.0
      %v5448 = vadd.f32 %v5438, 1.0
      %v5449 = vadd.f32 %v5439, 1.0
      %v5450 = vadd.f32 %v5440, 1.0
      %v5451 = vadd.f32 %v5441, 1.0
      %v5452 = vadd.f32 %v5442, 1.0
      %v5453 = vadd.f32 %v5443, 1.0
      %v5454 = vadd.f32 %v5444, 1.0
      %v5455 = vadd.f32 %v5445, 1.0
      %v5456 = vmul.f32 %v5066, %v5446
      %v5457 = vmul.f32 %v5067, %v5447
      %v5458 = vmul.f32 %v5068, %v5448
      %v5459 = vmul.f32 %v5069, %v5449
      %v5460 = vmul.f32 %v5070, %v5450
      %v5461 = vmul.f32 %v5071, %v5451
      %v5462 = vmul.f32 %v5072, %v5452
      %v5463 = vmul.f32 %v5073, %v5453
      %v5464 = vmul.f32 %v5074, %v5454
      %v5465 = vmul.f32 %v5075, %v5455
      %5476 = vrot.lane.b32.xlu0 %v5456, 124
      %v5477 = vpop.permute.xlu0 %5476
      %5478 = vrot.lane.b32.xlu0 %v5457, 124
      %v5479 = vpop.permute.xlu0 %5478
      %5480 = vrot.lane.b32.xlu0 %v5458, 124
      %v5481 = vpop.permute.xlu0 %5480
      %5482 = vrot.lane.b32.xlu0 %v5459, 124
      %v5483 = vpop.permute.xlu0 %5482
      %5484 = vrot.lane.b32.xlu0 %v5460, 124
      %v5485 = vpop.permute.xlu0 %5484
      %5486 = vrot.lane.b32.xlu0 %v5461, 124
      %v5487 = vpop.permute.xlu0 %5486
      %5488 = vrot.lane.b32.xlu0 %v5462, 124
      %v5489 = vpop.permute.xlu0 %5488
      %5490 = vrot.lane.b32.xlu0 %v5463, 124
      %v5491 = vpop.permute.xlu0 %5490
      %5492 = vrot.lane.b32.xlu0 %v5464, 124
      %v5493 = vpop.permute.xlu0 %5492
      %5494 = vrot.lane.b32.xlu0 %v5465, 124
      %v5495 = vpop.permute.xlu0 %5494
      %v5496 = vsel %vm788, %v5477, %v5479
      %v5497 = vsel %vm788, %v5481, %v5483
      %v5498 = vsel %vm788, %v5485, %v5487
      %v5499 = vsel %vm788, %v5489, %v5491
      %v5500 = vsel %vm788, %v5493, %v5495
      %5506 = vst [vmem:[%s630 - $0x1] sm:$0xfe] %v5496
      %5507 = vst [vmem:[%s630 + $0x7] sm:$0xff] %v5497
      %5508 = vst [vmem:[%s630 + $0xf] sm:$0xff] %v5498
      %5509 = vst [vmem:[%s630 + $0x17] sm:$0xff] %v5499
      %5510 = vst [vmem:[%s630 + $0x1f] sm:$0x1] %v5500
      %v5511 = vmul.f32 %v2521, 0.5
      %v5512 = vmul.f32 %v2522, 0.5
      %v5513 = vmul.f32 %v2523, 0.5
      %v5514 = vmul.f32 %v2524, 0.5
      %v5515 = vmul.f32 %v2525, 0.5
      %v5516 = vmul.f32 %v2526, 0.5
      %v5517 = vmul.f32 %v2527, 0.5
      %v5518 = vmul.f32 %v2528, 0.5
      %v5519 = vmul.f32 %v2521, 0.70710677
      %v5520 = vmul.f32 %v2522, 0.70710677
      %v5521 = vmul.f32 %v2523, 0.70710677
      %v5522 = vmul.f32 %v2524, 0.70710677
      %v5523 = vmul.f32 %v2525, 0.70710677
      %v5524 = vmul.f32 %v2526, 0.70710677
      %v5525 = vmul.f32 %v2527, 0.70710677
      %v5526 = vmul.f32 %v2528, 0.70710677
      %vm5527 = vcmp.ge.f32.partialorder %v5519, 0.0
      %vm5528 = vcmp.ge.f32.partialorder %v5520, 0.0
      %vm5529 = vcmp.ge.f32.partialorder %v5521, 0.0
      %vm5530 = vcmp.ge.f32.partialorder %v5522, 0.0
      %vm5531 = vcmp.ge.f32.partialorder %v5523, 0.0
      %vm5532 = vcmp.ge.f32.partialorder %v5524, 0.0
      %vm5533 = vcmp.ge.f32.partialorder %v5525, 0.0
      %vm5534 = vcmp.ge.f32.partialorder %v5526, 0.0
      %v5535 = vsel %vm5527, 1.0, -1.0
      %v5536 = vsel %vm5528, 1.0, -1.0
      %v5537 = vsel %vm5529, 1.0, -1.0
      %v5538 = vsel %vm5530, 1.0, -1.0
      %v5539 = vsel %vm5531, 1.0, -1.0
      %v5540 = vsel %vm5532, 1.0, -1.0
      %v5541 = vsel %vm5533, 1.0, -1.0
      %v5542 = vsel %vm5534, 1.0, -1.0
      %v5543 = vand.u32 2147483647, %v5519
      %v5544 = vand.u32 2147483647, %v5520
      %v5545 = vand.u32 2147483647, %v5521
      %v5546 = vand.u32 2147483647, %v5522
      %v5547 = vand.u32 2147483647, %v5523
      %v5548 = vand.u32 2147483647, %v5524
      %v5549 = vand.u32 2147483647, %v5525
      %v5550 = vand.u32 2147483647, %v5526
      %v5551 = vmul.f32 %v5543, 0.3275911
      %v5552 = vmul.f32 %v5544, 0.3275911
      %v5553 = vmul.f32 %v5545, 0.3275911
      %v5554 = vmul.f32 %v5546, 0.3275911
      %v5555 = vmul.f32 %v5547, 0.3275911
      %v5556 = vmul.f32 %v5548, 0.3275911
      %v5557 = vmul.f32 %v5549, 0.3275911
      %v5558 = vmul.f32 %v5550, 0.3275911
      %v5559 = vadd.f32 %v5551, 1.0
      %v5560 = vadd.f32 %v5552, 1.0
      %v5561 = vadd.f32 %v5553, 1.0
      %v5562 = vadd.f32 %v5554, 1.0
      %v5563 = vadd.f32 %v5555, 1.0
      %v5564 = vadd.f32 %v5556, 1.0
      %v5565 = vadd.f32 %v5557, 1.0
      %v5566 = vadd.f32 %v5558, 1.0
      %v5567 = vrcp.pop %v5559
      %v5568 = vmul.f32 %v5559, %v5567
      %v5569 = vsub.f32 1.0, %v5568
      %v5570 = vmul.f32 %v5567, %v5569
      %v5571 = vadd.f32 %v5567, %v5570
      %vm5572 = vweird.f32 %v5559
      %vm5573 = vweird.f32 %v5567
      %vm5574 = vmor %vm5572, %vm5573
      %v5575 = vsel %vm5574, %v5567, %v5571
      %v5576 = vand.u32 2147483647, %v5559
      %vm5577 = vcmp.eq.f32.partialorder %v5576, 8.507059e+37
      %v5578 = vand.u32 %v5559, 2147483648
      %v5579 = vor.u32 1.1754944e-38, %v5578
      %v5580 = vsel %vm5577, %v5579, %v5575
      %v5581 = vmul.f32 1.0, %v5580
      %v5582 = vrcp.pop %v5560
      %v5583 = vmul.f32 %v5560, %v5582
      %v5584 = vsub.f32 1.0, %v5583
      %v5585 = vmul.f32 %v5582, %v5584
      %v5586 = vadd.f32 %v5582, %v5585
      %vm5587 = vweird.f32 %v5560
      %vm5588 = vweird.f32 %v5582
      %vm5589 = vmor %vm5587, %vm5588
      %v5590 = vsel %vm5589, %v5582, %v5586
      %v5591 = vand.u32 2147483647, %v5560
      %vm5592 = vcmp.eq.f32.partialorder %v5591, 8.507059e+37
      %v5593 = vand.u32 %v5560, 2147483648
      %v5594 = vor.u32 1.1754944e-38, %v5593
      %v5595 = vsel %vm5592, %v5594, %v5590
      %v5596 = vmul.f32 1.0, %v5595
      %v5597 = vrcp.pop %v5561
      %v5598 = vmul.f32 %v5561, %v5597
      %v5599 = vsub.f32 1.0, %v5598
      %v5600 = vmul.f32 %v5597, %v5599
      %v5601 = vadd.f32 %v5597, %v5600
      %vm5602 = vweird.f32 %v5561
      %vm5603 = vweird.f32 %v5597
      %vm5604 = vmor %vm5602, %vm5603
      %v5605 = vsel %vm5604, %v5597, %v5601
      %v5606 = vand.u32 2147483647, %v5561
      %vm5607 = vcmp.eq.f32.partialorder %v5606, 8.507059e+37
      %v5608 = vand.u32 %v5561, 2147483648
      %v5609 = vor.u32 1.1754944e-38, %v5608
      %v5610 = vsel %vm5607, %v5609, %v5605
      %v5611 = vmul.f32 1.0, %v5610
      %v5612 = vrcp.pop %v5562
      %v5613 = vmul.f32 %v5562, %v5612
      %v5614 = vsub.f32 1.0, %v5613
      %v5615 = vmul.f32 %v5612, %v5614
      %v5616 = vadd.f32 %v5612, %v5615
      %vm5617 = vweird.f32 %v5562
      %vm5618 = vweird.f32 %v5612
      %vm5619 = vmor %vm5617, %vm5618
      %v5620 = vsel %vm5619, %v5612, %v5616
      %v5621 = vand.u32 2147483647, %v5562
      %vm5622 = vcmp.eq.f32.partialorder %v5621, 8.507059e+37
      %v5623 = vand.u32 %v5562, 2147483648
      %v5624 = vor.u32 1.1754944e-38, %v5623
      %v5625 = vsel %vm5622, %v5624, %v5620
      %v5626 = vmul.f32 1.0, %v5625
      %v5627 = vrcp.pop %v5563
      %v5628 = vmul.f32 %v5563, %v5627
      %v5629 = vsub.f32 1.0, %v5628
      %v5630 = vmul.f32 %v5627, %v5629
      %v5631 = vadd.f32 %v5627, %v5630
      %vm5632 = vweird.f32 %v5563
      %vm5633 = vweird.f32 %v5627
      %vm5634 = vmor %vm5632, %vm5633
      %v5635 = vsel %vm5634, %v5627, %v5631
      %v5636 = vand.u32 2147483647, %v5563
      %vm5637 = vcmp.eq.f32.partialorder %v5636, 8.507059e+37
      %v5638 = vand.u32 %v5563, 2147483648
      %v5639 = vor.u32 1.1754944e-38, %v5638
      %v5640 = vsel %vm5637, %v5639, %v5635
      %v5641 = vmul.f32 1.0, %v5640
      %v5642 = vrcp.pop %v5564
      %v5643 = vmul.f32 %v5564, %v5642
      %v5644 = vsub.f32 1.0, %v5643
      %v5645 = vmul.f32 %v5642, %v5644
      %v5646 = vadd.f32 %v5642, %v5645
      %vm5647 = vweird.f32 %v5564
      %vm5648 = vweird.f32 %v5642
      %vm5649 = vmor %vm5647, %vm5648
      %v5650 = vsel %vm5649, %v5642, %v5646
      %v5651 = vand.u32 2147483647, %v5564
      %vm5652 = vcmp.eq.f32.partialorder %v5651, 8.507059e+37
      %v5653 = vand.u32 %v5564, 2147483648
      %v5654 = vor.u32 1.1754944e-38, %v5653
      %v5655 = vsel %vm5652, %v5654, %v5650
      %v5656 = vmul.f32 1.0, %v5655
      %v5657 = vrcp.pop %v5565
      %v5658 = vmul.f32 %v5565, %v5657
      %v5659 = vsub.f32 1.0, %v5658
      %v5660 = vmul.f32 %v5657, %v5659
      %v5661 = vadd.f32 %v5657, %v5660
      %vm5662 = vweird.f32 %v5565
      %vm5663 = vweird.f32 %v5657
      %vm5664 = vmor %vm5662, %vm5663
      %v5665 = vsel %vm5664, %v5657, %v5661
      %v5666 = vand.u32 2147483647, %v5565
      %vm5667 = vcmp.eq.f32.partialorder %v5666, 8.507059e+37
      %v5668 = vand.u32 %v5565, 2147483648
      %v5669 = vor.u32 1.1754944e-38, %v5668
      %v5670 = vsel %vm5667, %v5669, %v5665
      %v5671 = vmul.f32 1.0, %v5670
      %v5672 = vrcp.pop %v5566
      %v5673 = vmul.f32 %v5566, %v5672
      %v5674 = vsub.f32 1.0, %v5673
      %v5675 = vmul.f32 %v5672, %v5674
      %v5676 = vadd.f32 %v5672, %v5675
      %vm5677 = vweird.f32 %v5566
      %vm5678 = vweird.f32 %v5672
      %vm5679 = vmor %vm5677, %vm5678
      %v5680 = vsel %vm5679, %v5672, %v5676
      %v5681 = vand.u32 2147483647, %v5566
      %vm5682 = vcmp.eq.f32.partialorder %v5681, 8.507059e+37
      %v5683 = vand.u32 %v5566, 2147483648
      %v5684 = vor.u32 1.1754944e-38, %v5683
      %v5685 = vsel %vm5682, %v5684, %v5680
      %v5686 = vmul.f32 1.0, %v5685
      %v5687 = vmul.f32 %v5581, 1.0614054
      %v5688 = vmul.f32 %v5596, 1.0614054
      %v5689 = vmul.f32 %v5611, 1.0614054
      %v5690 = vmul.f32 %v5626, 1.0614054
      %v5691 = vmul.f32 %v5641, 1.0614054
      %v5692 = vmul.f32 %v5656, 1.0614054
      %v5693 = vmul.f32 %v5671, 1.0614054
      %v5694 = vmul.f32 %v5686, 1.0614054
      %v5695 = vadd.f32 %v5687, -1.4531521
      %v5696 = vadd.f32 %v5688, -1.4531521
      %v5697 = vadd.f32 %v5689, -1.4531521
      %v5698 = vadd.f32 %v5690, -1.4531521
      %v5699 = vadd.f32 %v5691, -1.4531521
      %v5700 = vadd.f32 %v5692, -1.4531521
      %v5701 = vadd.f32 %v5693, -1.4531521
      %v5702 = vadd.f32 %v5694, -1.4531521
      %v5703 = vmul.f32 %v5695, %v5581
      %v5704 = vmul.f32 %v5696, %v5596
      %v5705 = vmul.f32 %v5697, %v5611
      %v5706 = vmul.f32 %v5698, %v5626
      %v5707 = vmul.f32 %v5699, %v5641
      %v5708 = vmul.f32 %v5700, %v5656
      %v5709 = vmul.f32 %v5701, %v5671
      %v5710 = vmul.f32 %v5702, %v5686
      %v5711 = vadd.f32 %v5703, 1.4214138
      %v5712 = vadd.f32 %v5704, 1.4214138
      %v5713 = vadd.f32 %v5705, 1.4214138
      %v5714 = vadd.f32 %v5706, 1.4214138
      %v5715 = vadd.f32 %v5707, 1.4214138
      %v5716 = vadd.f32 %v5708, 1.4214138
      %v5717 = vadd.f32 %v5709, 1.4214138
      %v5718 = vadd.f32 %v5710, 1.4214138
      %v5719 = vmul.f32 %v5711, %v5581
      %v5720 = vmul.f32 %v5712, %v5596
      %v5721 = vmul.f32 %v5713, %v5611
      %v5722 = vmul.f32 %v5714, %v5626
      %v5723 = vmul.f32 %v5715, %v5641
      %v5724 = vmul.f32 %v5716, %v5656
      %v5725 = vmul.f32 %v5717, %v5671
      %v5726 = vmul.f32 %v5718, %v5686
      %v5727 = vadd.f32 %v5719, -0.28449672
      %v5728 = vadd.f32 %v5720, -0.28449672
      %v5729 = vadd.f32 %v5721, -0.28449672
      %v5730 = vadd.f32 %v5722, -0.28449672
      %v5731 = vadd.f32 %v5723, -0.28449672
      %v5732 = vadd.f32 %v5724, -0.28449672
      %v5733 = vadd.f32 %v5725, -0.28449672
      %v5734 = vadd.f32 %v5726, -0.28449672
      %v5735 = vmul.f32 %v5727, %v5581
      %v5736 = vmul.f32 %v5728, %v5596
      %v5737 = vmul.f32 %v5729, %v5611
      %v5738 = vmul.f32 %v5730, %v5626
      %v5739 = vmul.f32 %v5731, %v5641
      %v5740 = vmul.f32 %v5732, %v5656
      %v5741 = vmul.f32 %v5733, %v5671
      %v5742 = vmul.f32 %v5734, %v5686
      %v5743 = vadd.f32 %v5735, 0.2548296
      %v5744 = vadd.f32 %v5736, 0.2548296
      %v5745 = vadd.f32 %v5737, 0.2548296
      %v5746 = vadd.f32 %v5738, 0.2548296
      %v5747 = vadd.f32 %v5739, 0.2548296
      %v5748 = vadd.f32 %v5740, 0.2548296
      %v5749 = vadd.f32 %v5741, 0.2548296
      %v5750 = vadd.f32 %v5742, 0.2548296
      %v5751 = vmul.f32 %v5743, %v5581
      %v5752 = vmul.f32 %v5744, %v5596
      %v5753 = vmul.f32 %v5745, %v5611
      %v5754 = vmul.f32 %v5746, %v5626
      %v5755 = vmul.f32 %v5747, %v5641
      %v5756 = vmul.f32 %v5748, %v5656
      %v5757 = vmul.f32 %v5749, %v5671
      %v5758 = vmul.f32 %v5750, %v5686
      %v5759 = vsub.f32 0.0, %v5543
      %v5760 = vsub.f32 0.0, %v5544
      %v5761 = vsub.f32 0.0, %v5545
      %v5762 = vsub.f32 0.0, %v5546
      %v5763 = vsub.f32 0.0, %v5547
      %v5764 = vsub.f32 0.0, %v5548
      %v5765 = vsub.f32 0.0, %v5549
      %v5766 = vsub.f32 0.0, %v5550
      %v5767 = vmul.f32 %v5759, %v5543
      %v5768 = vmul.f32 %v5760, %v5544
      %v5769 = vmul.f32 %v5761, %v5545
      %v5770 = vmul.f32 %v5762, %v5546
      %v5771 = vmul.f32 %v5763, %v5547
      %v5772 = vmul.f32 %v5764, %v5548
      %v5773 = vmul.f32 %v5765, %v5549
      %v5774 = vmul.f32 %v5766, %v5550
      %v5775 = vmul.f32 %v5767, 1.442695
      %v5776 = vpow.pop %v5775
      %v5777 = vmul.f32 %v5768, 1.442695
      %v5778 = vpow.pop %v5777
      %v5779 = vmul.f32 %v5769, 1.442695
      %v5780 = vpow.pop %v5779
      %v5781 = vmul.f32 %v5770, 1.442695
      %v5782 = vpow.pop %v5781
      %v5783 = vmul.f32 %v5771, 1.442695
      %v5784 = vpow.pop %v5783
      %v5785 = vmul.f32 %v5772, 1.442695
      %v5786 = vpow.pop %v5785
      %v5787 = vmul.f32 %v5773, 1.442695
      %v5788 = vpow.pop %v5787
      %v5789 = vmul.f32 %v5774, 1.442695
      %v5790 = vpow.pop %v5789
      %v5791 = vmul.f32 %v5751, %v5776
      %v5792 = vmul.f32 %v5752, %v5778
      %v5793 = vmul.f32 %v5753, %v5780
      %v5794 = vmul.f32 %v5754, %v5782
      %v5795 = vmul.f32 %v5755, %v5784
      %v5796 = vmul.f32 %v5756, %v5786
      %v5797 = vmul.f32 %v5757, %v5788
      %v5798 = vmul.f32 %v5758, %v5790
      %v5799 = vsub.f32 1.0, %v5791
      %v5800 = vsub.f32 1.0, %v5792
      %v5801 = vsub.f32 1.0, %v5793
      %v5802 = vsub.f32 1.0, %v5794
      %v5803 = vsub.f32 1.0, %v5795
      %v5804 = vsub.f32 1.0, %v5796
      %v5805 = vsub.f32 1.0, %v5797
      %v5806 = vsub.f32 1.0, %v5798
      %v5807 = vmul.f32 %v5535, %v5799
      %v5808 = vmul.f32 %v5536, %v5800
      %v5809 = vmul.f32 %v5537, %v5801
      %v5810 = vmul.f32 %v5538, %v5802
      %v5811 = vmul.f32 %v5539, %v5803
      %v5812 = vmul.f32 %v5540, %v5804
      %v5813 = vmul.f32 %v5541, %v5805
      %v5814 = vmul.f32 %v5542, %v5806
      %v5815 = vadd.f32 %v5807, 1.0
      %v5816 = vadd.f32 %v5808, 1.0
      %v5817 = vadd.f32 %v5809, 1.0
      %v5818 = vadd.f32 %v5810, 1.0
      %v5819 = vadd.f32 %v5811, 1.0
      %v5820 = vadd.f32 %v5812, 1.0
      %v5821 = vadd.f32 %v5813, 1.0
      %v5822 = vadd.f32 %v5814, 1.0
      %v5823 = vmul.f32 %v5511, %v5815
      %v5824 = vmul.f32 %v5512, %v5816
      %v5825 = vmul.f32 %v5513, %v5817
      %v5826 = vmul.f32 %v5514, %v5818
      %v5827 = vmul.f32 %v5515, %v5819
      %v5828 = vmul.f32 %v5516, %v5820
      %v5829 = vmul.f32 %v5517, %v5821
      %v5830 = vmul.f32 %v5518, %v5822
      %5839 = vrot.lane.b32.xlu0 %v5823, 124
      %v5840 = vpop.permute.xlu0 %5839
      %5841 = vrot.lane.b32.xlu0 %v5824, 124
      %v5842 = vpop.permute.xlu0 %5841
      %5843 = vrot.lane.b32.xlu0 %v5825, 124
      %v5844 = vpop.permute.xlu0 %5843
      %5845 = vrot.lane.b32.xlu0 %v5826, 124
      %v5846 = vpop.permute.xlu0 %5845
      %5847 = vrot.lane.b32.xlu0 %v5827, 124
      %v5848 = vpop.permute.xlu0 %5847
      %5849 = vrot.lane.b32.xlu0 %v5828, 124
      %v5850 = vpop.permute.xlu0 %5849
      %5851 = vrot.lane.b32.xlu0 %v5829, 124
      %v5852 = vpop.permute.xlu0 %5851
      %5853 = vrot.lane.b32.xlu0 %v5830, 124
      %v5854 = vpop.permute.xlu0 %5853
      %v5855 = vsel %vm788, %v5840, %v5842
      %v5856 = vsel %vm788, %v5844, %v5846
      %v5857 = vsel %vm788, %v5848, %v5850
      %v5858 = vsel %vm788, %v5852, %v5854
      %5863 = vst [vmem:[%s635] sm:$0xff] %v5855
      %5864 = vst [vmem:[%s635 + $0x8] sm:$0xff] %v5856
      %5865 = vst [vmem:[%s635 + $0x10] sm:$0xff] %v5857
      %5866 = vst [vmem:[%s635 + $0x18] sm:$0xff] %v5858
      %v5867 = vmul.f32 %v3566, 0.5
      %v5868 = vmul.f32 %v3567, 0.5
      %v5869 = vmul.f32 %v3568, 0.5
      %v5870 = vmul.f32 %v3569, 0.5
      %v5871 = vmul.f32 %v3570, 0.5
      %v5872 = vmul.f32 %v3566, 0.70710677
      %v5873 = vmul.f32 %v3567, 0.70710677
      %v5874 = vmul.f32 %v3568, 0.70710677
      %v5875 = vmul.f32 %v3569, 0.70710677
      %v5876 = vmul.f32 %v3570, 0.70710677
      %vm5877 = vcmp.ge.f32.partialorder %v5872, 0.0
      %vm5878 = vcmp.ge.f32.partialorder %v5873, 0.0
      %vm5879 = vcmp.ge.f32.partialorder %v5874, 0.0
      %vm5880 = vcmp.ge.f32.partialorder %v5875, 0.0
      %vm5881 = vcmp.ge.f32.partialorder %v5876, 0.0
      %v5882 = vsel %vm5877, 1.0, -1.0
      %v5883 = vsel %vm5878, 1.0, -1.0
      %v5884 = vsel %vm5879, 1.0, -1.0
      %v5885 = vsel %vm5880, 1.0, -1.0
      %v5886 = vsel %vm5881, 1.0, -1.0
      %v5887 = vand.u32 2147483647, %v5872
      %v5888 = vand.u32 2147483647, %v5873
      %v5889 = vand.u32 2147483647, %v5874
      %v5890 = vand.u32 2147483647, %v5875
      %v5891 = vand.u32 2147483647, %v5876
      %v5892 = vmul.f32 %v5887, 0.3275911
      %v5893 = vmul.f32 %v5888, 0.3275911
      %v5894 = vmul.f32 %v5889, 0.3275911
      %v5895 = vmul.f32 %v5890, 0.3275911
      %v5896 = vmul.f32 %v5891, 0.3275911
      %v5897 = vadd.f32 %v5892, 1.0
      %v5898 = vadd.f32 %v5893, 1.0
      %v5899 = vadd.f32 %v5894, 1.0
      %v5900 = vadd.f32 %v5895, 1.0
      %v5901 = vadd.f32 %v5896, 1.0
      %v5902 = vrcp.pop %v5897
      %v5903 = vmul.f32 %v5897, %v5902
      %v5904 = vsub.f32 1.0, %v5903
      %v5905 = vmul.f32 %v5902, %v5904
      %v5906 = vadd.f32 %v5902, %v5905
      %vm5907 = vweird.f32 %v5897
      %vm5908 = vweird.f32 %v5902
      %vm5909 = vmor %vm5907, %vm5908
      %v5910 = vsel %vm5909, %v5902, %v5906
      %v5911 = vand.u32 2147483647, %v5897
      %vm5912 = vcmp.eq.f32.partialorder %v5911, 8.507059e+37
      %v5913 = vand.u32 %v5897, 2147483648
      %v5914 = vor.u32 1.1754944e-38, %v5913
      %v5915 = vsel %vm5912, %v5914, %v5910
      %v5916 = vmul.f32 1.0, %v5915
      %v5917 = vrcp.pop %v5898
      %v5918 = vmul.f32 %v5898, %v5917
      %v5919 = vsub.f32 1.0, %v5918
      %v5920 = vmul.f32 %v5917, %v5919
      %v5921 = vadd.f32 %v5917, %v5920
      %vm5922 = vweird.f32 %v5898
      %vm5923 = vweird.f32 %v5917
      %vm5924 = vmor %vm5922, %vm5923
      %v5925 = vsel %vm5924, %v5917, %v5921
      %v5926 = vand.u32 2147483647, %v5898
      %vm5927 = vcmp.eq.f32.partialorder %v5926, 8.507059e+37
      %v5928 = vand.u32 %v5898, 2147483648
      %v5929 = vor.u32 1.1754944e-38, %v5928
      %v5930 = vsel %vm5927, %v5929, %v5925
      %v5931 = vmul.f32 1.0, %v5930
      %v5932 = vrcp.pop %v5899
      %v5933 = vmul.f32 %v5899, %v5932
      %v5934 = vsub.f32 1.0, %v5933
      %v5935 = vmul.f32 %v5932, %v5934
      %v5936 = vadd.f32 %v5932, %v5935
      %vm5937 = vweird.f32 %v5899
      %vm5938 = vweird.f32 %v5932
      %vm5939 = vmor %vm5937, %vm5938
      %v5940 = vsel %vm5939, %v5932, %v5936
      %v5941 = vand.u32 2147483647, %v5899
      %vm5942 = vcmp.eq.f32.partialorder %v5941, 8.507059e+37
      %v5943 = vand.u32 %v5899, 2147483648
      %v5944 = vor.u32 1.1754944e-38, %v5943
      %v5945 = vsel %vm5942, %v5944, %v5940
      %v5946 = vmul.f32 1.0, %v5945
      %v5947 = vrcp.pop %v5900
      %v5948 = vmul.f32 %v5900, %v5947
      %v5949 = vsub.f32 1.0, %v5948
      %v5950 = vmul.f32 %v5947, %v5949
      %v5951 = vadd.f32 %v5947, %v5950
      %vm5952 = vweird.f32 %v5900
      %vm5953 = vweird.f32 %v5947
      %vm5954 = vmor %vm5952, %vm5953
      %v5955 = vsel %vm5954, %v5947, %v5951
      %v5956 = vand.u32 2147483647, %v5900
      %vm5957 = vcmp.eq.f32.partialorder %v5956, 8.507059e+37
      %v5958 = vand.u32 %v5900, 2147483648
      %v5959 = vor.u32 1.1754944e-38, %v5958
      %v5960 = vsel %vm5957, %v5959, %v5955
      %v5961 = vmul.f32 1.0, %v5960
      %v5962 = vrcp.pop %v5901
      %v5963 = vmul.f32 %v5901, %v5962
      %v5964 = vsub.f32 1.0, %v5963
      %v5965 = vmul.f32 %v5962, %v5964
      %v5966 = vadd.f32 %v5962, %v5965
      %vm5967 = vweird.f32 %v5901
      %vm5968 = vweird.f32 %v5962
      %vm5969 = vmor %vm5967, %vm5968
      %v5970 = vsel %vm5969, %v5962, %v5966
      %v5971 = vand.u32 2147483647, %v5901
      %vm5972 = vcmp.eq.f32.partialorder %v5971, 8.507059e+37
      %v5973 = vand.u32 %v5901, 2147483648
      %v5974 = vor.u32 1.1754944e-38, %v5973
      %v5975 = vsel %vm5972, %v5974, %v5970
      %v5976 = vmul.f32 1.0, %v5975
      %v5977 = vmul.f32 %v5916, 1.0614054
      %v5978 = vmul.f32 %v5931, 1.0614054
      %v5979 = vmul.f32 %v5946, 1.0614054
      %v5980 = vmul.f32 %v5961, 1.0614054
      %v5981 = vmul.f32 %v5976, 1.0614054
      %v5982 = vadd.f32 %v5977, -1.4531521
      %v5983 = vadd.f32 %v5978, -1.4531521
      %v5984 = vadd.f32 %v5979, -1.4531521
      %v5985 = vadd.f32 %v5980, -1.4531521
      %v5986 = vadd.f32 %v5981, -1.4531521
      %v5987 = vmul.f32 %v5982, %v5916
      %v5988 = vmul.f32 %v5983, %v5931
      %v5989 = vmul.f32 %v5984, %v5946
      %v5990 = vmul.f32 %v5985, %v5961
      %v5991 = vmul.f32 %v5986, %v5976
      %v5992 = vadd.f32 %v5987, 1.4214138
      %v5993 = vadd.f32 %v5988, 1.4214138
      %v5994 = vadd.f32 %v5989, 1.4214138
      %v5995 = vadd.f32 %v5990, 1.4214138
      %v5996 = vadd.f32 %v5991, 1.4214138
      %v5997 = vmul.f32 %v5992, %v5916
      %v5998 = vmul.f32 %v5993, %v5931
      %v5999 = vmul.f32 %v5994, %v5946
      %v6000 = vmul.f32 %v5995, %v5961
      %v6001 = vmul.f32 %v5996, %v5976
      %v6002 = vadd.f32 %v5997, -0.28449672
      %v6003 = vadd.f32 %v5998, -0.28449672
      %v6004 = vadd.f32 %v5999, -0.28449672
      %v6005 = vadd.f32 %v6000, -0.28449672
      %v6006 = vadd.f32 %v6001, -0.28449672
      %v6007 = vmul.f32 %v6002, %v5916
      %v6008 = vmul.f32 %v6003, %v5931
      %v6009 = vmul.f32 %v6004, %v5946
      %v6010 = vmul.f32 %v6005, %v5961
      %v6011 = vmul.f32 %v6006, %v5976
      %v6012 = vadd.f32 %v6007, 0.2548296
      %v6013 = vadd.f32 %v6008, 0.2548296
      %v6014 = vadd.f32 %v6009, 0.2548296
      %v6015 = vadd.f32 %v6010, 0.2548296
      %v6016 = vadd.f32 %v6011, 0.2548296
      %v6017 = vmul.f32 %v6012, %v5916
      %v6018 = vmul.f32 %v6013, %v5931
      %v6019 = vmul.f32 %v6014, %v5946
      %v6020 = vmul.f32 %v6015, %v5961
      %v6021 = vmul.f32 %v6016, %v5976
      %v6022 = vsub.f32 0.0, %v5887
      %v6023 = vsub.f32 0.0, %v5888
      %v6024 = vsub.f32 0.0, %v5889
      %v6025 = vsub.f32 0.0, %v5890
      %v6026 = vsub.f32 0.0, %v5891
      %v6027 = vmul.f32 %v6022, %v5887
      %v6028 = vmul.f32 %v6023, %v5888
      %v6029 = vmul.f32 %v6024, %v5889
      %v6030 = vmul.f32 %v6025, %v5890
      %v6031 = vmul.f32 %v6026, %v5891
      %v6032 = vmul.f32 %v6027, 1.442695
      %v6033 = vpow.pop %v6032
      %v6034 = vmul.f32 %v6028, 1.442695
      %v6035 = vpow.pop %v6034
      %v6036 = vmul.f32 %v6029, 1.442695
      %v6037 = vpow.pop %v6036
      %v6038 = vmul.f32 %v6030, 1.442695
      %v6039 = vpow.pop %v6038
      %v6040 = vmul.f32 %v6031, 1.442695
      %v6041 = vpow.pop %v6040
      %v6042 = vmul.f32 %v6017, %v6033
      %v6043 = vmul.f32 %v6018, %v6035
      %v6044 = vmul.f32 %v6019, %v6037
      %v6045 = vmul.f32 %v6020, %v6039
      %v6046 = vmul.f32 %v6021, %v6041
      %v6047 = vsub.f32 1.0, %v6042
      %v6048 = vsub.f32 1.0, %v6043
      %v6049 = vsub.f32 1.0, %v6044
      %v6050 = vsub.f32 1.0, %v6045
      %v6051 = vsub.f32 1.0, %v6046
      %v6052 = vmul.f32 %v5882, %v6047
      %v6053 = vmul.f32 %v5883, %v6048
      %v6054 = vmul.f32 %v5884, %v6049
      %v6055 = vmul.f32 %v5885, %v6050
      %v6056 = vmul.f32 %v5886, %v6051
      %v6057 = vadd.f32 %v6052, 1.0
      %v6058 = vadd.f32 %v6053, 1.0
      %v6059 = vadd.f32 %v6054, 1.0
      %v6060 = vadd.f32 %v6055, 1.0
      %v6061 = vadd.f32 %v6056, 1.0
      %v6062 = vmul.f32 %v5867, %v6057
      %v6063 = vmul.f32 %v5868, %v6058
      %v6064 = vmul.f32 %v5869, %v6059
      %v6065 = vmul.f32 %v5870, %v6060
      %v6066 = vmul.f32 %v5871, %v6061
      %6067 = vst [vmem:[%s640 - $0x1] sm:$0xfe] %v6062
      %6068 = vst [vmem:[%s640 + $0x7] sm:$0xff] %v6063
      %6069 = vst [vmem:[%s640 + $0xf] sm:$0xff] %v6064
      %6070 = vst [vmem:[%s640 + $0x17] sm:$0xff] %v6065
      %6071 = vst [vmem:[%s640 + $0x1f] sm:$0x1] %v6066
      %v6072 = vmul.f32 %v5056, 0.5
      %v6073 = vmul.f32 %v5057, 0.5
      %v6074 = vmul.f32 %v5058, 0.5
      %v6075 = vmul.f32 %v5059, 0.5
      %v6076 = vmul.f32 %v5060, 0.5
      %v6077 = vmul.f32 %v5061, 0.5
      %v6078 = vmul.f32 %v5062, 0.5
      %v6079 = vmul.f32 %v5063, 0.5
      %v6080 = vmul.f32 %v5064, 0.5
      %v6081 = vmul.f32 %v5065, 0.5
      %v6082 = vmul.f32 %v5056, 0.70710677
      %v6083 = vmul.f32 %v5057, 0.70710677
      %v6084 = vmul.f32 %v5058, 0.70710677
      %v6085 = vmul.f32 %v5059, 0.70710677
      %v6086 = vmul.f32 %v5060, 0.70710677
      %v6087 = vmul.f32 %v5061, 0.70710677
      %v6088 = vmul.f32 %v5062, 0.70710677
      %v6089 = vmul.f32 %v5063, 0.70710677
      %v6090 = vmul.f32 %v5064, 0.70710677
      %v6091 = vmul.f32 %v5065, 0.70710677
      %vm6092 = vcmp.ge.f32.partialorder %v6082, 0.0
      %vm6093 = vcmp.ge.f32.partialorder %v6083, 0.0
      %vm6094 = vcmp.ge.f32.partialorder %v6084, 0.0
      %vm6095 = vcmp.ge.f32.partialorder %v6085, 0.0
      %vm6096 = vcmp.ge.f32.partialorder %v6086, 0.0
      %vm6097 = vcmp.ge.f32.partialorder %v6087, 0.0
      %vm6098 = vcmp.ge.f32.partialorder %v6088, 0.0
      %vm6099 = vcmp.ge.f32.partialorder %v6089, 0.0
      %vm6100 = vcmp.ge.f32.partialorder %v6090, 0.0
      %vm6101 = vcmp.ge.f32.partialorder %v6091, 0.0
      %v6102 = vsel %vm6092, 1.0, -1.0
      %v6103 = vsel %vm6093, 1.0, -1.0
      %v6104 = vsel %vm6094, 1.0, -1.0
      %v6105 = vsel %vm6095, 1.0, -1.0
      %v6106 = vsel %vm6096, 1.0, -1.0
      %v6107 = vsel %vm6097, 1.0, -1.0
      %v6108 = vsel %vm6098, 1.0, -1.0
      %v6109 = vsel %vm6099, 1.0, -1.0
      %v6110 = vsel %vm6100, 1.0, -1.0
      %v6111 = vsel %vm6101, 1.0, -1.0
      %v6112 = vand.u32 2147483647, %v6082
      %v6113 = vand.u32 2147483647, %v6083
      %v6114 = vand.u32 2147483647, %v6084
      %v6115 = vand.u32 2147483647, %v6085
      %v6116 = vand.u32 2147483647, %v6086
      %v6117 = vand.u32 2147483647, %v6087
      %v6118 = vand.u32 2147483647, %v6088
      %v6119 = vand.u32 2147483647, %v6089
      %v6120 = vand.u32 2147483647, %v6090
      %v6121 = vand.u32 2147483647, %v6091
      %v6122 = vmul.f32 %v6112, 0.3275911
      %v6123 = vmul.f32 %v6113, 0.3275911
      %v6124 = vmul.f32 %v6114, 0.3275911
      %v6125 = vmul.f32 %v6115, 0.3275911
      %v6126 = vmul.f32 %v6116, 0.3275911
      %v6127 = vmul.f32 %v6117, 0.3275911
      %v6128 = vmul.f32 %v6118, 0.3275911
      %v6129 = vmul.f32 %v6119, 0.3275911
      %v6130 = vmul.f32 %v6120, 0.3275911
      %v6131 = vmul.f32 %v6121, 0.3275911
      %v6132 = vadd.f32 %v6122, 1.0
      %v6133 = vadd.f32 %v6123, 1.0
      %v6134 = vadd.f32 %v6124, 1.0
      %v6135 = vadd.f32 %v6125, 1.0
      %v6136 = vadd.f32 %v6126, 1.0
      %v6137 = vadd.f32 %v6127, 1.0
      %v6138 = vadd.f32 %v6128, 1.0
      %v6139 = vadd.f32 %v6129, 1.0
      %v6140 = vadd.f32 %v6130, 1.0
      %v6141 = vadd.f32 %v6131, 1.0
      %v6142 = vrcp.pop %v6132
      %v6143 = vmul.f32 %v6132, %v6142
      %v6144 = vsub.f32 1.0, %v6143
      %v6145 = vmul.f32 %v6142, %v6144
      %v6146 = vadd.f32 %v6142, %v6145
      %vm6147 = vweird.f32 %v6132
      %vm6148 = vweird.f32 %v6142
      %vm6149 = vmor %vm6147, %vm6148
      %v6150 = vsel %vm6149, %v6142, %v6146
      %v6151 = vand.u32 2147483647, %v6132
      %vm6152 = vcmp.eq.f32.partialorder %v6151, 8.507059e+37
      %v6153 = vand.u32 %v6132, 2147483648
      %v6154 = vor.u32 1.1754944e-38, %v6153
      %v6155 = vsel %vm6152, %v6154, %v6150
      %v6156 = vmul.f32 1.0, %v6155
      %v6157 = vrcp.pop %v6133
      %v6158 = vmul.f32 %v6133, %v6157
      %v6159 = vsub.f32 1.0, %v6158
      %v6160 = vmul.f32 %v6157, %v6159
      %v6161 = vadd.f32 %v6157, %v6160
      %vm6162 = vweird.f32 %v6133
      %vm6163 = vweird.f32 %v6157
      %vm6164 = vmor %vm6162, %vm6163
      %v6165 = vsel %vm6164, %v6157, %v6161
      %v6166 = vand.u32 2147483647, %v6133
      %vm6167 = vcmp.eq.f32.partialorder %v6166, 8.507059e+37
      %v6168 = vand.u32 %v6133, 2147483648
      %v6169 = vor.u32 1.1754944e-38, %v6168
      %v6170 = vsel %vm6167, %v6169, %v6165
      %v6171 = vmul.f32 1.0, %v6170
      %v6172 = vrcp.pop %v6134
      %v6173 = vmul.f32 %v6134, %v6172
      %v6174 = vsub.f32 1.0, %v6173
      %v6175 = vmul.f32 %v6172, %v6174
      %v6176 = vadd.f32 %v6172, %v6175
      %vm6177 = vweird.f32 %v6134
      %vm6178 = vweird.f32 %v6172
      %vm6179 = vmor %vm6177, %vm6178
      %v6180 = vsel %vm6179, %v6172, %v6176
      %v6181 = vand.u32 2147483647, %v6134
      %vm6182 = vcmp.eq.f32.partialorder %v6181, 8.507059e+37
      %v6183 = vand.u32 %v6134, 2147483648
      %v6184 = vor.u32 1.1754944e-38, %v6183
      %v6185 = vsel %vm6182, %v6184, %v6180
      %v6186 = vmul.f32 1.0, %v6185
      %v6187 = vrcp.pop %v6135
      %v6188 = vmul.f32 %v6135, %v6187
      %v6189 = vsub.f32 1.0, %v6188
      %v6190 = vmul.f32 %v6187, %v6189
      %v6191 = vadd.f32 %v6187, %v6190
      %vm6192 = vweird.f32 %v6135
      %vm6193 = vweird.f32 %v6187
      %vm6194 = vmor %vm6192, %vm6193
      %v6195 = vsel %vm6194, %v6187, %v6191
      %v6196 = vand.u32 2147483647, %v6135
      %vm6197 = vcmp.eq.f32.partialorder %v6196, 8.507059e+37
      %v6198 = vand.u32 %v6135, 2147483648
      %v6199 = vor.u32 1.1754944e-38, %v6198
      %v6200 = vsel %vm6197, %v6199, %v6195
      %v6201 = vmul.f32 1.0, %v6200
      %v6202 = vrcp.pop %v6136
      %v6203 = vmul.f32 %v6136, %v6202
      %v6204 = vsub.f32 1.0, %v6203
      %v6205 = vmul.f32 %v6202, %v6204
      %v6206 = vadd.f32 %v6202, %v6205
      %vm6207 = vweird.f32 %v6136
      %vm6208 = vweird.f32 %v6202
      %vm6209 = vmor %vm6207, %vm6208
      %v6210 = vsel %vm6209, %v6202, %v6206
      %v6211 = vand.u32 2147483647, %v6136
      %vm6212 = vcmp.eq.f32.partialorder %v6211, 8.507059e+37
      %v6213 = vand.u32 %v6136, 2147483648
      %v6214 = vor.u32 1.1754944e-38, %v6213
      %v6215 = vsel %vm6212, %v6214, %v6210
      %v6216 = vmul.f32 1.0, %v6215
      %v6217 = vrcp.pop %v6137
      %v6218 = vmul.f32 %v6137, %v6217
      %v6219 = vsub.f32 1.0, %v6218
      %v6220 = vmul.f32 %v6217, %v6219
      %v6221 = vadd.f32 %v6217, %v6220
      %vm6222 = vweird.f32 %v6137
      %vm6223 = vweird.f32 %v6217
      %vm6224 = vmor %vm6222, %vm6223
      %v6225 = vsel %vm6224, %v6217, %v6221
      %v6226 = vand.u32 2147483647, %v6137
      %vm6227 = vcmp.eq.f32.partialorder %v6226, 8.507059e+37
      %v6228 = vand.u32 %v6137, 2147483648
      %v6229 = vor.u32 1.1754944e-38, %v6228
      %v6230 = vsel %vm6227, %v6229, %v6225
      %v6231 = vmul.f32 1.0, %v6230
      %v6232 = vrcp.pop %v6138
      %v6233 = vmul.f32 %v6138, %v6232
      %v6234 = vsub.f32 1.0, %v6233
      %v6235 = vmul.f32 %v6232, %v6234
      %v6236 = vadd.f32 %v6232, %v6235
      %vm6237 = vweird.f32 %v6138
      %vm6238 = vweird.f32 %v6232
      %vm6239 = vmor %vm6237, %vm6238
      %v6240 = vsel %vm6239, %v6232, %v6236
      %v6241 = vand.u32 2147483647, %v6138
      %vm6242 = vcmp.eq.f32.partialorder %v6241, 8.507059e+37
      %v6243 = vand.u32 %v6138, 2147483648
      %v6244 = vor.u32 1.1754944e-38, %v6243
      %v6245 = vsel %vm6242, %v6244, %v6240
      %v6246 = vmul.f32 1.0, %v6245
      %v6247 = vrcp.pop %v6139
      %v6248 = vmul.f32 %v6139, %v6247
      %v6249 = vsub.f32 1.0, %v6248
      %v6250 = vmul.f32 %v6247, %v6249
      %v6251 = vadd.f32 %v6247, %v6250
      %vm6252 = vweird.f32 %v6139
      %vm6253 = vweird.f32 %v6247
      %vm6254 = vmor %vm6252, %vm6253
      %v6255 = vsel %vm6254, %v6247, %v6251
      %v6256 = vand.u32 2147483647, %v6139
      %vm6257 = vcmp.eq.f32.partialorder %v6256, 8.507059e+37
      %v6258 = vand.u32 %v6139, 2147483648
      %v6259 = vor.u32 1.1754944e-38, %v6258
      %v6260 = vsel %vm6257, %v6259, %v6255
      %v6261 = vmul.f32 1.0, %v6260
      %v6262 = vrcp.pop %v6140
      %v6263 = vmul.f32 %v6140, %v6262
      %v6264 = vsub.f32 1.0, %v6263
      %v6265 = vmul.f32 %v6262, %v6264
      %v6266 = vadd.f32 %v6262, %v6265
      %vm6267 = vweird.f32 %v6140
      %vm6268 = vweird.f32 %v6262
      %vm6269 = vmor %vm6267, %vm6268
      %v6270 = vsel %vm6269, %v6262, %v6266
      %v6271 = vand.u32 2147483647, %v6140
      %vm6272 = vcmp.eq.f32.partialorder %v6271, 8.507059e+37
      %v6273 = vand.u32 %v6140, 2147483648
      %v6274 = vor.u32 1.1754944e-38, %v6273
      %v6275 = vsel %vm6272, %v6274, %v6270
      %v6276 = vmul.f32 1.0, %v6275
      %v6277 = vrcp.pop %v6141
      %v6278 = vmul.f32 %v6141, %v6277
      %v6279 = vsub.f32 1.0, %v6278
      %v6280 = vmul.f32 %v6277, %v6279
      %v6281 = vadd.f32 %v6277, %v6280
      %vm6282 = vweird.f32 %v6141
      %vm6283 = vweird.f32 %v6277
      %vm6284 = vmor %vm6282, %vm6283
      %v6285 = vsel %vm6284, %v6277, %v6281
      %v6286 = vand.u32 2147483647, %v6141
      %vm6287 = vcmp.eq.f32.partialorder %v6286, 8.507059e+37
      %v6288 = vand.u32 %v6141, 2147483648
      %v6289 = vor.u32 1.1754944e-38, %v6288
      %v6290 = vsel %vm6287, %v6289, %v6285
      %v6291 = vmul.f32 1.0, %v6290
      %v6292 = vmul.f32 %v6156, 1.0614054
      %v6293 = vmul.f32 %v6171, 1.0614054
      %v6294 = vmul.f32 %v6186, 1.0614054
      %v6295 = vmul.f32 %v6201, 1.0614054
      %v6296 = vmul.f32 %v6216, 1.0614054
      %v6297 = vmul.f32 %v6231, 1.0614054
      %v6298 = vmul.f32 %v6246, 1.0614054
      %v6299 = vmul.f32 %v6261, 1.0614054
      %v6300 = vmul.f32 %v6276, 1.0614054
      %v6301 = vmul.f32 %v6291, 1.0614054
      %v6302 = vadd.f32 %v6292, -1.4531521
      %v6303 = vadd.f32 %v6293, -1.4531521
      %v6304 = vadd.f32 %v6294, -1.4531521
      %v6305 = vadd.f32 %v6295, -1.4531521
      %v6306 = vadd.f32 %v6296, -1.4531521
      %v6307 = vadd.f32 %v6297, -1.4531521
      %v6308 = vadd.f32 %v6298, -1.4531521
      %v6309 = vadd.f32 %v6299, -1.4531521
      %v6310 = vadd.f32 %v6300, -1.4531521
      %v6311 = vadd.f32 %v6301, -1.4531521
      %v6312 = vmul.f32 %v6302, %v6156
      %v6313 = vmul.f32 %v6303, %v6171
      %v6314 = vmul.f32 %v6304, %v6186
      %v6315 = vmul.f32 %v6305, %v6201
      %v6316 = vmul.f32 %v6306, %v6216
      %v6317 = vmul.f32 %v6307, %v6231
      %v6318 = vmul.f32 %v6308, %v6246
      %v6319 = vmul.f32 %v6309, %v6261
      %v6320 = vmul.f32 %v6310, %v6276
      %v6321 = vmul.f32 %v6311, %v6291
      %v6322 = vadd.f32 %v6312, 1.4214138
      %v6323 = vadd.f32 %v6313, 1.4214138
      %v6324 = vadd.f32 %v6314, 1.4214138
      %v6325 = vadd.f32 %v6315, 1.4214138
      %v6326 = vadd.f32 %v6316, 1.4214138
      %v6327 = vadd.f32 %v6317, 1.4214138
      %v6328 = vadd.f32 %v6318, 1.4214138
      %v6329 = vadd.f32 %v6319, 1.4214138
      %v6330 = vadd.f32 %v6320, 1.4214138
      %v6331 = vadd.f32 %v6321, 1.4214138
      %v6332 = vmul.f32 %v6322, %v6156
      %v6333 = vmul.f32 %v6323, %v6171
      %v6334 = vmul.f32 %v6324, %v6186
      %v6335 = vmul.f32 %v6325, %v6201
      %v6336 = vmul.f32 %v6326, %v6216
      %v6337 = vmul.f32 %v6327, %v6231
      %v6338 = vmul.f32 %v6328, %v6246
      %v6339 = vmul.f32 %v6329, %v6261
      %v6340 = vmul.f32 %v6330, %v6276
      %v6341 = vmul.f32 %v6331, %v6291
      %v6342 = vadd.f32 %v6332, -0.28449672
      %v6343 = vadd.f32 %v6333, -0.28449672
      %v6344 = vadd.f32 %v6334, -0.28449672
      %v6345 = vadd.f32 %v6335, -0.28449672
      %v6346 = vadd.f32 %v6336, -0.28449672
      %v6347 = vadd.f32 %v6337, -0.28449672
      %v6348 = vadd.f32 %v6338, -0.28449672
      %v6349 = vadd.f32 %v6339, -0.28449672
      %v6350 = vadd.f32 %v6340, -0.28449672
      %v6351 = vadd.f32 %v6341, -0.28449672
      %v6352 = vmul.f32 %v6342, %v6156
      %v6353 = vmul.f32 %v6343, %v6171
      %v6354 = vmul.f32 %v6344, %v6186
      %v6355 = vmul.f32 %v6345, %v6201
      %v6356 = vmul.f32 %v6346, %v6216
      %v6357 = vmul.f32 %v6347, %v6231
      %v6358 = vmul.f32 %v6348, %v6246
      %v6359 = vmul.f32 %v6349, %v6261
      %v6360 = vmul.f32 %v6350, %v6276
      %v6361 = vmul.f32 %v6351, %v6291
      %v6362 = vadd.f32 %v6352, 0.2548296
      %v6363 = vadd.f32 %v6353, 0.2548296
      %v6364 = vadd.f32 %v6354, 0.2548296
      %v6365 = vadd.f32 %v6355, 0.2548296
      %v6366 = vadd.f32 %v6356, 0.2548296
      %v6367 = vadd.f32 %v6357, 0.2548296
      %v6368 = vadd.f32 %v6358, 0.2548296
      %v6369 = vadd.f32 %v6359, 0.2548296
      %v6370 = vadd.f32 %v6360, 0.2548296
      %v6371 = vadd.f32 %v6361, 0.2548296
      %v6372 = vmul.f32 %v6362, %v6156
      %v6373 = vmul.f32 %v6363, %v6171
      %v6374 = vmul.f32 %v6364, %v6186
      %v6375 = vmul.f32 %v6365, %v6201
      %v6376 = vmul.f32 %v6366, %v6216
      %v6377 = vmul.f32 %v6367, %v6231
      %v6378 = vmul.f32 %v6368, %v6246
      %v6379 = vmul.f32 %v6369, %v6261
      %v6380 = vmul.f32 %v6370, %v6276
      %v6381 = vmul.f32 %v6371, %v6291
      %v6382 = vsub.f32 0.0, %v6112
      %v6383 = vsub.f32 0.0, %v6113
      %v6384 = vsub.f32 0.0, %v6114
      %v6385 = vsub.f32 0.0, %v6115
      %v6386 = vsub.f32 0.0, %v6116
      %v6387 = vsub.f32 0.0, %v6117
      %v6388 = vsub.f32 0.0, %v6118
      %v6389 = vsub.f32 0.0, %v6119
      %v6390 = vsub.f32 0.0, %v6120
      %v6391 = vsub.f32 0.0, %v6121
      %v6392 = vmul.f32 %v6382, %v6112
      %v6393 = vmul.f32 %v6383, %v6113
      %v6394 = vmul.f32 %v6384, %v6114
      %v6395 = vmul.f32 %v6385, %v6115
      %v6396 = vmul.f32 %v6386, %v6116
      %v6397 = vmul.f32 %v6387, %v6117
      %v6398 = vmul.f32 %v6388, %v6118
      %v6399 = vmul.f32 %v6389, %v6119
      %v6400 = vmul.f32 %v6390, %v6120
      %v6401 = vmul.f32 %v6391, %v6121
      %v6402 = vmul.f32 %v6392, 1.442695
      %v6403 = vpow.pop %v6402
      %v6404 = vmul.f32 %v6393, 1.442695
      %v6405 = vpow.pop %v6404
      %v6406 = vmul.f32 %v6394, 1.442695
      %v6407 = vpow.pop %v6406
      %v6408 = vmul.f32 %v6395, 1.442695
      %v6409 = vpow.pop %v6408
      %v6410 = vmul.f32 %v6396, 1.442695
      %v6411 = vpow.pop %v6410
      %v6412 = vmul.f32 %v6397, 1.442695
      %v6413 = vpow.pop %v6412
      %v6414 = vmul.f32 %v6398, 1.442695
      %v6415 = vpow.pop %v6414
      %v6416 = vmul.f32 %v6399, 1.442695
      %v6417 = vpow.pop %v6416
      %v6418 = vmul.f32 %v6400, 1.442695
      %v6419 = vpow.pop %v6418
      %v6420 = vmul.f32 %v6401, 1.442695
      %v6421 = vpow.pop %v6420
      %v6422 = vmul.f32 %v6372, %v6403
      %v6423 = vmul.f32 %v6373, %v6405
      %v6424 = vmul.f32 %v6374, %v6407
      %v6425 = vmul.f32 %v6375, %v6409
      %v6426 = vmul.f32 %v6376, %v6411
      %v6427 = vmul.f32 %v6377, %v6413
      %v6428 = vmul.f32 %v6378, %v6415
      %v6429 = vmul.f32 %v6379, %v6417
      %v6430 = vmul.f32 %v6380, %v6419
      %v6431 = vmul.f32 %v6381, %v6421
      %v6432 = vsub.f32 1.0, %v6422
      %v6433 = vsub.f32 1.0, %v6423
      %v6434 = vsub.f32 1.0, %v6424
      %v6435 = vsub.f32 1.0, %v6425
      %v6436 = vsub.f32 1.0, %v6426
      %v6437 = vsub.f32 1.0, %v6427
      %v6438 = vsub.f32 1.0, %v6428
      %v6439 = vsub.f32 1.0, %v6429
      %v6440 = vsub.f32 1.0, %v6430
      %v6441 = vsub.f32 1.0, %v6431
      %v6442 = vmul.f32 %v6102, %v6432
      %v6443 = vmul.f32 %v6103, %v6433
      %v6444 = vmul.f32 %v6104, %v6434
      %v6445 = vmul.f32 %v6105, %v6435
      %v6446 = vmul.f32 %v6106, %v6436
      %v6447 = vmul.f32 %v6107, %v6437
      %v6448 = vmul.f32 %v6108, %v6438
      %v6449 = vmul.f32 %v6109, %v6439
      %v6450 = vmul.f32 %v6110, %v6440
      %v6451 = vmul.f32 %v6111, %v6441
      %v6452 = vadd.f32 %v6442, 1.0
      %v6453 = vadd.f32 %v6443, 1.0
      %v6454 = vadd.f32 %v6444, 1.0
      %v6455 = vadd.f32 %v6445, 1.0
      %v6456 = vadd.f32 %v6446, 1.0
      %v6457 = vadd.f32 %v6447, 1.0
      %v6458 = vadd.f32 %v6448, 1.0
      %v6459 = vadd.f32 %v6449, 1.0
      %v6460 = vadd.f32 %v6450, 1.0
      %v6461 = vadd.f32 %v6451, 1.0
      %v6462 = vmul.f32 %v6072, %v6452
      %v6463 = vmul.f32 %v6073, %v6453
      %v6464 = vmul.f32 %v6074, %v6454
      %v6465 = vmul.f32 %v6075, %v6455
      %v6466 = vmul.f32 %v6076, %v6456
      %v6467 = vmul.f32 %v6077, %v6457
      %v6468 = vmul.f32 %v6078, %v6458
      %v6469 = vmul.f32 %v6079, %v6459
      %v6470 = vmul.f32 %v6080, %v6460
      %v6471 = vmul.f32 %v6081, %v6461
      %6482 = vrot.lane.b32.xlu0 %v6462, 124
      %v6483 = vpop.permute.xlu0 %6482
      %6484 = vrot.lane.b32.xlu0 %v6463, 124
      %v6485 = vpop.permute.xlu0 %6484
      %6486 = vrot.lane.b32.xlu0 %v6464, 124
      %v6487 = vpop.permute.xlu0 %6486
      %6488 = vrot.lane.b32.xlu0 %v6465, 124
      %v6489 = vpop.permute.xlu0 %6488
      %6490 = vrot.lane.b32.xlu0 %v6466, 124
      %v6491 = vpop.permute.xlu0 %6490
      %6492 = vrot.lane.b32.xlu0 %v6467, 124
      %v6493 = vpop.permute.xlu0 %6492
      %6494 = vrot.lane.b32.xlu0 %v6468, 124
      %v6495 = vpop.permute.xlu0 %6494
      %6496 = vrot.lane.b32.xlu0 %v6469, 124
      %v6497 = vpop.permute.xlu0 %6496
      %6498 = vrot.lane.b32.xlu0 %v6470, 124
      %v6499 = vpop.permute.xlu0 %6498
      %6500 = vrot.lane.b32.xlu0 %v6471, 124
      %v6501 = vpop.permute.xlu0 %6500
      %v6502 = vsel %vm788, %v6483, %v6485
      %v6503 = vsel %vm788, %v6487, %v6489
      %v6504 = vsel %vm788, %v6491, %v6493
      %v6505 = vsel %vm788, %v6495, %v6497
      %v6506 = vsel %vm788, %v6499, %v6501
      %6512 = vst [vmem:[%s645 - $0x1] sm:$0xfe] %v6502
      %6513 = vst [vmem:[%s645 + $0x7] sm:$0xff] %v6503
      %6514 = vst [vmem:[%s645 + $0xf] sm:$0xff] %v6504
      %6515 = vst [vmem:[%s645 + $0x17] sm:$0xff] %v6505
      %6516 = vst [vmem:[%s645 + $0x1f] sm:$0x1] %v6506
      %p6517 = scmp.lt.s32.totalorder %s29, 1
      %s6518 = scalar_select %p6517, %s29, 1
      %s6519 = smul.addr %s6518, 4
      %s6520 = smul.addr %s6519, 8
      %s6521 = scalar_lea.vmem %s14, %s6520
      %p6522 = scmp.lt.s32.totalorder %s29, 1
      %s6523 = scalar_select %p6522, %s29, 1
      %s6524 = smul.addr %s6523, 4
      %s6525 = smul.addr %s6524, 8
      %s6526 = scalar_lea.vmem %s15, %s6525
      %p6527 = scmp.lt.s32.totalorder %s29, 1
      %s6528 = scalar_select %p6527, %s29, 1
      %s6529 = smul.addr %s6528, 4
      %s6530 = smul.addr %s6529, 8
      %s6531 = scalar_lea.vmem %s16, %s6530
      %p6532 = scmp.lt.s32.totalorder %s29, 1
      %s6533 = scalar_select %p6532, %s29, 1
      %s6534 = smul.addr %s6533, 4
      %s6535 = smul.addr %s6534, 8
      %s6536 = scalar_lea.vmem %s17, %s6535
      // Predicated region
      $region77: #{dconv_forward.4} parent=75 // pred_check
        %p6537 = pneg %p361
      $region78: #{dconv_forward.4} parent=75 // pred_check_branch
        %6539 = sbr.rel (%p6537) target = $region80
      $region79: #{dconv_forward.4} parent=75 // pred_region
        _
      $region80: #{dconv_forward.4} parent=75 // pred_fallthru
        _
      // Predicated region
      $region81: #{dconv_forward.4} parent=75 // pred_check
        %p6540 = pneg %p387
      $region82: #{dconv_forward.4} parent=75 // pred_check_branch
        %6542 = sbr.rel (%p6540) target = $region84
      $region83: #{dconv_forward.4} parent=75 // pred_region
        _
      $region84: #{dconv_forward.4} parent=75 // pred_fallthru
        _
      // Predicated region
      $region85: #{dconv_forward.4} parent=75 // pred_check
        %p6543 = pneg %p413
      $region86: #{dconv_forward.4} parent=75 // pred_check_branch
        %6545 = sbr.rel (%p6543) target = $region88
      $region87: #{dconv_forward.4} parent=75 // pred_region
        _
      $region88: #{dconv_forward.4} parent=75 // pred_fallthru
        _
      // Predicated region
      $region89: #{dconv_forward.4} parent=75 // pred_check
        %p6546 = pneg %p439
      $region90: #{dconv_forward.4} parent=75 // pred_check_branch
        %6548 = sbr.rel (%p6546) target = $region92
      $region91: #{dconv_forward.4} parent=75 // pred_region
        _
      $region92: #{dconv_forward.4} parent=75 // pred_fallthru
        _
    $region76: #{dconv_forward.4} parent=5 // pred_fallthru
      _
    %p6549 = scmp.le.s32.totalorder 2, %s24
    // Predicated region
    $region93: #{dconv_forward.4} parent=5 // pred_check
      %p6550 = pneg %p6549
    $region94: #{dconv_forward.4} parent=5 // pred_check_branch
      %6552 = sbr.rel (%p6550) target = $region96
    $region95: #{dconv_forward.4} parent=5 // pred_region
      %s6553 = ssub.s32 %s24, 2
      // Predicated region
      $region97: #{dconv_forward.4} parent=95 // pred_check
        %p6554 = pneg %p367
      $region98: #{dconv_forward.4} parent=95 // pred_check_branch
        %6556 = sbr.rel (%p6554) target = $region100
      $region99: #{dconv_forward.4} parent=95 // pred_region
        %p6557 = scmp.lt.s32.totalorder %s30, 1
        %s6558 = scalar_select %p6557, %s30, 1
        %s6559 = smul.addr %s6558, 4
        %s6560 = smul.addr %s6559, 8
        %s6561 = scalar_lea.vmem %s14, %s6560
      $region100: #{dconv_forward.4} parent=95 // pred_fallthru
        _
      // Predicated region
      $region101: #{dconv_forward.4} parent=95 // pred_check
        %p6562 = pneg %p393
      $region102: #{dconv_forward.4} parent=95 // pred_check_branch
        %6564 = sbr.rel (%p6562) target = $region104
      $region103: #{dconv_forward.4} parent=95 // pred_region
        %p6565 = scmp.lt.s32.totalorder %s30, 1
        %s6566 = scalar_select %p6565, %s30, 1
        %s6567 = smul.addr %s6566, 4
        %s6568 = smul.addr %s6567, 8
        %s6569 = scalar_lea.vmem %s15, %s6568
      $region104: #{dconv_forward.4} parent=95 // pred_fallthru
        _
      // Predicated region
      $region105: #{dconv_forward.4} parent=95 // pred_check
        %p6570 = pneg %p419
      $region106: #{dconv_forward.4} parent=95 // pred_check_branch
        %6572 = sbr.rel (%p6570) target = $region108
      $region107: #{dconv_forward.4} parent=95 // pred_region
        %p6573 = scmp.lt.s32.totalorder %s30, 1
        %s6574 = scalar_select %p6573, %s30, 1
        %s6575 = smul.addr %s6574, 4
        %s6576 = smul.addr %s6575, 8
        %s6577 = scalar_lea.vmem %s16, %s6576
      $region108: #{dconv_forward.4} parent=95 // pred_fallthru
        _
      // Predicated region
      $region109: #{dconv_forward.4} parent=95 // pred_check
        %p6578 = pneg %p445
      $region110: #{dconv_forward.4} parent=95 // pred_check_branch
        %6580 = sbr.rel (%p6578) target = $region112
      $region111: #{dconv_forward.4} parent=95 // pred_region
        %p6581 = scmp.lt.s32.totalorder %s30, 1
        %s6582 = scalar_select %p6581, %s30, 1
        %s6583 = smul.addr %s6582, 4
        %s6584 = smul.addr %s6583, 8
        %s6585 = scalar_lea.vmem %s17, %s6584
      $region112: #{dconv_forward.4} parent=95 // pred_fallthru
        _
    $region96: #{dconv_forward.4} parent=5 // pred_fallthru
      _
  $region6: #{dconv_forward.4} parent=0 // loop_footer
    %s28 = sadd.s32 1, %s24
  $region7: #{dconv_forward.4} parent=0 // loop_footer_branch
    %23 = sbr.rel target = $region3
  $region8: #{dconv_forward.4} parent=0 // loop_exit
    _

</llo_original>
